<compile_context>
chip_gen: v7x
topology: tpu7x:2x2x1
jax: 0.10.0
libtpu: 0.0.40
codegen_flags: <defaults>
</compile_context>

<pallas_src>
import functools

import jax
import jax.numpy as jnp
from jax import lax
from jax.experimental import pallas as pl
from jax.experimental.pallas import tpu as pltpu


KSIZES = (1, 3, 5)            # branch kernel sizes
KIM = max(KSIZES)             # im2col width of the layer-1 input (5 taps)
PMAX = KIM // 2               # = 2, max 'same' pad of a single conv
HALO1 = 8                     # sublane-aligned halo for layer-1 rows (>= 2*PMAX, %8==0)
HALO2 = 4                     # halo for layer-2 rows (>= PMAX)
TL_DEFAULT = 512              # L tile target (use 256 on v5e)


# ---------------------------------------------------------------------------
# Fused Pallas kernel: 3 branches x 3 conv+ReLU layers + branch sum
# ---------------------------------------------------------------------------

def _make_fused_kernel(TL: int, L: int):
    E1 = TL + 2 * HALO1        # layer-1 rows computed per tile (aligned)
    E2 = TL + 2 * HALO2        # layer-2 rows computed per tile (aligned)

    def kernel(x_ref, *refs):
        (w11, b11, w12, b12, w13, b13,      # branch 1 (K=1)
         w21, b21, w22, b22, w23, b23,      # branch 2 (K=3)
         w31, b31, w32, b32, w33, b33,      # branch 3 (K=5)
         o_ref, h1, h2) = refs

        lt = pl.program_id(1)
        s = lt * TL                         # global start row of this output tile

        # Local im2col'd input window: padded-input rows [lt*TL, lt*TL + E1),
        # i.e. global rows [s - HALO1, s + TL + HALO1).  Aligned start.
        start = lt * TL
        if TL % 8 == 0:
            start = pl.multiple_of(start, 8)
        x_win = x_ref[0, pl.ds(start, E1), :]          # (E1, KIM*Cin) bf16

        # 'same' zero padding between layers: rows outside [0, L) are zeroed
        # after layers 1 and 2 (that is what the next conv's padding sees).
        r1 = s - HALO1 + lax.broadcasted_iota(jnp.int32, (E1, 1), 0)
        in1 = (r1 >= 0) & (r1 < L)
        r2 = s - HALO2 + lax.broadcasted_iota(jnp.int32, (E2, 1), 0)
        in2 = (r2 >= 0) & (r2 < L)

        out_acc = jnp.zeros((TL, 128), jnp.float32)

        branches = (
            (1, w11, b11, w12, b12, w13, b13),
            (3, w21, b21, w22, b22, w23, b23),
            (5, w31, b31, w32, b32, w33, b33),
        )

        for K, w1, b1, w2, b2, w3, b3 in branches:
            p = K // 2

            # ---- layer 1: Cin -> 512, single im2col matmul (K taps folded
            # into the channel axis by the wrapper) -------------------------
            a1 = jnp.dot(x_win, w1[...], preferred_element_type=jnp.float32)
            a1 = jnp.maximum(a1 + b1[...], 0.0)
            a1 = jnp.where(in1, a1, 0.0)
            h1[...] = a1.astype(h1.dtype)              # (E1, 512), aligned store

            # ---- layer 2: 512 -> 256, per-tap dots on the SAME aligned LHS;
            # shift the narrow f32 outputs instead of the 512-wide bf16 LHS --
            h1v = h1[...]                              # one aligned read
            acc2 = jnp.zeros((E2, 256), jnp.float32)
            for k in range(K):
                yk = jnp.dot(h1v, w2[k], preferred_element_type=jnp.float32)
                off = HALO1 - HALO2 + k - p            # in {2..6}
                acc2 = acc2 + yk[off:off + E2, :]
            a2 = jnp.maximum(acc2 + b2[...], 0.0)
            a2 = jnp.where(in2, a2, 0.0)
            h2[...] = a2.astype(h2.dtype)              # (E2, 256), aligned store

            # ---- layer 3: 256 -> 128, taps packed along N: one matmul,
            # then sum the K row-shifted 128-wide slices ---------------------
            y3 = jnp.dot(h2[...], w3[...], preferred_element_type=jnp.float32)
            a3 = jnp.zeros((TL, 128), jnp.float32)
            for k in range(K):
                off = HALO2 + k - p                    # in {2..6}
                a3 = a3 + y3[off:off + TL, k * 128:(k + 1) * 128]
            a3 = jnp.maximum(a3 + b3[...], 0.0)
            out_acc = out_acc + a3                     # fused add of the 3 branches

        o_ref[0] = out_acc.astype(o_ref.dtype)

    return kernel


# ---------------------------------------------------------------------------
# Wrapper
# ---------------------------------------------------------------------------

@functools.partial(jax.jit, static_argnames=("tile_l",))
def task_shared_forward(params, prot_input, protein_emb=None, datalengths=None,
                        *, tile_l=None):
    """prot_input: (B, L, inputdim). Returns (B, L, 128) float32."""
    B, L, Cin = prot_input.shape

    if tile_l is None:
        TL = min(TL_DEFAULT, L)
        # Keep >= 4 (b, lt) grid points for megacore / 2-TC chips (v7x) when
        # the batch is tiny; trades a little per-step amortization for balance.
        while B * pl.cdiv(L, TL) < 4 and TL >= 128:
            TL //= 2
    else:
        TL = tile_l
    TL = max(1, min(TL, L))
    NLT = pl.cdiv(L, TL)
    Lpad = NLT * TL + 2 * HALO1

    # Wrapper-side im2col of the (small) raw input: channel block d holds
    # x[row + d - 2] (zero outside [0, L)).  Done once, tiny HBM cost.
    x = prot_input.astype(jnp.bfloat16)
    xp = jnp.pad(x, ((0, 0), (PMAX, PMAX), (0, 0)))
    xi = jnp.concatenate([xp[:, d:d + L, :] for d in range(KIM)], axis=-1)
    xpad = jnp.pad(xi, ((0, 0), (HALO1, Lpad - L - HALO1), (0, 0)))

    def _const_spec(a):
        if a.ndim == 2:
            return pl.BlockSpec(a.shape, lambda b, lt: (0, 0))
        return pl.BlockSpec(a.shape, lambda b, lt: (0, 0, 0))

    flat_args = []
    in_specs = [pl.BlockSpec((1, Lpad, KIM * Cin), lambda b, lt: (b, 0, 0))]

    for bi, K in enumerate(KSIZES):
        p = K // 2
        (w1, b1), (w2, b2), (w3, b3) = params[f"branch{bi + 1}"]

        # Layer 1: embed the K taps into the KIM*Cin im2col channel axis
        # (zero rows for taps this branch does not have).
        w1i = jnp.zeros((KIM * Cin, 512), w1.dtype)
        for k in range(K):
            d = k - p + PMAX
            w1i = w1i.at[d * Cin:(d + 1) * Cin, :].set(w1[k])

        # Layer 3: pack the K taps along the output-channel (N) axis.
        w3p = jnp.concatenate([w3[k] for k in range(K)], axis=-1)   # (256, 128*K)

        layer_arrs = [
            w1i.astype(jnp.bfloat16), b1.astype(jnp.float32).reshape(1, -1),
            w2.astype(jnp.bfloat16),  b2.astype(jnp.float32).reshape(1, -1),
            w3p.astype(jnp.bfloat16), b3.astype(jnp.float32).reshape(1, -1),
        ]
        flat_args += layer_arrs
        in_specs += [_const_spec(a) for a in layer_arrs]

    kernel = _make_fused_kernel(TL, L)

    return pl.pallas_call(
        kernel,
        out_shape=jax.ShapeDtypeStruct((B, L, 128), jnp.float32),
        grid=(B, NLT),
        in_specs=in_specs,
        out_specs=pl.BlockSpec((1, TL, 128), lambda b, lt: (b, lt, 0)),
        scratch_shapes=[
            pltpu.VMEM((TL + 2 * HALO1, 512), jnp.bfloat16),   # layer-1 activations
            pltpu.VMEM((TL + 2 * HALO2, 256), jnp.bfloat16),   # layer-2 activations
        ],
        compiler_params=pltpu.CompilerParams(
            dimension_semantics=("parallel", "parallel"),
            vmem_limit_bytes=64 * 1024 * 1024,
        ),
    )(xpad, *flat_args)


# ---------------------------------------------------------------------------
# Parameter setup (deterministic, mimics PyTorch Conv1d default init bounds)
# ---------------------------------------------------------------------------

def init_conv_params(key, K, Cin, Cout, dtype=jnp.float32):
    bound = 1.0 / jnp.sqrt(float(Cin * K))
    kw, kb = jax.random.split(key)
    # Stored in kernel layout (K, Cin, Cout); PyTorch stores (Cout, Cin, K).
    w = jax.random.uniform(kw, (K, Cin, Cout), dtype, minval=-bound, maxval=bound)
    b = jax.random.uniform(kb, (Cout,), dtype, minval=-bound, maxval=bound)
    return w, b


def init_task_shared_params(key, inputdim):
    params = {}
    for branch_idx, K in enumerate(KSIZES):
        layer_dims = [(inputdim, 512), (512, 256), (256, 128)]
        layers = []
        for (cin, cout) in layer_dims:
            key, sub = jax.random.split(key)
            layers.append(init_conv_params(sub, K, cin, cout))
        params[f"branch{branch_idx + 1}"] = layers
    return params


# ---------------------------------------------------------------------------
# Pure-JAX reference with the same bf16-in / f32-accumulate quantization
# ---------------------------------------------------------------------------

def _forward_ref(params, prot_input):
    x0 = prot_input.astype(jnp.bfloat16)
    branch_outs = []
    for bi in range(3):
        h = x0
        y = None
        for (w, b) in params[f"branch{bi + 1}"]:
            K = w.shape[0]
            Lx = h.shape[1]
            pad = K // 2
            hp = jnp.pad(h, ((0, 0), (pad, pad), (0, 0)))
            wb = w.astype(jnp.bfloat16)
            acc = jnp.zeros((h.shape[0], Lx, w.shape[2]), jnp.float32)
            for k in range(K):
                acc = acc + jnp.einsum("blc,cd->bld", hp[:, k:k + Lx, :], wb[k],
                                       preferred_element_type=jnp.float32)
            y = jnp.maximum(acc + b.astype(jnp.float32)[None, None, :], 0.0)
            h = y.astype(jnp.bfloat16)      # matches kernel's bf16 VMEM scratch
        branch_outs.append(y)
    return branch_outs[0] + branch_outs[1] + branch_outs[2]


# ---------------------------------------------------------------------------
# Main
# ---------------------------------------------------------------------------

if __name__ == "__main__":
    B, L, INPUTDIM = 2, 16, 8

    key = jax.random.PRNGKey(0)
    key_params, key_x, key_emb = jax.random.split(key, 3)

    params = init_task_shared_params(key_params, INPUTDIM)

    prot_input = jax.random.normal(key_x, (B, L, INPUTDIM), dtype=jnp.float32)
    protein_emb = jax.random.normal(key_emb, (B, 32), dtype=jnp.float32)  # unused
    datalengths = jnp.full((B,), L, dtype=jnp.int32)                       # unused

    ref = _forward_ref(params, prot_input)

    # Multi-tile path (tile_l=8 < L): exercises halo recompute + aligned windows.
    out = task_shared_forward(params, prot_input, protein_emb, datalengths, tile_l=8)
    out = jax.block_until_ready(out)
    assert out.shape == (B, L, 128), out.shape
    assert jnp.allclose(out, ref, atol=1e-2, rtol=1e-2), "mismatch (multi-tile)"

    # Default-TL single-tile path.
    out_d = jax.block_until_ready(task_shared_forward(params, prot_input))
    assert jnp.allclose(out_d, ref, atol=1e-2, rtol=1e-2), "mismatch (default tile)"

    # Ragged last tile (L not a multiple of TL) — review correctness concern.
    Lr = 13
    prot_r = prot_input[:, :Lr, :]
    out_r = jax.block_until_ready(task_shared_forward(params, prot_r, tile_l=8))
    ref_r = _forward_ref(params, prot_r)
    assert out_r.shape == (B, Lr, 128), out_r.shape
    assert jnp.allclose(out_r, ref_r, atol=1e-2, rtol=1e-2), "mismatch (ragged tile)"

    print("KERNEL_OK")
</pallas_src>

<mosaic_0001>
module attributes {stable_mosaic.version = 11 : i64} {
  func.func @kernel(%arg0: i32, %arg1: i32, %arg2: memref<1x32x40xbf16, #tpu.memory_space<vmem>>, %arg3: memref<40x512xbf16, #tpu.memory_space<vmem>>, %arg4: memref<1x512xf32, #tpu.memory_space<vmem>>, %arg5: memref<1x512x256xbf16, #tpu.memory_space<vmem>>, %arg6: memref<1x256xf32, #tpu.memory_space<vmem>>, %arg7: memref<256x128xbf16, #tpu.memory_space<vmem>>, %arg8: memref<1x128xf32, #tpu.memory_space<vmem>>, %arg9: memref<40x512xbf16, #tpu.memory_space<vmem>>, %arg10: memref<1x512xf32, #tpu.memory_space<vmem>>, %arg11: memref<3x512x256xbf16, #tpu.memory_space<vmem>>, %arg12: memref<1x256xf32, #tpu.memory_space<vmem>>, %arg13: memref<256x384xbf16, #tpu.memory_space<vmem>>, %arg14: memref<1x128xf32, #tpu.memory_space<vmem>>, %arg15: memref<40x512xbf16, #tpu.memory_space<vmem>>, %arg16: memref<1x512xf32, #tpu.memory_space<vmem>>, %arg17: memref<5x512x256xbf16, #tpu.memory_space<vmem>>, %arg18: memref<1x256xf32, #tpu.memory_space<vmem>>, %arg19: memref<256x640xbf16, #tpu.memory_space<vmem>>, %arg20: memref<1x128xf32, #tpu.memory_space<vmem>>, %arg21: memref<1x8x128xf32, #tpu.memory_space<vmem>>, %arg22: memref<24x512xbf16, #tpu.memory_space<vmem>>, %arg23: memref<16x256xbf16, #tpu.memory_space<vmem>>) attributes {dimension_semantics = [#tpu.dimension_semantics<parallel>, #tpu.dimension_semantics<parallel>], iteration_bounds = array<i64: 2, 2>, scalar_prefetch = 0 : i64, scratch_operands = 2 : i64, tpu.core_type = #tpu.core_type<tc>, window_params = [{transform_indices = @transform_0, window_bounds = array<i64: 1, 32, 40>}, {pipeline_mode = #tpu.pipeline_mode<synchronous>, transform_indices = @transform_1, window_bounds = array<i64: 40, 512>}, {pipeline_mode = #tpu.pipeline_mode<synchronous>, transform_indices = @transform_2, window_bounds = array<i64: 1, 512>}, {pipeline_mode = #tpu.pipeline_mode<synchronous>, transform_indices = @transform_3, window_bounds = array<i64: 1, 512, 256>}, {pipeline_mode = #tpu.pipeline_mode<synchronous>, transform_indices = @transform_4, window_bounds = array<i64: 1, 256>}, {pipeline_mode = #tpu.pipeline_mode<synchronous>, transform_indices = @transform_5, window_bounds = array<i64: 256, 128>}, {pipeline_mode = #tpu.pipeline_mode<synchronous>, transform_indices = @transform_6, window_bounds = array<i64: 1, 128>}, {pipeline_mode = #tpu.pipeline_mode<synchronous>, transform_indices = @transform_7, window_bounds = array<i64: 40, 512>}, {pipeline_mode = #tpu.pipeline_mode<synchronous>, transform_indices = @transform_8, window_bounds = array<i64: 1, 512>}, {pipeline_mode = #tpu.pipeline_mode<synchronous>, transform_indices = @transform_9, window_bounds = array<i64: 3, 512, 256>}, {pipeline_mode = #tpu.pipeline_mode<synchronous>, transform_indices = @transform_10, window_bounds = array<i64: 1, 256>}, {pipeline_mode = #tpu.pipeline_mode<synchronous>, transform_indices = @transform_11, window_bounds = array<i64: 256, 384>}, {pipeline_mode = #tpu.pipeline_mode<synchronous>, transform_indices = @transform_12, window_bounds = array<i64: 1, 128>}, {pipeline_mode = #tpu.pipeline_mode<synchronous>, transform_indices = @transform_13, window_bounds = array<i64: 40, 512>}, {pipeline_mode = #tpu.pipeline_mode<synchronous>, transform_indices = @transform_14, window_bounds = array<i64: 1, 512>}, {pipeline_mode = #tpu.pipeline_mode<synchronous>, transform_indices = @transform_15, window_bounds = array<i64: 5, 512, 256>}, {pipeline_mode = #tpu.pipeline_mode<synchronous>, transform_indices = @transform_16, window_bounds = array<i64: 1, 256>}, {pipeline_mode = #tpu.pipeline_mode<synchronous>, transform_indices = @transform_17, window_bounds = array<i64: 256, 640>}, {pipeline_mode = #tpu.pipeline_mode<synchronous>, transform_indices = @transform_18, window_bounds = array<i64: 1, 128>}, {transform_indices = @transform_19, window_bounds = array<i64: 1, 8, 128>}]} {
    %c8_i32 = arith.constant 8 : i32
    %0 = arith.muli %arg1, %c8_i32 : i32
    %c8_i32_0 = arith.constant 8 : i32
    %1 = arith.muli %arg1, %c8_i32_0 : i32
    %2 = tpu.assume_multiple %1, 8 : i32
    %c0 = arith.constant 0 : index
    %3 = arith.index_cast %2 : i32 to index
    %c0_1 = arith.constant 0 : index
    %4 = vector.load %arg2[%c0, %3, %c0_1] : memref<1x32x40xbf16, #tpu.memory_space<vmem>>, vector<1x24x40xbf16>
    %5 = vector.shape_cast %4 : vector<1x24x40xbf16> to vector<24x40xbf16>
    %c8_i32_2 = arith.constant 8 : i32
    %6 = arith.subi %0, %c8_i32_2 : i32
    %7 = tpu.iota {dimensions = array<i32: 0>} : vector<24x1xi32>
    %8 = vector.broadcast %6 : i32 to vector<24x1xi32>
    %9 = arith.addi %8, %7 : vector<24x1xi32>
    %c0_i32 = arith.constant 0 : i32
    %10 = vector.broadcast %c0_i32 : i32 to vector<24x1xi32>
    %11 = arith.cmpi sge, %9, %10 : vector<24x1xi32>
    %c16_i32 = arith.constant 16 : i32
    %12 = vector.broadcast %c16_i32 : i32 to vector<24x1xi32>
    %13 = arith.cmpi slt, %9, %12 : vector<24x1xi32>
    %14 = arith.andi %11, %13 : vector<24x1xi1>
    %c4_i32 = arith.constant 4 : i32
    %15 = arith.subi %0, %c4_i32 : i32
    %16 = tpu.iota {dimensions = array<i32: 0>} : vector<16x1xi32>
    %17 = vector.broadcast %15 : i32 to vector<16x1xi32>
    %18 = arith.addi %17, %16 : vector<16x1xi32>
    %c0_i32_3 = arith.constant 0 : i32
    %19 = vector.broadcast %c0_i32_3 : i32 to vector<16x1xi32>
    %20 = arith.cmpi sge, %18, %19 : vector<16x1xi32>
    %c16_i32_4 = arith.constant 16 : i32
    %21 = vector.broadcast %c16_i32_4 : i32 to vector<16x1xi32>
    %22 = arith.cmpi slt, %18, %21 : vector<16x1xi32>
    %23 = arith.andi %20, %22 : vector<16x1xi1>
    %cst = arith.constant 0.000000e+00 : f32
    %24 = vector.broadcast %cst : f32 to vector<8x128xf32>
    %c0_5 = arith.constant 0 : index
    %c0_6 = arith.constant 0 : index
    %25 = vector.load %arg3[%c0_5, %c0_6] : memref<40x512xbf16, #tpu.memory_space<vmem>>, vector<40x512xbf16>
    %cst_7 = arith.constant dense<0.000000e+00> : vector<24x512xf32>
    %26 = tpu.matmul %5, %25, %cst_7 {dimension_numbers = #tpu.dot_dimension_numbers<[1], [0], [0], [1], [0, 0, 1, 1], [], []>} : vector<24x40xbf16>, vector<40x512xbf16>, vector<24x512xf32> -> vector<24x512xf32>
    %c0_8 = arith.constant 0 : index
    %c0_9 = arith.constant 0 : index
    %27 = vector.load %arg4[%c0_8, %c0_9] : memref<1x512xf32, #tpu.memory_space<vmem>>, vector<1x512xf32>
    %28 = vector.broadcast %27 : vector<1x512xf32> to vector<24x512xf32>
    %29 = arith.addf %26, %28 : vector<24x512xf32>
    %cst_10 = arith.constant 0.000000e+00 : f32
    %30 = vector.broadcast %cst_10 : f32 to vector<24x512xf32>
    %31 = arith.maximumf %29, %30 : vector<24x512xf32>
    %cst_11 = arith.constant 0.000000e+00 : f32
    %32 = vector.shape_cast %14 : vector<24x1xi1> to vector<24x1xi1>
    %33 = vector.broadcast %32 : vector<24x1xi1> to vector<24x512xi1>
    %34 = vector.broadcast %cst_11 : f32 to vector<24x512xf32>
    %35 = arith.select %33, %31, %34 : vector<24x512xi1>, vector<24x512xf32>
    %36 = arith.truncf %35 : vector<24x512xf32> to vector<24x512xbf16>
    %c0_12 = arith.constant 0 : index
    %c0_13 = arith.constant 0 : index
    %37 = vector.load %arg22[%c0_12, %c0_13] : memref<24x512xbf16, #tpu.memory_space<vmem>>, vector<24x512xbf16>
    tpu.vector_store %arg22[%c0_12, %c0_13], %36 {strides = array<i32>} : memref<24x512xbf16, #tpu.memory_space<vmem>>, vector<24x512xbf16>,
    %c0_14 = arith.constant 0 : index
    %c0_15 = arith.constant 0 : index
    %38 = vector.load %arg22[%c0_14, %c0_15] : memref<24x512xbf16, #tpu.memory_space<vmem>>, vector<24x512xbf16>
    %cst_16 = arith.constant 0.000000e+00 : f32
    %39 = vector.broadcast %cst_16 : f32 to vector<16x256xf32>
    %c0_17 = arith.constant 0 : index
    %c0_18 = arith.constant 0 : index
    %c0_19 = arith.constant 0 : index
    %40 = vector.load %arg5[%c0_17, %c0_18, %c0_19] : memref<1x512x256xbf16, #tpu.memory_space<vmem>>, vector<1x512x256xbf16>
    %41 = vector.shape_cast %40 : vector<1x512x256xbf16> to vector<512x256xbf16>
    %cst_20 = arith.constant dense<0.000000e+00> : vector<24x256xf32>
    %42 = tpu.matmul %38, %41, %cst_20 {dimension_numbers = #tpu.dot_dimension_numbers<[1], [0], [0], [1], [0, 0, 1, 1], [], []>} : vector<24x512xbf16>, vector<512x256xbf16>, vector<24x256xf32> -> vector<24x256xf32>
    %43 = vector.extract_strided_slice %42 {offsets = [4, 0], sizes = [16, 256], strides = [1, 1]} : vector<24x256xf32> to vector<16x256xf32>
    %44 = arith.addf %39, %43 : vector<16x256xf32>
    %c0_21 = arith.constant 0 : index
    %c0_22 = arith.constant 0 : index
    %45 = vector.load %arg6[%c0_21, %c0_22] : memref<1x256xf32, #tpu.memory_space<vmem>>, vector<1x256xf32>
    %46 = vector.broadcast %45 : vector<1x256xf32> to vector<16x256xf32>
    %47 = arith.addf %44, %46 : vector<16x256xf32>
    %cst_23 = arith.constant 0.000000e+00 : f32
    %48 = vector.broadcast %cst_23 : f32 to vector<16x256xf32>
    %49 = arith.maximumf %47, %48 : vector<16x256xf32>
    %cst_24 = arith.constant 0.000000e+00 : f32
    %50 = vector.shape_cast %23 : vector<16x1xi1> to vector<16x1xi1>
    %51 = vector.broadcast %50 : vector<16x1xi1> to vector<16x256xi1>
    %52 = vector.broadcast %cst_24 : f32 to vector<16x256xf32>
    %53 = arith.select %51, %49, %52 : vector<16x256xi1>, vector<16x256xf32>
    %54 = arith.truncf %53 : vector<16x256xf32> to vector<16x256xbf16>
    %c0_25 = arith.constant 0 : index
    %c0_26 = arith.constant 0 : index
    %55 = vector.load %arg23[%c0_25, %c0_26] : memref<16x256xbf16, #tpu.memory_space<vmem>>, vector<16x256xbf16>
    tpu.vector_store %arg23[%c0_25, %c0_26], %54 {strides = array<i32>} : memref<16x256xbf16, #tpu.memory_space<vmem>>, vector<16x256xbf16>,
    %c0_27 = arith.constant 0 : index
    %c0_28 = arith.constant 0 : index
    %56 = vector.load %arg23[%c0_27, %c0_28] : memref<16x256xbf16, #tpu.memory_space<vmem>>, vector<16x256xbf16>
    %c0_29 = arith.constant 0 : index
    %c0_30 = arith.constant 0 : index
    %57 = vector.load %arg7[%c0_29, %c0_30] : memref<256x128xbf16, #tpu.memory_space<vmem>>, vector<256x128xbf16>
    %cst_31 = arith.constant dense<0.000000e+00> : vector<16x128xf32>
    %58 = tpu.matmul %56, %57, %cst_31 {dimension_numbers = #tpu.dot_dimension_numbers<[1], [0], [0], [1], [0, 0, 1, 1], [], []>} : vector<16x256xbf16>, vector<256x128xbf16>, vector<16x128xf32> -> vector<16x128xf32>
    %cst_32 = arith.constant 0.000000e+00 : f32
    %59 = vector.broadcast %cst_32 : f32 to vector<8x128xf32>
    %60 = vector.extract_strided_slice %58 {offsets = [4, 0], sizes = [8, 128], strides = [1, 1]} : vector<16x128xf32> to vector<8x128xf32>
    %61 = arith.addf %59, %60 : vector<8x128xf32>
    %c0_33 = arith.constant 0 : index
    %c0_34 = arith.constant 0 : index
    %62 = vector.load %arg8[%c0_33, %c0_34] : memref<1x128xf32, #tpu.memory_space<vmem>>, vector<1x128xf32>
    %63 = vector.broadcast %62 : vector<1x128xf32> to vector<8x128xf32>
    %64 = arith.addf %61, %63 : vector<8x128xf32>
    %cst_35 = arith.constant 0.000000e+00 : f32
    %65 = vector.broadcast %cst_35 : f32 to vector<8x128xf32>
    %66 = arith.maximumf %64, %65 : vector<8x128xf32>
    %67 = arith.addf %24, %66 : vector<8x128xf32>
    %c0_36 = arith.constant 0 : index
    %c0_37 = arith.constant 0 : index
    %68 = vector.load %arg9[%c0_36, %c0_37] : memref<40x512xbf16, #tpu.memory_space<vmem>>, vector<40x512xbf16>
    %cst_38 = arith.constant dense<0.000000e+00> : vector<24x512xf32>
    %69 = tpu.matmul %5, %68, %cst_38 {dimension_numbers = #tpu.dot_dimension_numbers<[1], [0], [0], [1], [0, 0, 1, 1], [], []>} : vector<24x40xbf16>, vector<40x512xbf16>, vector<24x512xf32> -> vector<24x512xf32>
    %c0_39 = arith.constant 0 : index
    %c0_40 = arith.constant 0 : index
    %70 = vector.load %arg10[%c0_39, %c0_40] : memref<1x512xf32, #tpu.memory_space<vmem>>, vector<1x512xf32>
    %71 = vector.broadcast %70 : vector<1x512xf32> to vector<24x512xf32>
    %72 = arith.addf %69, %71 : vector<24x512xf32>
    %cst_41 = arith.constant 0.000000e+00 : f32
    %73 = vector.broadcast %cst_41 : f32 to vector<24x512xf32>
    %74 = arith.maximumf %72, %73 : vector<24x512xf32>
    %cst_42 = arith.constant 0.000000e+00 : f32
    %75 = vector.shape_cast %14 : vector<24x1xi1> to vector<24x1xi1>
    %76 = vector.broadcast %75 : vector<24x1xi1> to vector<24x512xi1>
    %77 = vector.broadcast %cst_42 : f32 to vector<24x512xf32>
    %78 = arith.select %76, %74, %77 : vector<24x512xi1>, vector<24x512xf32>
    %79 = arith.truncf %78 : vector<24x512xf32> to vector<24x512xbf16>
    %c0_43 = arith.constant 0 : index
    %c0_44 = arith.constant 0 : index
    %80 = vector.load %arg22[%c0_43, %c0_44] : memref<24x512xbf16, #tpu.memory_space<vmem>>, vector<24x512xbf16>
    tpu.vector_store %arg22[%c0_43, %c0_44], %79 {strides = array<i32>} : memref<24x512xbf16, #tpu.memory_space<vmem>>, vector<24x512xbf16>,
    %c0_45 = arith.constant 0 : index
    %c0_46 = arith.constant 0 : index
    %81 = vector.load %arg22[%c0_45, %c0_46] : memref<24x512xbf16, #tpu.memory_space<vmem>>, vector<24x512xbf16>
    %cst_47 = arith.constant 0.000000e+00 : f32
    %82 = vector.broadcast %cst_47 : f32 to vector<16x256xf32>
    %c0_48 = arith.constant 0 : index
    %c0_49 = arith.constant 0 : index
    %c0_50 = arith.constant 0 : index
    %83 = vector.load %arg11[%c0_48, %c0_49, %c0_50] : memref<3x512x256xbf16, #tpu.memory_space<vmem>>, vector<1x512x256xbf16>
    %84 = vector.shape_cast %83 : vector<1x512x256xbf16> to vector<512x256xbf16>
    %cst_51 = arith.constant dense<0.000000e+00> : vector<24x256xf32>
    %85 = tpu.matmul %81, %84, %cst_51 {dimension_numbers = #tpu.dot_dimension_numbers<[1], [0], [0], [1], [0, 0, 1, 1], [], []>} : vector<24x512xbf16>, vector<512x256xbf16>, vector<24x256xf32> -> vector<24x256xf32>
    %86 = vector.extract_strided_slice %85 {offsets = [3, 0], sizes = [16, 256], strides = [1, 1]} : vector<24x256xf32> to vector<16x256xf32>
    %87 = arith.addf %82, %86 : vector<16x256xf32>
    %c1 = arith.constant 1 : index
    %c0_52 = arith.constant 0 : index
    %c0_53 = arith.constant 0 : index
    %88 = vector.load %arg11[%c1, %c0_52, %c0_53] : memref<3x512x256xbf16, #tpu.memory_space<vmem>>, vector<1x512x256xbf16>
    %89 = vector.shape_cast %88 : vector<1x512x256xbf16> to vector<512x256xbf16>
    %cst_54 = arith.constant dense<0.000000e+00> : vector<24x256xf32>
    %90 = tpu.matmul %81, %89, %cst_54 {dimension_numbers = #tpu.dot_dimension_numbers<[1], [0], [0], [1], [0, 0, 1, 1], [], []>} : vector<24x512xbf16>, vector<512x256xbf16>, vector<24x256xf32> -> vector<24x256xf32>
    %91 = vector.extract_strided_slice %90 {offsets = [4, 0], sizes = [16, 256], strides = [1, 1]} : vector<24x256xf32> to vector<16x256xf32>
    %92 = arith.addf %87, %91 : vector<16x256xf32>
    %c2 = arith.constant 2 : index
    %c0_55 = arith.constant 0 : index
    %c0_56 = arith.constant 0 : index
    %93 = vector.load %arg11[%c2, %c0_55, %c0_56] : memref<3x512x256xbf16, #tpu.memory_space<vmem>>, vector<1x512x256xbf16>
    %94 = vector.shape_cast %93 : vector<1x512x256xbf16> to vector<512x256xbf16>
    %cst_57 = arith.constant dense<0.000000e+00> : vector<24x256xf32>
    %95 = tpu.matmul %81, %94, %cst_57 {dimension_numbers = #tpu.dot_dimension_numbers<[1], [0], [0], [1], [0, 0, 1, 1], [], []>} : vector<24x512xbf16>, vector<512x256xbf16>, vector<24x256xf32> -> vector<24x256xf32>
    %96 = vector.extract_strided_slice %95 {offsets = [5, 0], sizes = [16, 256], strides = [1, 1]} : vector<24x256xf32> to vector<16x256xf32>
    %97 = arith.addf %92, %96 : vector<16x256xf32>
    %c0_58 = arith.constant 0 : index
    %c0_59 = arith.constant 0 : index
    %98 = vector.load %arg12[%c0_58, %c0_59] : memref<1x256xf32, #tpu.memory_space<vmem>>, vector<1x256xf32>
    %99 = vector.broadcast %98 : vector<1x256xf32> to vector<16x256xf32>
    %100 = arith.addf %97, %99 : vector<16x256xf32>
    %cst_60 = arith.constant 0.000000e+00 : f32
    %101 = vector.broadcast %cst_60 : f32 to vector<16x256xf32>
    %102 = arith.maximumf %100, %101 : vector<16x256xf32>
    %cst_61 = arith.constant 0.000000e+00 : f32
    %103 = vector.shape_cast %23 : vector<16x1xi1> to vector<16x1xi1>
    %104 = vector.broadcast %103 : vector<16x1xi1> to vector<16x256xi1>
    %105 = vector.broadcast %cst_61 : f32 to vector<16x256xf32>
    %106 = arith.select %104, %102, %105 : vector<16x256xi1>, vector<16x256xf32>
    %107 = arith.truncf %106 : vector<16x256xf32> to vector<16x256xbf16>
    %c0_62 = arith.constant 0 : index
    %c0_63 = arith.constant 0 : index
    %108 = vector.load %arg23[%c0_62, %c0_63] : memref<16x256xbf16, #tpu.memory_space<vmem>>, vector<16x256xbf16>
    tpu.vector_store %arg23[%c0_62, %c0_63], %107 {strides = array<i32>} : memref<16x256xbf16, #tpu.memory_space<vmem>>, vector<16x256xbf16>,
    %c0_64 = arith.constant 0 : index
    %c0_65 = arith.constant 0 : index
    %109 = vector.load %arg23[%c0_64, %c0_65] : memref<16x256xbf16, #tpu.memory_space<vmem>>, vector<16x256xbf16>
    %c0_66 = arith.constant 0 : index
    %c0_67 = arith.constant 0 : index
    %110 = vector.load %arg13[%c0_66, %c0_67] : memref<256x384xbf16, #tpu.memory_space<vmem>>, vector<256x384xbf16>
    %cst_68 = arith.constant dense<0.000000e+00> : vector<16x384xf32>
    %111 = tpu.matmul %109, %110, %cst_68 {dimension_numbers = #tpu.dot_dimension_numbers<[1], [0], [0], [1], [0, 0, 1, 1], [], []>} : vector<16x256xbf16>, vector<256x384xbf16>, vector<16x384xf32> -> vector<16x384xf32>
    %cst_69 = arith.constant 0.000000e+00 : f32
    %112 = vector.broadcast %cst_69 : f32 to vector<8x128xf32>
    %113 = vector.extract_strided_slice %111 {offsets = [3, 0], sizes = [8, 128], strides = [1, 1]} : vector<16x384xf32> to vector<8x128xf32>
    %114 = arith.addf %112, %113 : vector<8x128xf32>
    %115 = vector.extract_strided_slice %111 {offsets = [4, 128], sizes = [8, 128], strides = [1, 1]} : vector<16x384xf32> to vector<8x128xf32>
    %116 = arith.addf %114, %115 : vector<8x128xf32>
    %117 = vector.extract_strided_slice %111 {offsets = [5, 256], sizes = [8, 128], strides = [1, 1]} : vector<16x384xf32> to vector<8x128xf32>
    %118 = arith.addf %116, %117 : vector<8x128xf32>
    %c0_70 = arith.constant 0 : index
    %c0_71 = arith.constant 0 : index
    %119 = vector.load %arg14[%c0_70, %c0_71] : memref<1x128xf32, #tpu.memory_space<vmem>>, vector<1x128xf32>
    %120 = vector.broadcast %119 : vector<1x128xf32> to vector<8x128xf32>
    %121 = arith.addf %118, %120 : vector<8x128xf32>
    %cst_72 = arith.constant 0.000000e+00 : f32
    %122 = vector.broadcast %cst_72 : f32 to vector<8x128xf32>
    %123 = arith.maximumf %121, %122 : vector<8x128xf32>
    %124 = arith.addf %67, %123 : vector<8x128xf32>
    %c0_73 = arith.constant 0 : index
    %c0_74 = arith.constant 0 : index
    %125 = vector.load %arg15[%c0_73, %c0_74] : memref<40x512xbf16, #tpu.memory_space<vmem>>, vector<40x512xbf16>
    %cst_75 = arith.constant dense<0.000000e+00> : vector<24x512xf32>
    %126 = tpu.matmul %5, %125, %cst_75 {dimension_numbers = #tpu.dot_dimension_numbers<[1], [0], [0], [1], [0, 0, 1, 1], [], []>} : vector<24x40xbf16>, vector<40x512xbf16>, vector<24x512xf32> -> vector<24x512xf32>
    %c0_76 = arith.constant 0 : index
    %c0_77 = arith.constant 0 : index
    %127 = vector.load %arg16[%c0_76, %c0_77] : memref<1x512xf32, #tpu.memory_space<vmem>>, vector<1x512xf32>
    %128 = vector.broadcast %127 : vector<1x512xf32> to vector<24x512xf32>
    %129 = arith.addf %126, %128 : vector<24x512xf32>
    %cst_78 = arith.constant 0.000000e+00 : f32
    %130 = vector.broadcast %cst_78 : f32 to vector<24x512xf32>
    %131 = arith.maximumf %129, %130 : vector<24x512xf32>
    %cst_79 = arith.constant 0.000000e+00 : f32
    %132 = vector.shape_cast %14 : vector<24x1xi1> to vector<24x1xi1>
    %133 = vector.broadcast %132 : vector<24x1xi1> to vector<24x512xi1>
    %134 = vector.broadcast %cst_79 : f32 to vector<24x512xf32>
    %135 = arith.select %133, %131, %134 : vector<24x512xi1>, vector<24x512xf32>
    %136 = arith.truncf %135 : vector<24x512xf32> to vector<24x512xbf16>
    %c0_80 = arith.constant 0 : index
    %c0_81 = arith.constant 0 : index
    %137 = vector.load %arg22[%c0_80, %c0_81] : memref<24x512xbf16, #tpu.memory_space<vmem>>, vector<24x512xbf16>
    tpu.vector_store %arg22[%c0_80, %c0_81], %136 {strides = array<i32>} : memref<24x512xbf16, #tpu.memory_space<vmem>>, vector<24x512xbf16>,
    %c0_82 = arith.constant 0 : index
    %c0_83 = arith.constant 0 : index
    %138 = vector.load %arg22[%c0_82, %c0_83] : memref<24x512xbf16, #tpu.memory_space<vmem>>, vector<24x512xbf16>
    %cst_84 = arith.constant 0.000000e+00 : f32
    %139 = vector.broadcast %cst_84 : f32 to vector<16x256xf32>
    %c0_85 = arith.constant 0 : index
    %c0_86 = arith.constant 0 : index
    %c0_87 = arith.constant 0 : index
    %140 = vector.load %arg17[%c0_85, %c0_86, %c0_87] : memref<5x512x256xbf16, #tpu.memory_space<vmem>>, vector<1x512x256xbf16>
    %141 = vector.shape_cast %140 : vector<1x512x256xbf16> to vector<512x256xbf16>
    %cst_88 = arith.constant dense<0.000000e+00> : vector<24x256xf32>
    %142 = tpu.matmul %138, %141, %cst_88 {dimension_numbers = #tpu.dot_dimension_numbers<[1], [0], [0], [1], [0, 0, 1, 1], [], []>} : vector<24x512xbf16>, vector<512x256xbf16>, vector<24x256xf32> -> vector<24x256xf32>
    %143 = vector.extract_strided_slice %142 {offsets = [2, 0], sizes = [16, 256], strides = [1, 1]} : vector<24x256xf32> to vector<16x256xf32>
    %144 = arith.addf %139, %143 : vector<16x256xf32>
    %c1_89 = arith.constant 1 : index
    %c0_90 = arith.constant 0 : index
    %c0_91 = arith.constant 0 : index
    %145 = vector.load %arg17[%c1_89, %c0_90, %c0_91] : memref<5x512x256xbf16, #tpu.memory_space<vmem>>, vector<1x512x256xbf16>
    %146 = vector.shape_cast %145 : vector<1x512x256xbf16> to vector<512x256xbf16>
    %cst_92 = arith.constant dense<0.000000e+00> : vector<24x256xf32>
    %147 = tpu.matmul %138, %146, %cst_92 {dimension_numbers = #tpu.dot_dimension_numbers<[1], [0], [0], [1], [0, 0, 1, 1], [], []>} : vector<24x512xbf16>, vector<512x256xbf16>, vector<24x256xf32> -> vector<24x256xf32>
    %148 = vector.extract_strided_slice %147 {offsets = [3, 0], sizes = [16, 256], strides = [1, 1]} : vector<24x256xf32> to vector<16x256xf32>
    %149 = arith.addf %144, %148 : vector<16x256xf32>
    %c2_93 = arith.constant 2 : index
    %c0_94 = arith.constant 0 : index
    %c0_95 = arith.constant 0 : index
    %150 = vector.load %arg17[%c2_93, %c0_94, %c0_95] : memref<5x512x256xbf16, #tpu.memory_space<vmem>>, vector<1x512x256xbf16>
    %151 = vector.shape_cast %150 : vector<1x512x256xbf16> to vector<512x256xbf16>
    %cst_96 = arith.constant dense<0.000000e+00> : vector<24x256xf32>
    %152 = tpu.matmul %138, %151, %cst_96 {dimension_numbers = #tpu.dot_dimension_numbers<[1], [0], [0], [1], [0, 0, 1, 1], [], []>} : vector<24x512xbf16>, vector<512x256xbf16>, vector<24x256xf32> -> vector<24x256xf32>
    %153 = vector.extract_strided_slice %152 {offsets = [4, 0], sizes = [16, 256], strides = [1, 1]} : vector<24x256xf32> to vector<16x256xf32>
    %154 = arith.addf %149, %153 : vector<16x256xf32>
    %c3 = arith.constant 3 : index
    %c0_97 = arith.constant 0 : index
    %c0_98 = arith.constant 0 : index
    %155 = vector.load %arg17[%c3, %c0_97, %c0_98] : memref<5x512x256xbf16, #tpu.memory_space<vmem>>, vector<1x512x256xbf16>
    %156 = vector.shape_cast %155 : vector<1x512x256xbf16> to vector<512x256xbf16>
    %cst_99 = arith.constant dense<0.000000e+00> : vector<24x256xf32>
    %157 = tpu.matmul %138, %156, %cst_99 {dimension_numbers = #tpu.dot_dimension_numbers<[1], [0], [0], [1], [0, 0, 1, 1], [], []>} : vector<24x512xbf16>, vector<512x256xbf16>, vector<24x256xf32> -> vector<24x256xf32>
    %158 = vector.extract_strided_slice %157 {offsets = [5, 0], sizes = [16, 256], strides = [1, 1]} : vector<24x256xf32> to vector<16x256xf32>
    %159 = arith.addf %154, %158 : vector<16x256xf32>
    %c4 = arith.constant 4 : index
    %c0_100 = arith.constant 0 : index
    %c0_101 = arith.constant 0 : index
    %160 = vector.load %arg17[%c4, %c0_100, %c0_101] : memref<5x512x256xbf16, #tpu.memory_space<vmem>>, vector<1x512x256xbf16>
    %161 = vector.shape_cast %160 : vector<1x512x256xbf16> to vector<512x256xbf16>
    %cst_102 = arith.constant dense<0.000000e+00> : vector<24x256xf32>
    %162 = tpu.matmul %138, %161, %cst_102 {dimension_numbers = #tpu.dot_dimension_numbers<[1], [0], [0], [1], [0, 0, 1, 1], [], []>} : vector<24x512xbf16>, vector<512x256xbf16>, vector<24x256xf32> -> vector<24x256xf32>
    %163 = vector.extract_strided_slice %162 {offsets = [6, 0], sizes = [16, 256], strides = [1, 1]} : vector<24x256xf32> to vector<16x256xf32>
    %164 = arith.addf %159, %163 : vector<16x256xf32>
    %c0_103 = arith.constant 0 : index
    %c0_104 = arith.constant 0 : index
    %165 = vector.load %arg18[%c0_103, %c0_104] : memref<1x256xf32, #tpu.memory_space<vmem>>, vector<1x256xf32>
    %166 = vector.broadcast %165 : vector<1x256xf32> to vector<16x256xf32>
    %167 = arith.addf %164, %166 : vector<16x256xf32>
    %cst_105 = arith.constant 0.000000e+00 : f32
    %168 = vector.broadcast %cst_105 : f32 to vector<16x256xf32>
    %169 = arith.maximumf %167, %168 : vector<16x256xf32>
    %cst_106 = arith.constant 0.000000e+00 : f32
    %170 = vector.shape_cast %23 : vector<16x1xi1> to vector<16x1xi1>
    %171 = vector.broadcast %170 : vector<16x1xi1> to vector<16x256xi1>
    %172 = vector.broadcast %cst_106 : f32 to vector<16x256xf32>
    %173 = arith.select %171, %169, %172 : vector<16x256xi1>, vector<16x256xf32>
    %174 = arith.truncf %173 : vector<16x256xf32> to vector<16x256xbf16>
    %c0_107 = arith.constant 0 : index
    %c0_108 = arith.constant 0 : index
    %175 = vector.load %arg23[%c0_107, %c0_108] : memref<16x256xbf16, #tpu.memory_space<vmem>>, vector<16x256xbf16>
    tpu.vector_store %arg23[%c0_107, %c0_108], %174 {strides = array<i32>} : memref<16x256xbf16, #tpu.memory_space<vmem>>, vector<16x256xbf16>,
    %c0_109 = arith.constant 0 : index
    %c0_110 = arith.constant 0 : index
    %176 = vector.load %arg23[%c0_109, %c0_110] : memref<16x256xbf16, #tpu.memory_space<vmem>>, vector<16x256xbf16>
    %c0_111 = arith.constant 0 : index
    %c0_112 = arith.constant 0 : index
    %177 = vector.load %arg19[%c0_111, %c0_112] : memref<256x640xbf16, #tpu.memory_space<vmem>>, vector<256x640xbf16>
    %cst_113 = arith.constant dense<0.000000e+00> : vector<16x640xf32>
    %178 = tpu.matmul %176, %177, %cst_113 {dimension_numbers = #tpu.dot_dimension_numbers<[1], [0], [0], [1], [0, 0, 1, 1], [], []>} : vector<16x256xbf16>, vector<256x640xbf16>, vector<16x640xf32> -> vector<16x640xf32>
    %cst_114 = arith.constant 0.000000e+00 : f32
    %179 = vector.broadcast %cst_114 : f32 to vector<8x128xf32>
    %180 = vector.extract_strided_slice %178 {offsets = [2, 0], sizes = [8, 128], strides = [1, 1]} : vector<16x640xf32> to vector<8x128xf32>
    %181 = arith.addf %179, %180 : vector<8x128xf32>
    %182 = vector.extract_strided_slice %178 {offsets = [3, 128], sizes = [8, 128], strides = [1, 1]} : vector<16x640xf32> to vector<8x128xf32>
    %183 = arith.addf %181, %182 : vector<8x128xf32>
    %184 = vector.extract_strided_slice %178 {offsets = [4, 256], sizes = [8, 128], strides = [1, 1]} : vector<16x640xf32> to vector<8x128xf32>
    %185 = arith.addf %183, %184 : vector<8x128xf32>
    %186 = vector.extract_strided_slice %178 {offsets = [5, 384], sizes = [8, 128], strides = [1, 1]} : vector<16x640xf32> to vector<8x128xf32>
    %187 = arith.addf %185, %186 : vector<8x128xf32>
    %188 = vector.extract_strided_slice %178 {offsets = [6, 512], sizes = [8, 128], strides = [1, 1]} : vector<16x640xf32> to vector<8x128xf32>
    %189 = arith.addf %187, %188 : vector<8x128xf32>
    %c0_115 = arith.constant 0 : index
    %c0_116 = arith.constant 0 : index
    %190 = vector.load %arg20[%c0_115, %c0_116] : memref<1x128xf32, #tpu.memory_space<vmem>>, vector<1x128xf32>
    %191 = vector.broadcast %190 : vector<1x128xf32> to vector<8x128xf32>
    %192 = arith.addf %189, %191 : vector<8x128xf32>
    %cst_117 = arith.constant 0.000000e+00 : f32
    %193 = vector.broadcast %cst_117 : f32 to vector<8x128xf32>
    %194 = arith.maximumf %192, %193 : vector<8x128xf32>
    %195 = arith.addf %124, %194 : vector<8x128xf32>
    %c0_118 = arith.constant 0 : index
    %c0_119 = arith.constant 0 : index
    %c0_120 = arith.constant 0 : index
    %196 = vector.load %arg21[%c0_118, %c0_119, %c0_120] : memref<1x8x128xf32, #tpu.memory_space<vmem>>, vector<1x8x128xf32>
    %197 = vector.shape_cast %196 : vector<1x8x128xf32> to vector<8x128xf32>
    %198 = vector.shape_cast %195 : vector<8x128xf32> to vector<1x8x128xf32>
    tpu.vector_store %arg21[%c0_118, %c0_119, %c0_120], %198 {strides = array<i32>} : memref<1x8x128xf32, #tpu.memory_space<vmem>>, vector<1x8x128xf32>,
    return
  }
  func.func @transform_0(%arg0: i32, %arg1: i32) -> (i32, i32, i32) {
    %c0_i32 = arith.constant 0 : i32
    %c0_i32_0 = arith.constant 0 : i32
    %c0_i32_1 = arith.constant 0 : i32
    return %arg0, %c0_i32, %c0_i32_0 : i32, i32, i32
  }
  func.func @transform_1(%arg0: i32, %arg1: i32) -> (i32, i32) {
    %c0_i32 = arith.constant 0 : i32
    %c0_i32_0 = arith.constant 0 : i32
    %c0_i32_1 = arith.constant 0 : i32
    return %c0_i32, %c0_i32_0 : i32, i32
  }
  func.func @transform_2(%arg0: i32, %arg1: i32) -> (i32, i32) {
    %c0_i32 = arith.constant 0 : i32
    %c0_i32_0 = arith.constant 0 : i32
    %c0_i32_1 = arith.constant 0 : i32
    return %c0_i32, %c0_i32_0 : i32, i32
  }
  func.func @transform_3(%arg0: i32, %arg1: i32) -> (i32, i32, i32) {
    %c0_i32 = arith.constant 0 : i32
    %c0_i32_0 = arith.constant 0 : i32
    %c0_i32_1 = arith.constant 0 : i32
    %c0_i32_2 = arith.constant 0 : i32
    return %c0_i32, %c0_i32_0, %c0_i32_1 : i32, i32, i32
  }
  func.func @transform_4(%arg0: i32, %arg1: i32) -> (i32, i32) {
    %c0_i32 = arith.constant 0 : i32
    %c0_i32_0 = arith.constant 0 : i32
    %c0_i32_1 = arith.constant 0 : i32
    return %c0_i32, %c0_i32_0 : i32, i32
  }
  func.func @transform_5(%arg0: i32, %arg1: i32) -> (i32, i32) {
    %c0_i32 = arith.constant 0 : i32
    %c0_i32_0 = arith.constant 0 : i32
    %c0_i32_1 = arith.constant 0 : i32
    return %c0_i32, %c0_i32_0 : i32, i32
  }
  func.func @transform_6(%arg0: i32, %arg1: i32) -> (i32, i32) {
    %c0_i32 = arith.constant 0 : i32
    %c0_i32_0 = arith.constant 0 : i32
    %c0_i32_1 = arith.constant 0 : i32
    return %c0_i32, %c0_i32_0 : i32, i32
  }
  func.func @transform_7(%arg0: i32, %arg1: i32) -> (i32, i32) {
    %c0_i32 = arith.constant 0 : i32
    %c0_i32_0 = arith.constant 0 : i32
    %c0_i32_1 = arith.constant 0 : i32
    return %c0_i32, %c0_i32_0 : i32, i32
  }
  func.func @transform_8(%arg0: i32, %arg1: i32) -> (i32, i32) {
    %c0_i32 = arith.constant 0 : i32
    %c0_i32_0 = arith.constant 0 : i32
    %c0_i32_1 = arith.constant 0 : i32
    return %c0_i32, %c0_i32_0 : i32, i32
  }
  func.func @transform_9(%arg0: i32, %arg1: i32) -> (i32, i32, i32) {
    %c0_i32 = arith.constant 0 : i32
    %c0_i32_0 = arith.constant 0 : i32
    %c0_i32_1 = arith.constant 0 : i32
    %c0_i32_2 = arith.constant 0 : i32
    return %c0_i32, %c0_i32_0, %c0_i32_1 : i32, i32, i32
  }
  func.func @transform_10(%arg0: i32, %arg1: i32) -> (i32, i32) {
    %c0_i32 = arith.constant 0 : i32
    %c0_i32_0 = arith.constant 0 : i32
    %c0_i32_1 = arith.constant 0 : i32
    return %c0_i32, %c0_i32_0 : i32, i32
  }
  func.func @transform_11(%arg0: i32, %arg1: i32) -> (i32, i32) {
    %c0_i32 = arith.constant 0 : i32
    %c0_i32_0 = arith.constant 0 : i32
    %c0_i32_1 = arith.constant 0 : i32
    return %c0_i32, %c0_i32_0 : i32, i32
  }
  func.func @transform_12(%arg0: i32, %arg1: i32) -> (i32, i32) {
    %c0_i32 = arith.constant 0 : i32
    %c0_i32_0 = arith.constant 0 : i32
    %c0_i32_1 = arith.constant 0 : i32
    return %c0_i32, %c0_i32_0 : i32, i32
  }
  func.func @transform_13(%arg0: i32, %arg1: i32) -> (i32, i32) {
    %c0_i32 = arith.constant 0 : i32
    %c0_i32_0 = arith.constant 0 : i32
    %c0_i32_1 = arith.constant 0 : i32
    return %c0_i32, %c0_i32_0 : i32, i32
  }
  func.func @transform_14(%arg0: i32, %arg1: i32) -> (i32, i32) {
    %c0_i32 = arith.constant 0 : i32
    %c0_i32_0 = arith.constant 0 : i32
    %c0_i32_1 = arith.constant 0 : i32
    return %c0_i32, %c0_i32_0 : i32, i32
  }
  func.func @transform_15(%arg0: i32, %arg1: i32) -> (i32, i32, i32) {
    %c0_i32 = arith.constant 0 : i32
    %c0_i32_0 = arith.constant 0 : i32
    %c0_i32_1 = arith.constant 0 : i32
    %c0_i32_2 = arith.constant 0 : i32
    return %c0_i32, %c0_i32_0, %c0_i32_1 : i32, i32, i32
  }
  func.func @transform_16(%arg0: i32, %arg1: i32) -> (i32, i32) {
    %c0_i32 = arith.constant 0 : i32
    %c0_i32_0 = arith.constant 0 : i32
    %c0_i32_1 = arith.constant 0 : i32
    return %c0_i32, %c0_i32_0 : i32, i32
  }
  func.func @transform_17(%arg0: i32, %arg1: i32) -> (i32, i32) {
    %c0_i32 = arith.constant 0 : i32
    %c0_i32_0 = arith.constant 0 : i32
    %c0_i32_1 = arith.constant 0 : i32
    return %c0_i32, %c0_i32_0 : i32, i32
  }
  func.func @transform_18(%arg0: i32, %arg1: i32) -> (i32, i32) {
    %c0_i32 = arith.constant 0 : i32
    %c0_i32_0 = arith.constant 0 : i32
    %c0_i32_1 = arith.constant 0 : i32
    return %c0_i32, %c0_i32_0 : i32, i32
  }
  func.func @transform_19(%arg0: i32, %arg1: i32) -> (i32, i32, i32) {
    %c0_i32 = arith.constant 0 : i32
    %c0_i32_0 = arith.constant 0 : i32
    return %arg0, %arg1, %c0_i32 : i32, i32, i32
  }
}

</mosaic_0001>

<llo_original>
// kernel: task_shared_forward.1
$region0: #{task_shared_forward.1}
  #allocation0 [shape = 'u32[]', space=smem, size = 0x4, offset = 0x4, fixed_abs, tag = 'smem constant byte address 0x4 - core index']
  #allocation1 [shape = 'u32[144,128]{1,0:T(1,128)}', space=vmem, size = 0x12000, scoped, tag = 'internal scratch']
  #allocation2 [shape = 'bf16[24,512]{1,0:T(8,128)(2,1)}', space=vmem, size = 0x6000, scoped, tag = 'scratch operand']
  #allocation3 [shape = 'bf16[16,256]{1,0:T(16,128)(2,1)}', space=vmem, size = 0x2000, scoped, tag = 'scratch operand']
  %s0 = inlined_call_operand.hbm [shape: bf16[2,32,40], index: 0, kind: input, shape index: {}]
  %s1 = inlined_call_operand.hbm [shape: bf16[40,512], index: 1, kind: input, shape index: {}]
  %s2 = inlined_call_operand.hbm [shape: f32[1,512], index: 2, kind: input, shape index: {}]
  %s3 = inlined_call_operand.hbm [shape: bf16[1,512,256], index: 3, kind: input, shape index: {}]
  %s4 = inlined_call_operand.hbm [shape: f32[1,256], index: 4, kind: input, shape index: {}]
  %s5 = inlined_call_operand.hbm [shape: bf16[256,128], index: 5, kind: input, shape index: {}]
  %s6 = inlined_call_operand.hbm [shape: f32[1,128], index: 6, kind: input, shape index: {}]
  %s7 = inlined_call_operand.hbm [shape: bf16[40,512], index: 7, kind: input, shape index: {}]
  %s8 = inlined_call_operand.hbm [shape: f32[1,512], index: 8, kind: input, shape index: {}]
  %s9 = inlined_call_operand.hbm [shape: bf16[3,512,256], index: 9, kind: input, shape index: {}]
  %s10 = inlined_call_operand.hbm [shape: f32[1,256], index: 10, kind: input, shape index: {}]
  %s11 = inlined_call_operand.hbm [shape: bf16[256,384], index: 11, kind: input, shape index: {}]
  %s12 = inlined_call_operand.hbm [shape: f32[1,128], index: 12, kind: input, shape index: {}]
  %s13 = inlined_call_operand.hbm [shape: bf16[40,512], index: 13, kind: input, shape index: {}]
  %s14 = inlined_call_operand.hbm [shape: f32[1,512], index: 14, kind: input, shape index: {}]
  %s15 = inlined_call_operand.hbm [shape: bf16[5,512,256], index: 15, kind: input, shape index: {}]
  %s16 = inlined_call_operand.hbm [shape: f32[1,256], index: 16, kind: input, shape index: {}]
  %s17 = inlined_call_operand.hbm [shape: bf16[256,640], index: 17, kind: input, shape index: {}]
  %s18 = inlined_call_operand.hbm [shape: f32[1,128], index: 18, kind: input, shape index: {}]
  %s19 = inlined_call_operand.hbm [shape: f32[2,16,128], index: 19, kind: output, shape index: {}]
  %s20 = sld [smem:[#allocation0]]
  $region185: #{task_shared_forward.1} parent=0
    _
  %s22 = ssub.s32 1, %s20
  %s23 = scalar_select 0, %s22, %s20
  $region1: #{task_shared_forward.1} parent=0
    #allocation4 [shape = 'u8[16384]{0}', space=vmem, size = 0x4000, scoped, tag = 'input window, operand 0']
    #allocation5 [shape = 's32[2]{0}', space=sflag, size = 0x8, scoped, tag = 'scoped memory for task_shared_forward.1']
    #allocation6 [shape = 's32[2]{0}', space=sflag, size = 0x8, scoped, tag = 'scoped memory for task_shared_forward.1']
    #allocation7 [shape = 'u8[40960]{0}', space=vmem, size = 0xa000, scoped, tag = 'input window, operand 1, single buffered']
    #allocation8 [shape = 's32[1]{0}', space=sflag, size = 0x4, scoped, tag = 'scoped memory for task_shared_forward.1']
    #allocation9 [shape = 'u8[2048]{0}', space=vmem, size = 0x800, scoped, tag = 'input window, operand 2, single buffered']
    #allocation10 [shape = 'u8[262144]{0}', space=vmem, size = 0x40000, scoped, tag = 'input window, operand 3, single buffered']
    #allocation11 [shape = 's32[1]{0}', space=sflag, size = 0x4, scoped, tag = 'scoped memory for task_shared_forward.1']
    #allocation12 [shape = 'u8[1024]{0}', space=vmem, size = 0x400, scoped, tag = 'input window, operand 4, single buffered']
    #allocation13 [shape = 'u8[65536]{0}', space=vmem, size = 0x10000, scoped, tag = 'input window, operand 5, single buffered']
    #allocation14 [shape = 's32[1]{0}', space=sflag, size = 0x4, scoped, tag = 'scoped memory for task_shared_forward.1']
    #allocation15 [shape = 'u8[512]{0}', space=vmem, size = 0x400, scoped, tag = 'input window, operand 6, single buffered']
    #allocation16 [shape = 'u8[40960]{0}', space=vmem, size = 0xa000, scoped, tag = 'input window, operand 7, single buffered']
    #allocation17 [shape = 's32[1]{0}', space=sflag, size = 0x4, scoped, tag = 'scoped memory for task_shared_forward.1']
    #allocation18 [shape = 'u8[2048]{0}', space=vmem, size = 0x800, scoped, tag = 'input window, operand 8, single buffered']
    #allocation19 [shape = 'u8[786432]{0}', space=vmem, size = 0xc0000, scoped, tag = 'input window, operand 9, single buffered']
    #allocation20 [shape = 's32[1]{0}', space=sflag, size = 0x4, scoped, tag = 'scoped memory for task_shared_forward.1']
    #allocation21 [shape = 'u8[1024]{0}', space=vmem, size = 0x400, scoped, tag = 'input window, operand 10, single buffered']
    #allocation22 [shape = 'u8[196608]{0}', space=vmem, size = 0x30000, scoped, tag = 'input window, operand 11, single buffered']
    #allocation23 [shape = 's32[1]{0}', space=sflag, size = 0x4, scoped, tag = 'scoped memory for task_shared_forward.1']
    #allocation24 [shape = 'u8[512]{0}', space=vmem, size = 0x400, scoped, tag = 'input window, operand 12, single buffered']
    #allocation25 [shape = 'u8[40960]{0}', space=vmem, size = 0xa000, scoped, tag = 'input window, operand 13, single buffered']
    #allocation26 [shape = 's32[1]{0}', space=sflag, size = 0x4, scoped, tag = 'scoped memory for task_shared_forward.1']
    #allocation27 [shape = 'u8[2048]{0}', space=vmem, size = 0x800, scoped, tag = 'input window, operand 14, single buffered']
    #allocation28 [shape = 'u8[1310720]{0}', space=vmem, size = 0x140000, scoped, tag = 'input window, operand 15, single buffered']
    #allocation29 [shape = 's32[1]{0}', space=sflag, size = 0x4, scoped, tag = 'scoped memory for task_shared_forward.1']
    #allocation30 [shape = 'u8[1024]{0}', space=vmem, size = 0x400, scoped, tag = 'input window, operand 16, single buffered']
    #allocation31 [shape = 'u8[327680]{0}', space=vmem, size = 0x50000, scoped, tag = 'input window, operand 17, single buffered']
    #allocation32 [shape = 's32[1]{0}', space=sflag, size = 0x4, scoped, tag = 'scoped memory for task_shared_forward.1']
    #allocation33 [shape = 'u8[512]{0}', space=vmem, size = 0x400, scoped, tag = 'input window, operand 18, single buffered']
    #allocation34 [shape = 'u8[8192]{0}', space=vmem, size = 0x2000, scoped, tag = 'output window, operand 0']
    %24 = vsyncpa [#allocation5], 0
    %s25 = scalar_lea.sflag [#allocation5], 1
    %26 = vsyncpa %s25, 0
    %27 = vsyncpa [#allocation8], 0
    %28 = vsyncpa [#allocation11], 0
    %29 = vsyncpa [#allocation14], 0
    %30 = vsyncpa [#allocation17], 0
    %31 = vsyncpa [#allocation20], 0
    %32 = vsyncpa [#allocation23], 0
    %33 = vsyncpa [#allocation26], 0
    %34 = vsyncpa [#allocation29], 0
    %35 = vsyncpa [#allocation32], 0
    %36 = vsyncpa [#allocation6], 0
    %s37 = scalar_lea.sflag [#allocation6], 1
    %38 = vsyncpa %s37, 0
    loop: start=0, step=1, limit=6
    $region2: #{task_shared_forward.1} parent=1 // loop_pre_header
      _
    $region3: #{task_shared_forward.1} parent=1 // loop_header
      %s40 = sphi 0, %s44
      %p41 = scmp.ge.s32.totalorder %s40, 6
      %s47 = sphi 0, %s59
      %s48 = sphi 0, %s55
      %s49 = sphi 0, %s47
      %s50 = sphi 0, %s48
      %s51 = sphi 0, %s49
      %s52 = sphi 0, %s50
      %s62 = sphi 0, %s64
      %s65 = sphi 0, %s62
      %s66 = sphi 0, %s65
      %s82 = sphi 0, %s66
      %s86 = sphi 0, %s86
      %s88 = sphi 0, %s86
      %s89 = sphi 0, %s88
      %s103 = sphi 0, %s89
      %s107 = sphi 0, %s107
      %s109 = sphi 0, %s107
      %s110 = sphi 0, %s109
      %s124 = sphi 0, %s110
      %s128 = sphi 0, %s128
      %s130 = sphi 0, %s128
      %s131 = sphi 0, %s130
      %s145 = sphi 0, %s131
      %s149 = sphi 0, %s149
      %s151 = sphi 0, %s149
      %s152 = sphi 0, %s151
      %s166 = sphi 0, %s152
      %s170 = sphi 0, %s170
      %s172 = sphi 0, %s170
      %s173 = sphi 0, %s172
      %s187 = sphi 0, %s173
      %s191 = sphi 0, %s191
      %s193 = sphi 0, %s191
      %s194 = sphi 0, %s193
      %s208 = sphi 0, %s194
      %s212 = sphi 0, %s212
      %s214 = sphi 0, %s212
      %s215 = sphi 0, %s214
      %s229 = sphi 0, %s215
      %s233 = sphi 0, %s233
      %s235 = sphi 0, %s233
      %s236 = sphi 0, %s235
      %s250 = sphi 0, %s236
      %s254 = sphi 0, %s254
      %s256 = sphi 0, %s254
      %s257 = sphi 0, %s256
      %s271 = sphi 0, %s257
      %s275 = sphi 0, %s275
      %s277 = sphi 0, %s275
      %s278 = sphi 0, %s277
      %s292 = sphi 0, %s278
      %s296 = sphi 0, %s296
      %s298 = sphi 0, %s296
      %s299 = sphi 0, %s298
      %s313 = sphi 0, %s299
      %s317 = sphi 0, %s317
      %s319 = sphi 0, %s317
      %s320 = sphi 0, %s319
      %s334 = sphi 0, %s320
      %s338 = sphi 0, %s338
      %s340 = sphi 0, %s338
      %s341 = sphi 0, %s340
      %s355 = sphi 0, %s341
      %s359 = sphi 0, %s359
      %s361 = sphi 0, %s359
      %s362 = sphi 0, %s361
      %s376 = sphi 0, %s362
      %s380 = sphi 0, %s380
      %s382 = sphi 0, %s380
      %s383 = sphi 0, %s382
      %s397 = sphi 0, %s383
      %s401 = sphi 0, %s401
      %s403 = sphi 0, %s401
      %s404 = sphi 0, %s403
      %s418 = sphi 0, %s404
      %s422 = sphi 0, %s422
      %s424 = sphi 0, %s422
      %s425 = sphi 0, %s424
      %s439 = sphi 0, %s425
      %s443 = sphi 0, %s443
      %s445 = sphi 0, %s443
      %s446 = sphi 0, %s445
      %s460 = sphi 0, %s446
      %s468 = sphi 0, %s470
      %s471 = sphi 0, %s468
      %s472 = sphi 0, %s471
      %s488 = sphi 0, %s472
    $region4: #{task_shared_forward.1} parent=1 // loop_header_branch
      %43 = sbr.rel (%p41) target = $region8
    $region5: #{task_shared_forward.1} parent=1 // loop_body
      %s45 = ssub.s32 %s40, 1
      %s46 = ssub.s32 %s40, 2
      %s53 = sadd.s32 1, %s48
      %p54 = scmp.ge.s32.totalorder %s53, 2
      %s55 = scalar_select %p54, 0, %s53
      %s56 = sadd.s32 1, %s47
      %s57 = scalar_select %p54, %s56, %s47
      %p58 = scmp.ge.s32.totalorder %s57, 2
      %s59 = scalar_select %p58, 0, %s57
      %s60 = ssub.s32 %s47, %s59
      %p61 = scmp.eq.s32.totalorder %s60, 0
      %s63 = sadd.s32 %s62, 1
      %s64 = scalar_select %p61, %s62, %s63
      %p67 = pneg %p61
      %p68 = scmp.eq.s32.totalorder %s40, 3
      %p69 = por %p67, %p68
      %p70 = scmp.ne.s32.totalorder %s62, %s65
      %p71 = scmp.eq.s32.totalorder %s40, 0
      %p72 = por %p70, %p71
      %p73 = scmp.ne.s32.totalorder %s62, %s65
      %p74 = scmp.eq.s32.totalorder %s45, 3
      %p75 = por %p73, %p74
      %p76 = scmp.ne.s32.totalorder %s65, %s66
      %p77 = scmp.eq.s32.totalorder %s45, 0
      %p78 = por %p76, %p77
      %p79 = scmp.ne.s32.totalorder %s65, %s66
      %p80 = scmp.eq.s32.totalorder %s46, 3
      %p81 = por %p79, %p80
      %p83 = scmp.ne.s32.totalorder %s66, %s82
      %p84 = scmp.eq.s32.totalorder %s46, 0
      %p85 = por %p83, %p84
      %s87 = sadd.s32 %s86, 1
      %p90 = scmp.eq.s32.totalorder %s40, 3
      %p91 = scmp.ne.s32.totalorder %s86, %s88
      %p92 = scmp.eq.s32.totalorder %s40, 0
      %p93 = por %p91, %p92
      %p94 = scmp.ne.s32.totalorder %s86, %s88
      %p95 = scmp.eq.s32.totalorder %s45, 3
      %p96 = por %p94, %p95
      %p97 = scmp.ne.s32.totalorder %s88, %s89
      %p98 = scmp.eq.s32.totalorder %s45, 0
      %p99 = por %p97, %p98
      %p100 = scmp.ne.s32.totalorder %s88, %s89
      %p101 = scmp.eq.s32.totalorder %s46, 3
      %p102 = por %p100, %p101
      %p104 = scmp.ne.s32.totalorder %s89, %s103
      %p105 = scmp.eq.s32.totalorder %s46, 0
      %p106 = por %p104, %p105
      %s108 = sadd.s32 %s107, 1
      %p111 = scmp.eq.s32.totalorder %s40, 3
      %p112 = scmp.ne.s32.totalorder %s107, %s109
      %p113 = scmp.eq.s32.totalorder %s40, 0
      %p114 = por %p112, %p113
      %p115 = scmp.ne.s32.totalorder %s107, %s109
      %p116 = scmp.eq.s32.totalorder %s45, 3
      %p117 = por %p115, %p116
      %p118 = scmp.ne.s32.totalorder %s109, %s110
      %p119 = scmp.eq.s32.totalorder %s45, 0
      %p120 = por %p118, %p119
      %p121 = scmp.ne.s32.totalorder %s109, %s110
      %p122 = scmp.eq.s32.totalorder %s46, 3
      %p123 = por %p121, %p122
      %p125 = scmp.ne.s32.totalorder %s110, %s124
      %p126 = scmp.eq.s32.totalorder %s46, 0
      %p127 = por %p125, %p126
      %s129 = sadd.s32 %s128, 1
      %p132 = scmp.eq.s32.totalorder %s40, 3
      %p133 = scmp.ne.s32.totalorder %s128, %s130
      %p134 = scmp.eq.s32.totalorder %s40, 0
      %p135 = por %p133, %p134
      %p136 = scmp.ne.s32.totalorder %s128, %s130
      %p137 = scmp.eq.s32.totalorder %s45, 3
      %p138 = por %p136, %p137
      %p139 = scmp.ne.s32.totalorder %s130, %s131
      %p140 = scmp.eq.s32.totalorder %s45, 0
      %p141 = por %p139, %p140
      %p142 = scmp.ne.s32.totalorder %s130, %s131
      %p143 = scmp.eq.s32.totalorder %s46, 3
      %p144 = por %p142, %p143
      %p146 = scmp.ne.s32.totalorder %s131, %s145
      %p147 = scmp.eq.s32.totalorder %s46, 0
      %p148 = por %p146, %p147
      %s150 = sadd.s32 %s149, 1
      %p153 = scmp.eq.s32.totalorder %s40, 3
      %p154 = scmp.ne.s32.totalorder %s149, %s151
      %p155 = scmp.eq.s32.totalorder %s40, 0
      %p156 = por %p154, %p155
      %p157 = scmp.ne.s32.totalorder %s149, %s151
      %p158 = scmp.eq.s32.totalorder %s45, 3
      %p159 = por %p157, %p158
      %p160 = scmp.ne.s32.totalorder %s151, %s152
      %p161 = scmp.eq.s32.totalorder %s45, 0
      %p162 = por %p160, %p161
      %p163 = scmp.ne.s32.totalorder %s151, %s152
      %p164 = scmp.eq.s32.totalorder %s46, 3
      %p165 = por %p163, %p164
      %p167 = scmp.ne.s32.totalorder %s152, %s166
      %p168 = scmp.eq.s32.totalorder %s46, 0
      %p169 = por %p167, %p168
      %s171 = sadd.s32 %s170, 1
      %p174 = scmp.eq.s32.totalorder %s40, 3
      %p175 = scmp.ne.s32.totalorder %s170, %s172
      %p176 = scmp.eq.s32.totalorder %s40, 0
      %p177 = por %p175, %p176
      %p178 = scmp.ne.s32.totalorder %s170, %s172
      %p179 = scmp.eq.s32.totalorder %s45, 3
      %p180 = por %p178, %p179
      %p181 = scmp.ne.s32.totalorder %s172, %s173
      %p182 = scmp.eq.s32.totalorder %s45, 0
      %p183 = por %p181, %p182
      %p184 = scmp.ne.s32.totalorder %s172, %s173
      %p185 = scmp.eq.s32.totalorder %s46, 3
      %p186 = por %p184, %p185
      %p188 = scmp.ne.s32.totalorder %s173, %s187
      %p189 = scmp.eq.s32.totalorder %s46, 0
      %p190 = por %p188, %p189
      %s192 = sadd.s32 %s191, 1
      %p195 = scmp.eq.s32.totalorder %s40, 3
      %p196 = scmp.ne.s32.totalorder %s191, %s193
      %p197 = scmp.eq.s32.totalorder %s40, 0
      %p198 = por %p196, %p197
      %p199 = scmp.ne.s32.totalorder %s191, %s193
      %p200 = scmp.eq.s32.totalorder %s45, 3
      %p201 = por %p199, %p200
      %p202 = scmp.ne.s32.totalorder %s193, %s194
      %p203 = scmp.eq.s32.totalorder %s45, 0
      %p204 = por %p202, %p203
      %p205 = scmp.ne.s32.totalorder %s193, %s194
      %p206 = scmp.eq.s32.totalorder %s46, 3
      %p207 = por %p205, %p206
      %p209 = scmp.ne.s32.totalorder %s194, %s208
      %p210 = scmp.eq.s32.totalorder %s46, 0
      %p211 = por %p209, %p210
      %s213 = sadd.s32 %s212, 1
      %p216 = scmp.eq.s32.totalorder %s40, 3
      %p217 = scmp.ne.s32.totalorder %s212, %s214
      %p218 = scmp.eq.s32.totalorder %s40, 0
      %p219 = por %p217, %p218
      %p220 = scmp.ne.s32.totalorder %s212, %s214
      %p221 = scmp.eq.s32.totalorder %s45, 3
      %p222 = por %p220, %p221
      %p223 = scmp.ne.s32.totalorder %s214, %s215
      %p224 = scmp.eq.s32.totalorder %s45, 0
      %p225 = por %p223, %p224
      %p226 = scmp.ne.s32.totalorder %s214, %s215
      %p227 = scmp.eq.s32.totalorder %s46, 3
      %p228 = por %p226, %p227
      %p230 = scmp.ne.s32.totalorder %s215, %s229
      %p231 = scmp.eq.s32.totalorder %s46, 0
      %p232 = por %p230, %p231
      %s234 = sadd.s32 %s233, 1
      %p237 = scmp.eq.s32.totalorder %s40, 3
      %p238 = scmp.ne.s32.totalorder %s233, %s235
      %p239 = scmp.eq.s32.totalorder %s40, 0
      %p240 = por %p238, %p239
      %p241 = scmp.ne.s32.totalorder %s233, %s235
      %p242 = scmp.eq.s32.totalorder %s45, 3
      %p243 = por %p241, %p242
      %p244 = scmp.ne.s32.totalorder %s235, %s236
      %p245 = scmp.eq.s32.totalorder %s45, 0
      %p246 = por %p244, %p245
      %p247 = scmp.ne.s32.totalorder %s235, %s236
      %p248 = scmp.eq.s32.totalorder %s46, 3
      %p249 = por %p247, %p248
      %p251 = scmp.ne.s32.totalorder %s236, %s250
      %p252 = scmp.eq.s32.totalorder %s46, 0
      %p253 = por %p251, %p252
      %s255 = sadd.s32 %s254, 1
      %p258 = scmp.eq.s32.totalorder %s40, 3
      %p259 = scmp.ne.s32.totalorder %s254, %s256
      %p260 = scmp.eq.s32.totalorder %s40, 0
      %p261 = por %p259, %p260
      %p262 = scmp.ne.s32.totalorder %s254, %s256
      %p263 = scmp.eq.s32.totalorder %s45, 3
      %p264 = por %p262, %p263
      %p265 = scmp.ne.s32.totalorder %s256, %s257
      %p266 = scmp.eq.s32.totalorder %s45, 0
      %p267 = por %p265, %p266
      %p268 = scmp.ne.s32.totalorder %s256, %s257
      %p269 = scmp.eq.s32.totalorder %s46, 3
      %p270 = por %p268, %p269
      %p272 = scmp.ne.s32.totalorder %s257, %s271
      %p273 = scmp.eq.s32.totalorder %s46, 0
      %p274 = por %p272, %p273
      %s276 = sadd.s32 %s275, 1
      %p279 = scmp.eq.s32.totalorder %s40, 3
      %p280 = scmp.ne.s32.totalorder %s275, %s277
      %p281 = scmp.eq.s32.totalorder %s40, 0
      %p282 = por %p280, %p281
      %p283 = scmp.ne.s32.totalorder %s275, %s277
      %p284 = scmp.eq.s32.totalorder %s45, 3
      %p285 = por %p283, %p284
      %p286 = scmp.ne.s32.totalorder %s277, %s278
      %p287 = scmp.eq.s32.totalorder %s45, 0
      %p288 = por %p286, %p287
      %p289 = scmp.ne.s32.totalorder %s277, %s278
      %p290 = scmp.eq.s32.totalorder %s46, 3
      %p291 = por %p289, %p290
      %p293 = scmp.ne.s32.totalorder %s278, %s292
      %p294 = scmp.eq.s32.totalorder %s46, 0
      %p295 = por %p293, %p294
      %s297 = sadd.s32 %s296, 1
      %p300 = scmp.eq.s32.totalorder %s40, 3
      %p301 = scmp.ne.s32.totalorder %s296, %s298
      %p302 = scmp.eq.s32.totalorder %s40, 0
      %p303 = por %p301, %p302
      %p304 = scmp.ne.s32.totalorder %s296, %s298
      %p305 = scmp.eq.s32.totalorder %s45, 3
      %p306 = por %p304, %p305
      %p307 = scmp.ne.s32.totalorder %s298, %s299
      %p308 = scmp.eq.s32.totalorder %s45, 0
      %p309 = por %p307, %p308
      %p310 = scmp.ne.s32.totalorder %s298, %s299
      %p311 = scmp.eq.s32.totalorder %s46, 3
      %p312 = por %p310, %p311
      %p314 = scmp.ne.s32.totalorder %s299, %s313
      %p315 = scmp.eq.s32.totalorder %s46, 0
      %p316 = por %p314, %p315
      %s318 = sadd.s32 %s317, 1
      %p321 = scmp.eq.s32.totalorder %s40, 3
      %p322 = scmp.ne.s32.totalorder %s317, %s319
      %p323 = scmp.eq.s32.totalorder %s40, 0
      %p324 = por %p322, %p323
      %p325 = scmp.ne.s32.totalorder %s317, %s319
      %p326 = scmp.eq.s32.totalorder %s45, 3
      %p327 = por %p325, %p326
      %p328 = scmp.ne.s32.totalorder %s319, %s320
      %p329 = scmp.eq.s32.totalorder %s45, 0
      %p330 = por %p328, %p329
      %p331 = scmp.ne.s32.totalorder %s319, %s320
      %p332 = scmp.eq.s32.totalorder %s46, 3
      %p333 = por %p331, %p332
      %p335 = scmp.ne.s32.totalorder %s320, %s334
      %p336 = scmp.eq.s32.totalorder %s46, 0
      %p337 = por %p335, %p336
      %s339 = sadd.s32 %s338, 1
      %p342 = scmp.eq.s32.totalorder %s40, 3
      %p343 = scmp.ne.s32.totalorder %s338, %s340
      %p344 = scmp.eq.s32.totalorder %s40, 0
      %p345 = por %p343, %p344
      %p346 = scmp.ne.s32.totalorder %s338, %s340
      %p347 = scmp.eq.s32.totalorder %s45, 3
      %p348 = por %p346, %p347
      %p349 = scmp.ne.s32.totalorder %s340, %s341
      %p350 = scmp.eq.s32.totalorder %s45, 0
      %p351 = por %p349, %p350
      %p352 = scmp.ne.s32.totalorder %s340, %s341
      %p353 = scmp.eq.s32.totalorder %s46, 3
      %p354 = por %p352, %p353
      %p356 = scmp.ne.s32.totalorder %s341, %s355
      %p357 = scmp.eq.s32.totalorder %s46, 0
      %p358 = por %p356, %p357
      %s360 = sadd.s32 %s359, 1
      %p363 = scmp.eq.s32.totalorder %s40, 3
      %p364 = scmp.ne.s32.totalorder %s359, %s361
      %p365 = scmp.eq.s32.totalorder %s40, 0
      %p366 = por %p364, %p365
      %p367 = scmp.ne.s32.totalorder %s359, %s361
      %p368 = scmp.eq.s32.totalorder %s45, 3
      %p369 = por %p367, %p368
      %p370 = scmp.ne.s32.totalorder %s361, %s362
      %p371 = scmp.eq.s32.totalorder %s45, 0
      %p372 = por %p370, %p371
      %p373 = scmp.ne.s32.totalorder %s361, %s362
      %p374 = scmp.eq.s32.totalorder %s46, 3
      %p375 = por %p373, %p374
      %p377 = scmp.ne.s32.totalorder %s362, %s376
      %p378 = scmp.eq.s32.totalorder %s46, 0
      %p379 = por %p377, %p378
      %s381 = sadd.s32 %s380, 1
      %p384 = scmp.eq.s32.totalorder %s40, 3
      %p385 = scmp.ne.s32.totalorder %s380, %s382
      %p386 = scmp.eq.s32.totalorder %s40, 0
      %p387 = por %p385, %p386
      %p388 = scmp.ne.s32.totalorder %s380, %s382
      %p389 = scmp.eq.s32.totalorder %s45, 3
      %p390 = por %p388, %p389
      %p391 = scmp.ne.s32.totalorder %s382, %s383
      %p392 = scmp.eq.s32.totalorder %s45, 0
      %p393 = por %p391, %p392
      %p394 = scmp.ne.s32.totalorder %s382, %s383
      %p395 = scmp.eq.s32.totalorder %s46, 3
      %p396 = por %p394, %p395
      %p398 = scmp.ne.s32.totalorder %s383, %s397
      %p399 = scmp.eq.s32.totalorder %s46, 0
      %p400 = por %p398, %p399
      %s402 = sadd.s32 %s401, 1
      %p405 = scmp.eq.s32.totalorder %s40, 3
      %p406 = scmp.ne.s32.totalorder %s401, %s403
      %p407 = scmp.eq.s32.totalorder %s40, 0
      %p408 = por %p406, %p407
      %p409 = scmp.ne.s32.totalorder %s401, %s403
      %p410 = scmp.eq.s32.totalorder %s45, 3
      %p411 = por %p409, %p410
      %p412 = scmp.ne.s32.totalorder %s403, %s404
      %p413 = scmp.eq.s32.totalorder %s45, 0
      %p414 = por %p412, %p413
      %p415 = scmp.ne.s32.totalorder %s403, %s404
      %p416 = scmp.eq.s32.totalorder %s46, 3
      %p417 = por %p415, %p416
      %p419 = scmp.ne.s32.totalorder %s404, %s418
      %p420 = scmp.eq.s32.totalorder %s46, 0
      %p421 = por %p419, %p420
      %s423 = sadd.s32 %s422, 1
      %p426 = scmp.eq.s32.totalorder %s40, 3
      %p427 = scmp.ne.s32.totalorder %s422, %s424
      %p428 = scmp.eq.s32.totalorder %s40, 0
      %p429 = por %p427, %p428
      %p430 = scmp.ne.s32.totalorder %s422, %s424
      %p431 = scmp.eq.s32.totalorder %s45, 3
      %p432 = por %p430, %p431
      %p433 = scmp.ne.s32.totalorder %s424, %s425
      %p434 = scmp.eq.s32.totalorder %s45, 0
      %p435 = por %p433, %p434
      %p436 = scmp.ne.s32.totalorder %s424, %s425
      %p437 = scmp.eq.s32.totalorder %s46, 3
      %p438 = por %p436, %p437
      %p440 = scmp.ne.s32.totalorder %s425, %s439
      %p441 = scmp.eq.s32.totalorder %s46, 0
      %p442 = por %p440, %p441
      %s444 = sadd.s32 %s443, 1
      %p447 = scmp.eq.s32.totalorder %s40, 3
      %p448 = scmp.ne.s32.totalorder %s443, %s445
      %p449 = scmp.eq.s32.totalorder %s40, 0
      %p450 = por %p448, %p449
      %p451 = scmp.ne.s32.totalorder %s443, %s445
      %p452 = scmp.eq.s32.totalorder %s45, 3
      %p453 = por %p451, %p452
      %p454 = scmp.ne.s32.totalorder %s445, %s446
      %p455 = scmp.eq.s32.totalorder %s45, 0
      %p456 = por %p454, %p455
      %p457 = scmp.ne.s32.totalorder %s445, %s446
      %p458 = scmp.eq.s32.totalorder %s46, 3
      %p459 = por %p457, %p458
      %p461 = scmp.ne.s32.totalorder %s446, %s460
      %p462 = scmp.eq.s32.totalorder %s46, 0
      %p463 = por %p461, %p462
      %s464 = ssub.s32 %s47, %s59
      %s465 = ssub.s32 %s48, %s55
      %s466 = sor.u32 %s464, %s465
      %p467 = scmp.eq.s32.totalorder %s466, 0
      %s469 = sadd.s32 %s468, 1
      %s470 = scalar_select %p467, %s468, %s469
      %p473 = pneg %p467
      %p474 = scmp.eq.s32.totalorder %s40, 3
      %p475 = por %p473, %p474
      %p476 = scmp.ne.s32.totalorder %s468, %s471
      %p477 = scmp.eq.s32.totalorder %s40, 0
      %p478 = por %p476, %p477
      %p479 = scmp.ne.s32.totalorder %s468, %s471
      %p480 = scmp.eq.s32.totalorder %s45, 3
      %p481 = por %p479, %p480
      %p482 = scmp.ne.s32.totalorder %s471, %s472
      %p483 = scmp.eq.s32.totalorder %s45, 0
      %p484 = por %p482, %p483
      %p485 = scmp.ne.s32.totalorder %s471, %s472
      %p486 = scmp.eq.s32.totalorder %s46, 3
      %p487 = por %p485, %p486
      %p489 = scmp.ne.s32.totalorder %s472, %s488
      %p490 = scmp.eq.s32.totalorder %s46, 0
      %p491 = por %p489, %p490
      %p492 = scmp.le.s32.totalorder 1, %s40
      %p493 = scmp.lt.s32.totalorder %s40, 5
      %p494 = pnand %p492, %p493
      %p495 = pneg %p494
      // Predicated region
      $region9: #{task_shared_forward.1} parent=5 // pred_check
        _
      $region10: #{task_shared_forward.1} parent=5 // pred_check_branch
        %497 = sbr.rel (%p494) target = $region12
      $region11: #{task_shared_forward.1} parent=5 // pred_region
        %s498 = ssub.s32 %s40, 1
        // Predicated region
        $region13: #{task_shared_forward.1} parent=11 // pred_check
          %p499 = pneg %p99
        $region14: #{task_shared_forward.1} parent=11 // pred_check_branch
          %501 = sbr.rel (%p499) target = $region16
        $region15: #{task_shared_forward.1} parent=11 // pred_region
          %s503 = ssub.s32 1280, 1280
          %504 = vsyncadd [#allocation8], %s503
          %s505 = sshll.u32 [#allocation7], 4
          %s506 = int_to_ptr.vmem [resolvable:$true] %s505
          %511 = dma.hbm_to_vmem [thread:$0]  %s1, 1280, %s506, [#allocation8], 256, 256, 16
        $region16: #{task_shared_forward.1} parent=11 // pred_fallthru
          _
        // Predicated region
        $region17: #{task_shared_forward.1} parent=11 // pred_check
          %p512 = pneg %p120
        $region18: #{task_shared_forward.1} parent=11 // pred_check_branch
          %514 = sbr.rel (%p512) target = $region20
        $region19: #{task_shared_forward.1} parent=11 // pred_region
          %s516 = ssub.s32 64, 64
          %517 = vsyncadd [#allocation8], %s516
          %s519 = sshll.u32 [#allocation9], 4
          %s520 = int_to_ptr.vmem [resolvable:$true] %s519
          %522 = dma.hbm_to_vmem [thread:$0]  %s2, 64, %s520, [#allocation8]
        $region20: #{task_shared_forward.1} parent=11 // pred_fallthru
          _
        // Predicated region
        $region21: #{task_shared_forward.1} parent=11 // pred_check
          %p523 = pneg %p141
        $region22: #{task_shared_forward.1} parent=11 // pred_check_branch
          %525 = sbr.rel (%p523) target = $region24
        $region23: #{task_shared_forward.1} parent=11 // pred_region
          %s527 = ssub.s32 8192, 8192
          %528 = vsyncadd [#allocation11], %s527
          %s529 = sshll.u32 [#allocation10], 4
          %s530 = int_to_ptr.vmem [resolvable:$true] %s529
          %535 = dma.hbm_to_vmem [thread:$0]  %s3, 8192, %s530, [#allocation11], 128, 128, 8
        $region24: #{task_shared_forward.1} parent=11 // pred_fallthru
          _
        // Predicated region
        $region25: #{task_shared_forward.1} parent=11 // pred_check
          %p536 = pneg %p162
        $region26: #{task_shared_forward.1} parent=11 // pred_check_branch
          %538 = sbr.rel (%p536) target = $region28
        $region27: #{task_shared_forward.1} parent=11 // pred_region
          %s540 = ssub.s32 32, 32
          %541 = vsyncadd [#allocation11], %s540
          %s543 = sshll.u32 [#allocation12], 4
          %s544 = int_to_ptr.vmem [resolvable:$true] %s543
          %546 = dma.hbm_to_vmem [thread:$0]  %s4, 32, %s544, [#allocation11]
        $region28: #{task_shared_forward.1} parent=11 // pred_fallthru
          _
        // Predicated region
        $region29: #{task_shared_forward.1} parent=11 // pred_check
          %p547 = pneg %p183
        $region30: #{task_shared_forward.1} parent=11 // pred_check_branch
          %549 = sbr.rel (%p547) target = $region32
        $region31: #{task_shared_forward.1} parent=11 // pred_region
          %s551 = ssub.s32 2048, 2048
          %552 = vsyncadd [#allocation14], %s551
          %s553 = sshll.u32 [#allocation13], 4
          %s554 = int_to_ptr.vmem [resolvable:$true] %s553
          %559 = dma.hbm_to_vmem [thread:$0]  %s5, 2048, %s554, [#allocation14], 64, 64, 4
        $region32: #{task_shared_forward.1} parent=11 // pred_fallthru
          _
        // Predicated region
        $region33: #{task_shared_forward.1} parent=11 // pred_check
          %p560 = pneg %p204
        $region34: #{task_shared_forward.1} parent=11 // pred_check_branch
          %562 = sbr.rel (%p560) target = $region36
        $region35: #{task_shared_forward.1} parent=11 // pred_region
          %s564 = ssub.s32 16, 16
          %565 = vsyncadd [#allocation14], %s564
          %s567 = sshll.u32 [#allocation15], 4
          %s568 = int_to_ptr.vmem [resolvable:$true] %s567
          %570 = dma.hbm_to_vmem [thread:$0]  %s6, 16, %s568, [#allocation14]
        $region36: #{task_shared_forward.1} parent=11 // pred_fallthru
          _
        // Predicated region
        $region37: #{task_shared_forward.1} parent=11 // pred_check
          %p571 = pneg %p225
        $region38: #{task_shared_forward.1} parent=11 // pred_check_branch
          %573 = sbr.rel (%p571) target = $region40
        $region39: #{task_shared_forward.1} parent=11 // pred_region
          %s575 = ssub.s32 1280, 1280
          %576 = vsyncadd [#allocation17], %s575
          %s577 = sshll.u32 [#allocation16], 4
          %s578 = int_to_ptr.vmem [resolvable:$true] %s577
          %583 = dma.hbm_to_vmem [thread:$0]  %s7, 1280, %s578, [#allocation17], 256, 256, 16
        $region40: #{task_shared_forward.1} parent=11 // pred_fallthru
          _
        // Predicated region
        $region41: #{task_shared_forward.1} parent=11 // pred_check
          %p584 = pneg %p246
        $region42: #{task_shared_forward.1} parent=11 // pred_check_branch
          %586 = sbr.rel (%p584) target = $region44
        $region43: #{task_shared_forward.1} parent=11 // pred_region
          %s588 = ssub.s32 64, 64
          %589 = vsyncadd [#allocation17], %s588
          %s591 = sshll.u32 [#allocation18], 4
          %s592 = int_to_ptr.vmem [resolvable:$true] %s591
          %594 = dma.hbm_to_vmem [thread:$0]  %s8, 64, %s592, [#allocation17]
        $region44: #{task_shared_forward.1} parent=11 // pred_fallthru
          _
        // Predicated region
        $region45: #{task_shared_forward.1} parent=11 // pred_check
          %p595 = pneg %p267
        $region46: #{task_shared_forward.1} parent=11 // pred_check_branch
          %597 = sbr.rel (%p595) target = $region48
        $region47: #{task_shared_forward.1} parent=11 // pred_region
          %s599 = ssub.s32 24576, 24576
          %600 = vsyncadd [#allocation20], %s599
          %s601 = sshll.u32 [#allocation19], 4
          %s602 = int_to_ptr.vmem [resolvable:$true] %s601
          %607 = dma.hbm_to_vmem [thread:$0]  %s9, 24576, %s602, [#allocation20], 128, 128, 8
        $region48: #{task_shared_forward.1} parent=11 // pred_fallthru
          _
        // Predicated region
        $region49: #{task_shared_forward.1} parent=11 // pred_check
          %p608 = pneg %p288
        $region50: #{task_shared_forward.1} parent=11 // pred_check_branch
          %610 = sbr.rel (%p608) target = $region52
        $region51: #{task_shared_forward.1} parent=11 // pred_region
          %s612 = ssub.s32 32, 32
          %613 = vsyncadd [#allocation20], %s612
          %s615 = sshll.u32 [#allocation21], 4
          %s616 = int_to_ptr.vmem [resolvable:$true] %s615
          %618 = dma.hbm_to_vmem [thread:$0]  %s10, 32, %s616, [#allocation20]
        $region52: #{task_shared_forward.1} parent=11 // pred_fallthru
          _
        // Predicated region
        $region53: #{task_shared_forward.1} parent=11 // pred_check
          %p619 = pneg %p309
        $region54: #{task_shared_forward.1} parent=11 // pred_check_branch
          %621 = sbr.rel (%p619) target = $region56
        $region55: #{task_shared_forward.1} parent=11 // pred_region
          %s623 = ssub.s32 6144, 6144
          %624 = vsyncadd [#allocation23], %s623
          %s625 = sshll.u32 [#allocation22], 4
          %s626 = int_to_ptr.vmem [resolvable:$true] %s625
          %631 = dma.hbm_to_vmem [thread:$0]  %s11, 6144, %s626, [#allocation23], 192, 192, 12
        $region56: #{task_shared_forward.1} parent=11 // pred_fallthru
          _
        // Predicated region
        $region57: #{task_shared_forward.1} parent=11 // pred_check
          %p632 = pneg %p330
        $region58: #{task_shared_forward.1} parent=11 // pred_check_branch
          %634 = sbr.rel (%p632) target = $region60
        $region59: #{task_shared_forward.1} parent=11 // pred_region
          %s636 = ssub.s32 16, 16
          %637 = vsyncadd [#allocation23], %s636
          %s639 = sshll.u32 [#allocation24], 4
          %s640 = int_to_ptr.vmem [resolvable:$true] %s639
          %642 = dma.hbm_to_vmem [thread:$0]  %s12, 16, %s640, [#allocation23]
        $region60: #{task_shared_forward.1} parent=11 // pred_fallthru
          _
        // Predicated region
        $region61: #{task_shared_forward.1} parent=11 // pred_check
          %p643 = pneg %p351
        $region62: #{task_shared_forward.1} parent=11 // pred_check_branch
          %645 = sbr.rel (%p643) target = $region64
        $region63: #{task_shared_forward.1} parent=11 // pred_region
          %s647 = ssub.s32 1280, 1280
          %648 = vsyncadd [#allocation26], %s647
          %s649 = sshll.u32 [#allocation25], 4
          %s650 = int_to_ptr.vmem [resolvable:$true] %s649
          %655 = dma.hbm_to_vmem [thread:$0]  %s13, 1280, %s650, [#allocation26], 256, 256, 16
        $region64: #{task_shared_forward.1} parent=11 // pred_fallthru
          _
        // Predicated region
        $region65: #{task_shared_forward.1} parent=11 // pred_check
          %p656 = pneg %p372
        $region66: #{task_shared_forward.1} parent=11 // pred_check_branch
          %658 = sbr.rel (%p656) target = $region68
        $region67: #{task_shared_forward.1} parent=11 // pred_region
          %s660 = ssub.s32 64, 64
          %661 = vsyncadd [#allocation26], %s660
          %s663 = sshll.u32 [#allocation27], 4
          %s664 = int_to_ptr.vmem [resolvable:$true] %s663
          %666 = dma.hbm_to_vmem [thread:$0]  %s14, 64, %s664, [#allocation26]
        $region68: #{task_shared_forward.1} parent=11 // pred_fallthru
          _
        // Predicated region
        $region69: #{task_shared_forward.1} parent=11 // pred_check
          %p667 = pneg %p393
        $region70: #{task_shared_forward.1} parent=11 // pred_check_branch
          %669 = sbr.rel (%p667) target = $region72
        $region71: #{task_shared_forward.1} parent=11 // pred_region
          %s671 = ssub.s32 40960, 40960
          %672 = vsyncadd [#allocation29], %s671
          %s673 = sshll.u32 [#allocation28], 4
          %s674 = int_to_ptr.vmem [resolvable:$true] %s673
          %679 = dma.hbm_to_vmem [thread:$0]  %s15, 40960, %s674, [#allocation29], 128, 128, 8
        $region72: #{task_shared_forward.1} parent=11 // pred_fallthru
          _
        // Predicated region
        $region73: #{task_shared_forward.1} parent=11 // pred_check
          %p680 = pneg %p414
        $region74: #{task_shared_forward.1} parent=11 // pred_check_branch
          %682 = sbr.rel (%p680) target = $region76
        $region75: #{task_shared_forward.1} parent=11 // pred_region
          %s684 = ssub.s32 32, 32
          %685 = vsyncadd [#allocation29], %s684
          %s687 = sshll.u32 [#allocation30], 4
          %s688 = int_to_ptr.vmem [resolvable:$true] %s687
          %690 = dma.hbm_to_vmem [thread:$0]  %s16, 32, %s688, [#allocation29]
        $region76: #{task_shared_forward.1} parent=11 // pred_fallthru
          _
        // Predicated region
        $region77: #{task_shared_forward.1} parent=11 // pred_check
          %p691 = pneg %p435
        $region78: #{task_shared_forward.1} parent=11 // pred_check_branch
          %693 = sbr.rel (%p691) target = $region80
        $region79: #{task_shared_forward.1} parent=11 // pred_region
          %s695 = ssub.s32 10240, 10240
          %696 = vsyncadd [#allocation32], %s695
          %s697 = sshll.u32 [#allocation31], 4
          %s698 = int_to_ptr.vmem [resolvable:$true] %s697
          %703 = dma.hbm_to_vmem [thread:$0]  %s17, 10240, %s698, [#allocation32], 320, 320, 20
        $region80: #{task_shared_forward.1} parent=11 // pred_fallthru
          _
        // Predicated region
        $region81: #{task_shared_forward.1} parent=11 // pred_check
          %p704 = pneg %p456
        $region82: #{task_shared_forward.1} parent=11 // pred_check_branch
          %706 = sbr.rel (%p704) target = $region84
        $region83: #{task_shared_forward.1} parent=11 // pred_region
          %s708 = ssub.s32 16, 16
          %709 = vsyncadd [#allocation32], %s708
          %s711 = sshll.u32 [#allocation33], 4
          %s712 = int_to_ptr.vmem [resolvable:$true] %s711
          %714 = dma.hbm_to_vmem [thread:$0]  %s18, 16, %s712, [#allocation32]
        $region84: #{task_shared_forward.1} parent=11 // pred_fallthru
          _
      $region12: #{task_shared_forward.1} parent=5 // pred_fallthru
        _
      %p715 = scmp.lt.s32.totalorder %s40, 4
      // Predicated region
      $region85: #{task_shared_forward.1} parent=5 // pred_check
        %p716 = pneg %p715
      $region86: #{task_shared_forward.1} parent=5 // pred_check_branch
        %718 = sbr.rel (%p716) target = $region88
      $region87: #{task_shared_forward.1} parent=5 // pred_region
        // Predicated region
        $region89: #{task_shared_forward.1} parent=87 // pred_check
          %p719 = pneg %p72
        $region90: #{task_shared_forward.1} parent=87 // pred_check_branch
          %721 = sbr.rel (%p719) target = $region92
        $region91: #{task_shared_forward.1} parent=87 // pred_region
          %s722 = sand.u32 %s62, 1
          %s723 = scalar_lea.sflag [#allocation5], %s722
          %s724 = sand.u32 %s62, 1
          %s725 = smul.addr %s724, 16
          %s726 = scalar_lea.vmem [#allocation4], %s725
          %s728 = ssub.s32 256, 256
          %729 = vsyncadd %s723, %s728
          %s730 = smul.addr %s47, 4
          %s731 = smul.addr %s730, 64
          %s732 = scalar_lea.hbm %s0, %s731
          %s733 = sshll.u32 %s726, 4
          %s734 = int_to_ptr.vmem [resolvable:$true] %s733
          %739 = dma.hbm_to_vmem [thread:$0]  %s732, 256, %s734, %s723, 64, 64, 4
        $region92: #{task_shared_forward.1} parent=87 // pred_fallthru
          _
      $region88: #{task_shared_forward.1} parent=5 // pred_fallthru
        _
      %p740 = scmp.le.s32.totalorder 1, %s40
      %p741 = scmp.lt.s32.totalorder %s40, 5
      %p742 = pnand %p740, %p741
      %p743 = pneg %p742
      // Predicated region
      $region93: #{task_shared_forward.1} parent=5 // pred_check
        _
      $region94: #{task_shared_forward.1} parent=5 // pred_check_branch
        %745 = sbr.rel (%p742) target = $region96
      $region95: #{task_shared_forward.1} parent=5 // pred_region
        %s746 = ssub.s32 %s40, 1
        %s747 = sand.u32 %s65, 1
        %s748 = scalar_lea.sflag [#allocation5], %s747
        %s749 = sand.u32 %s65, 1
        %s750 = smul.addr %s749, 16
        %s751 = scalar_lea.vmem [#allocation4], %s750
        // Predicated region
        $region97: #{task_shared_forward.1} parent=95 // pred_check
          %p752 = pneg %p78
        $region98: #{task_shared_forward.1} parent=95 // pred_check_branch
          %754 = sbr.rel (%p752) target = $region100
        $region99: #{task_shared_forward.1} parent=95 // pred_region
          %755 = dma.done %s748, 256
        $region100: #{task_shared_forward.1} parent=95 // pred_fallthru
          _
        // Predicated region
        $region101: #{task_shared_forward.1} parent=95 // pred_check
          %p756 = pneg %p99
        $region102: #{task_shared_forward.1} parent=95 // pred_check_branch
          %758 = sbr.rel (%p756) target = $region104
        $region103: #{task_shared_forward.1} parent=95 // pred_region
          %759 = dma.done [#allocation8], 1280
        $region104: #{task_shared_forward.1} parent=95 // pred_fallthru
          _
        // Predicated region
        $region105: #{task_shared_forward.1} parent=95 // pred_check
          %p760 = pneg %p120
        $region106: #{task_shared_forward.1} parent=95 // pred_check_branch
          %762 = sbr.rel (%p760) target = $region108
        $region107: #{task_shared_forward.1} parent=95 // pred_region
          %763 = dma.done [#allocation8], 64
        $region108: #{task_shared_forward.1} parent=95 // pred_fallthru
          _
        // Predicated region
        $region109: #{task_shared_forward.1} parent=95 // pred_check
          %p764 = pneg %p141
        $region110: #{task_shared_forward.1} parent=95 // pred_check_branch
          %766 = sbr.rel (%p764) target = $region112
        $region111: #{task_shared_forward.1} parent=95 // pred_region
          %767 = dma.done [#allocation11], 8192
        $region112: #{task_shared_forward.1} parent=95 // pred_fallthru
          _
        // Predicated region
        $region113: #{task_shared_forward.1} parent=95 // pred_check
          %p768 = pneg %p162
        $region114: #{task_shared_forward.1} parent=95 // pred_check_branch
          %770 = sbr.rel (%p768) target = $region116
        $region115: #{task_shared_forward.1} parent=95 // pred_region
          %771 = dma.done [#allocation11], 32
        $region116: #{task_shared_forward.1} parent=95 // pred_fallthru
          _
        // Predicated region
        $region117: #{task_shared_forward.1} parent=95 // pred_check
          %p772 = pneg %p183
        $region118: #{task_shared_forward.1} parent=95 // pred_check_branch
          %774 = sbr.rel (%p772) target = $region120
        $region119: #{task_shared_forward.1} parent=95 // pred_region
          %775 = dma.done [#allocation14], 2048
        $region120: #{task_shared_forward.1} parent=95 // pred_fallthru
          _
        // Predicated region
        $region121: #{task_shared_forward.1} parent=95 // pred_check
          %p776 = pneg %p204
        $region122: #{task_shared_forward.1} parent=95 // pred_check_branch
          %778 = sbr.rel (%p776) target = $region124
        $region123: #{task_shared_forward.1} parent=95 // pred_region
          %779 = dma.done [#allocation14], 16
        $region124: #{task_shared_forward.1} parent=95 // pred_fallthru
          _
        // Predicated region
        $region125: #{task_shared_forward.1} parent=95 // pred_check
          %p780 = pneg %p225
        $region126: #{task_shared_forward.1} parent=95 // pred_check_branch
          %782 = sbr.rel (%p780) target = $region128
        $region127: #{task_shared_forward.1} parent=95 // pred_region
          %783 = dma.done [#allocation17], 1280
        $region128: #{task_shared_forward.1} parent=95 // pred_fallthru
          _
        // Predicated region
        $region129: #{task_shared_forward.1} parent=95 // pred_check
          %p784 = pneg %p246
        $region130: #{task_shared_forward.1} parent=95 // pred_check_branch
          %786 = sbr.rel (%p784) target = $region132
        $region131: #{task_shared_forward.1} parent=95 // pred_region
          %787 = dma.done [#allocation17], 64
        $region132: #{task_shared_forward.1} parent=95 // pred_fallthru
          _
        // Predicated region
        $region133: #{task_shared_forward.1} parent=95 // pred_check
          %p788 = pneg %p267
        $region134: #{task_shared_forward.1} parent=95 // pred_check_branch
          %790 = sbr.rel (%p788) target = $region136
        $region135: #{task_shared_forward.1} parent=95 // pred_region
          %791 = dma.done [#allocation20], 24576
        $region136: #{task_shared_forward.1} parent=95 // pred_fallthru
          _
        // Predicated region
        $region137: #{task_shared_forward.1} parent=95 // pred_check
          %p792 = pneg %p288
        $region138: #{task_shared_forward.1} parent=95 // pred_check_branch
          %794 = sbr.rel (%p792) target = $region140
        $region139: #{task_shared_forward.1} parent=95 // pred_region
          %795 = dma.done [#allocation20], 32
        $region140: #{task_shared_forward.1} parent=95 // pred_fallthru
          _
        // Predicated region
        $region141: #{task_shared_forward.1} parent=95 // pred_check
          %p796 = pneg %p309
        $region142: #{task_shared_forward.1} parent=95 // pred_check_branch
          %798 = sbr.rel (%p796) target = $region144
        $region143: #{task_shared_forward.1} parent=95 // pred_region
          %799 = dma.done [#allocation23], 6144
        $region144: #{task_shared_forward.1} parent=95 // pred_fallthru
          _
        // Predicated region
        $region145: #{task_shared_forward.1} parent=95 // pred_check
          %p800 = pneg %p330
        $region146: #{task_shared_forward.1} parent=95 // pred_check_branch
          %802 = sbr.rel (%p800) target = $region148
        $region147: #{task_shared_forward.1} parent=95 // pred_region
          %803 = dma.done [#allocation23], 16
        $region148: #{task_shared_forward.1} parent=95 // pred_fallthru
          _
        // Predicated region
        $region149: #{task_shared_forward.1} parent=95 // pred_check
          %p804 = pneg %p351
        $region150: #{task_shared_forward.1} parent=95 // pred_check_branch
          %806 = sbr.rel (%p804) target = $region152
        $region151: #{task_shared_forward.1} parent=95 // pred_region
          %807 = dma.done [#allocation26], 1280
        $region152: #{task_shared_forward.1} parent=95 // pred_fallthru
          _
        // Predicated region
        $region153: #{task_shared_forward.1} parent=95 // pred_check
          %p808 = pneg %p372
        $region154: #{task_shared_forward.1} parent=95 // pred_check_branch
          %810 = sbr.rel (%p808) target = $region156
        $region155: #{task_shared_forward.1} parent=95 // pred_region
          %811 = dma.done [#allocation26], 64
        $region156: #{task_shared_forward.1} parent=95 // pred_fallthru
          _
        // Predicated region
        $region157: #{task_shared_forward.1} parent=95 // pred_check
          %p812 = pneg %p393
        $region158: #{task_shared_forward.1} parent=95 // pred_check_branch
          %814 = sbr.rel (%p812) target = $region160
        $region159: #{task_shared_forward.1} parent=95 // pred_region
          %815 = dma.done [#allocation29], 40960
        $region160: #{task_shared_forward.1} parent=95 // pred_fallthru
          _
        // Predicated region
        $region161: #{task_shared_forward.1} parent=95 // pred_check
          %p816 = pneg %p414
        $region162: #{task_shared_forward.1} parent=95 // pred_check_branch
          %818 = sbr.rel (%p816) target = $region164
        $region163: #{task_shared_forward.1} parent=95 // pred_region
          %819 = dma.done [#allocation29], 32
        $region164: #{task_shared_forward.1} parent=95 // pred_fallthru
          _
        // Predicated region
        $region165: #{task_shared_forward.1} parent=95 // pred_check
          %p820 = pneg %p435
        $region166: #{task_shared_forward.1} parent=95 // pred_check_branch
          %822 = sbr.rel (%p820) target = $region168
        $region167: #{task_shared_forward.1} parent=95 // pred_region
          %823 = dma.done [#allocation32], 10240
        $region168: #{task_shared_forward.1} parent=95 // pred_fallthru
          _
        // Predicated region
        $region169: #{task_shared_forward.1} parent=95 // pred_check
          %p824 = pneg %p456
        $region170: #{task_shared_forward.1} parent=95 // pred_check_branch
          %826 = sbr.rel (%p824) target = $region172
        $region171: #{task_shared_forward.1} parent=95 // pred_region
          %827 = dma.done [#allocation32], 16
        $region172: #{task_shared_forward.1} parent=95 // pred_fallthru
          _
        %s828 = sand.u32 %s65, 1
        %s829 = scalar_lea.sflag [#allocation5], %s828
        %s830 = sand.u32 %s65, 1
        %s831 = smul.addr %s830, 16
        %s832 = scalar_lea.vmem [#allocation4], %s831
        %p833 = pneg %p78
        %p834 = pneg %p75
        %p835 = pneg %p99
        %p836 = pneg %p96
        %p837 = pneg %p120
        %p838 = pneg %p117
        %p839 = pneg %p141
        %p840 = pneg %p138
        %p841 = pneg %p162
        %p842 = pneg %p159
        %p843 = pneg %p183
        %p844 = pneg %p180
        %p845 = pneg %p204
        %p846 = pneg %p201
        %p847 = pneg %p225
        %p848 = pneg %p222
        %p849 = pneg %p246
        %p850 = pneg %p243
        %p851 = pneg %p267
        %p852 = pneg %p264
        %p853 = pneg %p288
        %p854 = pneg %p285
        %p855 = pneg %p309
        %p856 = pneg %p306
        %p857 = pneg %p330
        %p858 = pneg %p327
        %p859 = pneg %p351
        %p860 = pneg %p348
        %p861 = pneg %p372
        %p862 = pneg %p369
        %p863 = pneg %p393
        %p864 = pneg %p390
        %p865 = pneg %p414
        %p866 = pneg %p411
        %p867 = pneg %p435
        %p868 = pneg %p432
        %p869 = pneg %p456
        %p870 = pneg %p453
        %p871 = pneg %p484
        %p872 = pneg %p481
        %s873 = sand.u32 %s471, 1
        %s874 = scalar_lea.sflag [#allocation6], %s873
        %s875 = sand.u32 %s471, 1
        %s876 = smul.addr %s875, 8
        %s877 = scalar_lea.vmem [#allocation34], %s876
        %s879 = smul.u32 %s50, 8
        %s880 = sshra.s32 %s879, 3
        %s881 = sand.u32 %s879, 7
        %s882 = smul.addr %s880, 4
        %s883 = scalar_lea.vmem %s751, %s882 [#allocation4]
        %v884 = vld [vmem:[%s883] sm:$0xf]
        %v885 = vld [vmem:[%s883 + $0x4] sm:$0xf]
        %v886 = vld [vmem:[%s883 + $0x8] sm:$0xf]
        %s887 = ssub.s32 %s879, 8
        %v888 = vlaneseq
        %v889 = vshrl.u32 %v888, 7
        %v890 = vadd.s32 %v889, 8
        %v891 = vadd.s32 %v889, 16
        %v892 = vstv %s887
        %v893 = vadd.s32 %v892, %v889
        %v894 = vadd.s32 %v892, %v890
        %v895 = vadd.s32 %v892, %v891
        %vm896 = vcmp.ge.s32.totalorder %v893, 0
        %vm897 = vcmp.ge.s32.totalorder %v894, 0
        %vm898 = vcmp.ge.s32.totalorder %v895, 0
        %vm899 = vcmp.lt.s32.totalorder %v893, 16
        %vm900 = vcmp.lt.s32.totalorder %v894, 16
        %vm901 = vcmp.lt.s32.totalorder %v895, 16
        %vm902 = vmand %vm896, %vm899
        %vm903 = vmand %vm897, %vm900
        %vm904 = vmand %vm898, %vm901
        %s905 = ssub.s32 %s879, 4
        %v906 = vstv %s905
        %v907 = vadd.s32 %v906, %v889
        %v908 = vadd.s32 %v906, %v890
        %vm909 = vcmp.ge.s32.totalorder %v907, 0
        %vm910 = vcmp.ge.s32.totalorder %v908, 0
        %vm911 = vcmp.lt.s32.totalorder %v907, 16
        %vm912 = vcmp.lt.s32.totalorder %v908, 16
        %vm913 = vmand %vm909, %vm911
        %vm914 = vmand %vm910, %vm912
        %v915 = vld [vmem:[#allocation7] sm:$0xff]
        %v916 = vld [vmem:[#allocation7 + $0x8] sm:$0xff]
        %v917 = vld [vmem:[#allocation7 + $0x10] sm:$0xff]
        %v918 = vld [vmem:[#allocation7 + $0x18] sm:$0xff]
        %v919 = vld [vmem:[#allocation7 + $0x20] sm:$0xff]
        %v920 = vld [vmem:[#allocation7 + $0x28] sm:$0xff]
        %v921 = vld [vmem:[#allocation7 + $0x30] sm:$0xff]
        %v922 = vld [vmem:[#allocation7 + $0x38] sm:$0xff]
        %v923 = vld [vmem:[#allocation7 + $0x40] sm:$0xff]
        %v924 = vld [vmem:[#allocation7 + $0x48] sm:$0xff]
        %v925 = vld [vmem:[#allocation9] sm:$0xf]
        %v927 = vlaneseq
        %v928 = vshrl.u32 %v927, 7
        %v929 = vsub.s32 0, %v928
        %v930 = vrot.slane %v925, %v929
        %v931 = vlaneseq
        %v932 = vshrl.u32 %v931, 7
        %v933 = vsub.s32 1, %v932
        %v934 = vrot.slane %v925, %v933
        %v935 = vlaneseq
        %v936 = vshrl.u32 %v935, 7
        %v937 = vsub.s32 2, %v936
        %v938 = vrot.slane %v925, %v937
        %v939 = vlaneseq
        %v940 = vshrl.u32 %v939, 7
        %v941 = vsub.s32 3, %v940
        %v942 = vrot.slane %v925, %v941
        %v950 = vunpack.c.l.b16 %v884
        %v951 = vunpack.c.l.b16 %v885
        %v952 = vunpack.c.l.b16 %v886
        %v953 = vpack.c.b16 %v951, %v950
        %v954 = vpack.c.b16 %v952, %v952
        %v965 = vunpack.c.l.b16 %v915
        %v966 = vunpack.c.h.b16 %v915
        %v967 = vunpack.c.l.b16 %v916
        %v968 = vunpack.c.h.b16 %v916
        %v969 = vunpack.c.l.b16 %v917
        %v970 = vunpack.c.h.b16 %v917
        %v971 = vunpack.c.l.b16 %v918
        %v972 = vunpack.c.h.b16 %v918
        %v973 = vunpack.c.l.b16 %v919
        %v974 = vunpack.c.h.b16 %v919
        %v975 = vunpack.c.l.b16 %v920
        %v976 = vunpack.c.h.b16 %v920
        %v977 = vunpack.c.l.b16 %v921
        %v978 = vunpack.c.h.b16 %v921
        %v979 = vunpack.c.l.b16 %v922
        %v980 = vunpack.c.h.b16 %v922
        %v981 = vunpack.c.l.b16 %v923
        %v982 = vunpack.c.h.b16 %v923
        %v983 = vunpack.c.l.b16 %v924
        %v984 = vunpack.c.h.b16 %v924
        %v985 = vpack.c.b16 %v969, %v965
        %v986 = vpack.c.b16 %v970, %v966
        %v987 = vpack.c.b16 %v971, %v967
        %v988 = vpack.c.b16 %v972, %v968
        %v989 = vpack.c.b16 %v977, %v973
        %v990 = vpack.c.b16 %v978, %v974
        %v991 = vpack.c.b16 %v979, %v975
        %v992 = vpack.c.b16 %v980, %v976
        %v993 = vpack.c.b16 %v981, %v981
        %v994 = vpack.c.b16 %v982, %v982
        %v995 = vpack.c.b16 %v983, %v983
        %v996 = vpack.c.b16 %v984, %v984
        %vm1005 = vcmask 326656
        %v1007 = vsel %vm1005, %v953, 0
        %v1010 = vsel %vm1005, %v954, 0
        %vm1012 = vcmask 1043456
        %v1014 = vsel %vm1012, %v993, 0
        %v1017 = vsel %vm1012, %v994, 0
        %v1020 = vsel %vm1012, %v995, 0
        %v1023 = vsel %vm1012, %v996, 0
        %1025 = vmatprep.subr.bf16.mxu0 %v986
        %1026 = vmatpush1.bf16.msra.mxu0 %v985
        %1027 = vmatprep.subr.bf16.mxu0 %v990
        %1028 = vmatpush1.bf16.msra.mxu0 %v989
        %1029 = vmatprep.subr.bf16.mxu0 %v1017
        %1030 = vmatpush1.bf16.msra.mxu0 %v1014
        %1031 = vmatprep.subr.bf16.mxu0 0
        %1032 = vmatpush1.bf16.msra.mxu0 0
        %1033 = vmatprep.subr.bf16.mxu0 0
        %1034 = vmatpush1.bf16.msra.mxu0 0
        %1035 = vmatprep.subr.bf16.mxu0 0
        %1036 = vmatpush1.bf16.msra.mxu0 0
        %1037 = vmatprep.subr.bf16.mxu0 0
        %1038 = vmatpush1.bf16.msra.mxu0 0
        %1039 = vmatprep.subr.bf16.mxu0 0
        %1040 = vmatpush1.bf16.msra.mxu0 0
        %1041 = vmatprep.subr.bf16.mxu0 0
        %1042 = vmatpush1.bf16.msra.mxu0 0
        %1043 = vmatprep.subr.bf16.mxu0 0
        %1044 = vmatpush1.bf16.msra.mxu0 0
        %1045 = vmatprep.subr.bf16.mxu0 0
        %1046 = vmatpush1.bf16.msra.mxu0 0
        %1047 = vmatprep.subr.bf16.mxu0 0
        %1048 = vmatpush1.bf16.msra.mxu0 0
        %1049 = vmatprep.subr.bf16.mxu0 0
        %1050 = vmatpush1.bf16.msra.mxu0 0
        %1051 = vmatprep.subr.bf16.mxu0 0
        %1052 = vmatpush1.bf16.msra.mxu0 0
        %1053 = vmatprep.subr.bf16.mxu0 0
        %1054 = vmatpush1.bf16.msra.mxu0 0
        %1055 = vmatprep.subr.bf16.mxu0 0
        %1056 = vmatpush1.bf16.msra.mxu0 0
        %1057 = vmatprep.mubr.bf16.mxu0 0
        %1058 = vmatmul.mubr.bf16.gmra.mrb[0].mxu0 %v1007
        %v1059 = vpop.f32.mrb[0].mxu0
        %v1060 = vadd.f32 %v930, %v1059
        %v1061 = vpop.f32.mrb[0].mxu0
        %v1062 = vadd.f32 %v934, %v1061
        %v1063 = vpop.f32.mrb[0].mxu0
        %v1064 = vadd.f32 %v930, %v1063
        %v1065 = vpop.f32.mrb[0].mxu0
        %v1066 = vadd.f32 %v934, %v1065
        %1067 = vmatprep.mubr.bf16.mxu0 0
        %1068 = vmatmul.mubr.bf16.gmra.mrb[0].mxu0 %v1010
        %v1069 = vpop.f32.mrb[0].mxu0
        %v1070 = vadd.f32 %v930, %v1069
        %v1071 = vpop.f32.mrb[0].mxu0
        %v1072 = vadd.f32 %v934, %v1071
        %v1073 = vpop.f32.mrb[0].mxu0
        %v1074 = vpop.f32.mrb[0].mxu0
        %1075 = vdwg.mxu0
        %1076 = vmatprep.subr.bf16.mxu0 %v988
        %1077 = vmatpush1.bf16.msra.mxu0 %v987
        %1078 = vmatprep.subr.bf16.mxu0 %v992
        %1079 = vmatpush1.bf16.msra.mxu0 %v991
        %1080 = vmatprep.subr.bf16.mxu0 %v1023
        %1081 = vmatpush1.bf16.msra.mxu0 %v1020
        %1082 = vmatprep.subr.bf16.mxu0 0
        %1083 = vmatpush1.bf16.msra.mxu0 0
        %1084 = vmatprep.subr.bf16.mxu0 0
        %1085 = vmatpush1.bf16.msra.mxu0 0
        %1086 = vmatprep.subr.bf16.mxu0 0
        %1087 = vmatpush1.bf16.msra.mxu0 0
        %1088 = vmatprep.subr.bf16.mxu0 0
        %1089 = vmatpush1.bf16.msra.mxu0 0
        %1090 = vmatprep.subr.bf16.mxu0 0
        %1091 = vmatpush1.bf16.msra.mxu0 0
        %1092 = vmatprep.subr.bf16.mxu0 0
        %1093 = vmatpush1.bf16.msra.mxu0 0
        %1094 = vmatprep.subr.bf16.mxu0 0
        %1095 = vmatpush1.bf16.msra.mxu0 0
        %1096 = vmatprep.subr.bf16.mxu0 0
        %1097 = vmatpush1.bf16.msra.mxu0 0
        %1098 = vmatprep.subr.bf16.mxu0 0
        %1099 = vmatpush1.bf16.msra.mxu0 0
        %1100 = vmatprep.subr.bf16.mxu0 0
        %1101 = vmatpush1.bf16.msra.mxu0 0
        %1102 = vmatprep.subr.bf16.mxu0 0
        %1103 = vmatpush1.bf16.msra.mxu0 0
        %1104 = vmatprep.subr.bf16.mxu0 0
        %1105 = vmatpush1.bf16.msra.mxu0 0
        %1106 = vmatprep.subr.bf16.mxu0 0
        %1107 = vmatpush1.bf16.msra.mxu0 0
        %1108 = vmatprep.mubr.bf16.mxu0 0
        %1109 = vmatmul.mubr.bf16.gmra.mrb[0].mxu0 %v1007
        %v1110 = vpop.f32.mrb[0].mxu0
        %v1111 = vadd.f32 %v938, %v1110
        %v1112 = vpop.f32.mrb[0].mxu0
        %v1113 = vadd.f32 %v942, %v1112
        %v1114 = vpop.f32.mrb[0].mxu0
        %v1115 = vadd.f32 %v938, %v1114
        %v1116 = vpop.f32.mrb[0].mxu0
        %v1117 = vadd.f32 %v942, %v1116
        %1118 = vmatprep.mubr.bf16.mxu0 0
        %1119 = vmatmul.mubr.bf16.gmra.mrb[0].mxu0 %v1010
        %v1120 = vpop.f32.mrb[0].mxu0
        %v1121 = vadd.f32 %v938, %v1120
        %v1122 = vpop.f32.mrb[0].mxu0
        %v1123 = vadd.f32 %v942, %v1122
        %v1124 = vpop.f32.mrb[0].mxu0
        %v1125 = vpop.f32.mrb[0].mxu0
        %1126 = vdwg.mxu0
        %v1127 = vmax.f32 %v1060, 0.0
        %v1128 = vmax.f32 %v1062, 0.0
        %v1129 = vmax.f32 %v1111, 0.0
        %v1130 = vmax.f32 %v1113, 0.0
        %v1131 = vmax.f32 %v1064, 0.0
        %v1132 = vmax.f32 %v1066, 0.0
        %v1133 = vmax.f32 %v1115, 0.0
        %v1134 = vmax.f32 %v1117, 0.0
        %v1135 = vmax.f32 %v1070, 0.0
        %v1136 = vmax.f32 %v1072, 0.0
        %v1137 = vmax.f32 %v1121, 0.0
        %v1138 = vmax.f32 %v1123, 0.0
        %v1139 = vsel %vm902, 1, 0
        %v1140 = vsel %vm903, 1, 0
        %v1141 = vsel %vm904, 1, 0
        %vm1142 = vcmp.eq.s32.totalorder %v1139, 1
        %vm1143 = vcmp.eq.s32.totalorder %v1140, 1
        %vm1144 = vcmp.eq.s32.totalorder %v1141, 1
        %v1145 = vsel %vm1142, %v1127, 0.0
        %v1146 = vsel %vm1142, %v1128, 0.0
        %v1147 = vsel %vm1142, %v1129, 0.0
        %v1148 = vsel %vm1142, %v1130, 0.0
        %v1149 = vsel %vm1143, %v1131, 0.0
        %v1150 = vsel %vm1143, %v1132, 0.0
        %v1151 = vsel %vm1143, %v1133, 0.0
        %v1152 = vsel %vm1143, %v1134, 0.0
        %v1153 = vsel %vm1144, %v1135, 0.0
        %v1154 = vsel %vm1144, %v1136, 0.0
        %v1155 = vsel %vm1144, %v1137, 0.0
        %v1156 = vsel %vm1144, %v1138, 0.0
        %v1157 = vpack.c.bf16 %v1149, %v1145
        %v1158 = vpack.c.bf16 %v1150, %v1146
        %v1159 = vpack.c.bf16 %v1151, %v1147
        %v1160 = vpack.c.bf16 %v1152, %v1148
        %v1161 = vpack.c.bf16 %v1153, %v1153
        %v1162 = vpack.c.bf16 %v1154, %v1154
        %v1163 = vpack.c.bf16 %v1155, %v1155
        %v1164 = vpack.c.bf16 %v1156, %v1156
        %v1173 = vunpack.c.l.b16 %v1157
        %v1174 = vunpack.c.l.b16 %v1158
        %v1175 = vunpack.c.l.b16 %v1159
        %v1176 = vunpack.c.l.b16 %v1160
        %v1177 = vunpack.c.h.b16 %v1157
        %v1178 = vunpack.c.h.b16 %v1158
        %v1179 = vunpack.c.h.b16 %v1159
        %v1180 = vunpack.c.h.b16 %v1160
        %v1181 = vunpack.c.l.b16 %v1161
        %v1182 = vunpack.c.l.b16 %v1162
        %v1183 = vunpack.c.l.b16 %v1163
        %v1184 = vunpack.c.l.b16 %v1164
        %v1185 = vpack.c.b16 %v1174, %v1173
        %v1186 = vpack.c.b16 %v1176, %v1175
        %v1187 = vpack.c.b16 %v1178, %v1177
        %v1188 = vpack.c.b16 %v1180, %v1179
        %v1189 = vpack.c.b16 %v1182, %v1181
        %v1190 = vpack.c.b16 %v1184, %v1183
        %1197 = vst [vmem:[#allocation2] sm:$0xff] %v1185
        %1198 = vst [vmem:[#allocation2 + $0x8] sm:$0xff] %v1186
        %1199 = vst [vmem:[#allocation2 + $0x10] sm:$0xff] %v1187
        %1200 = vst [vmem:[#allocation2 + $0x18] sm:$0xff] %v1188
        %1201 = vst [vmem:[#allocation2 + $0x20] sm:$0xff] %v1189
        %1202 = vst [vmem:[#allocation2 + $0x28] sm:$0xff] %v1190
        %v1203 = vld [vmem:[#allocation2] sm:$0xff]
        %v1204 = vld [vmem:[#allocation2 + $0x8] sm:$0xff]
        %v1205 = vld [vmem:[#allocation2 + $0x10] sm:$0xff]
        %v1206 = vld [vmem:[#allocation2 + $0x18] sm:$0xff]
        %v1207 = vld [vmem:[#allocation2 + $0x20] sm:$0xff]
        %v1208 = vld [vmem:[#allocation2 + $0x28] sm:$0xff]
        %v1209 = vld [vmem:[#allocation10] sm:$0xff]
        %v1210 = vld [vmem:[#allocation10 + $0x8] sm:$0xff]
        %v1211 = vld [vmem:[#allocation10 + $0x10] sm:$0xff]
        %v1212 = vld [vmem:[#allocation10 + $0x18] sm:$0xff]
        %v1213 = vld [vmem:[#allocation10 + $0x20] sm:$0xff]
        %v1214 = vld [vmem:[#allocation10 + $0x28] sm:$0xff]
        %v1215 = vld [vmem:[#allocation10 + $0x30] sm:$0xff]
        %v1216 = vld [vmem:[#allocation10 + $0x38] sm:$0xff]
        %v1217 = vld [vmem:[#allocation10 + $0x40] sm:$0xff]
        %v1218 = vld [vmem:[#allocation10 + $0x48] sm:$0xff]
        %v1219 = vld [vmem:[#allocation10 + $0x50] sm:$0xff]
        %v1220 = vld [vmem:[#allocation10 + $0x58] sm:$0xff]
        %v1221 = vld [vmem:[#allocation10 + $0x60] sm:$0xff]
        %v1222 = vld [vmem:[#allocation10 + $0x68] sm:$0xff]
        %v1223 = vld [vmem:[#allocation10 + $0x70] sm:$0xff]
        %v1224 = vld [vmem:[#allocation10 + $0x78] sm:$0xff]
        %v1225 = vld [vmem:[#allocation10 + $0x80] sm:$0xff]
        %v1226 = vld [vmem:[#allocation10 + $0x88] sm:$0xff]
        %v1227 = vld [vmem:[#allocation10 + $0x90] sm:$0xff]
        %v1228 = vld [vmem:[#allocation10 + $0x98] sm:$0xff]
        %v1229 = vld [vmem:[#allocation10 + $0xa0] sm:$0xff]
        %v1230 = vld [vmem:[#allocation10 + $0xa8] sm:$0xff]
        %v1231 = vld [vmem:[#allocation10 + $0xb0] sm:$0xff]
        %v1232 = vld [vmem:[#allocation10 + $0xb8] sm:$0xff]
        %v1233 = vld [vmem:[#allocation10 + $0xc0] sm:$0xff]
        %v1234 = vld [vmem:[#allocation10 + $0xc8] sm:$0xff]
        %v1235 = vld [vmem:[#allocation10 + $0xd0] sm:$0xff]
        %v1236 = vld [vmem:[#allocation10 + $0xd8] sm:$0xff]
        %v1237 = vld [vmem:[#allocation10 + $0xe0] sm:$0xff]
        %v1238 = vld [vmem:[#allocation10 + $0xe8] sm:$0xff]
        %v1239 = vld [vmem:[#allocation10 + $0xf0] sm:$0xff]
        %v1240 = vld [vmem:[#allocation10 + $0xf8] sm:$0xff]
        %v1241 = vld [vmem:[#allocation10 + $0x100] sm:$0xff]
        %v1242 = vld [vmem:[#allocation10 + $0x108] sm:$0xff]
        %v1243 = vld [vmem:[#allocation10 + $0x110] sm:$0xff]
        %v1244 = vld [vmem:[#allocation10 + $0x118] sm:$0xff]
        %v1245 = vld [vmem:[#allocation10 + $0x120] sm:$0xff]
        %v1246 = vld [vmem:[#allocation10 + $0x128] sm:$0xff]
        %v1247 = vld [vmem:[#allocation10 + $0x130] sm:$0xff]
        %v1248 = vld [vmem:[#allocation10 + $0x138] sm:$0xff]
        %v1249 = vld [vmem:[#allocation10 + $0x140] sm:$0xff]
        %v1250 = vld [vmem:[#allocation10 + $0x148] sm:$0xff]
        %v1251 = vld [vmem:[#allocation10 + $0x150] sm:$0xff]
        %v1252 = vld [vmem:[#allocation10 + $0x158] sm:$0xff]
        %v1253 = vld [vmem:[#allocation10 + $0x160] sm:$0xff]
        %v1254 = vld [vmem:[#allocation10 + $0x168] sm:$0xff]
        %v1255 = vld [vmem:[#allocation10 + $0x170] sm:$0xff]
        %v1256 = vld [vmem:[#allocation10 + $0x178] sm:$0xff]
        %v1257 = vld [vmem:[#allocation10 + $0x180] sm:$0xff]
        %v1258 = vld [vmem:[#allocation10 + $0x188] sm:$0xff]
        %v1259 = vld [vmem:[#allocation10 + $0x190] sm:$0xff]
        %v1260 = vld [vmem:[#allocation10 + $0x198] sm:$0xff]
        %v1261 = vld [vmem:[#allocation10 + $0x1a0] sm:$0xff]
        %v1262 = vld [vmem:[#allocation10 + $0x1a8] sm:$0xff]
        %v1263 = vld [vmem:[#allocation10 + $0x1b0] sm:$0xff]
        %v1264 = vld [vmem:[#allocation10 + $0x1b8] sm:$0xff]
        %v1265 = vld [vmem:[#allocation10 + $0x1c0] sm:$0xff]
        %v1266 = vld [vmem:[#allocation10 + $0x1c8] sm:$0xff]
        %v1267 = vld [vmem:[#allocation10 + $0x1d0] sm:$0xff]
        %v1268 = vld [vmem:[#allocation10 + $0x1d8] sm:$0xff]
        %v1269 = vld [vmem:[#allocation10 + $0x1e0] sm:$0xff]
        %v1270 = vld [vmem:[#allocation10 + $0x1e8] sm:$0xff]
        %v1271 = vld [vmem:[#allocation10 + $0x1f0] sm:$0xff]
        %v1272 = vld [vmem:[#allocation10 + $0x1f8] sm:$0xff]
        %v1279 = vunpack.c.l.b16 %v1203
        %v1280 = vunpack.c.h.b16 %v1203
        %v1281 = vunpack.c.l.b16 %v1204
        %v1282 = vunpack.c.h.b16 %v1204
        %v1283 = vunpack.c.l.b16 %v1205
        %v1284 = vunpack.c.h.b16 %v1205
        %v1285 = vunpack.c.l.b16 %v1206
        %v1286 = vunpack.c.h.b16 %v1206
        %v1287 = vunpack.c.l.b16 %v1207
        %v1288 = vunpack.c.h.b16 %v1207
        %v1289 = vunpack.c.l.b16 %v1208
        %v1290 = vunpack.c.h.b16 %v1208
        %v1291 = vpack.c.b16 %v1283, %v1279
        %v1292 = vpack.c.b16 %v1284, %v1280
        %v1293 = vpack.c.b16 %v1285, %v1281
        %v1294 = vpack.c.b16 %v1286, %v1282
        %v1295 = vpack.c.b16 %v1287, %v1287
        %v1296 = vpack.c.b16 %v1288, %v1288
        %v1297 = vpack.c.b16 %v1289, %v1289
        %v1298 = vpack.c.b16 %v1290, %v1290
        %v1371 = vunpack.c.l.b16 %v1209
        %v1372 = vunpack.c.h.b16 %v1209
        %v1373 = vunpack.c.l.b16 %v1210
        %v1374 = vunpack.c.h.b16 %v1210
        %v1375 = vunpack.c.l.b16 %v1211
        %v1376 = vunpack.c.h.b16 %v1211
        %v1377 = vunpack.c.l.b16 %v1212
        %v1378 = vunpack.c.h.b16 %v1212
        %v1379 = vunpack.c.l.b16 %v1213
        %v1380 = vunpack.c.h.b16 %v1213
        %v1381 = vunpack.c.l.b16 %v1214
        %v1382 = vunpack.c.h.b16 %v1214
        %v1383 = vunpack.c.l.b16 %v1215
        %v1384 = vunpack.c.h.b16 %v1215
        %v1385 = vunpack.c.l.b16 %v1216
        %v1386 = vunpack.c.h.b16 %v1216
        %v1387 = vunpack.c.l.b16 %v1217
        %v1388 = vunpack.c.h.b16 %v1217
        %v1389 = vunpack.c.l.b16 %v1218
        %v1390 = vunpack.c.h.b16 %v1218
        %v1391 = vunpack.c.l.b16 %v1219
        %v1392 = vunpack.c.h.b16 %v1219
        %v1393 = vunpack.c.l.b16 %v1220
        %v1394 = vunpack.c.h.b16 %v1220
        %v1395 = vunpack.c.l.b16 %v1221
        %v1396 = vunpack.c.h.b16 %v1221
        %v1397 = vunpack.c.l.b16 %v1222
        %v1398 = vunpack.c.h.b16 %v1222
        %v1399 = vunpack.c.l.b16 %v1223
        %v1400 = vunpack.c.h.b16 %v1223
        %v1401 = vunpack.c.l.b16 %v1224
        %v1402 = vunpack.c.h.b16 %v1224
        %v1403 = vunpack.c.l.b16 %v1225
        %v1404 = vunpack.c.h.b16 %v1225
        %v1405 = vunpack.c.l.b16 %v1226
        %v1406 = vunpack.c.h.b16 %v1226
        %v1407 = vunpack.c.l.b16 %v1227
        %v1408 = vunpack.c.h.b16 %v1227
        %v1409 = vunpack.c.l.b16 %v1228
        %v1410 = vunpack.c.h.b16 %v1228
        %v1411 = vunpack.c.l.b16 %v1229
        %v1412 = vunpack.c.h.b16 %v1229
        %v1413 = vunpack.c.l.b16 %v1230
        %v1414 = vunpack.c.h.b16 %v1230
        %v1415 = vunpack.c.l.b16 %v1231
        %v1416 = vunpack.c.h.b16 %v1231
        %v1417 = vunpack.c.l.b16 %v1232
        %v1418 = vunpack.c.h.b16 %v1232
        %v1419 = vunpack.c.l.b16 %v1233
        %v1420 = vunpack.c.h.b16 %v1233
        %v1421 = vunpack.c.l.b16 %v1234
        %v1422 = vunpack.c.h.b16 %v1234
        %v1423 = vunpack.c.l.b16 %v1235
        %v1424 = vunpack.c.h.b16 %v1235
        %v1425 = vunpack.c.l.b16 %v1236
        %v1426 = vunpack.c.h.b16 %v1236
        %v1427 = vunpack.c.l.b16 %v1237
        %v1428 = vunpack.c.h.b16 %v1237
        %v1429 = vunpack.c.l.b16 %v1238
        %v1430 = vunpack.c.h.b16 %v1238
        %v1431 = vunpack.c.l.b16 %v1239
        %v1432 = vunpack.c.h.b16 %v1239
        %v1433 = vunpack.c.l.b16 %v1240
        %v1434 = vunpack.c.h.b16 %v1240
        %v1435 = vunpack.c.l.b16 %v1241
        %v1436 = vunpack.c.h.b16 %v1241
        %v1437 = vunpack.c.l.b16 %v1242
        %v1438 = vunpack.c.h.b16 %v1242
        %v1439 = vunpack.c.l.b16 %v1243
        %v1440 = vunpack.c.h.b16 %v1243
        %v1441 = vunpack.c.l.b16 %v1244
        %v1442 = vunpack.c.h.b16 %v1244
        %v1443 = vunpack.c.l.b16 %v1245
        %v1444 = vunpack.c.h.b16 %v1245
        %v1445 = vunpack.c.l.b16 %v1246
        %v1446 = vunpack.c.h.b16 %v1246
        %v1447 = vunpack.c.l.b16 %v1247
        %v1448 = vunpack.c.h.b16 %v1247
        %v1449 = vunpack.c.l.b16 %v1248
        %v1450 = vunpack.c.h.b16 %v1248
        %v1451 = vunpack.c.l.b16 %v1249
        %v1452 = vunpack.c.h.b16 %v1249
        %v1453 = vunpack.c.l.b16 %v1250
        %v1454 = vunpack.c.h.b16 %v1250
        %v1455 = vunpack.c.l.b16 %v1251
        %v1456 = vunpack.c.h.b16 %v1251
        %v1457 = vunpack.c.l.b16 %v1252
        %v1458 = vunpack.c.h.b16 %v1252
        %v1459 = vunpack.c.l.b16 %v1253
        %v1460 = vunpack.c.h.b16 %v1253
        %v1461 = vunpack.c.l.b16 %v1254
        %v1462 = vunpack.c.h.b16 %v1254
        %v1463 = vunpack.c.l.b16 %v1255
        %v1464 = vunpack.c.h.b16 %v1255
        %v1465 = vunpack.c.l.b16 %v1256
        %v1466 = vunpack.c.h.b16 %v1256
        %v1467 = vunpack.c.l.b16 %v1257
        %v1468 = vunpack.c.h.b16 %v1257
        %v1469 = vunpack.c.l.b16 %v1258
        %v1470 = vunpack.c.h.b16 %v1258
        %v1471 = vunpack.c.l.b16 %v1259
        %v1472 = vunpack.c.h.b16 %v1259
        %v1473 = vunpack.c.l.b16 %v1260
        %v1474 = vunpack.c.h.b16 %v1260
        %v1475 = vunpack.c.l.b16 %v1261
        %v1476 = vunpack.c.h.b16 %v1261
        %v1477 = vunpack.c.l.b16 %v1262
        %v1478 = vunpack.c.h.b16 %v1262
        %v1479 = vunpack.c.l.b16 %v1263
        %v1480 = vunpack.c.h.b16 %v1263
        %v1481 = vunpack.c.l.b16 %v1264
        %v1482 = vunpack.c.h.b16 %v1264
        %v1483 = vunpack.c.l.b16 %v1265
        %v1484 = vunpack.c.h.b16 %v1265
        %v1485 = vunpack.c.l.b16 %v1266
        %v1486 = vunpack.c.h.b16 %v1266
        %v1487 = vunpack.c.l.b16 %v1267
        %v1488 = vunpack.c.h.b16 %v1267
        %v1489 = vunpack.c.l.b16 %v1268
        %v1490 = vunpack.c.h.b16 %v1268
        %v1491 = vunpack.c.l.b16 %v1269
        %v1492 = vunpack.c.h.b16 %v1269
        %v1493 = vunpack.c.l.b16 %v1270
        %v1494 = vunpack.c.h.b16 %v1270
        %v1495 = vunpack.c.l.b16 %v1271
        %v1496 = vunpack.c.h.b16 %v1271
        %v1497 = vunpack.c.l.b16 %v1272
        %v1498 = vunpack.c.h.b16 %v1272
        %v1499 = vpack.c.b16 %v1373, %v1371
        %v1500 = vpack.c.b16 %v1374, %v1372
        %v1501 = vpack.c.b16 %v1377, %v1375
        %v1502 = vpack.c.b16 %v1378, %v1376
        %v1503 = vpack.c.b16 %v1381, %v1379
        %v1504 = vpack.c.b16 %v1382, %v1380
        %v1505 = vpack.c.b16 %v1385, %v1383
        %v1506 = vpack.c.b16 %v1386, %v1384
        %v1507 = vpack.c.b16 %v1389, %v1387
        %v1508 = vpack.c.b16 %v1390, %v1388
        %v1509 = vpack.c.b16 %v1393, %v1391
        %v1510 = vpack.c.b16 %v1394, %v1392
        %v1511 = vpack.c.b16 %v1397, %v1395
        %v1512 = vpack.c.b16 %v1398, %v1396
        %v1513 = vpack.c.b16 %v1401, %v1399
        %v1514 = vpack.c.b16 %v1402, %v1400
        %v1515 = vpack.c.b16 %v1405, %v1403
        %v1516 = vpack.c.b16 %v1406, %v1404
        %v1517 = vpack.c.b16 %v1409, %v1407
        %v1518 = vpack.c.b16 %v1410, %v1408
        %v1519 = vpack.c.b16 %v1413, %v1411
        %v1520 = vpack.c.b16 %v1414, %v1412
        %v1521 = vpack.c.b16 %v1417, %v1415
        %v1522 = vpack.c.b16 %v1418, %v1416
        %v1523 = vpack.c.b16 %v1421, %v1419
        %v1524 = vpack.c.b16 %v1422, %v1420
        %v1525 = vpack.c.b16 %v1425, %v1423
        %v1526 = vpack.c.b16 %v1426, %v1424
        %v1527 = vpack.c.b16 %v1429, %v1427
        %v1528 = vpack.c.b16 %v1430, %v1428
        %v1529 = vpack.c.b16 %v1433, %v1431
        %v1530 = vpack.c.b16 %v1434, %v1432
        %v1531 = vpack.c.b16 %v1437, %v1435
        %v1532 = vpack.c.b16 %v1438, %v1436
        %v1533 = vpack.c.b16 %v1441, %v1439
        %v1534 = vpack.c.b16 %v1442, %v1440
        %v1535 = vpack.c.b16 %v1445, %v1443
        %v1536 = vpack.c.b16 %v1446, %v1444
        %v1537 = vpack.c.b16 %v1449, %v1447
        %v1538 = vpack.c.b16 %v1450, %v1448
        %v1539 = vpack.c.b16 %v1453, %v1451
        %v1540 = vpack.c.b16 %v1454, %v1452
        %v1541 = vpack.c.b16 %v1457, %v1455
        %v1542 = vpack.c.b16 %v1458, %v1456
        %v1543 = vpack.c.b16 %v1461, %v1459
        %v1544 = vpack.c.b16 %v1462, %v1460
        %v1545 = vpack.c.b16 %v1465, %v1463
        %v1546 = vpack.c.b16 %v1466, %v1464
        %v1547 = vpack.c.b16 %v1469, %v1467
        %v1548 = vpack.c.b16 %v1470, %v1468
        %v1549 = vpack.c.b16 %v1473, %v1471
        %v1550 = vpack.c.b16 %v1474, %v1472
        %v1551 = vpack.c.b16 %v1477, %v1475
        %v1552 = vpack.c.b16 %v1478, %v1476
        %v1553 = vpack.c.b16 %v1481, %v1479
        %v1554 = vpack.c.b16 %v1482, %v1480
        %v1555 = vpack.c.b16 %v1485, %v1483
        %v1556 = vpack.c.b16 %v1486, %v1484
        %v1557 = vpack.c.b16 %v1489, %v1487
        %v1558 = vpack.c.b16 %v1490, %v1488
        %v1559 = vpack.c.b16 %v1493, %v1491
        %v1560 = vpack.c.b16 %v1494, %v1492
        %v1561 = vpack.c.b16 %v1497, %v1495
        %v1562 = vpack.c.b16 %v1498, %v1496
        %1627 = vmatprep.subr.bf16.mxu0 %v1500
        %1628 = vmatpush1.bf16.msra.mxu0 %v1499
        %1629 = vmatprep.subr.bf16.mxu0 %v1502
        %1630 = vmatpush1.bf16.msra.mxu0 %v1501
        %1631 = vmatprep.subr.bf16.mxu0 %v1504
        %1632 = vmatpush1.bf16.msra.mxu0 %v1503
        %1633 = vmatprep.subr.bf16.mxu0 %v1506
        %1634 = vmatpush1.bf16.msra.mxu0 %v1505
        %1635 = vmatprep.subr.bf16.mxu0 %v1508
        %1636 = vmatpush1.bf16.msra.mxu0 %v1507
        %1637 = vmatprep.subr.bf16.mxu0 %v1510
        %1638 = vmatpush1.bf16.msra.mxu0 %v1509
        %1639 = vmatprep.subr.bf16.mxu0 %v1512
        %1640 = vmatpush1.bf16.msra.mxu0 %v1511
        %1641 = vmatprep.subr.bf16.mxu0 %v1514
        %1642 = vmatpush1.bf16.msra.mxu0 %v1513
        %1643 = vmatprep.subr.bf16.mxu0 %v1516
        %1644 = vmatpush1.bf16.msra.mxu0 %v1515
        %1645 = vmatprep.subr.bf16.mxu0 %v1518
        %1646 = vmatpush1.bf16.msra.mxu0 %v1517
        %1647 = vmatprep.subr.bf16.mxu0 %v1520
        %1648 = vmatpush1.bf16.msra.mxu0 %v1519
        %1649 = vmatprep.subr.bf16.mxu0 %v1522
        %1650 = vmatpush1.bf16.msra.mxu0 %v1521
        %1651 = vmatprep.subr.bf16.mxu0 %v1524
        %1652 = vmatpush1.bf16.msra.mxu0 %v1523
        %1653 = vmatprep.subr.bf16.mxu0 %v1526
        %1654 = vmatpush1.bf16.msra.mxu0 %v1525
        %1655 = vmatprep.subr.bf16.mxu0 %v1528
        %1656 = vmatpush1.bf16.msra.mxu0 %v1527
        %1657 = vmatprep.subr.bf16.mxu0 %v1530
        %1658 = vmatpush1.bf16.msra.mxu0 %v1529
        %1659 = vmatprep.mubr.bf16.mxu0 %v1292
        %1660 = vmatmul.mubr.bf16.gmra.mrb[0].mxu0 %v1291
        %v1661 = vpop.f32.mrb[0].mxu0
        %v1662 = vadd.f32 0.0, %v1661
        %v1663 = vpop.f32.mrb[0].mxu0
        %v1664 = vadd.f32 0.0, %v1663
        %v1665 = vpop.f32.mrb[0].mxu0
        %v1666 = vadd.f32 0.0, %v1665
        %v1667 = vpop.f32.mrb[0].mxu0
        %v1668 = vadd.f32 0.0, %v1667
        %1669 = vmatprep.mubr.bf16.mxu0 %v1296
        %1670 = vmatmul.mubr.bf16.gmra.mrb[0].mxu0 %v1295
        %v1671 = vpop.f32.mrb[0].mxu0
        %v1672 = vadd.f32 0.0, %v1671
        %v1673 = vpop.f32.mrb[0].mxu0
        %v1674 = vadd.f32 0.0, %v1673
        %v1675 = vpop.f32.mrb[0].mxu0
        %v1676 = vpop.f32.mrb[0].mxu0
        %1677 = vdwg.mxu0
        %1678 = vmatprep.subr.bf16.mxu0 %v1532
        %1679 = vmatpush1.bf16.msra.mxu0 %v1531
        %1680 = vmatprep.subr.bf16.mxu0 %v1534
        %1681 = vmatpush1.bf16.msra.mxu0 %v1533
        %1682 = vmatprep.subr.bf16.mxu0 %v1536
        %1683 = vmatpush1.bf16.msra.mxu0 %v1535
        %1684 = vmatprep.subr.bf16.mxu0 %v1538
        %1685 = vmatpush1.bf16.msra.mxu0 %v1537
        %1686 = vmatprep.subr.bf16.mxu0 %v1540
        %1687 = vmatpush1.bf16.msra.mxu0 %v1539
        %1688 = vmatprep.subr.bf16.mxu0 %v1542
        %1689 = vmatpush1.bf16.msra.mxu0 %v1541
        %1690 = vmatprep.subr.bf16.mxu0 %v1544
        %1691 = vmatpush1.bf16.msra.mxu0 %v1543
        %1692 = vmatprep.subr.bf16.mxu0 %v1546
        %1693 = vmatpush1.bf16.msra.mxu0 %v1545
        %1694 = vmatprep.subr.bf16.mxu0 %v1548
        %1695 = vmatpush1.bf16.msra.mxu0 %v1547
        %1696 = vmatprep.subr.bf16.mxu0 %v1550
        %1697 = vmatpush1.bf16.msra.mxu0 %v1549
        %1698 = vmatprep.subr.bf16.mxu0 %v1552
        %1699 = vmatpush1.bf16.msra.mxu0 %v1551
        %1700 = vmatprep.subr.bf16.mxu0 %v1554
        %1701 = vmatpush1.bf16.msra.mxu0 %v1553
        %1702 = vmatprep.subr.bf16.mxu0 %v1556
        %1703 = vmatpush1.bf16.msra.mxu0 %v1555
        %1704 = vmatprep.subr.bf16.mxu0 %v1558
        %1705 = vmatpush1.bf16.msra.mxu0 %v1557
        %1706 = vmatprep.subr.bf16.mxu0 %v1560
        %1707 = vmatpush1.bf16.msra.mxu0 %v1559
        %1708 = vmatprep.subr.bf16.mxu0 %v1562
        %1709 = vmatpush1.bf16.msra.mxu0 %v1561
        %1710 = vmatprep.mubr.bf16.mxu0 %v1294
        %1711 = vmatmul.mubr.bf16.gmra.mrb[0].mxu0 %v1293
        %v1712 = vpop.f32.mrb[0].mxu0
        %v1713 = vadd.f32 %v1662, %v1712
        %v1714 = vpop.f32.mrb[0].mxu0
        %v1715 = vadd.f32 %v1664, %v1714
        %v1716 = vpop.f32.mrb[0].mxu0
        %v1717 = vadd.f32 %v1666, %v1716
        %v1718 = vpop.f32.mrb[0].mxu0
        %v1719 = vadd.f32 %v1668, %v1718
        %1720 = vmatprep.mubr.bf16.mxu0 %v1298
        %1721 = vmatmul.mubr.bf16.gmra.mrb[0].mxu0 %v1297
        %v1722 = vpop.f32.mrb[0].mxu0
        %v1723 = vadd.f32 %v1672, %v1722
        %v1724 = vpop.f32.mrb[0].mxu0
        %v1725 = vadd.f32 %v1674, %v1724
        %v1726 = vpop.f32.mrb[0].mxu0
        %v1727 = vpop.f32.mrb[0].mxu0
        %1728 = vdwg.mxu0
        %v1729 = vadd.f32 %v1713, 0.0
        %v1730 = vadd.f32 %v1715, 0.0
        %v1731 = vadd.f32 %v1717, 0.0
        %v1732 = vadd.f32 %v1719, 0.0
        %v1733 = vadd.f32 %v1723, 0.0
        %v1734 = vadd.f32 %v1725, 0.0
        %v1735 = vld [vmem:[#allocation12] sm:$0x3]
        %v1737 = vlaneseq
        %v1738 = vshrl.u32 %v1737, 7
        %v1739 = vsub.s32 0, %v1738
        %v1740 = vrot.slane %v1735, %v1739
        %v1741 = vlaneseq
        %v1742 = vshrl.u32 %v1741, 7
        %v1743 = vsub.s32 1, %v1742
        %v1744 = vrot.slane %v1735, %v1743
        %v1747 = vadd.f32 %v1729, %v1740
        %v1748 = vadd.f32 %v1730, %v1744
        %v1749 = vadd.f32 %v1731, %v1740
        %v1750 = vadd.f32 %v1732, %v1744
        %v1751 = vadd.f32 %v1733, %v1740
        %v1752 = vadd.f32 %v1734, %v1744
        %v1753 = vmax.f32 %v1747, 0.0
        %v1754 = vmax.f32 %v1748, 0.0
        %v1755 = vmax.f32 %v1749, 0.0
        %v1756 = vmax.f32 %v1750, 0.0
        %v1757 = vmax.f32 %v1751, 0.0
        %v1758 = vmax.f32 %v1752, 0.0
        %v1759 = vsel %vm913, 1, 0
        %v1760 = vsel %vm914, 1, 0
        %vm1761 = vcmp.eq.s32.totalorder %v1759, 1
        %vm1762 = vcmp.eq.s32.totalorder %v1760, 1
        %v1769 = vrot.slane %v1753, 4
        %v1770 = vrot.slane %v1755, 4
        %v1771 = vsel %vm1012, %v1769, %v1770
        %v1772 = vrot.slane %v1754, 4
        %v1773 = vrot.slane %v1756, 4
        %v1774 = vsel %vm1012, %v1772, %v1773
        %v1775 = vrot.slane %v1757, 4
        %v1776 = vsel %vm1012, %v1770, %v1775
        %v1777 = vrot.slane %v1758, 4
        %v1778 = vsel %vm1012, %v1773, %v1777
        %v1783 = vsel %vm1761, %v1771, 0.0
        %v1784 = vsel %vm1761, %v1774, 0.0
        %v1785 = vsel %vm1762, %v1776, 0.0
        %v1786 = vsel %vm1762, %v1778, 0.0
        %v1787 = vpack.c.bf16 %v1785, %v1783
        %v1788 = vpack.c.bf16 %v1786, %v1784
        %1789 = vst [vmem:[#allocation3] sm:$0xff] %v1787
        %1790 = vst [vmem:[#allocation3 + $0x8] sm:$0xff] %v1788
        %v1791 = vld [vmem:[#allocation3] sm:$0xff]
        %v1792 = vld [vmem:[#allocation3 + $0x8] sm:$0xff]
        %v1793 = vld [vmem:[#allocation13] sm:$0xf]
        %v1794 = vld [vmem:[#allocation13 + $0x4] sm:$0xf]
        %v1795 = vld [vmem:[#allocation13 + $0x8] sm:$0xf]
        %v1796 = vld [vmem:[#allocation13 + $0xc] sm:$0xf]
        %v1797 = vld [vmem:[#allocation13 + $0x10] sm:$0xf]
        %v1798 = vld [vmem:[#allocation13 + $0x14] sm:$0xf]
        %v1799 = vld [vmem:[#allocation13 + $0x18] sm:$0xf]
        %v1800 = vld [vmem:[#allocation13 + $0x1c] sm:$0xf]
        %v1801 = vld [vmem:[#allocation13 + $0x20] sm:$0xf]
        %v1802 = vld [vmem:[#allocation13 + $0x24] sm:$0xf]
        %v1803 = vld [vmem:[#allocation13 + $0x28] sm:$0xf]
        %v1804 = vld [vmem:[#allocation13 + $0x2c] sm:$0xf]
        %v1805 = vld [vmem:[#allocation13 + $0x30] sm:$0xf]
        %v1806 = vld [vmem:[#allocation13 + $0x34] sm:$0xf]
        %v1807 = vld [vmem:[#allocation13 + $0x38] sm:$0xf]
        %v1808 = vld [vmem:[#allocation13 + $0x3c] sm:$0xf]
        %v1809 = vld [vmem:[#allocation13 + $0x40] sm:$0xf]
        %v1810 = vld [vmem:[#allocation13 + $0x44] sm:$0xf]
        %v1811 = vld [vmem:[#allocation13 + $0x48] sm:$0xf]
        %v1812 = vld [vmem:[#allocation13 + $0x4c] sm:$0xf]
        %v1813 = vld [vmem:[#allocation13 + $0x50] sm:$0xf]
        %v1814 = vld [vmem:[#allocation13 + $0x54] sm:$0xf]
        %v1815 = vld [vmem:[#allocation13 + $0x58] sm:$0xf]
        %v1816 = vld [vmem:[#allocation13 + $0x5c] sm:$0xf]
        %v1817 = vld [vmem:[#allocation13 + $0x60] sm:$0xf]
        %v1818 = vld [vmem:[#allocation13 + $0x64] sm:$0xf]
        %v1819 = vld [vmem:[#allocation13 + $0x68] sm:$0xf]
        %v1820 = vld [vmem:[#allocation13 + $0x6c] sm:$0xf]
        %v1821 = vld [vmem:[#allocation13 + $0x70] sm:$0xf]
        %v1822 = vld [vmem:[#allocation13 + $0x74] sm:$0xf]
        %v1823 = vld [vmem:[#allocation13 + $0x78] sm:$0xf]
        %v1824 = vld [vmem:[#allocation13 + $0x7c] sm:$0xf]
        %v1857 = vunpack.c.l.b16 %v1793
        %v1858 = vunpack.c.l.b16 %v1794
        %v1859 = vunpack.c.l.b16 %v1795
        %v1860 = vunpack.c.l.b16 %v1796
        %v1861 = vunpack.c.l.b16 %v1797
        %v1862 = vunpack.c.l.b16 %v1798
        %v1863 = vunpack.c.l.b16 %v1799
        %v1864 = vunpack.c.l.b16 %v1800
        %v1865 = vunpack.c.l.b16 %v1801
        %v1866 = vunpack.c.l.b16 %v1802
        %v1867 = vunpack.c.l.b16 %v1803
        %v1868 = vunpack.c.l.b16 %v1804
        %v1869 = vunpack.c.l.b16 %v1805
        %v1870 = vunpack.c.l.b16 %v1806
        %v1871 = vunpack.c.l.b16 %v1807
        %v1872 = vunpack.c.l.b16 %v1808
        %v1873 = vunpack.c.l.b16 %v1809
        %v1874 = vunpack.c.l.b16 %v1810
        %v1875 = vunpack.c.l.b16 %v1811
        %v1876 = vunpack.c.l.b16 %v1812
        %v1877 = vunpack.c.l.b16 %v1813
        %v1878 = vunpack.c.l.b16 %v1814
        %v1879 = vunpack.c.l.b16 %v1815
        %v1880 = vunpack.c.l.b16 %v1816
        %v1881 = vunpack.c.l.b16 %v1817
        %v1882 = vunpack.c.l.b16 %v1818
        %v1883 = vunpack.c.l.b16 %v1819
        %v1884 = vunpack.c.l.b16 %v1820
        %v1885 = vunpack.c.l.b16 %v1821
        %v1886 = vunpack.c.l.b16 %v1822
        %v1887 = vunpack.c.l.b16 %v1823
        %v1888 = vunpack.c.l.b16 %v1824
        %v1889 = vpack.c.b16 %v1858, %v1857
        %v1890 = vpack.c.b16 %v1860, %v1859
        %v1891 = vpack.c.b16 %v1862, %v1861
        %v1892 = vpack.c.b16 %v1864, %v1863
        %v1893 = vpack.c.b16 %v1866, %v1865
        %v1894 = vpack.c.b16 %v1868, %v1867
        %v1895 = vpack.c.b16 %v1870, %v1869
        %v1896 = vpack.c.b16 %v1872, %v1871
        %v1897 = vpack.c.b16 %v1874, %v1873
        %v1898 = vpack.c.b16 %v1876, %v1875
        %v1899 = vpack.c.b16 %v1878, %v1877
        %v1900 = vpack.c.b16 %v1880, %v1879
        %v1901 = vpack.c.b16 %v1882, %v1881
        %v1902 = vpack.c.b16 %v1884, %v1883
        %v1903 = vpack.c.b16 %v1886, %v1885
        %v1904 = vpack.c.b16 %v1888, %v1887
        %1921 = vmatprep.subr.bf16.mxu0 0
        %1922 = vmatpush1.bf16.msra.mxu0 %v1889
        %1923 = vmatprep.subr.bf16.mxu0 0
        %1924 = vmatpush1.bf16.msra.mxu0 %v1890
        %1925 = vmatprep.subr.bf16.mxu0 0
        %1926 = vmatpush1.bf16.msra.mxu0 %v1891
        %1927 = vmatprep.subr.bf16.mxu0 0
        %1928 = vmatpush1.bf16.msra.mxu0 %v1892
        %1929 = vmatprep.subr.bf16.mxu0 0
        %1930 = vmatpush1.bf16.msra.mxu0 %v1893
        %1931 = vmatprep.subr.bf16.mxu0 0
        %1932 = vmatpush1.bf16.msra.mxu0 %v1894
        %1933 = vmatprep.subr.bf16.mxu0 0
        %1934 = vmatpush1.bf16.msra.mxu0 %v1895
        %1935 = vmatprep.subr.bf16.mxu0 0
        %1936 = vmatpush1.bf16.msra.mxu0 %v1896
        %1937 = vmatprep.subr.bf16.mxu0 0
        %1938 = vmatpush1.bf16.msra.mxu0 %v1897
        %1939 = vmatprep.subr.bf16.mxu0 0
        %1940 = vmatpush1.bf16.msra.mxu0 %v1898
        %1941 = vmatprep.subr.bf16.mxu0 0
        %1942 = vmatpush1.bf16.msra.mxu0 %v1899
        %1943 = vmatprep.subr.bf16.mxu0 0
        %1944 = vmatpush1.bf16.msra.mxu0 %v1900
        %1945 = vmatprep.subr.bf16.mxu0 0
        %1946 = vmatpush1.bf16.msra.mxu0 %v1901
        %1947 = vmatprep.subr.bf16.mxu0 0
        %1948 = vmatpush1.bf16.msra.mxu0 %v1902
        %1949 = vmatprep.subr.bf16.mxu0 0
        %1950 = vmatpush1.bf16.msra.mxu0 %v1903
        %1951 = vmatprep.subr.bf16.mxu0 0
        %1952 = vmatpush1.bf16.msra.mxu0 %v1904
        %1953 = vmatprep.mubr.bf16.mxu0 %v1792
        %1954 = vmatmul.mubr.bf16.gmra.mrb[0].mxu0 %v1791
        %v1955 = vpop.f32.mrb[0].mxu0
        %v1956 = vadd.f32 0.0, %v1955
        %v1957 = vpop.f32.mrb[0].mxu0
        %v1958 = vpop.f32.mrb[0].mxu0
        %v1959 = vadd.f32 0.0, %v1958
        %v1960 = vpop.f32.mrb[0].mxu0
        %1961 = vdwg.mxu0
        %v1962 = vadd.f32 %v1956, 0.0
        %v1963 = vadd.f32 %v1959, 0.0
        %v1964 = vld [vmem:[#allocation15] sm:$0x1]
        %v1966 = vlaneseq
        %v1967 = vshrl.u32 %v1966, 7
        %v1968 = vsub.s32 0, %v1967
        %v1969 = vrot.slane %v1964, %v1968
        %v1971 = vadd.f32 %v1962, %v1969
        %v1972 = vadd.f32 %v1963, %v1969
        %v1973 = vmax.f32 %v1971, 0.0
        %v1974 = vmax.f32 %v1972, 0.0
        %v1975 = vadd.f32 %v1973, 0.0
        %v1976 = vadd.f32 %v1974, 0.0
        %v1977 = vld [vmem:[#allocation16] sm:$0xff]
        %v1978 = vld [vmem:[#allocation16 + $0x8] sm:$0xff]
        %v1979 = vld [vmem:[#allocation16 + $0x10] sm:$0xff]
        %v1980 = vld [vmem:[#allocation16 + $0x18] sm:$0xff]
        %v1981 = vld [vmem:[#allocation16 + $0x20] sm:$0xff]
        %v1982 = vld [vmem:[#allocation16 + $0x28] sm:$0xff]
        %v1983 = vld [vmem:[#allocation16 + $0x30] sm:$0xff]
        %v1984 = vld [vmem:[#allocation16 + $0x38] sm:$0xff]
        %v1985 = vld [vmem:[#allocation16 + $0x40] sm:$0xff]
        %v1986 = vld [vmem:[#allocation16 + $0x48] sm:$0xff]
        %v1987 = vld [vmem:[#allocation18] sm:$0xf]
        %v1989 = vlaneseq
        %v1990 = vshrl.u32 %v1989, 7
        %v1991 = vsub.s32 0, %v1990
        %v1992 = vrot.slane %v1987, %v1991
        %v1993 = vlaneseq
        %v1994 = vshrl.u32 %v1993, 7
        %v1995 = vsub.s32 1, %v1994
        %v1996 = vrot.slane %v1987, %v1995
        %v1997 = vlaneseq
        %v1998 = vshrl.u32 %v1997, 7
        %v1999 = vsub.s32 2, %v1998
        %v2000 = vrot.slane %v1987, %v1999
        %v2001 = vlaneseq
        %v2002 = vshrl.u32 %v2001, 7
        %v2003 = vsub.s32 3, %v2002
        %v2004 = vrot.slane %v1987, %v2003
        %v2019 = vunpack.c.l.b16 %v1977
        %v2020 = vunpack.c.h.b16 %v1977
        %v2021 = vunpack.c.l.b16 %v1978
        %v2022 = vunpack.c.h.b16 %v1978
        %v2023 = vunpack.c.l.b16 %v1979
        %v2024 = vunpack.c.h.b16 %v1979
        %v2025 = vunpack.c.l.b16 %v1980
        %v2026 = vunpack.c.h.b16 %v1980
        %v2027 = vunpack.c.l.b16 %v1981
        %v2028 = vunpack.c.h.b16 %v1981
        %v2029 = vunpack.c.l.b16 %v1982
        %v2030 = vunpack.c.h.b16 %v1982
        %v2031 = vunpack.c.l.b16 %v1983
        %v2032 = vunpack.c.h.b16 %v1983
        %v2033 = vunpack.c.l.b16 %v1984
        %v2034 = vunpack.c.h.b16 %v1984
        %v2035 = vunpack.c.l.b16 %v1985
        %v2036 = vunpack.c.h.b16 %v1985
        %v2037 = vunpack.c.l.b16 %v1986
        %v2038 = vunpack.c.h.b16 %v1986
        %v2039 = vpack.c.b16 %v2023, %v2019
        %v2040 = vpack.c.b16 %v2024, %v2020
        %v2041 = vpack.c.b16 %v2025, %v2021
        %v2042 = vpack.c.b16 %v2026, %v2022
        %v2043 = vpack.c.b16 %v2031, %v2027
        %v2044 = vpack.c.b16 %v2032, %v2028
        %v2045 = vpack.c.b16 %v2033, %v2029
        %v2046 = vpack.c.b16 %v2034, %v2030
        %v2047 = vpack.c.b16 %v2035, %v2035
        %v2048 = vpack.c.b16 %v2036, %v2036
        %v2049 = vpack.c.b16 %v2037, %v2037
        %v2050 = vpack.c.b16 %v2038, %v2038
        %v2060 = vsel %vm1012, %v2047, 0
        %v2063 = vsel %vm1012, %v2048, 0
        %v2066 = vsel %vm1012, %v2049, 0
        %v2069 = vsel %vm1012, %v2050, 0
        %2071 = vmatprep.subr.bf16.mxu0 %v2040
        %2072 = vmatpush1.bf16.msra.mxu0 %v2039
        %2073 = vmatprep.subr.bf16.mxu0 %v2044
        %2074 = vmatpush1.bf16.msra.mxu0 %v2043
        %2075 = vmatprep.subr.bf16.mxu0 %v2063
        %2076 = vmatpush1.bf16.msra.mxu0 %v2060
        %2077 = vmatprep.subr.bf16.mxu0 0
        %2078 = vmatpush1.bf16.msra.mxu0 0
        %2079 = vmatprep.subr.bf16.mxu0 0
        %2080 = vmatpush1.bf16.msra.mxu0 0
        %2081 = vmatprep.subr.bf16.mxu0 0
        %2082 = vmatpush1.bf16.msra.mxu0 0
        %2083 = vmatprep.subr.bf16.mxu0 0
        %2084 = vmatpush1.bf16.msra.mxu0 0
        %2085 = vmatprep.subr.bf16.mxu0 0
        %2086 = vmatpush1.bf16.msra.mxu0 0
        %2087 = vmatprep.subr.bf16.mxu0 0
        %2088 = vmatpush1.bf16.msra.mxu0 0
        %2089 = vmatprep.subr.bf16.mxu0 0
        %2090 = vmatpush1.bf16.msra.mxu0 0
        %2091 = vmatprep.subr.bf16.mxu0 0
        %2092 = vmatpush1.bf16.msra.mxu0 0
        %2093 = vmatprep.subr.bf16.mxu0 0
        %2094 = vmatpush1.bf16.msra.mxu0 0
        %2095 = vmatprep.subr.bf16.mxu0 0
        %2096 = vmatpush1.bf16.msra.mxu0 0
        %2097 = vmatprep.subr.bf16.mxu0 0
        %2098 = vmatpush1.bf16.msra.mxu0 0
        %2099 = vmatprep.subr.bf16.mxu0 0
        %2100 = vmatpush1.bf16.msra.mxu0 0
        %2101 = vmatprep.subr.bf16.mxu0 0
        %2102 = vmatpush1.bf16.msra.mxu0 0
        %2103 = vmatprep.mubr.bf16.mxu0 0
        %2104 = vmatmul.mubr.bf16.gmra.mrb[0].mxu0 %v1007
        %v2105 = vpop.f32.mrb[0].mxu0
        %v2106 = vadd.f32 %v1992, %v2105
        %v2107 = vpop.f32.mrb[0].mxu0
        %v2108 = vadd.f32 %v1996, %v2107
        %v2109 = vpop.f32.mrb[0].mxu0
        %v2110 = vadd.f32 %v1992, %v2109
        %v2111 = vpop.f32.mrb[0].mxu0
        %v2112 = vadd.f32 %v1996, %v2111
        %2113 = vmatprep.mubr.bf16.mxu0 0
        %2114 = vmatmul.mubr.bf16.gmra.mrb[0].mxu0 %v1010
        %v2115 = vpop.f32.mrb[0].mxu0
        %v2116 = vadd.f32 %v1992, %v2115
        %v2117 = vpop.f32.mrb[0].mxu0
        %v2118 = vadd.f32 %v1996, %v2117
        %v2119 = vpop.f32.mrb[0].mxu0
        %v2120 = vpop.f32.mrb[0].mxu0
        %2121 = vdwg.mxu0
        %2122 = vmatprep.subr.bf16.mxu0 %v2042
        %2123 = vmatpush1.bf16.msra.mxu0 %v2041
        %2124 = vmatprep.subr.bf16.mxu0 %v2046
        %2125 = vmatpush1.bf16.msra.mxu0 %v2045
        %2126 = vmatprep.subr.bf16.mxu0 %v2069
        %2127 = vmatpush1.bf16.msra.mxu0 %v2066
        %2128 = vmatprep.subr.bf16.mxu0 0
        %2129 = vmatpush1.bf16.msra.mxu0 0
        %2130 = vmatprep.subr.bf16.mxu0 0
        %2131 = vmatpush1.bf16.msra.mxu0 0
        %2132 = vmatprep.subr.bf16.mxu0 0
        %2133 = vmatpush1.bf16.msra.mxu0 0
        %2134 = vmatprep.subr.bf16.mxu0 0
        %2135 = vmatpush1.bf16.msra.mxu0 0
        %2136 = vmatprep.subr.bf16.mxu0 0
        %2137 = vmatpush1.bf16.msra.mxu0 0
        %2138 = vmatprep.subr.bf16.mxu0 0
        %2139 = vmatpush1.bf16.msra.mxu0 0
        %2140 = vmatprep.subr.bf16.mxu0 0
        %2141 = vmatpush1.bf16.msra.mxu0 0
        %2142 = vmatprep.subr.bf16.mxu0 0
        %2143 = vmatpush1.bf16.msra.mxu0 0
        %2144 = vmatprep.subr.bf16.mxu0 0
        %2145 = vmatpush1.bf16.msra.mxu0 0
        %2146 = vmatprep.subr.bf16.mxu0 0
        %2147 = vmatpush1.bf16.msra.mxu0 0
        %2148 = vmatprep.subr.bf16.mxu0 0
        %2149 = vmatpush1.bf16.msra.mxu0 0
        %2150 = vmatprep.subr.bf16.mxu0 0
        %2151 = vmatpush1.bf16.msra.mxu0 0
        %2152 = vmatprep.subr.bf16.mxu0 0
        %2153 = vmatpush1.bf16.msra.mxu0 0
        %2154 = vmatprep.mubr.bf16.mxu0 0
        %2155 = vmatmul.mubr.bf16.gmra.mrb[0].mxu0 %v1007
        %v2156 = vpop.f32.mrb[0].mxu0
        %v2157 = vadd.f32 %v2000, %v2156
        %v2158 = vpop.f32.mrb[0].mxu0
        %v2159 = vadd.f32 %v2004, %v2158
        %v2160 = vpop.f32.mrb[0].mxu0
        %v2161 = vadd.f32 %v2000, %v2160
        %v2162 = vpop.f32.mrb[0].mxu0
        %v2163 = vadd.f32 %v2004, %v2162
        %2164 = vmatprep.mubr.bf16.mxu0 0
        %2165 = vmatmul.mubr.bf16.gmra.mrb[0].mxu0 %v1010
        %v2166 = vpop.f32.mrb[0].mxu0
        %v2167 = vadd.f32 %v2000, %v2166
        %v2168 = vpop.f32.mrb[0].mxu0
        %v2169 = vadd.f32 %v2004, %v2168
        %v2170 = vpop.f32.mrb[0].mxu0
        %v2171 = vpop.f32.mrb[0].mxu0
        %2172 = vdwg.mxu0
        %v2173 = vmax.f32 %v2106, 0.0
        %v2174 = vmax.f32 %v2108, 0.0
        %v2175 = vmax.f32 %v2157, 0.0
        %v2176 = vmax.f32 %v2159, 0.0
        %v2177 = vmax.f32 %v2110, 0.0
        %v2178 = vmax.f32 %v2112, 0.0
        %v2179 = vmax.f32 %v2161, 0.0
        %v2180 = vmax.f32 %v2163, 0.0
        %v2181 = vmax.f32 %v2116, 0.0
        %v2182 = vmax.f32 %v2118, 0.0
        %v2183 = vmax.f32 %v2167, 0.0
        %v2184 = vmax.f32 %v2169, 0.0
        %v2185 = vsel %vm1142, %v2173, 0.0
        %v2186 = vsel %vm1142, %v2174, 0.0
        %v2187 = vsel %vm1142, %v2175, 0.0
        %v2188 = vsel %vm1142, %v2176, 0.0
        %v2189 = vsel %vm1143, %v2177, 0.0
        %v2190 = vsel %vm1143, %v2178, 0.0
        %v2191 = vsel %vm1143, %v2179, 0.0
        %v2192 = vsel %vm1143, %v2180, 0.0
        %v2193 = vsel %vm1144, %v2181, 0.0
        %v2194 = vsel %vm1144, %v2182, 0.0
        %v2195 = vsel %vm1144, %v2183, 0.0
        %v2196 = vsel %vm1144, %v2184, 0.0
        %v2197 = vpack.c.bf16 %v2189, %v2185
        %v2198 = vpack.c.bf16 %v2190, %v2186
        %v2199 = vpack.c.bf16 %v2191, %v2187
        %v2200 = vpack.c.bf16 %v2192, %v2188
        %v2201 = vpack.c.bf16 %v2193, %v2193
        %v2202 = vpack.c.bf16 %v2194, %v2194
        %v2203 = vpack.c.bf16 %v2195, %v2195
        %v2204 = vpack.c.bf16 %v2196, %v2196
        %v2213 = vunpack.c.l.b16 %v2197
        %v2214 = vunpack.c.l.b16 %v2198
        %v2215 = vunpack.c.l.b16 %v2199
        %v2216 = vunpack.c.l.b16 %v2200
        %v2217 = vunpack.c.h.b16 %v2197
        %v2218 = vunpack.c.h.b16 %v2198
        %v2219 = vunpack.c.h.b16 %v2199
        %v2220 = vunpack.c.h.b16 %v2200
        %v2221 = vunpack.c.l.b16 %v2201
        %v2222 = vunpack.c.l.b16 %v2202
        %v2223 = vunpack.c.l.b16 %v2203
        %v2224 = vunpack.c.l.b16 %v2204
        %v2225 = vpack.c.b16 %v2214, %v2213
        %v2226 = vpack.c.b16 %v2216, %v2215
        %v2227 = vpack.c.b16 %v2218, %v2217
        %v2228 = vpack.c.b16 %v2220, %v2219
        %v2229 = vpack.c.b16 %v2222, %v2221
        %v2230 = vpack.c.b16 %v2224, %v2223
        %2237 = vst [vmem:[#allocation2] sm:$0xff] %v2225
        %2238 = vst [vmem:[#allocation2 + $0x8] sm:$0xff] %v2226
        %2239 = vst [vmem:[#allocation2 + $0x10] sm:$0xff] %v2227
        %2240 = vst [vmem:[#allocation2 + $0x18] sm:$0xff] %v2228
        %2241 = vst [vmem:[#allocation2 + $0x20] sm:$0xff] %v2229
        %2242 = vst [vmem:[#allocation2 + $0x28] sm:$0xff] %v2230
        %v2243 = vld [vmem:[#allocation2] sm:$0xff]
        %v2244 = vld [vmem:[#allocation2 + $0x8] sm:$0xff]
        %v2245 = vld [vmem:[#allocation2 + $0x10] sm:$0xff]
        %v2246 = vld [vmem:[#allocation2 + $0x18] sm:$0xff]
        %v2247 = vld [vmem:[#allocation2 + $0x20] sm:$0xff]
        %v2248 = vld [vmem:[#allocation2 + $0x28] sm:$0xff]
        %v2249 = vld [vmem:[#allocation19] sm:$0xff]
        %v2250 = vld [vmem:[#allocation19 + $0x8] sm:$0xff]
        %v2251 = vld [vmem:[#allocation19 + $0x10] sm:$0xff]
        %v2252 = vld [vmem:[#allocation19 + $0x18] sm:$0xff]
        %v2253 = vld [vmem:[#allocation19 + $0x20] sm:$0xff]
        %v2254 = vld [vmem:[#allocation19 + $0x28] sm:$0xff]
        %v2255 = vld [vmem:[#allocation19 + $0x30] sm:$0xff]
        %v2256 = vld [vmem:[#allocation19 + $0x38] sm:$0xff]
        %v2257 = vld [vmem:[#allocation19 + $0x40] sm:$0xff]
        %v2258 = vld [vmem:[#allocation19 + $0x48] sm:$0xff]
        %v2259 = vld [vmem:[#allocation19 + $0x50] sm:$0xff]
        %v2260 = vld [vmem:[#allocation19 + $0x58] sm:$0xff]
        %v2261 = vld [vmem:[#allocation19 + $0x60] sm:$0xff]
        %v2262 = vld [vmem:[#allocation19 + $0x68] sm:$0xff]
        %v2263 = vld [vmem:[#allocation19 + $0x70] sm:$0xff]
        %v2264 = vld [vmem:[#allocation19 + $0x78] sm:$0xff]
        %v2265 = vld [vmem:[#allocation19 + $0x80] sm:$0xff]
        %v2266 = vld [vmem:[#allocation19 + $0x88] sm:$0xff]
        %v2267 = vld [vmem:[#allocation19 + $0x90] sm:$0xff]
        %v2268 = vld [vmem:[#allocation19 + $0x98] sm:$0xff]
        %v2269 = vld [vmem:[#allocation19 + $0xa0] sm:$0xff]
        %v2270 = vld [vmem:[#allocation19 + $0xa8] sm:$0xff]
        %v2271 = vld [vmem:[#allocation19 + $0xb0] sm:$0xff]
        %v2272 = vld [vmem:[#allocation19 + $0xb8] sm:$0xff]
        %v2273 = vld [vmem:[#allocation19 + $0xc0] sm:$0xff]
        %v2274 = vld [vmem:[#allocation19 + $0xc8] sm:$0xff]
        %v2275 = vld [vmem:[#allocation19 + $0xd0] sm:$0xff]
        %v2276 = vld [vmem:[#allocation19 + $0xd8] sm:$0xff]
        %v2277 = vld [vmem:[#allocation19 + $0xe0] sm:$0xff]
        %v2278 = vld [vmem:[#allocation19 + $0xe8] sm:$0xff]
        %v2279 = vld [vmem:[#allocation19 + $0xf0] sm:$0xff]
        %v2280 = vld [vmem:[#allocation19 + $0xf8] sm:$0xff]
        %v2281 = vld [vmem:[#allocation19 + $0x100] sm:$0xff]
        %v2282 = vld [vmem:[#allocation19 + $0x108] sm:$0xff]
        %v2283 = vld [vmem:[#allocation19 + $0x110] sm:$0xff]
        %v2284 = vld [vmem:[#allocation19 + $0x118] sm:$0xff]
        %v2285 = vld [vmem:[#allocation19 + $0x120] sm:$0xff]
        %v2286 = vld [vmem:[#allocation19 + $0x128] sm:$0xff]
        %v2287 = vld [vmem:[#allocation19 + $0x130] sm:$0xff]
        %v2288 = vld [vmem:[#allocation19 + $0x138] sm:$0xff]
        %v2289 = vld [vmem:[#allocation19 + $0x140] sm:$0xff]
        %v2290 = vld [vmem:[#allocation19 + $0x148] sm:$0xff]
        %v2291 = vld [vmem:[#allocation19 + $0x150] sm:$0xff]
        %v2292 = vld [vmem:[#allocation19 + $0x158] sm:$0xff]
        %v2293 = vld [vmem:[#allocation19 + $0x160] sm:$0xff]
        %v2294 = vld [vmem:[#allocation19 + $0x168] sm:$0xff]
        %v2295 = vld [vmem:[#allocation19 + $0x170] sm:$0xff]
        %v2296 = vld [vmem:[#allocation19 + $0x178] sm:$0xff]
        %v2297 = vld [vmem:[#allocation19 + $0x180] sm:$0xff]
        %v2298 = vld [vmem:[#allocation19 + $0x188] sm:$0xff]
        %v2299 = vld [vmem:[#allocation19 + $0x190] sm:$0xff]
        %v2300 = vld [vmem:[#allocation19 + $0x198] sm:$0xff]
        %v2301 = vld [vmem:[#allocation19 + $0x1a0] sm:$0xff]
        %v2302 = vld [vmem:[#allocation19 + $0x1a8] sm:$0xff]
        %v2303 = vld [vmem:[#allocation19 + $0x1b0] sm:$0xff]
        %v2304 = vld [vmem:[#allocation19 + $0x1b8] sm:$0xff]
        %v2305 = vld [vmem:[#allocation19 + $0x1c0] sm:$0xff]
        %v2306 = vld [vmem:[#allocation19 + $0x1c8] sm:$0xff]
        %v2307 = vld [vmem:[#allocation19 + $0x1d0] sm:$0xff]
        %v2308 = vld [vmem:[#allocation19 + $0x1d8] sm:$0xff]
        %v2309 = vld [vmem:[#allocation19 + $0x1e0] sm:$0xff]
        %v2310 = vld [vmem:[#allocation19 + $0x1e8] sm:$0xff]
        %v2311 = vld [vmem:[#allocation19 + $0x1f0] sm:$0xff]
        %v2312 = vld [vmem:[#allocation19 + $0x1f8] sm:$0xff]
        %v2319 = vunpack.c.l.b16 %v2243
        %v2320 = vunpack.c.h.b16 %v2243
        %v2321 = vunpack.c.l.b16 %v2244
        %v2322 = vunpack.c.h.b16 %v2244
        %v2323 = vunpack.c.l.b16 %v2245
        %v2324 = vunpack.c.h.b16 %v2245
        %v2325 = vunpack.c.l.b16 %v2246
        %v2326 = vunpack.c.h.b16 %v2246
        %v2327 = vunpack.c.l.b16 %v2247
        %v2328 = vunpack.c.h.b16 %v2247
        %v2329 = vunpack.c.l.b16 %v2248
        %v2330 = vunpack.c.h.b16 %v2248
        %v2331 = vpack.c.b16 %v2323, %v2319
        %v2332 = vpack.c.b16 %v2324, %v2320
        %v2333 = vpack.c.b16 %v2325, %v2321
        %v2334 = vpack.c.b16 %v2326, %v2322
        %v2335 = vpack.c.b16 %v2327, %v2327
        %v2336 = vpack.c.b16 %v2328, %v2328
        %v2337 = vpack.c.b16 %v2329, %v2329
        %v2338 = vpack.c.b16 %v2330, %v2330
        %v2411 = vunpack.c.l.b16 %v2249
        %v2412 = vunpack.c.h.b16 %v2249
        %v2413 = vunpack.c.l.b16 %v2250
        %v2414 = vunpack.c.h.b16 %v2250
        %v2415 = vunpack.c.l.b16 %v2251
        %v2416 = vunpack.c.h.b16 %v2251
        %v2417 = vunpack.c.l.b16 %v2252
        %v2418 = vunpack.c.h.b16 %v2252
        %v2419 = vunpack.c.l.b16 %v2253
        %v2420 = vunpack.c.h.b16 %v2253
        %v2421 = vunpack.c.l.b16 %v2254
        %v2422 = vunpack.c.h.b16 %v2254
        %v2423 = vunpack.c.l.b16 %v2255
        %v2424 = vunpack.c.h.b16 %v2255
        %v2425 = vunpack.c.l.b16 %v2256
        %v2426 = vunpack.c.h.b16 %v2256
        %v2427 = vunpack.c.l.b16 %v2257
        %v2428 = vunpack.c.h.b16 %v2257
        %v2429 = vunpack.c.l.b16 %v2258
        %v2430 = vunpack.c.h.b16 %v2258
        %v2431 = vunpack.c.l.b16 %v2259
        %v2432 = vunpack.c.h.b16 %v2259
        %v2433 = vunpack.c.l.b16 %v2260
        %v2434 = vunpack.c.h.b16 %v2260
        %v2435 = vunpack.c.l.b16 %v2261
        %v2436 = vunpack.c.h.b16 %v2261
        %v2437 = vunpack.c.l.b16 %v2262
        %v2438 = vunpack.c.h.b16 %v2262
        %v2439 = vunpack.c.l.b16 %v2263
        %v2440 = vunpack.c.h.b16 %v2263
        %v2441 = vunpack.c.l.b16 %v2264
        %v2442 = vunpack.c.h.b16 %v2264
        %v2443 = vunpack.c.l.b16 %v2265
        %v2444 = vunpack.c.h.b16 %v2265
        %v2445 = vunpack.c.l.b16 %v2266
        %v2446 = vunpack.c.h.b16 %v2266
        %v2447 = vunpack.c.l.b16 %v2267
        %v2448 = vunpack.c.h.b16 %v2267
        %v2449 = vunpack.c.l.b16 %v2268
        %v2450 = vunpack.c.h.b16 %v2268
        %v2451 = vunpack.c.l.b16 %v2269
        %v2452 = vunpack.c.h.b16 %v2269
        %v2453 = vunpack.c.l.b16 %v2270
        %v2454 = vunpack.c.h.b16 %v2270
        %v2455 = vunpack.c.l.b16 %v2271
        %v2456 = vunpack.c.h.b16 %v2271
        %v2457 = vunpack.c.l.b16 %v2272
        %v2458 = vunpack.c.h.b16 %v2272
        %v2459 = vunpack.c.l.b16 %v2273
        %v2460 = vunpack.c.h.b16 %v2273
        %v2461 = vunpack.c.l.b16 %v2274
        %v2462 = vunpack.c.h.b16 %v2274
        %v2463 = vunpack.c.l.b16 %v2275
        %v2464 = vunpack.c.h.b16 %v2275
        %v2465 = vunpack.c.l.b16 %v2276
        %v2466 = vunpack.c.h.b16 %v2276
        %v2467 = vunpack.c.l.b16 %v2277
        %v2468 = vunpack.c.h.b16 %v2277
        %v2469 = vunpack.c.l.b16 %v2278
        %v2470 = vunpack.c.h.b16 %v2278
        %v2471 = vunpack.c.l.b16 %v2279
        %v2472 = vunpack.c.h.b16 %v2279
        %v2473 = vunpack.c.l.b16 %v2280
        %v2474 = vunpack.c.h.b16 %v2280
        %v2475 = vunpack.c.l.b16 %v2281
        %v2476 = vunpack.c.h.b16 %v2281
        %v2477 = vunpack.c.l.b16 %v2282
        %v2478 = vunpack.c.h.b16 %v2282
        %v2479 = vunpack.c.l.b16 %v2283
        %v2480 = vunpack.c.h.b16 %v2283
        %v2481 = vunpack.c.l.b16 %v2284
        %v2482 = vunpack.c.h.b16 %v2284
        %v2483 = vunpack.c.l.b16 %v2285
        %v2484 = vunpack.c.h.b16 %v2285
        %v2485 = vunpack.c.l.b16 %v2286
        %v2486 = vunpack.c.h.b16 %v2286
        %v2487 = vunpack.c.l.b16 %v2287
        %v2488 = vunpack.c.h.b16 %v2287
        %v2489 = vunpack.c.l.b16 %v2288
        %v2490 = vunpack.c.h.b16 %v2288
        %v2491 = vunpack.c.l.b16 %v2289
        %v2492 = vunpack.c.h.b16 %v2289
        %v2493 = vunpack.c.l.b16 %v2290
        %v2494 = vunpack.c.h.b16 %v2290
        %v2495 = vunpack.c.l.b16 %v2291
        %v2496 = vunpack.c.h.b16 %v2291
        %v2497 = vunpack.c.l.b16 %v2292
        %v2498 = vunpack.c.h.b16 %v2292
        %v2499 = vunpack.c.l.b16 %v2293
        %v2500 = vunpack.c.h.b16 %v2293
        %v2501 = vunpack.c.l.b16 %v2294
        %v2502 = vunpack.c.h.b16 %v2294
        %v2503 = vunpack.c.l.b16 %v2295
        %v2504 = vunpack.c.h.b16 %v2295
        %v2505 = vunpack.c.l.b16 %v2296
        %v2506 = vunpack.c.h.b16 %v2296
        %v2507 = vunpack.c.l.b16 %v2297
        %v2508 = vunpack.c.h.b16 %v2297
        %v2509 = vunpack.c.l.b16 %v2298
        %v2510 = vunpack.c.h.b16 %v2298
        %v2511 = vunpack.c.l.b16 %v2299
        %v2512 = vunpack.c.h.b16 %v2299
        %v2513 = vunpack.c.l.b16 %v2300
        %v2514 = vunpack.c.h.b16 %v2300
        %v2515 = vunpack.c.l.b16 %v2301
        %v2516 = vunpack.c.h.b16 %v2301
        %v2517 = vunpack.c.l.b16 %v2302
        %v2518 = vunpack.c.h.b16 %v2302
        %v2519 = vunpack.c.l.b16 %v2303
        %v2520 = vunpack.c.h.b16 %v2303
        %v2521 = vunpack.c.l.b16 %v2304
        %v2522 = vunpack.c.h.b16 %v2304
        %v2523 = vunpack.c.l.b16 %v2305
        %v2524 = vunpack.c.h.b16 %v2305
        %v2525 = vunpack.c.l.b16 %v2306
        %v2526 = vunpack.c.h.b16 %v2306
        %v2527 = vunpack.c.l.b16 %v2307
        %v2528 = vunpack.c.h.b16 %v2307
        %v2529 = vunpack.c.l.b16 %v2308
        %v2530 = vunpack.c.h.b16 %v2308
        %v2531 = vunpack.c.l.b16 %v2309
        %v2532 = vunpack.c.h.b16 %v2309
        %v2533 = vunpack.c.l.b16 %v2310
        %v2534 = vunpack.c.h.b16 %v2310
        %v2535 = vunpack.c.l.b16 %v2311
        %v2536 = vunpack.c.h.b16 %v2311
        %v2537 = vunpack.c.l.b16 %v2312
        %v2538 = vunpack.c.h.b16 %v2312
        %v2539 = vpack.c.b16 %v2413, %v2411
        %v2540 = vpack.c.b16 %v2414, %v2412
        %v2541 = vpack.c.b16 %v2417, %v2415
        %v2542 = vpack.c.b16 %v2418, %v2416
        %v2543 = vpack.c.b16 %v2421, %v2419
        %v2544 = vpack.c.b16 %v2422, %v2420
        %v2545 = vpack.c.b16 %v2425, %v2423
        %v2546 = vpack.c.b16 %v2426, %v2424
        %v2547 = vpack.c.b16 %v2429, %v2427
        %v2548 = vpack.c.b16 %v2430, %v2428
        %v2549 = vpack.c.b16 %v2433, %v2431
        %v2550 = vpack.c.b16 %v2434, %v2432
        %v2551 = vpack.c.b16 %v2437, %v2435
        %v2552 = vpack.c.b16 %v2438, %v2436
        %v2553 = vpack.c.b16 %v2441, %v2439
        %v2554 = vpack.c.b16 %v2442, %v2440
        %v2555 = vpack.c.b16 %v2445, %v2443
        %v2556 = vpack.c.b16 %v2446, %v2444
        %v2557 = vpack.c.b16 %v2449, %v2447
        %v2558 = vpack.c.b16 %v2450, %v2448
        %v2559 = vpack.c.b16 %v2453, %v2451
        %v2560 = vpack.c.b16 %v2454, %v2452
        %v2561 = vpack.c.b16 %v2457, %v2455
        %v2562 = vpack.c.b16 %v2458, %v2456
        %v2563 = vpack.c.b16 %v2461, %v2459
        %v2564 = vpack.c.b16 %v2462, %v2460
        %v2565 = vpack.c.b16 %v2465, %v2463
        %v2566 = vpack.c.b16 %v2466, %v2464
        %v2567 = vpack.c.b16 %v2469, %v2467
        %v2568 = vpack.c.b16 %v2470, %v2468
        %v2569 = vpack.c.b16 %v2473, %v2471
        %v2570 = vpack.c.b16 %v2474, %v2472
        %v2571 = vpack.c.b16 %v2477, %v2475
        %v2572 = vpack.c.b16 %v2478, %v2476
        %v2573 = vpack.c.b16 %v2481, %v2479
        %v2574 = vpack.c.b16 %v2482, %v2480
        %v2575 = vpack.c.b16 %v2485, %v2483
        %v2576 = vpack.c.b16 %v2486, %v2484
        %v2577 = vpack.c.b16 %v2489, %v2487
        %v2578 = vpack.c.b16 %v2490, %v2488
        %v2579 = vpack.c.b16 %v2493, %v2491
        %v2580 = vpack.c.b16 %v2494, %v2492
        %v2581 = vpack.c.b16 %v2497, %v2495
        %v2582 = vpack.c.b16 %v2498, %v2496
        %v2583 = vpack.c.b16 %v2501, %v2499
        %v2584 = vpack.c.b16 %v2502, %v2500
        %v2585 = vpack.c.b16 %v2505, %v2503
        %v2586 = vpack.c.b16 %v2506, %v2504
        %v2587 = vpack.c.b16 %v2509, %v2507
        %v2588 = vpack.c.b16 %v2510, %v2508
        %v2589 = vpack.c.b16 %v2513, %v2511
        %v2590 = vpack.c.b16 %v2514, %v2512
        %v2591 = vpack.c.b16 %v2517, %v2515
        %v2592 = vpack.c.b16 %v2518, %v2516
        %v2593 = vpack.c.b16 %v2521, %v2519
        %v2594 = vpack.c.b16 %v2522, %v2520
        %v2595 = vpack.c.b16 %v2525, %v2523
        %v2596 = vpack.c.b16 %v2526, %v2524
        %v2597 = vpack.c.b16 %v2529, %v2527
        %v2598 = vpack.c.b16 %v2530, %v2528
        %v2599 = vpack.c.b16 %v2533, %v2531
        %v2600 = vpack.c.b16 %v2534, %v2532
        %v2601 = vpack.c.b16 %v2537, %v2535
        %v2602 = vpack.c.b16 %v2538, %v2536
        %2667 = vmatprep.subr.bf16.mxu0 %v2540
        %2668 = vmatpush1.bf16.msra.mxu0 %v2539
        %2669 = vmatprep.subr.bf16.mxu0 %v2542
        %2670 = vmatpush1.bf16.msra.mxu0 %v2541
        %2671 = vmatprep.subr.bf16.mxu0 %v2544
        %2672 = vmatpush1.bf16.msra.mxu0 %v2543
        %2673 = vmatprep.subr.bf16.mxu0 %v2546
        %2674 = vmatpush1.bf16.msra.mxu0 %v2545
        %2675 = vmatprep.subr.bf16.mxu0 %v2548
        %2676 = vmatpush1.bf16.msra.mxu0 %v2547
        %2677 = vmatprep.subr.bf16.mxu0 %v2550
        %2678 = vmatpush1.bf16.msra.mxu0 %v2549
        %2679 = vmatprep.subr.bf16.mxu0 %v2552
        %2680 = vmatpush1.bf16.msra.mxu0 %v2551
        %2681 = vmatprep.subr.bf16.mxu0 %v2554
        %2682 = vmatpush1.bf16.msra.mxu0 %v2553
        %2683 = vmatprep.subr.bf16.mxu0 %v2556
        %2684 = vmatpush1.bf16.msra.mxu0 %v2555
        %2685 = vmatprep.subr.bf16.mxu0 %v2558
        %2686 = vmatpush1.bf16.msra.mxu0 %v2557
        %2687 = vmatprep.subr.bf16.mxu0 %v2560
        %2688 = vmatpush1.bf16.msra.mxu0 %v2559
        %2689 = vmatprep.subr.bf16.mxu0 %v2562
        %2690 = vmatpush1.bf16.msra.mxu0 %v2561
        %2691 = vmatprep.subr.bf16.mxu0 %v2564
        %2692 = vmatpush1.bf16.msra.mxu0 %v2563
        %2693 = vmatprep.subr.bf16.mxu0 %v2566
        %2694 = vmatpush1.bf16.msra.mxu0 %v2565
        %2695 = vmatprep.subr.bf16.mxu0 %v2568
        %2696 = vmatpush1.bf16.msra.mxu0 %v2567
        %2697 = vmatprep.subr.bf16.mxu0 %v2570
        %2698 = vmatpush1.bf16.msra.mxu0 %v2569
        %2699 = vmatprep.mubr.bf16.mxu0 %v2332
        %2700 = vmatmul.mubr.bf16.gmra.mrb[0].mxu0 %v2331
        %v2701 = vpop.f32.mrb[0].mxu0
        %v2702 = vadd.f32 0.0, %v2701
        %v2703 = vpop.f32.mrb[0].mxu0
        %v2704 = vadd.f32 0.0, %v2703
        %v2705 = vpop.f32.mrb[0].mxu0
        %v2706 = vadd.f32 0.0, %v2705
        %v2707 = vpop.f32.mrb[0].mxu0
        %v2708 = vadd.f32 0.0, %v2707
        %2709 = vmatprep.mubr.bf16.mxu0 %v2336
        %2710 = vmatmul.mubr.bf16.gmra.mrb[0].mxu0 %v2335
        %v2711 = vpop.f32.mrb[0].mxu0
        %v2712 = vadd.f32 0.0, %v2711
        %v2713 = vpop.f32.mrb[0].mxu0
        %v2714 = vadd.f32 0.0, %v2713
        %v2715 = vpop.f32.mrb[0].mxu0
        %v2716 = vpop.f32.mrb[0].mxu0
        %2717 = vdwg.mxu0
        %2718 = vmatprep.subr.bf16.mxu0 %v2572
        %2719 = vmatpush1.bf16.msra.mxu0 %v2571
        %2720 = vmatprep.subr.bf16.mxu0 %v2574
        %2721 = vmatpush1.bf16.msra.mxu0 %v2573
        %2722 = vmatprep.subr.bf16.mxu0 %v2576
        %2723 = vmatpush1.bf16.msra.mxu0 %v2575
        %2724 = vmatprep.subr.bf16.mxu0 %v2578
        %2725 = vmatpush1.bf16.msra.mxu0 %v2577
        %2726 = vmatprep.subr.bf16.mxu0 %v2580
        %2727 = vmatpush1.bf16.msra.mxu0 %v2579
        %2728 = vmatprep.subr.bf16.mxu0 %v2582
        %2729 = vmatpush1.bf16.msra.mxu0 %v2581
        %2730 = vmatprep.subr.bf16.mxu0 %v2584
        %2731 = vmatpush1.bf16.msra.mxu0 %v2583
        %2732 = vmatprep.subr.bf16.mxu0 %v2586
        %2733 = vmatpush1.bf16.msra.mxu0 %v2585
        %2734 = vmatprep.subr.bf16.mxu0 %v2588
        %2735 = vmatpush1.bf16.msra.mxu0 %v2587
        %2736 = vmatprep.subr.bf16.mxu0 %v2590
        %2737 = vmatpush1.bf16.msra.mxu0 %v2589
        %2738 = vmatprep.subr.bf16.mxu0 %v2592
        %2739 = vmatpush1.bf16.msra.mxu0 %v2591
        %2740 = vmatprep.subr.bf16.mxu0 %v2594
        %2741 = vmatpush1.bf16.msra.mxu0 %v2593
        %2742 = vmatprep.subr.bf16.mxu0 %v2596
        %2743 = vmatpush1.bf16.msra.mxu0 %v2595
        %2744 = vmatprep.subr.bf16.mxu0 %v2598
        %2745 = vmatpush1.bf16.msra.mxu0 %v2597
        %2746 = vmatprep.subr.bf16.mxu0 %v2600
        %2747 = vmatpush1.bf16.msra.mxu0 %v2599
        %2748 = vmatprep.subr.bf16.mxu0 %v2602
        %2749 = vmatpush1.bf16.msra.mxu0 %v2601
        %2750 = vmatprep.mubr.bf16.mxu0 %v2334
        %2751 = vmatmul.mubr.bf16.gmra.mrb[0].mxu0 %v2333
        %v2752 = vpop.f32.mrb[0].mxu0
        %v2753 = vadd.f32 %v2702, %v2752
        %v2754 = vpop.f32.mrb[0].mxu0
        %v2755 = vadd.f32 %v2704, %v2754
        %v2756 = vpop.f32.mrb[0].mxu0
        %v2757 = vadd.f32 %v2706, %v2756
        %v2758 = vpop.f32.mrb[0].mxu0
        %v2759 = vadd.f32 %v2708, %v2758
        %2760 = vmatprep.mubr.bf16.mxu0 %v2338
        %2761 = vmatmul.mubr.bf16.gmra.mrb[0].mxu0 %v2337
        %v2762 = vpop.f32.mrb[0].mxu0
        %v2763 = vadd.f32 %v2712, %v2762
        %v2764 = vpop.f32.mrb[0].mxu0
        %v2765 = vadd.f32 %v2714, %v2764
        %v2766 = vpop.f32.mrb[0].mxu0
        %v2767 = vpop.f32.mrb[0].mxu0
        %2768 = vdwg.mxu0
        %v2769 = vadd.f32 %v2753, 0.0
        %v2770 = vadd.f32 %v2755, 0.0
        %v2771 = vadd.f32 %v2757, 0.0
        %v2772 = vadd.f32 %v2759, 0.0
        %v2773 = vadd.f32 %v2763, 0.0
        %v2774 = vadd.f32 %v2765, 0.0
        %s2775 = scalar_lea.vmem [#allocation19], 512
        %v2776 = vld [vmem:[%s2775] sm:$0xff]
        %v2777 = vld [vmem:[%s2775 + $0x8] sm:$0xff]
        %v2778 = vld [vmem:[%s2775 + $0x10] sm:$0xff]
        %v2779 = vld [vmem:[%s2775 + $0x18] sm:$0xff]
        %v2780 = vld [vmem:[%s2775 + $0x20] sm:$0xff]
        %v2781 = vld [vmem:[%s2775 + $0x28] sm:$0xff]
        %v2782 = vld [vmem:[%s2775 + $0x30] sm:$0xff]
        %v2783 = vld [vmem:[%s2775 + $0x38] sm:$0xff]
        %v2784 = vld [vmem:[%s2775 + $0x40] sm:$0xff]
        %v2785 = vld [vmem:[%s2775 + $0x48] sm:$0xff]
        %v2786 = vld [vmem:[%s2775 + $0x50] sm:$0xff]
        %v2787 = vld [vmem:[%s2775 + $0x58] sm:$0xff]
        %v2788 = vld [vmem:[%s2775 + $0x60] sm:$0xff]
        %v2789 = vld [vmem:[%s2775 + $0x68] sm:$0xff]
        %v2790 = vld [vmem:[%s2775 + $0x70] sm:$0xff]
        %v2791 = vld [vmem:[%s2775 + $0x78] sm:$0xff]
        %v2792 = vld [vmem:[%s2775 + $0x80] sm:$0xff]
        %v2793 = vld [vmem:[%s2775 + $0x88] sm:$0xff]
        %v2794 = vld [vmem:[%s2775 + $0x90] sm:$0xff]
        %v2795 = vld [vmem:[%s2775 + $0x98] sm:$0xff]
        %v2796 = vld [vmem:[%s2775 + $0xa0] sm:$0xff]
        %v2797 = vld [vmem:[%s2775 + $0xa8] sm:$0xff]
        %v2798 = vld [vmem:[%s2775 + $0xb0] sm:$0xff]
        %v2799 = vld [vmem:[%s2775 + $0xb8] sm:$0xff]
        %v2800 = vld [vmem:[%s2775 + $0xc0] sm:$0xff]
        %v2801 = vld [vmem:[%s2775 + $0xc8] sm:$0xff]
        %v2802 = vld [vmem:[%s2775 + $0xd0] sm:$0xff]
        %v2803 = vld [vmem:[%s2775 + $0xd8] sm:$0xff]
        %v2804 = vld [vmem:[%s2775 + $0xe0] sm:$0xff]
        %v2805 = vld [vmem:[%s2775 + $0xe8] sm:$0xff]
        %v2806 = vld [vmem:[%s2775 + $0xf0] sm:$0xff]
        %v2807 = vld [vmem:[%s2775 + $0xf8] sm:$0xff]
        %v2808 = vld [vmem:[%s2775 + $0x100] sm:$0xff]
        %v2809 = vld [vmem:[%s2775 + $0x108] sm:$0xff]
        %v2810 = vld [vmem:[%s2775 + $0x110] sm:$0xff]
        %v2811 = vld [vmem:[%s2775 + $0x118] sm:$0xff]
        %v2812 = vld [vmem:[%s2775 + $0x120] sm:$0xff]
        %v2813 = vld [vmem:[%s2775 + $0x128] sm:$0xff]
        %v2814 = vld [vmem:[%s2775 + $0x130] sm:$0xff]
        %v2815 = vld [vmem:[%s2775 + $0x138] sm:$0xff]
        %v2816 = vld [vmem:[%s2775 + $0x140] sm:$0xff]
        %v2817 = vld [vmem:[%s2775 + $0x148] sm:$0xff]
        %v2818 = vld [vmem:[%s2775 + $0x150] sm:$0xff]
        %v2819 = vld [vmem:[%s2775 + $0x158] sm:$0xff]
        %v2820 = vld [vmem:[%s2775 + $0x160] sm:$0xff]
        %v2821 = vld [vmem:[%s2775 + $0x168] sm:$0xff]
        %v2822 = vld [vmem:[%s2775 + $0x170] sm:$0xff]
        %v2823 = vld [vmem:[%s2775 + $0x178] sm:$0xff]
        %v2824 = vld [vmem:[%s2775 + $0x180] sm:$0xff]
        %v2825 = vld [vmem:[%s2775 + $0x188] sm:$0xff]
        %v2826 = vld [vmem:[%s2775 + $0x190] sm:$0xff]
        %v2827 = vld [vmem:[%s2775 + $0x198] sm:$0xff]
        %v2828 = vld [vmem:[%s2775 + $0x1a0] sm:$0xff]
        %v2829 = vld [vmem:[%s2775 + $0x1a8] sm:$0xff]
        %v2830 = vld [vmem:[%s2775 + $0x1b0] sm:$0xff]
        %v2831 = vld [vmem:[%s2775 + $0x1b8] sm:$0xff]
        %v2832 = vld [vmem:[%s2775 + $0x1c0] sm:$0xff]
        %v2833 = vld [vmem:[%s2775 + $0x1c8] sm:$0xff]
        %v2834 = vld [vmem:[%s2775 + $0x1d0] sm:$0xff]
        %v2835 = vld [vmem:[%s2775 + $0x1d8] sm:$0xff]
        %v2836 = vld [vmem:[%s2775 + $0x1e0] sm:$0xff]
        %v2837 = vld [vmem:[%s2775 + $0x1e8] sm:$0xff]
        %v2838 = vld [vmem:[%s2775 + $0x1f0] sm:$0xff]
        %v2839 = vld [vmem:[%s2775 + $0x1f8] sm:$0xff]
        %v2904 = vunpack.c.l.b16 %v2776
        %v2905 = vunpack.c.h.b16 %v2776
        %v2906 = vunpack.c.l.b16 %v2777
        %v2907 = vunpack.c.h.b16 %v2777
        %v2908 = vunpack.c.l.b16 %v2778
        %v2909 = vunpack.c.h.b16 %v2778
        %v2910 = vunpack.c.l.b16 %v2779
        %v2911 = vunpack.c.h.b16 %v2779
        %v2912 = vunpack.c.l.b16 %v2780
        %v2913 = vunpack.c.h.b16 %v2780
        %v2914 = vunpack.c.l.b16 %v2781
        %v2915 = vunpack.c.h.b16 %v2781
        %v2916 = vunpack.c.l.b16 %v2782
        %v2917 = vunpack.c.h.b16 %v2782
        %v2918 = vunpack.c.l.b16 %v2783
        %v2919 = vunpack.c.h.b16 %v2783
        %v2920 = vunpack.c.l.b16 %v2784
        %v2921 = vunpack.c.h.b16 %v2784
        %v2922 = vunpack.c.l.b16 %v2785
        %v2923 = vunpack.c.h.b16 %v2785
        %v2924 = vunpack.c.l.b16 %v2786
        %v2925 = vunpack.c.h.b16 %v2786
        %v2926 = vunpack.c.l.b16 %v2787
        %v2927 = vunpack.c.h.b16 %v2787
        %v2928 = vunpack.c.l.b16 %v2788
        %v2929 = vunpack.c.h.b16 %v2788
        %v2930 = vunpack.c.l.b16 %v2789
        %v2931 = vunpack.c.h.b16 %v2789
        %v2932 = vunpack.c.l.b16 %v2790
        %v2933 = vunpack.c.h.b16 %v2790
        %v2934 = vunpack.c.l.b16 %v2791
        %v2935 = vunpack.c.h.b16 %v2791
        %v2936 = vunpack.c.l.b16 %v2792
        %v2937 = vunpack.c.h.b16 %v2792
        %v2938 = vunpack.c.l.b16 %v2793
        %v2939 = vunpack.c.h.b16 %v2793
        %v2940 = vunpack.c.l.b16 %v2794
        %v2941 = vunpack.c.h.b16 %v2794
        %v2942 = vunpack.c.l.b16 %v2795
        %v2943 = vunpack.c.h.b16 %v2795
        %v2944 = vunpack.c.l.b16 %v2796
        %v2945 = vunpack.c.h.b16 %v2796
        %v2946 = vunpack.c.l.b16 %v2797
        %v2947 = vunpack.c.h.b16 %v2797
        %v2948 = vunpack.c.l.b16 %v2798
        %v2949 = vunpack.c.h.b16 %v2798
        %v2950 = vunpack.c.l.b16 %v2799
        %v2951 = vunpack.c.h.b16 %v2799
        %v2952 = vunpack.c.l.b16 %v2800
        %v2953 = vunpack.c.h.b16 %v2800
        %v2954 = vunpack.c.l.b16 %v2801
        %v2955 = vunpack.c.h.b16 %v2801
        %v2956 = vunpack.c.l.b16 %v2802
        %v2957 = vunpack.c.h.b16 %v2802
        %v2958 = vunpack.c.l.b16 %v2803
        %v2959 = vunpack.c.h.b16 %v2803
        %v2960 = vunpack.c.l.b16 %v2804
        %v2961 = vunpack.c.h.b16 %v2804
        %v2962 = vunpack.c.l.b16 %v2805
        %v2963 = vunpack.c.h.b16 %v2805
        %v2964 = vunpack.c.l.b16 %v2806
        %v2965 = vunpack.c.h.b16 %v2806
        %v2966 = vunpack.c.l.b16 %v2807
        %v2967 = vunpack.c.h.b16 %v2807
        %v2968 = vunpack.c.l.b16 %v2808
        %v2969 = vunpack.c.h.b16 %v2808
        %v2970 = vunpack.c.l.b16 %v2809
        %v2971 = vunpack.c.h.b16 %v2809
        %v2972 = vunpack.c.l.b16 %v2810
        %v2973 = vunpack.c.h.b16 %v2810
        %v2974 = vunpack.c.l.b16 %v2811
        %v2975 = vunpack.c.h.b16 %v2811
        %v2976 = vunpack.c.l.b16 %v2812
        %v2977 = vunpack.c.h.b16 %v2812
        %v2978 = vunpack.c.l.b16 %v2813
        %v2979 = vunpack.c.h.b16 %v2813
        %v2980 = vunpack.c.l.b16 %v2814
        %v2981 = vunpack.c.h.b16 %v2814
        %v2982 = vunpack.c.l.b16 %v2815
        %v2983 = vunpack.c.h.b16 %v2815
        %v2984 = vunpack.c.l.b16 %v2816
        %v2985 = vunpack.c.h.b16 %v2816
        %v2986 = vunpack.c.l.b16 %v2817
        %v2987 = vunpack.c.h.b16 %v2817
        %v2988 = vunpack.c.l.b16 %v2818
        %v2989 = vunpack.c.h.b16 %v2818
        %v2990 = vunpack.c.l.b16 %v2819
        %v2991 = vunpack.c.h.b16 %v2819
        %v2992 = vunpack.c.l.b16 %v2820
        %v2993 = vunpack.c.h.b16 %v2820
        %v2994 = vunpack.c.l.b16 %v2821
        %v2995 = vunpack.c.h.b16 %v2821
        %v2996 = vunpack.c.l.b16 %v2822
        %v2997 = vunpack.c.h.b16 %v2822
        %v2998 = vunpack.c.l.b16 %v2823
        %v2999 = vunpack.c.h.b16 %v2823
        %v3000 = vunpack.c.l.b16 %v2824
        %v3001 = vunpack.c.h.b16 %v2824
        %v3002 = vunpack.c.l.b16 %v2825
        %v3003 = vunpack.c.h.b16 %v2825
        %v3004 = vunpack.c.l.b16 %v2826
        %v3005 = vunpack.c.h.b16 %v2826
        %v3006 = vunpack.c.l.b16 %v2827
        %v3007 = vunpack.c.h.b16 %v2827
        %v3008 = vunpack.c.l.b16 %v2828
        %v3009 = vunpack.c.h.b16 %v2828
        %v3010 = vunpack.c.l.b16 %v2829
        %v3011 = vunpack.c.h.b16 %v2829
        %v3012 = vunpack.c.l.b16 %v2830
        %v3013 = vunpack.c.h.b16 %v2830
        %v3014 = vunpack.c.l.b16 %v2831
        %v3015 = vunpack.c.h.b16 %v2831
        %v3016 = vunpack.c.l.b16 %v2832
        %v3017 = vunpack.c.h.b16 %v2832
        %v3018 = vunpack.c.l.b16 %v2833
        %v3019 = vunpack.c.h.b16 %v2833
        %v3020 = vunpack.c.l.b16 %v2834
        %v3021 = vunpack.c.h.b16 %v2834
        %v3022 = vunpack.c.l.b16 %v2835
        %v3023 = vunpack.c.h.b16 %v2835
        %v3024 = vunpack.c.l.b16 %v2836
        %v3025 = vunpack.c.h.b16 %v2836
        %v3026 = vunpack.c.l.b16 %v2837
        %v3027 = vunpack.c.h.b16 %v2837
        %v3028 = vunpack.c.l.b16 %v2838
        %v3029 = vunpack.c.h.b16 %v2838
        %v3030 = vunpack.c.l.b16 %v2839
        %v3031 = vunpack.c.h.b16 %v2839
        %v3032 = vpack.c.b16 %v2906, %v2904
        %v3033 = vpack.c.b16 %v2907, %v2905
        %v3034 = vpack.c.b16 %v2910, %v2908
        %v3035 = vpack.c.b16 %v2911, %v2909
        %v3036 = vpack.c.b16 %v2914, %v2912
        %v3037 = vpack.c.b16 %v2915, %v2913
        %v3038 = vpack.c.b16 %v2918, %v2916
        %v3039 = vpack.c.b16 %v2919, %v2917
        %v3040 = vpack.c.b16 %v2922, %v2920
        %v3041 = vpack.c.b16 %v2923, %v2921
        %v3042 = vpack.c.b16 %v2926, %v2924
        %v3043 = vpack.c.b16 %v2927, %v2925
        %v3044 = vpack.c.b16 %v2930, %v2928
        %v3045 = vpack.c.b16 %v2931, %v2929
        %v3046 = vpack.c.b16 %v2934, %v2932
        %v3047 = vpack.c.b16 %v2935, %v2933
        %v3048 = vpack.c.b16 %v2938, %v2936
        %v3049 = vpack.c.b16 %v2939, %v2937
        %v3050 = vpack.c.b16 %v2942, %v2940
        %v3051 = vpack.c.b16 %v2943, %v2941
        %v3052 = vpack.c.b16 %v2946, %v2944
        %v3053 = vpack.c.b16 %v2947, %v2945
        %v3054 = vpack.c.b16 %v2950, %v2948
        %v3055 = vpack.c.b16 %v2951, %v2949
        %v3056 = vpack.c.b16 %v2954, %v2952
        %v3057 = vpack.c.b16 %v2955, %v2953
        %v3058 = vpack.c.b16 %v2958, %v2956
        %v3059 = vpack.c.b16 %v2959, %v2957
        %v3060 = vpack.c.b16 %v2962, %v2960
        %v3061 = vpack.c.b16 %v2963, %v2961
        %v3062 = vpack.c.b16 %v2966, %v2964
        %v3063 = vpack.c.b16 %v2967, %v2965
        %v3064 = vpack.c.b16 %v2970, %v2968
        %v3065 = vpack.c.b16 %v2971, %v2969
        %v3066 = vpack.c.b16 %v2974, %v2972
        %v3067 = vpack.c.b16 %v2975, %v2973
        %v3068 = vpack.c.b16 %v2978, %v2976
        %v3069 = vpack.c.b16 %v2979, %v2977
        %v3070 = vpack.c.b16 %v2982, %v2980
        %v3071 = vpack.c.b16 %v2983, %v2981
        %v3072 = vpack.c.b16 %v2986, %v2984
        %v3073 = vpack.c.b16 %v2987, %v2985
        %v3074 = vpack.c.b16 %v2990, %v2988
        %v3075 = vpack.c.b16 %v2991, %v2989
        %v3076 = vpack.c.b16 %v2994, %v2992
        %v3077 = vpack.c.b16 %v2995, %v2993
        %v3078 = vpack.c.b16 %v2998, %v2996
        %v3079 = vpack.c.b16 %v2999, %v2997
        %v3080 = vpack.c.b16 %v3002, %v3000
        %v3081 = vpack.c.b16 %v3003, %v3001
        %v3082 = vpack.c.b16 %v3006, %v3004
        %v3083 = vpack.c.b16 %v3007, %v3005
        %v3084 = vpack.c.b16 %v3010, %v3008
        %v3085 = vpack.c.b16 %v3011, %v3009
        %v3086 = vpack.c.b16 %v3014, %v3012
        %v3087 = vpack.c.b16 %v3015, %v3013
        %v3088 = vpack.c.b16 %v3018, %v3016
        %v3089 = vpack.c.b16 %v3019, %v3017
        %v3090 = vpack.c.b16 %v3022, %v3020
        %v3091 = vpack.c.b16 %v3023, %v3021
        %v3092 = vpack.c.b16 %v3026, %v3024
        %v3093 = vpack.c.b16 %v3027, %v3025
        %v3094 = vpack.c.b16 %v3030, %v3028
        %v3095 = vpack.c.b16 %v3031, %v3029
        %3160 = vmatprep.subr.bf16.mxu0 %v3033
        %3161 = vmatpush1.bf16.msra.mxu0 %v3032
        %3162 = vmatprep.subr.bf16.mxu0 %v3035
        %3163 = vmatpush1.bf16.msra.mxu0 %v3034
        %3164 = vmatprep.subr.bf16.mxu0 %v3037
        %3165 = vmatpush1.bf16.msra.mxu0 %v3036
        %3166 = vmatprep.subr.bf16.mxu0 %v3039
        %3167 = vmatpush1.bf16.msra.mxu0 %v3038
        %3168 = vmatprep.subr.bf16.mxu0 %v3041
        %3169 = vmatpush1.bf16.msra.mxu0 %v3040
        %3170 = vmatprep.subr.bf16.mxu0 %v3043
        %3171 = vmatpush1.bf16.msra.mxu0 %v3042
        %3172 = vmatprep.subr.bf16.mxu0 %v3045
        %3173 = vmatpush1.bf16.msra.mxu0 %v3044
        %3174 = vmatprep.subr.bf16.mxu0 %v3047
        %3175 = vmatpush1.bf16.msra.mxu0 %v3046
        %3176 = vmatprep.subr.bf16.mxu0 %v3049
        %3177 = vmatpush1.bf16.msra.mxu0 %v3048
        %3178 = vmatprep.subr.bf16.mxu0 %v3051
        %3179 = vmatpush1.bf16.msra.mxu0 %v3050
        %3180 = vmatprep.subr.bf16.mxu0 %v3053
        %3181 = vmatpush1.bf16.msra.mxu0 %v3052
        %3182 = vmatprep.subr.bf16.mxu0 %v3055
        %3183 = vmatpush1.bf16.msra.mxu0 %v3054
        %3184 = vmatprep.subr.bf16.mxu0 %v3057
        %3185 = vmatpush1.bf16.msra.mxu0 %v3056
        %3186 = vmatprep.subr.bf16.mxu0 %v3059
        %3187 = vmatpush1.bf16.msra.mxu0 %v3058
        %3188 = vmatprep.subr.bf16.mxu0 %v3061
        %3189 = vmatpush1.bf16.msra.mxu0 %v3060
        %3190 = vmatprep.subr.bf16.mxu0 %v3063
        %3191 = vmatpush1.bf16.msra.mxu0 %v3062
        %3192 = vmatprep.mubr.bf16.mxu0 %v2332
        %3193 = vmatmul.mubr.bf16.gmra.mrb[0].mxu0 %v2331
        %v3194 = vpop.f32.mrb[0].mxu0
        %v3195 = vadd.f32 0.0, %v3194
        %v3196 = vpop.f32.mrb[0].mxu0
        %v3197 = vadd.f32 0.0, %v3196
        %v3198 = vpop.f32.mrb[0].mxu0
        %v3199 = vadd.f32 0.0, %v3198
        %v3200 = vpop.f32.mrb[0].mxu0
        %v3201 = vadd.f32 0.0, %v3200
        %3202 = vmatprep.mubr.bf16.mxu0 %v2336
        %3203 = vmatmul.mubr.bf16.gmra.mrb[0].mxu0 %v2335
        %v3204 = vpop.f32.mrb[0].mxu0
        %v3205 = vadd.f32 0.0, %v3204
        %v3206 = vpop.f32.mrb[0].mxu0
        %v3207 = vadd.f32 0.0, %v3206
        %v3208 = vpop.f32.mrb[0].mxu0
        %v3209 = vpop.f32.mrb[0].mxu0
        %3210 = vdwg.mxu0
        %3211 = vmatprep.subr.bf16.mxu0 %v3065
        %3212 = vmatpush1.bf16.msra.mxu0 %v3064
        %3213 = vmatprep.subr.bf16.mxu0 %v3067
        %3214 = vmatpush1.bf16.msra.mxu0 %v3066
        %3215 = vmatprep.subr.bf16.mxu0 %v3069
        %3216 = vmatpush1.bf16.msra.mxu0 %v3068
        %3217 = vmatprep.subr.bf16.mxu0 %v3071
        %3218 = vmatpush1.bf16.msra.mxu0 %v3070
        %3219 = vmatprep.subr.bf16.mxu0 %v3073
        %3220 = vmatpush1.bf16.msra.mxu0 %v3072
        %3221 = vmatprep.subr.bf16.mxu0 %v3075
        %3222 = vmatpush1.bf16.msra.mxu0 %v3074
        %3223 = vmatprep.subr.bf16.mxu0 %v3077
        %3224 = vmatpush1.bf16.msra.mxu0 %v3076
        %3225 = vmatprep.subr.bf16.mxu0 %v3079
        %3226 = vmatpush1.bf16.msra.mxu0 %v3078
        %3227 = vmatprep.subr.bf16.mxu0 %v3081
        %3228 = vmatpush1.bf16.msra.mxu0 %v3080
        %3229 = vmatprep.subr.bf16.mxu0 %v3083
        %3230 = vmatpush1.bf16.msra.mxu0 %v3082
        %3231 = vmatprep.subr.bf16.mxu0 %v3085
        %3232 = vmatpush1.bf16.msra.mxu0 %v3084
        %3233 = vmatprep.subr.bf16.mxu0 %v3087
        %3234 = vmatpush1.bf16.msra.mxu0 %v3086
        %3235 = vmatprep.subr.bf16.mxu0 %v3089
        %3236 = vmatpush1.bf16.msra.mxu0 %v3088
        %3237 = vmatprep.subr.bf16.mxu0 %v3091
        %3238 = vmatpush1.bf16.msra.mxu0 %v3090
        %3239 = vmatprep.subr.bf16.mxu0 %v3093
        %3240 = vmatpush1.bf16.msra.mxu0 %v3092
        %3241 = vmatprep.subr.bf16.mxu0 %v3095
        %3242 = vmatpush1.bf16.msra.mxu0 %v3094
        %3243 = vmatprep.mubr.bf16.mxu0 %v2334
        %3244 = vmatmul.mubr.bf16.gmra.mrb[0].mxu0 %v2333
        %v3245 = vpop.f32.mrb[0].mxu0
        %v3246 = vadd.f32 %v3195, %v3245
        %v3247 = vpop.f32.mrb[0].mxu0
        %v3248 = vadd.f32 %v3197, %v3247
        %v3249 = vpop.f32.mrb[0].mxu0
        %v3250 = vadd.f32 %v3199, %v3249
        %v3251 = vpop.f32.mrb[0].mxu0
        %v3252 = vadd.f32 %v3201, %v3251
        %3253 = vmatprep.mubr.bf16.mxu0 %v2338
        %3254 = vmatmul.mubr.bf16.gmra.mrb[0].mxu0 %v2337
        %v3255 = vpop.f32.mrb[0].mxu0
        %v3256 = vadd.f32 %v3205, %v3255
        %v3257 = vpop.f32.mrb[0].mxu0
        %v3258 = vadd.f32 %v3207, %v3257
        %v3259 = vpop.f32.mrb[0].mxu0
        %v3260 = vpop.f32.mrb[0].mxu0
        %3261 = vdwg.mxu0
        %vm3268 = vcmask 1046528
        %v3269 = vrot.slane %v3246, 1
        %v3270 = vrot.slane %v3250, 1
        %v3271 = vsel %vm3268, %v3269, %v3270
        %v3272 = vrot.slane %v3248, 1
        %v3273 = vrot.slane %v3252, 1
        %v3274 = vsel %vm3268, %v3272, %v3273
        %v3275 = vrot.slane %v3256, 1
        %v3276 = vsel %vm3268, %v3270, %v3275
        %v3277 = vrot.slane %v3258, 1
        %v3278 = vsel %vm3268, %v3273, %v3277
        %v3285 = vadd.f32 %v2769, %v3271
        %v3286 = vadd.f32 %v2770, %v3274
        %v3287 = vadd.f32 %v2771, %v3276
        %v3288 = vadd.f32 %v2772, %v3278
        %v3289 = vadd.f32 %v2773, %v3275
        %v3290 = vadd.f32 %v2774, %v3277
        %s3291 = scalar_lea.vmem [#allocation19], 1024
        %v3292 = vld [vmem:[%s3291] sm:$0xff]
        %v3293 = vld [vmem:[%s3291 + $0x8] sm:$0xff]
        %v3294 = vld [vmem:[%s3291 + $0x10] sm:$0xff]
        %v3295 = vld [vmem:[%s3291 + $0x18] sm:$0xff]
        %v3296 = vld [vmem:[%s3291 + $0x20] sm:$0xff]
        %v3297 = vld [vmem:[%s3291 + $0x28] sm:$0xff]
        %v3298 = vld [vmem:[%s3291 + $0x30] sm:$0xff]
        %v3299 = vld [vmem:[%s3291 + $0x38] sm:$0xff]
        %v3300 = vld [vmem:[%s3291 + $0x40] sm:$0xff]
        %v3301 = vld [vmem:[%s3291 + $0x48] sm:$0xff]
        %v3302 = vld [vmem:[%s3291 + $0x50] sm:$0xff]
        %v3303 = vld [vmem:[%s3291 + $0x58] sm:$0xff]
        %v3304 = vld [vmem:[%s3291 + $0x60] sm:$0xff]
        %v3305 = vld [vmem:[%s3291 + $0x68] sm:$0xff]
        %v3306 = vld [vmem:[%s3291 + $0x70] sm:$0xff]
        %v3307 = vld [vmem:[%s3291 + $0x78] sm:$0xff]
        %v3308 = vld [vmem:[%s3291 + $0x80] sm:$0xff]
        %v3309 = vld [vmem:[%s3291 + $0x88] sm:$0xff]
        %v3310 = vld [vmem:[%s3291 + $0x90] sm:$0xff]
        %v3311 = vld [vmem:[%s3291 + $0x98] sm:$0xff]
        %v3312 = vld [vmem:[%s3291 + $0xa0] sm:$0xff]
        %v3313 = vld [vmem:[%s3291 + $0xa8] sm:$0xff]
        %v3314 = vld [vmem:[%s3291 + $0xb0] sm:$0xff]
        %v3315 = vld [vmem:[%s3291 + $0xb8] sm:$0xff]
        %v3316 = vld [vmem:[%s3291 + $0xc0] sm:$0xff]
        %v3317 = vld [vmem:[%s3291 + $0xc8] sm:$0xff]
        %v3318 = vld [vmem:[%s3291 + $0xd0] sm:$0xff]
        %v3319 = vld [vmem:[%s3291 + $0xd8] sm:$0xff]
        %v3320 = vld [vmem:[%s3291 + $0xe0] sm:$0xff]
        %v3321 = vld [vmem:[%s3291 + $0xe8] sm:$0xff]
        %v3322 = vld [vmem:[%s3291 + $0xf0] sm:$0xff]
        %v3323 = vld [vmem:[%s3291 + $0xf8] sm:$0xff]
        %v3324 = vld [vmem:[%s3291 + $0x100] sm:$0xff]
        %v3325 = vld [vmem:[%s3291 + $0x108] sm:$0xff]
        %v3326 = vld [vmem:[%s3291 + $0x110] sm:$0xff]
        %v3327 = vld [vmem:[%s3291 + $0x118] sm:$0xff]
        %v3328 = vld [vmem:[%s3291 + $0x120] sm:$0xff]
        %v3329 = vld [vmem:[%s3291 + $0x128] sm:$0xff]
        %v3330 = vld [vmem:[%s3291 + $0x130] sm:$0xff]
        %v3331 = vld [vmem:[%s3291 + $0x138] sm:$0xff]
        %v3332 = vld [vmem:[%s3291 + $0x140] sm:$0xff]
        %v3333 = vld [vmem:[%s3291 + $0x148] sm:$0xff]
        %v3334 = vld [vmem:[%s3291 + $0x150] sm:$0xff]
        %v3335 = vld [vmem:[%s3291 + $0x158] sm:$0xff]
        %v3336 = vld [vmem:[%s3291 + $0x160] sm:$0xff]
        %v3337 = vld [vmem:[%s3291 + $0x168] sm:$0xff]
        %v3338 = vld [vmem:[%s3291 + $0x170] sm:$0xff]
        %v3339 = vld [vmem:[%s3291 + $0x178] sm:$0xff]
        %v3340 = vld [vmem:[%s3291 + $0x180] sm:$0xff]
        %v3341 = vld [vmem:[%s3291 + $0x188] sm:$0xff]
        %v3342 = vld [vmem:[%s3291 + $0x190] sm:$0xff]
        %v3343 = vld [vmem:[%s3291 + $0x198] sm:$0xff]
        %v3344 = vld [vmem:[%s3291 + $0x1a0] sm:$0xff]
        %v3345 = vld [vmem:[%s3291 + $0x1a8] sm:$0xff]
        %v3346 = vld [vmem:[%s3291 + $0x1b0] sm:$0xff]
        %v3347 = vld [vmem:[%s3291 + $0x1b8] sm:$0xff]
        %v3348 = vld [vmem:[%s3291 + $0x1c0] sm:$0xff]
        %v3349 = vld [vmem:[%s3291 + $0x1c8] sm:$0xff]
        %v3350 = vld [vmem:[%s3291 + $0x1d0] sm:$0xff]
        %v3351 = vld [vmem:[%s3291 + $0x1d8] sm:$0xff]
        %v3352 = vld [vmem:[%s3291 + $0x1e0] sm:$0xff]
        %v3353 = vld [vmem:[%s3291 + $0x1e8] sm:$0xff]
        %v3354 = vld [vmem:[%s3291 + $0x1f0] sm:$0xff]
        %v3355 = vld [vmem:[%s3291 + $0x1f8] sm:$0xff]
        %v3420 = vunpack.c.l.b16 %v3292
        %v3421 = vunpack.c.h.b16 %v3292
        %v3422 = vunpack.c.l.b16 %v3293
        %v3423 = vunpack.c.h.b16 %v3293
        %v3424 = vunpack.c.l.b16 %v3294
        %v3425 = vunpack.c.h.b16 %v3294
        %v3426 = vunpack.c.l.b16 %v3295
        %v3427 = vunpack.c.h.b16 %v3295
        %v3428 = vunpack.c.l.b16 %v3296
        %v3429 = vunpack.c.h.b16 %v3296
        %v3430 = vunpack.c.l.b16 %v3297
        %v3431 = vunpack.c.h.b16 %v3297
        %v3432 = vunpack.c.l.b16 %v3298
        %v3433 = vunpack.c.h.b16 %v3298
        %v3434 = vunpack.c.l.b16 %v3299
        %v3435 = vunpack.c.h.b16 %v3299
        %v3436 = vunpack.c.l.b16 %v3300
        %v3437 = vunpack.c.h.b16 %v3300
        %v3438 = vunpack.c.l.b16 %v3301
        %v3439 = vunpack.c.h.b16 %v3301
        %v3440 = vunpack.c.l.b16 %v3302
        %v3441 = vunpack.c.h.b16 %v3302
        %v3442 = vunpack.c.l.b16 %v3303
        %v3443 = vunpack.c.h.b16 %v3303
        %v3444 = vunpack.c.l.b16 %v3304
        %v3445 = vunpack.c.h.b16 %v3304
        %v3446 = vunpack.c.l.b16 %v3305
        %v3447 = vunpack.c.h.b16 %v3305
        %v3448 = vunpack.c.l.b16 %v3306
        %v3449 = vunpack.c.h.b16 %v3306
        %v3450 = vunpack.c.l.b16 %v3307
        %v3451 = vunpack.c.h.b16 %v3307
        %v3452 = vunpack.c.l.b16 %v3308
        %v3453 = vunpack.c.h.b16 %v3308
        %v3454 = vunpack.c.l.b16 %v3309
        %v3455 = vunpack.c.h.b16 %v3309
        %v3456 = vunpack.c.l.b16 %v3310
        %v3457 = vunpack.c.h.b16 %v3310
        %v3458 = vunpack.c.l.b16 %v3311
        %v3459 = vunpack.c.h.b16 %v3311
        %v3460 = vunpack.c.l.b16 %v3312
        %v3461 = vunpack.c.h.b16 %v3312
        %v3462 = vunpack.c.l.b16 %v3313
        %v3463 = vunpack.c.h.b16 %v3313
        %v3464 = vunpack.c.l.b16 %v3314
        %v3465 = vunpack.c.h.b16 %v3314
        %v3466 = vunpack.c.l.b16 %v3315
        %v3467 = vunpack.c.h.b16 %v3315
        %v3468 = vunpack.c.l.b16 %v3316
        %v3469 = vunpack.c.h.b16 %v3316
        %v3470 = vunpack.c.l.b16 %v3317
        %v3471 = vunpack.c.h.b16 %v3317
        %v3472 = vunpack.c.l.b16 %v3318
        %v3473 = vunpack.c.h.b16 %v3318
        %v3474 = vunpack.c.l.b16 %v3319
        %v3475 = vunpack.c.h.b16 %v3319
        %v3476 = vunpack.c.l.b16 %v3320
        %v3477 = vunpack.c.h.b16 %v3320
        %v3478 = vunpack.c.l.b16 %v3321
        %v3479 = vunpack.c.h.b16 %v3321
        %v3480 = vunpack.c.l.b16 %v3322
        %v3481 = vunpack.c.h.b16 %v3322
        %v3482 = vunpack.c.l.b16 %v3323
        %v3483 = vunpack.c.h.b16 %v3323
        %v3484 = vunpack.c.l.b16 %v3324
        %v3485 = vunpack.c.h.b16 %v3324
        %v3486 = vunpack.c.l.b16 %v3325
        %v3487 = vunpack.c.h.b16 %v3325
        %v3488 = vunpack.c.l.b16 %v3326
        %v3489 = vunpack.c.h.b16 %v3326
        %v3490 = vunpack.c.l.b16 %v3327
        %v3491 = vunpack.c.h.b16 %v3327
        %v3492 = vunpack.c.l.b16 %v3328
        %v3493 = vunpack.c.h.b16 %v3328
        %v3494 = vunpack.c.l.b16 %v3329
        %v3495 = vunpack.c.h.b16 %v3329
        %v3496 = vunpack.c.l.b16 %v3330
        %v3497 = vunpack.c.h.b16 %v3330
        %v3498 = vunpack.c.l.b16 %v3331
        %v3499 = vunpack.c.h.b16 %v3331
        %v3500 = vunpack.c.l.b16 %v3332
        %v3501 = vunpack.c.h.b16 %v3332
        %v3502 = vunpack.c.l.b16 %v3333
        %v3503 = vunpack.c.h.b16 %v3333
        %v3504 = vunpack.c.l.b16 %v3334
        %v3505 = vunpack.c.h.b16 %v3334
        %v3506 = vunpack.c.l.b16 %v3335
        %v3507 = vunpack.c.h.b16 %v3335
        %v3508 = vunpack.c.l.b16 %v3336
        %v3509 = vunpack.c.h.b16 %v3336
        %v3510 = vunpack.c.l.b16 %v3337
        %v3511 = vunpack.c.h.b16 %v3337
        %v3512 = vunpack.c.l.b16 %v3338
        %v3513 = vunpack.c.h.b16 %v3338
        %v3514 = vunpack.c.l.b16 %v3339
        %v3515 = vunpack.c.h.b16 %v3339
        %v3516 = vunpack.c.l.b16 %v3340
        %v3517 = vunpack.c.h.b16 %v3340
        %v3518 = vunpack.c.l.b16 %v3341
        %v3519 = vunpack.c.h.b16 %v3341
        %v3520 = vunpack.c.l.b16 %v3342
        %v3521 = vunpack.c.h.b16 %v3342
        %v3522 = vunpack.c.l.b16 %v3343
        %v3523 = vunpack.c.h.b16 %v3343
        %v3524 = vunpack.c.l.b16 %v3344
        %v3525 = vunpack.c.h.b16 %v3344
        %v3526 = vunpack.c.l.b16 %v3345
        %v3527 = vunpack.c.h.b16 %v3345
        %v3528 = vunpack.c.l.b16 %v3346
        %v3529 = vunpack.c.h.b16 %v3346
        %v3530 = vunpack.c.l.b16 %v3347
        %v3531 = vunpack.c.h.b16 %v3347
        %v3532 = vunpack.c.l.b16 %v3348
        %v3533 = vunpack.c.h.b16 %v3348
        %v3534 = vunpack.c.l.b16 %v3349
        %v3535 = vunpack.c.h.b16 %v3349
        %v3536 = vunpack.c.l.b16 %v3350
        %v3537 = vunpack.c.h.b16 %v3350
        %v3538 = vunpack.c.l.b16 %v3351
        %v3539 = vunpack.c.h.b16 %v3351
        %v3540 = vunpack.c.l.b16 %v3352
        %v3541 = vunpack.c.h.b16 %v3352
        %v3542 = vunpack.c.l.b16 %v3353
        %v3543 = vunpack.c.h.b16 %v3353
        %v3544 = vunpack.c.l.b16 %v3354
        %v3545 = vunpack.c.h.b16 %v3354
        %v3546 = vunpack.c.l.b16 %v3355
        %v3547 = vunpack.c.h.b16 %v3355
        %v3548 = vpack.c.b16 %v3422, %v3420
        %v3549 = vpack.c.b16 %v3423, %v3421
        %v3550 = vpack.c.b16 %v3426, %v3424
        %v3551 = vpack.c.b16 %v3427, %v3425
        %v3552 = vpack.c.b16 %v3430, %v3428
        %v3553 = vpack.c.b16 %v3431, %v3429
        %v3554 = vpack.c.b16 %v3434, %v3432
        %v3555 = vpack.c.b16 %v3435, %v3433
        %v3556 = vpack.c.b16 %v3438, %v3436
        %v3557 = vpack.c.b16 %v3439, %v3437
        %v3558 = vpack.c.b16 %v3442, %v3440
        %v3559 = vpack.c.b16 %v3443, %v3441
        %v3560 = vpack.c.b16 %v3446, %v3444
        %v3561 = vpack.c.b16 %v3447, %v3445
        %v3562 = vpack.c.b16 %v3450, %v3448
        %v3563 = vpack.c.b16 %v3451, %v3449
        %v3564 = vpack.c.b16 %v3454, %v3452
        %v3565 = vpack.c.b16 %v3455, %v3453
        %v3566 = vpack.c.b16 %v3458, %v3456
        %v3567 = vpack.c.b16 %v3459, %v3457
        %v3568 = vpack.c.b16 %v3462, %v3460
        %v3569 = vpack.c.b16 %v3463, %v3461
        %v3570 = vpack.c.b16 %v3466, %v3464
        %v3571 = vpack.c.b16 %v3467, %v3465
        %v3572 = vpack.c.b16 %v3470, %v3468
        %v3573 = vpack.c.b16 %v3471, %v3469
        %v3574 = vpack.c.b16 %v3474, %v3472
        %v3575 = vpack.c.b16 %v3475, %v3473
        %v3576 = vpack.c.b16 %v3478, %v3476
        %v3577 = vpack.c.b16 %v3479, %v3477
        %v3578 = vpack.c.b16 %v3482, %v3480
        %v3579 = vpack.c.b16 %v3483, %v3481
        %v3580 = vpack.c.b16 %v3486, %v3484
        %v3581 = vpack.c.b16 %v3487, %v3485
        %v3582 = vpack.c.b16 %v3490, %v3488
        %v3583 = vpack.c.b16 %v3491, %v3489
        %v3584 = vpack.c.b16 %v3494, %v3492
        %v3585 = vpack.c.b16 %v3495, %v3493
        %v3586 = vpack.c.b16 %v3498, %v3496
        %v3587 = vpack.c.b16 %v3499, %v3497
        %v3588 = vpack.c.b16 %v3502, %v3500
        %v3589 = vpack.c.b16 %v3503, %v3501
        %v3590 = vpack.c.b16 %v3506, %v3504
        %v3591 = vpack.c.b16 %v3507, %v3505
        %v3592 = vpack.c.b16 %v3510, %v3508
        %v3593 = vpack.c.b16 %v3511, %v3509
        %v3594 = vpack.c.b16 %v3514, %v3512
        %v3595 = vpack.c.b16 %v3515, %v3513
        %v3596 = vpack.c.b16 %v3518, %v3516
        %v3597 = vpack.c.b16 %v3519, %v3517
        %v3598 = vpack.c.b16 %v3522, %v3520
        %v3599 = vpack.c.b16 %v3523, %v3521
        %v3600 = vpack.c.b16 %v3526, %v3524
        %v3601 = vpack.c.b16 %v3527, %v3525
        %v3602 = vpack.c.b16 %v3530, %v3528
        %v3603 = vpack.c.b16 %v3531, %v3529
        %v3604 = vpack.c.b16 %v3534, %v3532
        %v3605 = vpack.c.b16 %v3535, %v3533
        %v3606 = vpack.c.b16 %v3538, %v3536
        %v3607 = vpack.c.b16 %v3539, %v3537
        %v3608 = vpack.c.b16 %v3542, %v3540
        %v3609 = vpack.c.b16 %v3543, %v3541
        %v3610 = vpack.c.b16 %v3546, %v3544
        %v3611 = vpack.c.b16 %v3547, %v3545
        %3676 = vmatprep.subr.bf16.mxu0 %v3549
        %3677 = vmatpush1.bf16.msra.mxu0 %v3548
        %3678 = vmatprep.subr.bf16.mxu0 %v3551
        %3679 = vmatpush1.bf16.msra.mxu0 %v3550
        %3680 = vmatprep.subr.bf16.mxu0 %v3553
        %3681 = vmatpush1.bf16.msra.mxu0 %v3552
        %3682 = vmatprep.subr.bf16.mxu0 %v3555
        %3683 = vmatpush1.bf16.msra.mxu0 %v3554
        %3684 = vmatprep.subr.bf16.mxu0 %v3557
        %3685 = vmatpush1.bf16.msra.mxu0 %v3556
        %3686 = vmatprep.subr.bf16.mxu0 %v3559
        %3687 = vmatpush1.bf16.msra.mxu0 %v3558
        %3688 = vmatprep.subr.bf16.mxu0 %v3561
        %3689 = vmatpush1.bf16.msra.mxu0 %v3560
        %3690 = vmatprep.subr.bf16.mxu0 %v3563
        %3691 = vmatpush1.bf16.msra.mxu0 %v3562
        %3692 = vmatprep.subr.bf16.mxu0 %v3565
        %3693 = vmatpush1.bf16.msra.mxu0 %v3564
        %3694 = vmatprep.subr.bf16.mxu0 %v3567
        %3695 = vmatpush1.bf16.msra.mxu0 %v3566
        %3696 = vmatprep.subr.bf16.mxu0 %v3569
        %3697 = vmatpush1.bf16.msra.mxu0 %v3568
        %3698 = vmatprep.subr.bf16.mxu0 %v3571
        %3699 = vmatpush1.bf16.msra.mxu0 %v3570
        %3700 = vmatprep.subr.bf16.mxu0 %v3573
        %3701 = vmatpush1.bf16.msra.mxu0 %v3572
        %3702 = vmatprep.subr.bf16.mxu0 %v3575
        %3703 = vmatpush1.bf16.msra.mxu0 %v3574
        %3704 = vmatprep.subr.bf16.mxu0 %v3577
        %3705 = vmatpush1.bf16.msra.mxu0 %v3576
        %3706 = vmatprep.subr.bf16.mxu0 %v3579
        %3707 = vmatpush1.bf16.msra.mxu0 %v3578
        %3708 = vmatprep.mubr.bf16.mxu0 %v2332
        %3709 = vmatmul.mubr.bf16.gmra.mrb[0].mxu0 %v2331
        %v3710 = vpop.f32.mrb[0].mxu0
        %v3711 = vadd.f32 0.0, %v3710
        %v3712 = vpop.f32.mrb[0].mxu0
        %v3713 = vadd.f32 0.0, %v3712
        %v3714 = vpop.f32.mrb[0].mxu0
        %v3715 = vadd.f32 0.0, %v3714
        %v3716 = vpop.f32.mrb[0].mxu0
        %v3717 = vadd.f32 0.0, %v3716
        %3718 = vmatprep.mubr.bf16.mxu0 %v2336
        %3719 = vmatmul.mubr.bf16.gmra.mrb[0].mxu0 %v2335
        %v3720 = vpop.f32.mrb[0].mxu0
        %v3721 = vadd.f32 0.0, %v3720
        %v3722 = vpop.f32.mrb[0].mxu0
        %v3723 = vadd.f32 0.0, %v3722
        %v3724 = vpop.f32.mrb[0].mxu0
        %v3725 = vpop.f32.mrb[0].mxu0
        %3726 = vdwg.mxu0
        %3727 = vmatprep.subr.bf16.mxu0 %v3581
        %3728 = vmatpush1.bf16.msra.mxu0 %v3580
        %3729 = vmatprep.subr.bf16.mxu0 %v3583
        %3730 = vmatpush1.bf16.msra.mxu0 %v3582
        %3731 = vmatprep.subr.bf16.mxu0 %v3585
        %3732 = vmatpush1.bf16.msra.mxu0 %v3584
        %3733 = vmatprep.subr.bf16.mxu0 %v3587
        %3734 = vmatpush1.bf16.msra.mxu0 %v3586
        %3735 = vmatprep.subr.bf16.mxu0 %v3589
        %3736 = vmatpush1.bf16.msra.mxu0 %v3588
        %3737 = vmatprep.subr.bf16.mxu0 %v3591
        %3738 = vmatpush1.bf16.msra.mxu0 %v3590
        %3739 = vmatprep.subr.bf16.mxu0 %v3593
        %3740 = vmatpush1.bf16.msra.mxu0 %v3592
        %3741 = vmatprep.subr.bf16.mxu0 %v3595
        %3742 = vmatpush1.bf16.msra.mxu0 %v3594
        %3743 = vmatprep.subr.bf16.mxu0 %v3597
        %3744 = vmatpush1.bf16.msra.mxu0 %v3596
        %3745 = vmatprep.subr.bf16.mxu0 %v3599
        %3746 = vmatpush1.bf16.msra.mxu0 %v3598
        %3747 = vmatprep.subr.bf16.mxu0 %v3601
        %3748 = vmatpush1.bf16.msra.mxu0 %v3600
        %3749 = vmatprep.subr.bf16.mxu0 %v3603
        %3750 = vmatpush1.bf16.msra.mxu0 %v3602
        %3751 = vmatprep.subr.bf16.mxu0 %v3605
        %3752 = vmatpush1.bf16.msra.mxu0 %v3604
        %3753 = vmatprep.subr.bf16.mxu0 %v3607
        %3754 = vmatpush1.bf16.msra.mxu0 %v3606
        %3755 = vmatprep.subr.bf16.mxu0 %v3609
        %3756 = vmatpush1.bf16.msra.mxu0 %v3608
        %3757 = vmatprep.subr.bf16.mxu0 %v3611
        %3758 = vmatpush1.bf16.msra.mxu0 %v3610
        %3759 = vmatprep.mubr.bf16.mxu0 %v2334
        %3760 = vmatmul.mubr.bf16.gmra.mrb[0].mxu0 %v2333
        %v3761 = vpop.f32.mrb[0].mxu0
        %v3762 = vadd.f32 %v3711, %v3761
        %v3763 = vpop.f32.mrb[0].mxu0
        %v3764 = vadd.f32 %v3713, %v3763
        %v3765 = vpop.f32.mrb[0].mxu0
        %v3766 = vadd.f32 %v3715, %v3765
        %v3767 = vpop.f32.mrb[0].mxu0
        %v3768 = vadd.f32 %v3717, %v3767
        %3769 = vmatprep.mubr.bf16.mxu0 %v2338
        %3770 = vmatmul.mubr.bf16.gmra.mrb[0].mxu0 %v2337
        %v3771 = vpop.f32.mrb[0].mxu0
        %v3772 = vadd.f32 %v3721, %v3771
        %v3773 = vpop.f32.mrb[0].mxu0
        %v3774 = vadd.f32 %v3723, %v3773
        %v3775 = vpop.f32.mrb[0].mxu0
        %v3776 = vpop.f32.mrb[0].mxu0
        %3777 = vdwg.mxu0
        %vm3784 = vcmask 1045504
        %v3785 = vrot.slane %v3762, 2
        %v3786 = vrot.slane %v3766, 2
        %v3787 = vsel %vm3784, %v3785, %v3786
        %v3788 = vrot.slane %v3764, 2
        %v3789 = vrot.slane %v3768, 2
        %v3790 = vsel %vm3784, %v3788, %v3789
        %v3791 = vrot.slane %v3772, 2
        %v3792 = vsel %vm3784, %v3786, %v3791
        %v3793 = vrot.slane %v3774, 2
        %v3794 = vsel %vm3784, %v3789, %v3793
        %v3801 = vadd.f32 %v3285, %v3787
        %v3802 = vadd.f32 %v3286, %v3790
        %v3803 = vadd.f32 %v3287, %v3792
        %v3804 = vadd.f32 %v3288, %v3794
        %v3805 = vadd.f32 %v3289, %v3791
        %v3806 = vadd.f32 %v3290, %v3793
        %v3807 = vld [vmem:[#allocation21] sm:$0x3]
        %v3809 = vlaneseq
        %v3810 = vshrl.u32 %v3809, 7
        %v3811 = vsub.s32 0, %v3810
        %v3812 = vrot.slane %v3807, %v3811
        %v3813 = vlaneseq
        %v3814 = vshrl.u32 %v3813, 7
        %v3815 = vsub.s32 1, %v3814
        %v3816 = vrot.slane %v3807, %v3815
        %v3819 = vadd.f32 %v3801, %v3812
        %v3820 = vadd.f32 %v3802, %v3816
        %v3821 = vadd.f32 %v3803, %v3812
        %v3822 = vadd.f32 %v3804, %v3816
        %v3823 = vadd.f32 %v3805, %v3812
        %v3824 = vadd.f32 %v3806, %v3816
        %v3825 = vmax.f32 %v3819, 0.0
        %v3826 = vmax.f32 %v3820, 0.0
        %v3827 = vmax.f32 %v3821, 0.0
        %v3828 = vmax.f32 %v3822, 0.0
        %v3829 = vmax.f32 %v3823, 0.0
        %v3830 = vmax.f32 %v3824, 0.0
        %vm3837 = vcmask 1044480
        %v3838 = vrot.slane %v3825, 3
        %v3839 = vrot.slane %v3827, 3
        %v3840 = vsel %vm3837, %v3838, %v3839
        %v3841 = vrot.slane %v3826, 3
        %v3842 = vrot.slane %v3828, 3
        %v3843 = vsel %vm3837, %v3841, %v3842
        %v3844 = vrot.slane %v3829, 3
        %v3845 = vsel %vm3837, %v3839, %v3844
        %v3846 = vrot.slane %v3830, 3
        %v3847 = vsel %vm3837, %v3842, %v3846
        %v3852 = vsel %vm1761, %v3840, 0.0
        %v3853 = vsel %vm1761, %v3843, 0.0
        %v3854 = vsel %vm1762, %v3845, 0.0
        %v3855 = vsel %vm1762, %v3847, 0.0
        %v3856 = vpack.c.bf16 %v3854, %v3852
        %v3857 = vpack.c.bf16 %v3855, %v3853
        %3858 = vst [vmem:[#allocation3] sm:$0xff] %v3856
        %3859 = vst [vmem:[#allocation3 + $0x8] sm:$0xff] %v3857
        %v3860 = vld [vmem:[#allocation3] sm:$0xff]
        %v3861 = vld [vmem:[#allocation3 + $0x8] sm:$0xff]
        %v3862 = vld [vmem:[#allocation22] sm:$0xff]
        %v3863 = vld [vmem:[#allocation22 + $0x8] sm:$0xf]
        %v3864 = vld [vmem:[#allocation22 + $0xc] sm:$0xff]
        %v3865 = vld [vmem:[#allocation22 + $0x14] sm:$0xf]
        %v3866 = vld [vmem:[#allocation22 + $0x18] sm:$0xff]
        %v3867 = vld [vmem:[#allocation22 + $0x20] sm:$0xf]
        %v3868 = vld [vmem:[#allocation22 + $0x24] sm:$0xff]
        %v3869 = vld [vmem:[#allocation22 + $0x2c] sm:$0xf]
        %v3870 = vld [vmem:[#allocation22 + $0x30] sm:$0xff]
        %v3871 = vld [vmem:[#allocation22 + $0x38] sm:$0xf]
        %v3872 = vld [vmem:[#allocation22 + $0x3c] sm:$0xff]
        %v3873 = vld [vmem:[#allocation22 + $0x44] sm:$0xf]
        %v3874 = vld [vmem:[#allocation22 + $0x48] sm:$0xff]
        %v3875 = vld [vmem:[#allocation22 + $0x50] sm:$0xf]
        %v3876 = vld [vmem:[#allocation22 + $0x54] sm:$0xff]
        %v3877 = vld [vmem:[#allocation22 + $0x5c] sm:$0xf]
        %v3878 = vld [vmem:[#allocation22 + $0x60] sm:$0xff]
        %v3879 = vld [vmem:[#allocation22 + $0x68] sm:$0xf]
        %v3880 = vld [vmem:[#allocation22 + $0x6c] sm:$0xff]
        %v3881 = vld [vmem:[#allocation22 + $0x74] sm:$0xf]
        %v3882 = vld [vmem:[#allocation22 + $0x78] sm:$0xff]
        %v3883 = vld [vmem:[#allocation22 + $0x80] sm:$0xf]
        %v3884 = vld [vmem:[#allocation22 + $0x84] sm:$0xff]
        %v3885 = vld [vmem:[#allocation22 + $0x8c] sm:$0xf]
        %v3886 = vld [vmem:[#allocation22 + $0x90] sm:$0xff]
        %v3887 = vld [vmem:[#allocation22 + $0x98] sm:$0xf]
        %v3888 = vld [vmem:[#allocation22 + $0x9c] sm:$0xff]
        %v3889 = vld [vmem:[#allocation22 + $0xa4] sm:$0xf]
        %v3890 = vld [vmem:[#allocation22 + $0xa8] sm:$0xff]
        %v3891 = vld [vmem:[#allocation22 + $0xb0] sm:$0xf]
        %v3892 = vld [vmem:[#allocation22 + $0xb4] sm:$0xff]
        %v3893 = vld [vmem:[#allocation22 + $0xbc] sm:$0xf]
        %v3894 = vld [vmem:[#allocation22 + $0xc0] sm:$0xff]
        %v3895 = vld [vmem:[#allocation22 + $0xc8] sm:$0xf]
        %v3896 = vld [vmem:[#allocation22 + $0xcc] sm:$0xff]
        %v3897 = vld [vmem:[#allocation22 + $0xd4] sm:$0xf]
        %v3898 = vld [vmem:[#allocation22 + $0xd8] sm:$0xff]
        %v3899 = vld [vmem:[#allocation22 + $0xe0] sm:$0xf]
        %v3900 = vld [vmem:[#allocation22 + $0xe4] sm:$0xff]
        %v3901 = vld [vmem:[#allocation22 + $0xec] sm:$0xf]
        %v3902 = vld [vmem:[#allocation22 + $0xf0] sm:$0xff]
        %v3903 = vld [vmem:[#allocation22 + $0xf8] sm:$0xf]
        %v3904 = vld [vmem:[#allocation22 + $0xfc] sm:$0xff]
        %v3905 = vld [vmem:[#allocation22 + $0x104] sm:$0xf]
        %v3906 = vld [vmem:[#allocation22 + $0x108] sm:$0xff]
        %v3907 = vld [vmem:[#allocation22 + $0x110] sm:$0xf]
        %v3908 = vld [vmem:[#allocation22 + $0x114] sm:$0xff]
        %v3909 = vld [vmem:[#allocation22 + $0x11c] sm:$0xf]
        %v3910 = vld [vmem:[#allocation22 + $0x120] sm:$0xff]
        %v3911 = vld [vmem:[#allocation22 + $0x128] sm:$0xf]
        %v3912 = vld [vmem:[#allocation22 + $0x12c] sm:$0xff]
        %v3913 = vld [vmem:[#allocation22 + $0x134] sm:$0xf]
        %v3914 = vld [vmem:[#allocation22 + $0x138] sm:$0xff]
        %v3915 = vld [vmem:[#allocation22 + $0x140] sm:$0xf]
        %v3916 = vld [vmem:[#allocation22 + $0x144] sm:$0xff]
        %v3917 = vld [vmem:[#allocation22 + $0x14c] sm:$0xf]
        %v3918 = vld [vmem:[#allocation22 + $0x150] sm:$0xff]
        %v3919 = vld [vmem:[#allocation22 + $0x158] sm:$0xf]
        %v3920 = vld [vmem:[#allocation22 + $0x15c] sm:$0xff]
        %v3921 = vld [vmem:[#allocation22 + $0x164] sm:$0xf]
        %v3922 = vld [vmem:[#allocation22 + $0x168] sm:$0xff]
        %v3923 = vld [vmem:[#allocation22 + $0x170] sm:$0xf]
        %v3924 = vld [vmem:[#allocation22 + $0x174] sm:$0xff]
        %v3925 = vld [vmem:[#allocation22 + $0x17c] sm:$0xf]
        %v3990 = vunpack.c.l.b16 %v3862
        %v3991 = vunpack.c.h.b16 %v3862
        %v3992 = vunpack.c.l.b16 %v3863
        %v3993 = vunpack.c.l.b16 %v3864
        %v3994 = vunpack.c.h.b16 %v3864
        %v3995 = vunpack.c.l.b16 %v3865
        %v3996 = vunpack.c.l.b16 %v3866
        %v3997 = vunpack.c.h.b16 %v3866
        %v3998 = vunpack.c.l.b16 %v3867
        %v3999 = vunpack.c.l.b16 %v3868
        %v4000 = vunpack.c.h.b16 %v3868
        %v4001 = vunpack.c.l.b16 %v3869
        %v4002 = vunpack.c.l.b16 %v3870
        %v4003 = vunpack.c.h.b16 %v3870
        %v4004 = vunpack.c.l.b16 %v3871
        %v4005 = vunpack.c.l.b16 %v3872
        %v4006 = vunpack.c.h.b16 %v3872
        %v4007 = vunpack.c.l.b16 %v3873
        %v4008 = vunpack.c.l.b16 %v3874
        %v4009 = vunpack.c.h.b16 %v3874
        %v4010 = vunpack.c.l.b16 %v3875
        %v4011 = vunpack.c.l.b16 %v3876
        %v4012 = vunpack.c.h.b16 %v3876
        %v4013 = vunpack.c.l.b16 %v3877
        %v4014 = vunpack.c.l.b16 %v3878
        %v4015 = vunpack.c.h.b16 %v3878
        %v4016 = vunpack.c.l.b16 %v3879
        %v4017 = vunpack.c.l.b16 %v3880
        %v4018 = vunpack.c.h.b16 %v3880
        %v4019 = vunpack.c.l.b16 %v3881
        %v4020 = vunpack.c.l.b16 %v3882
        %v4021 = vunpack.c.h.b16 %v3882
        %v4022 = vunpack.c.l.b16 %v3883
        %v4023 = vunpack.c.l.b16 %v3884
        %v4024 = vunpack.c.h.b16 %v3884
        %v4025 = vunpack.c.l.b16 %v3885
        %v4026 = vunpack.c.l.b16 %v3886
        %v4027 = vunpack.c.h.b16 %v3886
        %v4028 = vunpack.c.l.b16 %v3887
        %v4029 = vunpack.c.l.b16 %v3888
        %v4030 = vunpack.c.h.b16 %v3888
        %v4031 = vunpack.c.l.b16 %v3889
        %v4032 = vunpack.c.l.b16 %v3890
        %v4033 = vunpack.c.h.b16 %v3890
        %v4034 = vunpack.c.l.b16 %v3891
        %v4035 = vunpack.c.l.b16 %v3892
        %v4036 = vunpack.c.h.b16 %v3892
        %v4037 = vunpack.c.l.b16 %v3893
        %v4038 = vunpack.c.l.b16 %v3894
        %v4039 = vunpack.c.h.b16 %v3894
        %v4040 = vunpack.c.l.b16 %v3895
        %v4041 = vunpack.c.l.b16 %v3896
        %v4042 = vunpack.c.h.b16 %v3896
        %v4043 = vunpack.c.l.b16 %v3897
        %v4044 = vunpack.c.l.b16 %v3898
        %v4045 = vunpack.c.h.b16 %v3898
        %v4046 = vunpack.c.l.b16 %v3899
        %v4047 = vunpack.c.l.b16 %v3900
        %v4048 = vunpack.c.h.b16 %v3900
        %v4049 = vunpack.c.l.b16 %v3901
        %v4050 = vunpack.c.l.b16 %v3902
        %v4051 = vunpack.c.h.b16 %v3902
        %v4052 = vunpack.c.l.b16 %v3903
        %v4053 = vunpack.c.l.b16 %v3904
        %v4054 = vunpack.c.h.b16 %v3904
        %v4055 = vunpack.c.l.b16 %v3905
        %v4056 = vunpack.c.l.b16 %v3906
        %v4057 = vunpack.c.h.b16 %v3906
        %v4058 = vunpack.c.l.b16 %v3907
        %v4059 = vunpack.c.l.b16 %v3908
        %v4060 = vunpack.c.h.b16 %v3908
        %v4061 = vunpack.c.l.b16 %v3909
        %v4062 = vunpack.c.l.b16 %v3910
        %v4063 = vunpack.c.h.b16 %v3910
        %v4064 = vunpack.c.l.b16 %v3911
        %v4065 = vunpack.c.l.b16 %v3912
        %v4066 = vunpack.c.h.b16 %v3912
        %v4067 = vunpack.c.l.b16 %v3913
        %v4068 = vunpack.c.l.b16 %v3914
        %v4069 = vunpack.c.h.b16 %v3914
        %v4070 = vunpack.c.l.b16 %v3915
        %v4071 = vunpack.c.l.b16 %v3916
        %v4072 = vunpack.c.h.b16 %v3916
        %v4073 = vunpack.c.l.b16 %v3917
        %v4074 = vunpack.c.l.b16 %v3918
        %v4075 = vunpack.c.h.b16 %v3918
        %v4076 = vunpack.c.l.b16 %v3919
        %v4077 = vunpack.c.l.b16 %v3920
        %v4078 = vunpack.c.h.b16 %v3920
        %v4079 = vunpack.c.l.b16 %v3921
        %v4080 = vunpack.c.l.b16 %v3922
        %v4081 = vunpack.c.h.b16 %v3922
        %v4082 = vunpack.c.l.b16 %v3923
        %v4083 = vunpack.c.l.b16 %v3924
        %v4084 = vunpack.c.h.b16 %v3924
        %v4085 = vunpack.c.l.b16 %v3925
        %v4086 = vpack.c.b16 %v3993, %v3990
        %v4087 = vpack.c.b16 %v3994, %v3991
        %v4088 = vpack.c.b16 %v3995, %v3992
        %v4089 = vpack.c.b16 %v3999, %v3996
        %v4090 = vpack.c.b16 %v4000, %v3997
        %v4091 = vpack.c.b16 %v4001, %v3998
        %v4092 = vpack.c.b16 %v4005, %v4002
        %v4093 = vpack.c.b16 %v4006, %v4003
        %v4094 = vpack.c.b16 %v4007, %v4004
        %v4095 = vpack.c.b16 %v4011, %v4008
        %v4096 = vpack.c.b16 %v4012, %v4009
        %v4097 = vpack.c.b16 %v4013, %v4010
        %v4098 = vpack.c.b16 %v4017, %v4014
        %v4099 = vpack.c.b16 %v4018, %v4015
        %v4100 = vpack.c.b16 %v4019, %v4016
        %v4101 = vpack.c.b16 %v4023, %v4020
        %v4102 = vpack.c.b16 %v4024, %v4021
        %v4103 = vpack.c.b16 %v4025, %v4022
        %v4104 = vpack.c.b16 %v4029, %v4026
        %v4105 = vpack.c.b16 %v4030, %v4027
        %v4106 = vpack.c.b16 %v4031, %v4028
        %v4107 = vpack.c.b16 %v4035, %v4032
        %v4108 = vpack.c.b16 %v4036, %v4033
        %v4109 = vpack.c.b16 %v4037, %v4034
        %v4110 = vpack.c.b16 %v4041, %v4038
        %v4111 = vpack.c.b16 %v4042, %v4039
        %v4112 = vpack.c.b16 %v4043, %v4040
        %v4113 = vpack.c.b16 %v4047, %v4044
        %v4114 = vpack.c.b16 %v4048, %v4045
        %v4115 = vpack.c.b16 %v4049, %v4046
        %v4116 = vpack.c.b16 %v4053, %v4050
        %v4117 = vpack.c.b16 %v4054, %v4051
        %v4118 = vpack.c.b16 %v4055, %v4052
        %v4119 = vpack.c.b16 %v4059, %v4056
        %v4120 = vpack.c.b16 %v4060, %v4057
        %v4121 = vpack.c.b16 %v4061, %v4058
        %v4122 = vpack.c.b16 %v4065, %v4062
        %v4123 = vpack.c.b16 %v4066, %v4063
        %v4124 = vpack.c.b16 %v4067, %v4064
        %v4125 = vpack.c.b16 %v4071, %v4068
        %v4126 = vpack.c.b16 %v4072, %v4069
        %v4127 = vpack.c.b16 %v4073, %v4070
        %v4128 = vpack.c.b16 %v4077, %v4074
        %v4129 = vpack.c.b16 %v4078, %v4075
        %v4130 = vpack.c.b16 %v4079, %v4076
        %v4131 = vpack.c.b16 %v4083, %v4080
        %v4132 = vpack.c.b16 %v4084, %v4081
        %v4133 = vpack.c.b16 %v4085, %v4082
        %4182 = vmatprep.subr.bf16.mxu0 %v4087
        %4183 = vmatpush1.bf16.msra.mxu0 %v4086
        %4184 = vmatprep.subr.bf16.mxu0 %v4090
        %4185 = vmatpush1.bf16.msra.mxu0 %v4089
        %4186 = vmatprep.subr.bf16.mxu0 %v4093
        %4187 = vmatpush1.bf16.msra.mxu0 %v4092
        %4188 = vmatprep.subr.bf16.mxu0 %v4096
        %4189 = vmatpush1.bf16.msra.mxu0 %v4095
        %4190 = vmatprep.subr.bf16.mxu0 %v4099
        %4191 = vmatpush1.bf16.msra.mxu0 %v4098
        %4192 = vmatprep.subr.bf16.mxu0 %v4102
        %4193 = vmatpush1.bf16.msra.mxu0 %v4101
        %4194 = vmatprep.subr.bf16.mxu0 %v4105
        %4195 = vmatpush1.bf16.msra.mxu0 %v4104
        %4196 = vmatprep.subr.bf16.mxu0 %v4108
        %4197 = vmatpush1.bf16.msra.mxu0 %v4107
        %4198 = vmatprep.subr.bf16.mxu0 %v4111
        %4199 = vmatpush1.bf16.msra.mxu0 %v4110
        %4200 = vmatprep.subr.bf16.mxu0 %v4114
        %4201 = vmatpush1.bf16.msra.mxu0 %v4113
        %4202 = vmatprep.subr.bf16.mxu0 %v4117
        %4203 = vmatpush1.bf16.msra.mxu0 %v4116
        %4204 = vmatprep.subr.bf16.mxu0 %v4120
        %4205 = vmatpush1.bf16.msra.mxu0 %v4119
        %4206 = vmatprep.subr.bf16.mxu0 %v4123
        %4207 = vmatpush1.bf16.msra.mxu0 %v4122
        %4208 = vmatprep.subr.bf16.mxu0 %v4126
        %4209 = vmatpush1.bf16.msra.mxu0 %v4125
        %4210 = vmatprep.subr.bf16.mxu0 %v4129
        %4211 = vmatpush1.bf16.msra.mxu0 %v4128
        %4212 = vmatprep.subr.bf16.mxu0 %v4132
        %4213 = vmatpush1.bf16.msra.mxu0 %v4131
        %4214 = vmatprep.mubr.bf16.mxu0 %v3861
        %4215 = vmatmul.mubr.bf16.gmra.mrb[0].mxu0 %v3860
        %v4216 = vpop.f32.mrb[0].mxu0
        %v4217 = vadd.f32 0.0, %v4216
        %v4218 = vpop.f32.mrb[0].mxu0
        %v4219 = vadd.f32 0.0, %v4218
        %v4220 = vpop.f32.mrb[0].mxu0
        %v4221 = vadd.f32 0.0, %v4220
        %v4222 = vpop.f32.mrb[0].mxu0
        %v4223 = vadd.f32 0.0, %v4222
        %4224 = vdwg.mxu0
        %4225 = vmatprep.subr.bf16.mxu0 0
        %4226 = vmatpush1.bf16.msra.mxu0 %v4088
        %4227 = vmatprep.subr.bf16.mxu0 0
        %4228 = vmatpush1.bf16.msra.mxu0 %v4091
        %4229 = vmatprep.subr.bf16.mxu0 0
        %4230 = vmatpush1.bf16.msra.mxu0 %v4094
        %4231 = vmatprep.subr.bf16.mxu0 0
        %4232 = vmatpush1.bf16.msra.mxu0 %v4097
        %4233 = vmatprep.subr.bf16.mxu0 0
        %4234 = vmatpush1.bf16.msra.mxu0 %v4100
        %4235 = vmatprep.subr.bf16.mxu0 0
        %4236 = vmatpush1.bf16.msra.mxu0 %v4103
        %4237 = vmatprep.subr.bf16.mxu0 0
        %4238 = vmatpush1.bf16.msra.mxu0 %v4106
        %4239 = vmatprep.subr.bf16.mxu0 0
        %4240 = vmatpush1.bf16.msra.mxu0 %v4109
        %4241 = vmatprep.subr.bf16.mxu0 0
        %4242 = vmatpush1.bf16.msra.mxu0 %v4112
        %4243 = vmatprep.subr.bf16.mxu0 0
        %4244 = vmatpush1.bf16.msra.mxu0 %v4115
        %4245 = vmatprep.subr.bf16.mxu0 0
        %4246 = vmatpush1.bf16.msra.mxu0 %v4118
        %4247 = vmatprep.subr.bf16.mxu0 0
        %4248 = vmatpush1.bf16.msra.mxu0 %v4121
        %4249 = vmatprep.subr.bf16.mxu0 0
        %4250 = vmatpush1.bf16.msra.mxu0 %v4124
        %4251 = vmatprep.subr.bf16.mxu0 0
        %4252 = vmatpush1.bf16.msra.mxu0 %v4127
        %4253 = vmatprep.subr.bf16.mxu0 0
        %4254 = vmatpush1.bf16.msra.mxu0 %v4130
        %4255 = vmatprep.subr.bf16.mxu0 0
        %4256 = vmatpush1.bf16.msra.mxu0 %v4133
        %4257 = vmatprep.mubr.bf16.mxu0 %v3861
        %4258 = vmatmul.mubr.bf16.gmra.mrb[0].mxu0 %v3860
        %v4259 = vpop.f32.mrb[0].mxu0
        %v4260 = vadd.f32 0.0, %v4259
        %v4261 = vpop.f32.mrb[0].mxu0
        %v4262 = vpop.f32.mrb[0].mxu0
        %v4263 = vadd.f32 0.0, %v4262
        %v4264 = vpop.f32.mrb[0].mxu0
        %4265 = vdwg.mxu0
        %v4266 = vadd.f32 %v4217, 0.0
        %v4267 = vadd.f32 %v4221, 0.0
        %v4270 = vrot.slane %v4219, 1
        %v4271 = vrot.slane %v4223, 1
        %v4272 = vsel %vm3268, %v4270, %v4271
        %v4275 = vadd.f32 %v4266, %v4272
        %v4276 = vadd.f32 %v4267, %v4271
        %v4279 = vrot.slane %v4260, 2
        %v4280 = vrot.slane %v4263, 2
        %v4281 = vsel %vm3784, %v4279, %v4280
        %v4284 = vadd.f32 %v4275, %v4281
        %v4285 = vadd.f32 %v4276, %v4280
        %v4286 = vld [vmem:[#allocation24] sm:$0x1]
        %v4288 = vlaneseq
        %v4289 = vshrl.u32 %v4288, 7
        %v4290 = vsub.s32 0, %v4289
        %v4291 = vrot.slane %v4286, %v4290
        %v4293 = vadd.f32 %v4284, %v4291
        %v4294 = vadd.f32 %v4285, %v4291
        %v4295 = vmax.f32 %v4293, 0.0
        %v4296 = vmax.f32 %v4294, 0.0
        %vm4299 = vcmask 1040384
        %v4300 = vrot.slane %v4295, 7
        %v4301 = vrot.slane %v4296, 7
        %v4302 = vsel %vm4299, %v4300, %v4301
        %v4305 = vadd.f32 %v1975, %v4300
        %v4306 = vadd.f32 %v1976, %v4302
        %v4307 = vld [vmem:[#allocation25] sm:$0xff]
        %v4308 = vld [vmem:[#allocation25 + $0x8] sm:$0xff]
        %v4309 = vld [vmem:[#allocation25 + $0x10] sm:$0xff]
        %v4310 = vld [vmem:[#allocation25 + $0x18] sm:$0xff]
        %v4311 = vld [vmem:[#allocation25 + $0x20] sm:$0xff]
        %v4312 = vld [vmem:[#allocation25 + $0x28] sm:$0xff]
        %v4313 = vld [vmem:[#allocation25 + $0x30] sm:$0xff]
        %v4314 = vld [vmem:[#allocation25 + $0x38] sm:$0xff]
        %v4315 = vld [vmem:[#allocation25 + $0x40] sm:$0xff]
        %v4316 = vld [vmem:[#allocation25 + $0x48] sm:$0xff]
        %v4317 = vld [vmem:[#allocation27] sm:$0xf]
        %v4319 = vlaneseq
        %v4320 = vshrl.u32 %v4319, 7
        %v4321 = vsub.s32 0, %v4320
        %v4322 = vrot.slane %v4317, %v4321
        %v4323 = vlaneseq
        %v4324 = vshrl.u32 %v4323, 7
        %v4325 = vsub.s32 1, %v4324
        %v4326 = vrot.slane %v4317, %v4325
        %v4327 = vlaneseq
        %v4328 = vshrl.u32 %v4327, 7
        %v4329 = vsub.s32 2, %v4328
        %v4330 = vrot.slane %v4317, %v4329
        %v4331 = vlaneseq
        %v4332 = vshrl.u32 %v4331, 7
        %v4333 = vsub.s32 3, %v4332
        %v4334 = vrot.slane %v4317, %v4333
        %v4349 = vunpack.c.l.b16 %v4307
        %v4350 = vunpack.c.h.b16 %v4307
        %v4351 = vunpack.c.l.b16 %v4308
        %v4352 = vunpack.c.h.b16 %v4308
        %v4353 = vunpack.c.l.b16 %v4309
        %v4354 = vunpack.c.h.b16 %v4309
        %v4355 = vunpack.c.l.b16 %v4310
        %v4356 = vunpack.c.h.b16 %v4310
        %v4357 = vunpack.c.l.b16 %v4311
        %v4358 = vunpack.c.h.b16 %v4311
        %v4359 = vunpack.c.l.b16 %v4312
        %v4360 = vunpack.c.h.b16 %v4312
        %v4361 = vunpack.c.l.b16 %v4313
        %v4362 = vunpack.c.h.b16 %v4313
        %v4363 = vunpack.c.l.b16 %v4314
        %v4364 = vunpack.c.h.b16 %v4314
        %v4365 = vunpack.c.l.b16 %v4315
        %v4366 = vunpack.c.h.b16 %v4315
        %v4367 = vunpack.c.l.b16 %v4316
        %v4368 = vunpack.c.h.b16 %v4316
        %v4369 = vpack.c.b16 %v4353, %v4349
        %v4370 = vpack.c.b16 %v4354, %v4350
        %v4371 = vpack.c.b16 %v4355, %v4351
        %v4372 = vpack.c.b16 %v4356, %v4352
        %v4373 = vpack.c.b16 %v4361, %v4357
        %v4374 = vpack.c.b16 %v4362, %v4358
        %v4375 = vpack.c.b16 %v4363, %v4359
        %v4376 = vpack.c.b16 %v4364, %v4360
        %v4377 = vpack.c.b16 %v4365, %v4365
        %v4378 = vpack.c.b16 %v4366, %v4366
        %v4379 = vpack.c.b16 %v4367, %v4367
        %v4380 = vpack.c.b16 %v4368, %v4368
        %v4390 = vsel %vm1012, %v4377, 0
        %v4393 = vsel %vm1012, %v4378, 0
        %v4396 = vsel %vm1012, %v4379, 0
        %v4399 = vsel %vm1012, %v4380, 0
        %4401 = vmatprep.subr.bf16.mxu0 %v4370
        %4402 = vmatpush1.bf16.msra.mxu0 %v4369
        %4403 = vmatprep.subr.bf16.mxu0 %v4374
        %4404 = vmatpush1.bf16.msra.mxu0 %v4373
        %4405 = vmatprep.subr.bf16.mxu0 %v4393
        %4406 = vmatpush1.bf16.msra.mxu0 %v4390
        %4407 = vmatprep.subr.bf16.mxu0 0
        %4408 = vmatpush1.bf16.msra.mxu0 0
        %4409 = vmatprep.subr.bf16.mxu0 0
        %4410 = vmatpush1.bf16.msra.mxu0 0
        %4411 = vmatprep.subr.bf16.mxu0 0
        %4412 = vmatpush1.bf16.msra.mxu0 0
        %4413 = vmatprep.subr.bf16.mxu0 0
        %4414 = vmatpush1.bf16.msra.mxu0 0
        %4415 = vmatprep.subr.bf16.mxu0 0
        %4416 = vmatpush1.bf16.msra.mxu0 0
        %4417 = vmatprep.subr.bf16.mxu0 0
        %4418 = vmatpush1.bf16.msra.mxu0 0
        %4419 = vmatprep.subr.bf16.mxu0 0
        %4420 = vmatpush1.bf16.msra.mxu0 0
        %4421 = vmatprep.subr.bf16.mxu0 0
        %4422 = vmatpush1.bf16.msra.mxu0 0
        %4423 = vmatprep.subr.bf16.mxu0 0
        %4424 = vmatpush1.bf16.msra.mxu0 0
        %4425 = vmatprep.subr.bf16.mxu0 0
        %4426 = vmatpush1.bf16.msra.mxu0 0
        %4427 = vmatprep.subr.bf16.mxu0 0
        %4428 = vmatpush1.bf16.msra.mxu0 0
        %4429 = vmatprep.subr.bf16.mxu0 0
        %4430 = vmatpush1.bf16.msra.mxu0 0
        %4431 = vmatprep.subr.bf16.mxu0 0
        %4432 = vmatpush1.bf16.msra.mxu0 0
        %4433 = vmatprep.mubr.bf16.mxu0 0
        %4434 = vmatmul.mubr.bf16.gmra.mrb[0].mxu0 %v1007
        %v4435 = vpop.f32.mrb[0].mxu0
        %v4436 = vadd.f32 %v4322, %v4435
        %v4437 = vpop.f32.mrb[0].mxu0
        %v4438 = vadd.f32 %v4326, %v4437
        %v4439 = vpop.f32.mrb[0].mxu0
        %v4440 = vadd.f32 %v4322, %v4439
        %v4441 = vpop.f32.mrb[0].mxu0
        %v4442 = vadd.f32 %v4326, %v4441
        %4443 = vmatprep.mubr.bf16.mxu0 0
        %4444 = vmatmul.mubr.bf16.gmra.mrb[0].mxu0 %v1010
        %v4445 = vpop.f32.mrb[0].mxu0
        %v4446 = vadd.f32 %v4322, %v4445
        %v4447 = vpop.f32.mrb[0].mxu0
        %v4448 = vadd.f32 %v4326, %v4447
        %v4449 = vpop.f32.mrb[0].mxu0
        %v4450 = vpop.f32.mrb[0].mxu0
        %4451 = vdwg.mxu0
        %4452 = vmatprep.subr.bf16.mxu0 %v4372
        %4453 = vmatpush1.bf16.msra.mxu0 %v4371
        %4454 = vmatprep.subr.bf16.mxu0 %v4376
        %4455 = vmatpush1.bf16.msra.mxu0 %v4375
        %4456 = vmatprep.subr.bf16.mxu0 %v4399
        %4457 = vmatpush1.bf16.msra.mxu0 %v4396
        %4458 = vmatprep.subr.bf16.mxu0 0
        %4459 = vmatpush1.bf16.msra.mxu0 0
        %4460 = vmatprep.subr.bf16.mxu0 0
        %4461 = vmatpush1.bf16.msra.mxu0 0
        %4462 = vmatprep.subr.bf16.mxu0 0
        %4463 = vmatpush1.bf16.msra.mxu0 0
        %4464 = vmatprep.subr.bf16.mxu0 0
        %4465 = vmatpush1.bf16.msra.mxu0 0
        %4466 = vmatprep.subr.bf16.mxu0 0
        %4467 = vmatpush1.bf16.msra.mxu0 0
        %4468 = vmatprep.subr.bf16.mxu0 0
        %4469 = vmatpush1.bf16.msra.mxu0 0
        %4470 = vmatprep.subr.bf16.mxu0 0
        %4471 = vmatpush1.bf16.msra.mxu0 0
        %4472 = vmatprep.subr.bf16.mxu0 0
        %4473 = vmatpush1.bf16.msra.mxu0 0
        %4474 = vmatprep.subr.bf16.mxu0 0
        %4475 = vmatpush1.bf16.msra.mxu0 0
        %4476 = vmatprep.subr.bf16.mxu0 0
        %4477 = vmatpush1.bf16.msra.mxu0 0
        %4478 = vmatprep.subr.bf16.mxu0 0
        %4479 = vmatpush1.bf16.msra.mxu0 0
        %4480 = vmatprep.subr.bf16.mxu0 0
        %4481 = vmatpush1.bf16.msra.mxu0 0
        %4482 = vmatprep.subr.bf16.mxu0 0
        %4483 = vmatpush1.bf16.msra.mxu0 0
        %4484 = vmatprep.mubr.bf16.mxu0 0
        %4485 = vmatmul.mubr.bf16.gmra.mrb[0].mxu0 %v1007
        %v4486 = vpop.f32.mrb[0].mxu0
        %v4487 = vadd.f32 %v4330, %v4486
        %v4488 = vpop.f32.mrb[0].mxu0
        %v4489 = vadd.f32 %v4334, %v4488
        %v4490 = vpop.f32.mrb[0].mxu0
        %v4491 = vadd.f32 %v4330, %v4490
        %v4492 = vpop.f32.mrb[0].mxu0
        %v4493 = vadd.f32 %v4334, %v4492
        %4494 = vmatprep.mubr.bf16.mxu0 0
        %4495 = vmatmul.mubr.bf16.gmra.mrb[0].mxu0 %v1010
        %v4496 = vpop.f32.mrb[0].mxu0
        %v4497 = vadd.f32 %v4330, %v4496
        %v4498 = vpop.f32.mrb[0].mxu0
        %v4499 = vadd.f32 %v4334, %v4498
        %v4500 = vpop.f32.mrb[0].mxu0
        %v4501 = vpop.f32.mrb[0].mxu0
        %4502 = vdwg.mxu0
        %v4503 = vmax.f32 %v4436, 0.0
        %v4504 = vmax.f32 %v4438, 0.0
        %v4505 = vmax.f32 %v4487, 0.0
        %v4506 = vmax.f32 %v4489, 0.0
        %v4507 = vmax.f32 %v4440, 0.0
        %v4508 = vmax.f32 %v4442, 0.0
        %v4509 = vmax.f32 %v4491, 0.0
        %v4510 = vmax.f32 %v4493, 0.0
        %v4511 = vmax.f32 %v4446, 0.0
        %v4512 = vmax.f32 %v4448, 0.0
        %v4513 = vmax.f32 %v4497, 0.0
        %v4514 = vmax.f32 %v4499, 0.0
        %v4515 = vsel %vm1142, %v4503, 0.0
        %v4516 = vsel %vm1142, %v4504, 0.0
        %v4517 = vsel %vm1142, %v4505, 0.0
        %v4518 = vsel %vm1142, %v4506, 0.0
        %v4519 = vsel %vm1143, %v4507, 0.0
        %v4520 = vsel %vm1143, %v4508, 0.0
        %v4521 = vsel %vm1143, %v4509, 0.0
        %v4522 = vsel %vm1143, %v4510, 0.0
        %v4523 = vsel %vm1144, %v4511, 0.0
        %v4524 = vsel %vm1144, %v4512, 0.0
        %v4525 = vsel %vm1144, %v4513, 0.0
        %v4526 = vsel %vm1144, %v4514, 0.0
        %v4527 = vpack.c.bf16 %v4519, %v4515
        %v4528 = vpack.c.bf16 %v4520, %v4516
        %v4529 = vpack.c.bf16 %v4521, %v4517
        %v4530 = vpack.c.bf16 %v4522, %v4518
        %v4531 = vpack.c.bf16 %v4523, %v4523
        %v4532 = vpack.c.bf16 %v4524, %v4524
        %v4533 = vpack.c.bf16 %v4525, %v4525
        %v4534 = vpack.c.bf16 %v4526, %v4526
        %v4543 = vunpack.c.l.b16 %v4527
        %v4544 = vunpack.c.l.b16 %v4528
        %v4545 = vunpack.c.l.b16 %v4529
        %v4546 = vunpack.c.l.b16 %v4530
        %v4547 = vunpack.c.h.b16 %v4527
        %v4548 = vunpack.c.h.b16 %v4528
        %v4549 = vunpack.c.h.b16 %v4529
        %v4550 = vunpack.c.h.b16 %v4530
        %v4551 = vunpack.c.l.b16 %v4531
        %v4552 = vunpack.c.l.b16 %v4532
        %v4553 = vunpack.c.l.b16 %v4533
        %v4554 = vunpack.c.l.b16 %v4534
        %v4555 = vpack.c.b16 %v4544, %v4543
        %v4556 = vpack.c.b16 %v4546, %v4545
        %v4557 = vpack.c.b16 %v4548, %v4547
        %v4558 = vpack.c.b16 %v4550, %v4549
        %v4559 = vpack.c.b16 %v4552, %v4551
        %v4560 = vpack.c.b16 %v4554, %v4553
        %4567 = vst [vmem:[#allocation2] sm:$0xff] %v4555
        %4568 = vst [vmem:[#allocation2 + $0x8] sm:$0xff] %v4556
        %4569 = vst [vmem:[#allocation2 + $0x10] sm:$0xff] %v4557
        %4570 = vst [vmem:[#allocation2 + $0x18] sm:$0xff] %v4558
        %4571 = vst [vmem:[#allocation2 + $0x20] sm:$0xff] %v4559
        %4572 = vst [vmem:[#allocation2 + $0x28] sm:$0xff] %v4560
        %v4573 = vld [vmem:[#allocation2] sm:$0xff]
        %v4574 = vld [vmem:[#allocation2 + $0x8] sm:$0xff]
        %v4575 = vld [vmem:[#allocation2 + $0x10] sm:$0xff]
        %v4576 = vld [vmem:[#allocation2 + $0x18] sm:$0xff]
        %v4577 = vld [vmem:[#allocation2 + $0x20] sm:$0xff]
        %v4578 = vld [vmem:[#allocation2 + $0x28] sm:$0xff]
        %v4579 = vld [vmem:[#allocation28] sm:$0xff]
        %v4580 = vld [vmem:[#allocation28 + $0x8] sm:$0xff]
        %v4581 = vld [vmem:[#allocation28 + $0x10] sm:$0xff]
        %v4582 = vld [vmem:[#allocation28 + $0x18] sm:$0xff]
        %v4583 = vld [vmem:[#allocation28 + $0x20] sm:$0xff]
        %v4584 = vld [vmem:[#allocation28 + $0x28] sm:$0xff]
        %v4585 = vld [vmem:[#allocation28 + $0x30] sm:$0xff]
        %v4586 = vld [vmem:[#allocation28 + $0x38] sm:$0xff]
        %v4587 = vld [vmem:[#allocation28 + $0x40] sm:$0xff]
        %v4588 = vld [vmem:[#allocation28 + $0x48] sm:$0xff]
        %v4589 = vld [vmem:[#allocation28 + $0x50] sm:$0xff]
        %v4590 = vld [vmem:[#allocation28 + $0x58] sm:$0xff]
        %v4591 = vld [vmem:[#allocation28 + $0x60] sm:$0xff]
        %v4592 = vld [vmem:[#allocation28 + $0x68] sm:$0xff]
        %v4593 = vld [vmem:[#allocation28 + $0x70] sm:$0xff]
        %v4594 = vld [vmem:[#allocation28 + $0x78] sm:$0xff]
        %v4595 = vld [vmem:[#allocation28 + $0x80] sm:$0xff]
        %v4596 = vld [vmem:[#allocation28 + $0x88] sm:$0xff]
        %v4597 = vld [vmem:[#allocation28 + $0x90] sm:$0xff]
        %v4598 = vld [vmem:[#allocation28 + $0x98] sm:$0xff]
        %v4599 = vld [vmem:[#allocation28 + $0xa0] sm:$0xff]
        %v4600 = vld [vmem:[#allocation28 + $0xa8] sm:$0xff]
        %v4601 = vld [vmem:[#allocation28 + $0xb0] sm:$0xff]
        %v4602 = vld [vmem:[#allocation28 + $0xb8] sm:$0xff]
        %v4603 = vld [vmem:[#allocation28 + $0xc0] sm:$0xff]
        %v4604 = vld [vmem:[#allocation28 + $0xc8] sm:$0xff]
        %v4605 = vld [vmem:[#allocation28 + $0xd0] sm:$0xff]
        %v4606 = vld [vmem:[#allocation28 + $0xd8] sm:$0xff]
        %v4607 = vld [vmem:[#allocation28 + $0xe0] sm:$0xff]
        %v4608 = vld [vmem:[#allocation28 + $0xe8] sm:$0xff]
        %v4609 = vld [vmem:[#allocation28 + $0xf0] sm:$0xff]
        %v4610 = vld [vmem:[#allocation28 + $0xf8] sm:$0xff]
        %v4611 = vld [vmem:[#allocation28 + $0x100] sm:$0xff]
        %v4612 = vld [vmem:[#allocation28 + $0x108] sm:$0xff]
        %v4613 = vld [vmem:[#allocation28 + $0x110] sm:$0xff]
        %v4614 = vld [vmem:[#allocation28 + $0x118] sm:$0xff]
        %v4615 = vld [vmem:[#allocation28 + $0x120] sm:$0xff]
        %v4616 = vld [vmem:[#allocation28 + $0x128] sm:$0xff]
        %v4617 = vld [vmem:[#allocation28 + $0x130] sm:$0xff]
        %v4618 = vld [vmem:[#allocation28 + $0x138] sm:$0xff]
        %v4619 = vld [vmem:[#allocation28 + $0x140] sm:$0xff]
        %v4620 = vld [vmem:[#allocation28 + $0x148] sm:$0xff]
        %v4621 = vld [vmem:[#allocation28 + $0x150] sm:$0xff]
        %v4622 = vld [vmem:[#allocation28 + $0x158] sm:$0xff]
        %v4623 = vld [vmem:[#allocation28 + $0x160] sm:$0xff]
        %v4624 = vld [vmem:[#allocation28 + $0x168] sm:$0xff]
        %v4625 = vld [vmem:[#allocation28 + $0x170] sm:$0xff]
        %v4626 = vld [vmem:[#allocation28 + $0x178] sm:$0xff]
        %v4627 = vld [vmem:[#allocation28 + $0x180] sm:$0xff]
        %v4628 = vld [vmem:[#allocation28 + $0x188] sm:$0xff]
        %v4629 = vld [vmem:[#allocation28 + $0x190] sm:$0xff]
        %v4630 = vld [vmem:[#allocation28 + $0x198] sm:$0xff]
        %v4631 = vld [vmem:[#allocation28 + $0x1a0] sm:$0xff]
        %v4632 = vld [vmem:[#allocation28 + $0x1a8] sm:$0xff]
        %v4633 = vld [vmem:[#allocation28 + $0x1b0] sm:$0xff]
        %v4634 = vld [vmem:[#allocation28 + $0x1b8] sm:$0xff]
        %v4635 = vld [vmem:[#allocation28 + $0x1c0] sm:$0xff]
        %v4636 = vld [vmem:[#allocation28 + $0x1c8] sm:$0xff]
        %v4637 = vld [vmem:[#allocation28 + $0x1d0] sm:$0xff]
        %v4638 = vld [vmem:[#allocation28 + $0x1d8] sm:$0xff]
        %v4639 = vld [vmem:[#allocation28 + $0x1e0] sm:$0xff]
        %v4640 = vld [vmem:[#allocation28 + $0x1e8] sm:$0xff]
        %v4641 = vld [vmem:[#allocation28 + $0x1f0] sm:$0xff]
        %v4642 = vld [vmem:[#allocation28 + $0x1f8] sm:$0xff]
        %v4649 = vunpack.c.l.b16 %v4573
        %v4650 = vunpack.c.h.b16 %v4573
        %v4651 = vunpack.c.l.b16 %v4574
        %v4652 = vunpack.c.h.b16 %v4574
        %v4653 = vunpack.c.l.b16 %v4575
        %v4654 = vunpack.c.h.b16 %v4575
        %v4655 = vunpack.c.l.b16 %v4576
        %v4656 = vunpack.c.h.b16 %v4576
        %v4657 = vunpack.c.l.b16 %v4577
        %v4658 = vunpack.c.h.b16 %v4577
        %v4659 = vunpack.c.l.b16 %v4578
        %v4660 = vunpack.c.h.b16 %v4578
        %v4661 = vpack.c.b16 %v4653, %v4649
        %v4662 = vpack.c.b16 %v4654, %v4650
        %v4663 = vpack.c.b16 %v4655, %v4651
        %v4664 = vpack.c.b16 %v4656, %v4652
        %v4665 = vpack.c.b16 %v4657, %v4657
        %v4666 = vpack.c.b16 %v4658, %v4658
        %v4667 = vpack.c.b16 %v4659, %v4659
        %v4668 = vpack.c.b16 %v4660, %v4660
        %v4741 = vunpack.c.l.b16 %v4579
        %v4742 = vunpack.c.h.b16 %v4579
        %v4743 = vunpack.c.l.b16 %v4580
        %v4744 = vunpack.c.h.b16 %v4580
        %v4745 = vunpack.c.l.b16 %v4581
        %v4746 = vunpack.c.h.b16 %v4581
        %v4747 = vunpack.c.l.b16 %v4582
        %v4748 = vunpack.c.h.b16 %v4582
        %v4749 = vunpack.c.l.b16 %v4583
        %v4750 = vunpack.c.h.b16 %v4583
        %v4751 = vunpack.c.l.b16 %v4584
        %v4752 = vunpack.c.h.b16 %v4584
        %v4753 = vunpack.c.l.b16 %v4585
        %v4754 = vunpack.c.h.b16 %v4585
        %v4755 = vunpack.c.l.b16 %v4586
        %v4756 = vunpack.c.h.b16 %v4586
        %v4757 = vunpack.c.l.b16 %v4587
        %v4758 = vunpack.c.h.b16 %v4587
        %v4759 = vunpack.c.l.b16 %v4588
        %v4760 = vunpack.c.h.b16 %v4588
        %v4761 = vunpack.c.l.b16 %v4589
        %v4762 = vunpack.c.h.b16 %v4589
        %v4763 = vunpack.c.l.b16 %v4590
        %v4764 = vunpack.c.h.b16 %v4590
        %v4765 = vunpack.c.l.b16 %v4591
        %v4766 = vunpack.c.h.b16 %v4591
        %v4767 = vunpack.c.l.b16 %v4592
        %v4768 = vunpack.c.h.b16 %v4592
        %v4769 = vunpack.c.l.b16 %v4593
        %v4770 = vunpack.c.h.b16 %v4593
        %v4771 = vunpack.c.l.b16 %v4594
        %v4772 = vunpack.c.h.b16 %v4594
        %v4773 = vunpack.c.l.b16 %v4595
        %v4774 = vunpack.c.h.b16 %v4595
        %v4775 = vunpack.c.l.b16 %v4596
        %v4776 = vunpack.c.h.b16 %v4596
        %v4777 = vunpack.c.l.b16 %v4597
        %v4778 = vunpack.c.h.b16 %v4597
        %v4779 = vunpack.c.l.b16 %v4598
        %v4780 = vunpack.c.h.b16 %v4598
        %v4781 = vunpack.c.l.b16 %v4599
        %v4782 = vunpack.c.h.b16 %v4599
        %v4783 = vunpack.c.l.b16 %v4600
        %v4784 = vunpack.c.h.b16 %v4600
        %v4785 = vunpack.c.l.b16 %v4601
        %v4786 = vunpack.c.h.b16 %v4601
        %v4787 = vunpack.c.l.b16 %v4602
        %v4788 = vunpack.c.h.b16 %v4602
        %v4789 = vunpack.c.l.b16 %v4603
        %v4790 = vunpack.c.h.b16 %v4603
        %v4791 = vunpack.c.l.b16 %v4604
        %v4792 = vunpack.c.h.b16 %v4604
        %v4793 = vunpack.c.l.b16 %v4605
        %v4794 = vunpack.c.h.b16 %v4605
        %v4795 = vunpack.c.l.b16 %v4606
        %v4796 = vunpack.c.h.b16 %v4606
        %v4797 = vunpack.c.l.b16 %v4607
        %v4798 = vunpack.c.h.b16 %v4607
        %v4799 = vunpack.c.l.b16 %v4608
        %v4800 = vunpack.c.h.b16 %v4608
        %v4801 = vunpack.c.l.b16 %v4609
        %v4802 = vunpack.c.h.b16 %v4609
        %v4803 = vunpack.c.l.b16 %v4610
        %v4804 = vunpack.c.h.b16 %v4610
        %v4805 = vunpack.c.l.b16 %v4611
        %v4806 = vunpack.c.h.b16 %v4611
        %v4807 = vunpack.c.l.b16 %v4612
        %v4808 = vunpack.c.h.b16 %v4612
        %v4809 = vunpack.c.l.b16 %v4613
        %v4810 = vunpack.c.h.b16 %v4613
        %v4811 = vunpack.c.l.b16 %v4614
        %v4812 = vunpack.c.h.b16 %v4614
        %v4813 = vunpack.c.l.b16 %v4615
        %v4814 = vunpack.c.h.b16 %v4615
        %v4815 = vunpack.c.l.b16 %v4616
        %v4816 = vunpack.c.h.b16 %v4616
        %v4817 = vunpack.c.l.b16 %v4617
        %v4818 = vunpack.c.h.b16 %v4617
        %v4819 = vunpack.c.l.b16 %v4618
        %v4820 = vunpack.c.h.b16 %v4618
        %v4821 = vunpack.c.l.b16 %v4619
        %v4822 = vunpack.c.h.b16 %v4619
        %v4823 = vunpack.c.l.b16 %v4620
        %v4824 = vunpack.c.h.b16 %v4620
        %v4825 = vunpack.c.l.b16 %v4621
        %v4826 = vunpack.c.h.b16 %v4621
        %v4827 = vunpack.c.l.b16 %v4622
        %v4828 = vunpack.c.h.b16 %v4622
        %v4829 = vunpack.c.l.b16 %v4623
        %v4830 = vunpack.c.h.b16 %v4623
        %v4831 = vunpack.c.l.b16 %v4624
        %v4832 = vunpack.c.h.b16 %v4624
        %v4833 = vunpack.c.l.b16 %v4625
        %v4834 = vunpack.c.h.b16 %v4625
        %v4835 = vunpack.c.l.b16 %v4626
        %v4836 = vunpack.c.h.b16 %v4626
        %v4837 = vunpack.c.l.b16 %v4627
        %v4838 = vunpack.c.h.b16 %v4627
        %v4839 = vunpack.c.l.b16 %v4628
        %v4840 = vunpack.c.h.b16 %v4628
        %v4841 = vunpack.c.l.b16 %v4629
        %v4842 = vunpack.c.h.b16 %v4629
        %v4843 = vunpack.c.l.b16 %v4630
        %v4844 = vunpack.c.h.b16 %v4630
        %v4845 = vunpack.c.l.b16 %v4631
        %v4846 = vunpack.c.h.b16 %v4631
        %v4847 = vunpack.c.l.b16 %v4632
        %v4848 = vunpack.c.h.b16 %v4632
        %v4849 = vunpack.c.l.b16 %v4633
        %v4850 = vunpack.c.h.b16 %v4633
        %v4851 = vunpack.c.l.b16 %v4634
        %v4852 = vunpack.c.h.b16 %v4634
        %v4853 = vunpack.c.l.b16 %v4635
        %v4854 = vunpack.c.h.b16 %v4635
        %v4855 = vunpack.c.l.b16 %v4636
        %v4856 = vunpack.c.h.b16 %v4636
        %v4857 = vunpack.c.l.b16 %v4637
        %v4858 = vunpack.c.h.b16 %v4637
        %v4859 = vunpack.c.l.b16 %v4638
        %v4860 = vunpack.c.h.b16 %v4638
        %v4861 = vunpack.c.l.b16 %v4639
        %v4862 = vunpack.c.h.b16 %v4639
        %v4863 = vunpack.c.l.b16 %v4640
        %v4864 = vunpack.c.h.b16 %v4640
        %v4865 = vunpack.c.l.b16 %v4641
        %v4866 = vunpack.c.h.b16 %v4641
        %v4867 = vunpack.c.l.b16 %v4642
        %v4868 = vunpack.c.h.b16 %v4642
        %v4869 = vpack.c.b16 %v4743, %v4741
        %v4870 = vpack.c.b16 %v4744, %v4742
        %v4871 = vpack.c.b16 %v4747, %v4745
        %v4872 = vpack.c.b16 %v4748, %v4746
        %v4873 = vpack.c.b16 %v4751, %v4749
        %v4874 = vpack.c.b16 %v4752, %v4750
        %v4875 = vpack.c.b16 %v4755, %v4753
        %v4876 = vpack.c.b16 %v4756, %v4754
        %v4877 = vpack.c.b16 %v4759, %v4757
        %v4878 = vpack.c.b16 %v4760, %v4758
        %v4879 = vpack.c.b16 %v4763, %v4761
        %v4880 = vpack.c.b16 %v4764, %v4762
        %v4881 = vpack.c.b16 %v4767, %v4765
        %v4882 = vpack.c.b16 %v4768, %v4766
        %v4883 = vpack.c.b16 %v4771, %v4769
        %v4884 = vpack.c.b16 %v4772, %v4770
        %v4885 = vpack.c.b16 %v4775, %v4773
        %v4886 = vpack.c.b16 %v4776, %v4774
        %v4887 = vpack.c.b16 %v4779, %v4777
        %v4888 = vpack.c.b16 %v4780, %v4778
        %v4889 = vpack.c.b16 %v4783, %v4781
        %v4890 = vpack.c.b16 %v4784, %v4782
        %v4891 = vpack.c.b16 %v4787, %v4785
        %v4892 = vpack.c.b16 %v4788, %v4786
        %v4893 = vpack.c.b16 %v4791, %v4789
        %v4894 = vpack.c.b16 %v4792, %v4790
        %v4895 = vpack.c.b16 %v4795, %v4793
        %v4896 = vpack.c.b16 %v4796, %v4794
        %v4897 = vpack.c.b16 %v4799, %v4797
        %v4898 = vpack.c.b16 %v4800, %v4798
        %v4899 = vpack.c.b16 %v4803, %v4801
        %v4900 = vpack.c.b16 %v4804, %v4802
        %v4901 = vpack.c.b16 %v4807, %v4805
        %v4902 = vpack.c.b16 %v4808, %v4806
        %v4903 = vpack.c.b16 %v4811, %v4809
        %v4904 = vpack.c.b16 %v4812, %v4810
        %v4905 = vpack.c.b16 %v4815, %v4813
        %v4906 = vpack.c.b16 %v4816, %v4814
        %v4907 = vpack.c.b16 %v4819, %v4817
        %v4908 = vpack.c.b16 %v4820, %v4818
        %v4909 = vpack.c.b16 %v4823, %v4821
        %v4910 = vpack.c.b16 %v4824, %v4822
        %v4911 = vpack.c.b16 %v4827, %v4825
        %v4912 = vpack.c.b16 %v4828, %v4826
        %v4913 = vpack.c.b16 %v4831, %v4829
        %v4914 = vpack.c.b16 %v4832, %v4830
        %v4915 = vpack.c.b16 %v4835, %v4833
        %v4916 = vpack.c.b16 %v4836, %v4834
        %v4917 = vpack.c.b16 %v4839, %v4837
        %v4918 = vpack.c.b16 %v4840, %v4838
        %v4919 = vpack.c.b16 %v4843, %v4841
        %v4920 = vpack.c.b16 %v4844, %v4842
        %v4921 = vpack.c.b16 %v4847, %v4845
        %v4922 = vpack.c.b16 %v4848, %v4846
        %v4923 = vpack.c.b16 %v4851, %v4849
        %v4924 = vpack.c.b16 %v4852, %v4850
        %v4925 = vpack.c.b16 %v4855, %v4853
        %v4926 = vpack.c.b16 %v4856, %v4854
        %v4927 = vpack.c.b16 %v4859, %v4857
        %v4928 = vpack.c.b16 %v4860, %v4858
        %v4929 = vpack.c.b16 %v4863, %v4861
        %v4930 = vpack.c.b16 %v4864, %v4862
        %v4931 = vpack.c.b16 %v4867, %v4865
        %v4932 = vpack.c.b16 %v4868, %v4866
        %4997 = vmatprep.subr.bf16.mxu0 %v4870
        %4998 = vmatpush1.bf16.msra.mxu0 %v4869
        %4999 = vmatprep.subr.bf16.mxu0 %v4872
        %5000 = vmatpush1.bf16.msra.mxu0 %v4871
        %5001 = vmatprep.subr.bf16.mxu0 %v4874
        %5002 = vmatpush1.bf16.msra.mxu0 %v4873
        %5003 = vmatprep.subr.bf16.mxu0 %v4876
        %5004 = vmatpush1.bf16.msra.mxu0 %v4875
        %5005 = vmatprep.subr.bf16.mxu0 %v4878
        %5006 = vmatpush1.bf16.msra.mxu0 %v4877
        %5007 = vmatprep.subr.bf16.mxu0 %v4880
        %5008 = vmatpush1.bf16.msra.mxu0 %v4879
        %5009 = vmatprep.subr.bf16.mxu0 %v4882
        %5010 = vmatpush1.bf16.msra.mxu0 %v4881
        %5011 = vmatprep.subr.bf16.mxu0 %v4884
        %5012 = vmatpush1.bf16.msra.mxu0 %v4883
        %5013 = vmatprep.subr.bf16.mxu0 %v4886
        %5014 = vmatpush1.bf16.msra.mxu0 %v4885
        %5015 = vmatprep.subr.bf16.mxu0 %v4888
        %5016 = vmatpush1.bf16.msra.mxu0 %v4887
        %5017 = vmatprep.subr.bf16.mxu0 %v4890
        %5018 = vmatpush1.bf16.msra.mxu0 %v4889
        %5019 = vmatprep.subr.bf16.mxu0 %v4892
        %5020 = vmatpush1.bf16.msra.mxu0 %v4891
        %5021 = vmatprep.subr.bf16.mxu0 %v4894
        %5022 = vmatpush1.bf16.msra.mxu0 %v4893
        %5023 = vmatprep.subr.bf16.mxu0 %v4896
        %5024 = vmatpush1.bf16.msra.mxu0 %v4895
        %5025 = vmatprep.subr.bf16.mxu0 %v4898
        %5026 = vmatpush1.bf16.msra.mxu0 %v4897
        %5027 = vmatprep.subr.bf16.mxu0 %v4900
        %5028 = vmatpush1.bf16.msra.mxu0 %v4899
        %5029 = vmatprep.mubr.bf16.mxu0 %v4662
        %5030 = vmatmul.mubr.bf16.gmra.mrb[0].mxu0 %v4661
        %v5031 = vpop.f32.mrb[0].mxu0
        %v5032 = vadd.f32 0.0, %v5031
        %v5033 = vpop.f32.mrb[0].mxu0
        %v5034 = vadd.f32 0.0, %v5033
        %v5035 = vpop.f32.mrb[0].mxu0
        %v5036 = vadd.f32 0.0, %v5035
        %v5037 = vpop.f32.mrb[0].mxu0
        %v5038 = vadd.f32 0.0, %v5037
        %5039 = vmatprep.mubr.bf16.mxu0 %v4666
        %5040 = vmatmul.mubr.bf16.gmra.mrb[0].mxu0 %v4665
        %v5041 = vpop.f32.mrb[0].mxu0
        %v5042 = vadd.f32 0.0, %v5041
        %v5043 = vpop.f32.mrb[0].mxu0
        %v5044 = vadd.f32 0.0, %v5043
        %v5045 = vpop.f32.mrb[0].mxu0
        %v5046 = vpop.f32.mrb[0].mxu0
        %5047 = vdwg.mxu0
        %5048 = vmatprep.subr.bf16.mxu0 %v4902
        %5049 = vmatpush1.bf16.msra.mxu0 %v4901
        %5050 = vmatprep.subr.bf16.mxu0 %v4904
        %5051 = vmatpush1.bf16.msra.mxu0 %v4903
        %5052 = vmatprep.subr.bf16.mxu0 %v4906
        %5053 = vmatpush1.bf16.msra.mxu0 %v4905
        %5054 = vmatprep.subr.bf16.mxu0 %v4908
        %5055 = vmatpush1.bf16.msra.mxu0 %v4907
        %5056 = vmatprep.subr.bf16.mxu0 %v4910
        %5057 = vmatpush1.bf16.msra.mxu0 %v4909
        %5058 = vmatprep.subr.bf16.mxu0 %v4912
        %5059 = vmatpush1.bf16.msra.mxu0 %v4911
        %5060 = vmatprep.subr.bf16.mxu0 %v4914
        %5061 = vmatpush1.bf16.msra.mxu0 %v4913
        %5062 = vmatprep.subr.bf16.mxu0 %v4916
        %5063 = vmatpush1.bf16.msra.mxu0 %v4915
        %5064 = vmatprep.subr.bf16.mxu0 %v4918
        %5065 = vmatpush1.bf16.msra.mxu0 %v4917
        %5066 = vmatprep.subr.bf16.mxu0 %v4920
        %5067 = vmatpush1.bf16.msra.mxu0 %v4919
        %5068 = vmatprep.subr.bf16.mxu0 %v4922
        %5069 = vmatpush1.bf16.msra.mxu0 %v4921
        %5070 = vmatprep.subr.bf16.mxu0 %v4924
        %5071 = vmatpush1.bf16.msra.mxu0 %v4923
        %5072 = vmatprep.subr.bf16.mxu0 %v4926
        %5073 = vmatpush1.bf16.msra.mxu0 %v4925
        %5074 = vmatprep.subr.bf16.mxu0 %v4928
        %5075 = vmatpush1.bf16.msra.mxu0 %v4927
        %5076 = vmatprep.subr.bf16.mxu0 %v4930
        %5077 = vmatpush1.bf16.msra.mxu0 %v4929
        %5078 = vmatprep.subr.bf16.mxu0 %v4932
        %5079 = vmatpush1.bf16.msra.mxu0 %v4931
        %5080 = vmatprep.mubr.bf16.mxu0 %v4664
        %5081 = vmatmul.mubr.bf16.gmra.mrb[0].mxu0 %v4663
        %v5082 = vpop.f32.mrb[0].mxu0
        %v5083 = vadd.f32 %v5032, %v5082
        %v5084 = vpop.f32.mrb[0].mxu0
        %v5085 = vadd.f32 %v5034, %v5084
        %v5086 = vpop.f32.mrb[0].mxu0
        %v5087 = vadd.f32 %v5036, %v5086
        %v5088 = vpop.f32.mrb[0].mxu0
        %v5089 = vadd.f32 %v5038, %v5088
        %5090 = vmatprep.mubr.bf16.mxu0 %v4668
        %5091 = vmatmul.mubr.bf16.gmra.mrb[0].mxu0 %v4667
        %v5092 = vpop.f32.mrb[0].mxu0
        %v5093 = vadd.f32 %v5042, %v5092
        %v5094 = vpop.f32.mrb[0].mxu0
        %v5095 = vadd.f32 %v5044, %v5094
        %v5096 = vpop.f32.mrb[0].mxu0
        %v5097 = vpop.f32.mrb[0].mxu0
        %5098 = vdwg.mxu0
        %v5099 = vadd.f32 %v5083, 0.0
        %v5100 = vadd.f32 %v5085, 0.0
        %v5101 = vadd.f32 %v5087, 0.0
        %v5102 = vadd.f32 %v5089, 0.0
        %v5103 = vadd.f32 %v5093, 0.0
        %v5104 = vadd.f32 %v5095, 0.0
        %s5105 = scalar_lea.vmem [#allocation28], 512
        %v5106 = vld [vmem:[%s5105] sm:$0xff]
        %v5107 = vld [vmem:[%s5105 + $0x8] sm:$0xff]
        %v5108 = vld [vmem:[%s5105 + $0x10] sm:$0xff]
        %v5109 = vld [vmem:[%s5105 + $0x18] sm:$0xff]
        %v5110 = vld [vmem:[%s5105 + $0x20] sm:$0xff]
        %v5111 = vld [vmem:[%s5105 + $0x28] sm:$0xff]
        %v5112 = vld [vmem:[%s5105 + $0x30] sm:$0xff]
        %v5113 = vld [vmem:[%s5105 + $0x38] sm:$0xff]
        %v5114 = vld [vmem:[%s5105 + $0x40] sm:$0xff]
        %v5115 = vld [vmem:[%s5105 + $0x48] sm:$0xff]
        %v5116 = vld [vmem:[%s5105 + $0x50] sm:$0xff]
        %v5117 = vld [vmem:[%s5105 + $0x58] sm:$0xff]
        %v5118 = vld [vmem:[%s5105 + $0x60] sm:$0xff]
        %v5119 = vld [vmem:[%s5105 + $0x68] sm:$0xff]
        %v5120 = vld [vmem:[%s5105 + $0x70] sm:$0xff]
        %v5121 = vld [vmem:[%s5105 + $0x78] sm:$0xff]
        %v5122 = vld [vmem:[%s5105 + $0x80] sm:$0xff]
        %v5123 = vld [vmem:[%s5105 + $0x88] sm:$0xff]
        %v5124 = vld [vmem:[%s5105 + $0x90] sm:$0xff]
        %v5125 = vld [vmem:[%s5105 + $0x98] sm:$0xff]
        %v5126 = vld [vmem:[%s5105 + $0xa0] sm:$0xff]
        %v5127 = vld [vmem:[%s5105 + $0xa8] sm:$0xff]
        %v5128 = vld [vmem:[%s5105 + $0xb0] sm:$0xff]
        %v5129 = vld [vmem:[%s5105 + $0xb8] sm:$0xff]
        %v5130 = vld [vmem:[%s5105 + $0xc0] sm:$0xff]
        %v5131 = vld [vmem:[%s5105 + $0xc8] sm:$0xff]
        %v5132 = vld [vmem:[%s5105 + $0xd0] sm:$0xff]
        %v5133 = vld [vmem:[%s5105 + $0xd8] sm:$0xff]
        %v5134 = vld [vmem:[%s5105 + $0xe0] sm:$0xff]
        %v5135 = vld [vmem:[%s5105 + $0xe8] sm:$0xff]
        %v5136 = vld [vmem:[%s5105 + $0xf0] sm:$0xff]
        %v5137 = vld [vmem:[%s5105 + $0xf8] sm:$0xff]
        %v5138 = vld [vmem:[%s5105 + $0x100] sm:$0xff]
        %v5139 = vld [vmem:[%s5105 + $0x108] sm:$0xff]
        %v5140 = vld [vmem:[%s5105 + $0x110] sm:$0xff]
        %v5141 = vld [vmem:[%s5105 + $0x118] sm:$0xff]
        %v5142 = vld [vmem:[%s5105 + $0x120] sm:$0xff]
        %v5143 = vld [vmem:[%s5105 + $0x128] sm:$0xff]
        %v5144 = vld [vmem:[%s5105 + $0x130] sm:$0xff]
        %v5145 = vld [vmem:[%s5105 + $0x138] sm:$0xff]
        %v5146 = vld [vmem:[%s5105 + $0x140] sm:$0xff]
        %v5147 = vld [vmem:[%s5105 + $0x148] sm:$0xff]
        %v5148 = vld [vmem:[%s5105 + $0x150] sm:$0xff]
        %v5149 = vld [vmem:[%s5105 + $0x158] sm:$0xff]
        %v5150 = vld [vmem:[%s5105 + $0x160] sm:$0xff]
        %v5151 = vld [vmem:[%s5105 + $0x168] sm:$0xff]
        %v5152 = vld [vmem:[%s5105 + $0x170] sm:$0xff]
        %v5153 = vld [vmem:[%s5105 + $0x178] sm:$0xff]
        %v5154 = vld [vmem:[%s5105 + $0x180] sm:$0xff]
        %v5155 = vld [vmem:[%s5105 + $0x188] sm:$0xff]
        %v5156 = vld [vmem:[%s5105 + $0x190] sm:$0xff]
        %v5157 = vld [vmem:[%s5105 + $0x198] sm:$0xff]
        %v5158 = vld [vmem:[%s5105 + $0x1a0] sm:$0xff]
        %v5159 = vld [vmem:[%s5105 + $0x1a8] sm:$0xff]
        %v5160 = vld [vmem:[%s5105 + $0x1b0] sm:$0xff]
        %v5161 = vld [vmem:[%s5105 + $0x1b8] sm:$0xff]
        %v5162 = vld [vmem:[%s5105 + $0x1c0] sm:$0xff]
        %v5163 = vld [vmem:[%s5105 + $0x1c8] sm:$0xff]
        %v5164 = vld [vmem:[%s5105 + $0x1d0] sm:$0xff]
        %v5165 = vld [vmem:[%s5105 + $0x1d8] sm:$0xff]
        %v5166 = vld [vmem:[%s5105 + $0x1e0] sm:$0xff]
        %v5167 = vld [vmem:[%s5105 + $0x1e8] sm:$0xff]
        %v5168 = vld [vmem:[%s5105 + $0x1f0] sm:$0xff]
        %v5169 = vld [vmem:[%s5105 + $0x1f8] sm:$0xff]
        %v5234 = vunpack.c.l.b16 %v5106
        %v5235 = vunpack.c.h.b16 %v5106
        %v5236 = vunpack.c.l.b16 %v5107
        %v5237 = vunpack.c.h.b16 %v5107
        %v5238 = vunpack.c.l.b16 %v5108
        %v5239 = vunpack.c.h.b16 %v5108
        %v5240 = vunpack.c.l.b16 %v5109
        %v5241 = vunpack.c.h.b16 %v5109
        %v5242 = vunpack.c.l.b16 %v5110
        %v5243 = vunpack.c.h.b16 %v5110
        %v5244 = vunpack.c.l.b16 %v5111
        %v5245 = vunpack.c.h.b16 %v5111
        %v5246 = vunpack.c.l.b16 %v5112
        %v5247 = vunpack.c.h.b16 %v5112
        %v5248 = vunpack.c.l.b16 %v5113
        %v5249 = vunpack.c.h.b16 %v5113
        %v5250 = vunpack.c.l.b16 %v5114
        %v5251 = vunpack.c.h.b16 %v5114
        %v5252 = vunpack.c.l.b16 %v5115
        %v5253 = vunpack.c.h.b16 %v5115
        %v5254 = vunpack.c.l.b16 %v5116
        %v5255 = vunpack.c.h.b16 %v5116
        %v5256 = vunpack.c.l.b16 %v5117
        %v5257 = vunpack.c.h.b16 %v5117
        %v5258 = vunpack.c.l.b16 %v5118
        %v5259 = vunpack.c.h.b16 %v5118
        %v5260 = vunpack.c.l.b16 %v5119
        %v5261 = vunpack.c.h.b16 %v5119
        %v5262 = vunpack.c.l.b16 %v5120
        %v5263 = vunpack.c.h.b16 %v5120
        %v5264 = vunpack.c.l.b16 %v5121
        %v5265 = vunpack.c.h.b16 %v5121
        %v5266 = vunpack.c.l.b16 %v5122
        %v5267 = vunpack.c.h.b16 %v5122
        %v5268 = vunpack.c.l.b16 %v5123
        %v5269 = vunpack.c.h.b16 %v5123
        %v5270 = vunpack.c.l.b16 %v5124
        %v5271 = vunpack.c.h.b16 %v5124
        %v5272 = vunpack.c.l.b16 %v5125
        %v5273 = vunpack.c.h.b16 %v5125
        %v5274 = vunpack.c.l.b16 %v5126
        %v5275 = vunpack.c.h.b16 %v5126
        %v5276 = vunpack.c.l.b16 %v5127
        %v5277 = vunpack.c.h.b16 %v5127
        %v5278 = vunpack.c.l.b16 %v5128
        %v5279 = vunpack.c.h.b16 %v5128
        %v5280 = vunpack.c.l.b16 %v5129
        %v5281 = vunpack.c.h.b16 %v5129
        %v5282 = vunpack.c.l.b16 %v5130
        %v5283 = vunpack.c.h.b16 %v5130
        %v5284 = vunpack.c.l.b16 %v5131
        %v5285 = vunpack.c.h.b16 %v5131
        %v5286 = vunpack.c.l.b16 %v5132
        %v5287 = vunpack.c.h.b16 %v5132
        %v5288 = vunpack.c.l.b16 %v5133
        %v5289 = vunpack.c.h.b16 %v5133
        %v5290 = vunpack.c.l.b16 %v5134
        %v5291 = vunpack.c.h.b16 %v5134
        %v5292 = vunpack.c.l.b16 %v5135
        %v5293 = vunpack.c.h.b16 %v5135
        %v5294 = vunpack.c.l.b16 %v5136
        %v5295 = vunpack.c.h.b16 %v5136
        %v5296 = vunpack.c.l.b16 %v5137
        %v5297 = vunpack.c.h.b16 %v5137
        %v5298 = vunpack.c.l.b16 %v5138
        %v5299 = vunpack.c.h.b16 %v5138
        %v5300 = vunpack.c.l.b16 %v5139
        %v5301 = vunpack.c.h.b16 %v5139
        %v5302 = vunpack.c.l.b16 %v5140
        %v5303 = vunpack.c.h.b16 %v5140
        %v5304 = vunpack.c.l.b16 %v5141
        %v5305 = vunpack.c.h.b16 %v5141
        %v5306 = vunpack.c.l.b16 %v5142
        %v5307 = vunpack.c.h.b16 %v5142
        %v5308 = vunpack.c.l.b16 %v5143
        %v5309 = vunpack.c.h.b16 %v5143
        %v5310 = vunpack.c.l.b16 %v5144
        %v5311 = vunpack.c.h.b16 %v5144
        %v5312 = vunpack.c.l.b16 %v5145
        %v5313 = vunpack.c.h.b16 %v5145
        %v5314 = vunpack.c.l.b16 %v5146
        %v5315 = vunpack.c.h.b16 %v5146
        %v5316 = vunpack.c.l.b16 %v5147
        %v5317 = vunpack.c.h.b16 %v5147
        %v5318 = vunpack.c.l.b16 %v5148
        %v5319 = vunpack.c.h.b16 %v5148
        %v5320 = vunpack.c.l.b16 %v5149
        %v5321 = vunpack.c.h.b16 %v5149
        %v5322 = vunpack.c.l.b16 %v5150
        %v5323 = vunpack.c.h.b16 %v5150
        %v5324 = vunpack.c.l.b16 %v5151
        %v5325 = vunpack.c.h.b16 %v5151
        %v5326 = vunpack.c.l.b16 %v5152
        %v5327 = vunpack.c.h.b16 %v5152
        %v5328 = vunpack.c.l.b16 %v5153
        %v5329 = vunpack.c.h.b16 %v5153
        %v5330 = vunpack.c.l.b16 %v5154
        %v5331 = vunpack.c.h.b16 %v5154
        %v5332 = vunpack.c.l.b16 %v5155
        %v5333 = vunpack.c.h.b16 %v5155
        %v5334 = vunpack.c.l.b16 %v5156
        %v5335 = vunpack.c.h.b16 %v5156
        %v5336 = vunpack.c.l.b16 %v5157
        %v5337 = vunpack.c.h.b16 %v5157
        %v5338 = vunpack.c.l.b16 %v5158
        %v5339 = vunpack.c.h.b16 %v5158
        %v5340 = vunpack.c.l.b16 %v5159
        %v5341 = vunpack.c.h.b16 %v5159
        %v5342 = vunpack.c.l.b16 %v5160
        %v5343 = vunpack.c.h.b16 %v5160
        %v5344 = vunpack.c.l.b16 %v5161
        %v5345 = vunpack.c.h.b16 %v5161
        %v5346 = vunpack.c.l.b16 %v5162
        %v5347 = vunpack.c.h.b16 %v5162
        %v5348 = vunpack.c.l.b16 %v5163
        %v5349 = vunpack.c.h.b16 %v5163
        %v5350 = vunpack.c.l.b16 %v5164
        %v5351 = vunpack.c.h.b16 %v5164
        %v5352 = vunpack.c.l.b16 %v5165
        %v5353 = vunpack.c.h.b16 %v5165
        %v5354 = vunpack.c.l.b16 %v5166
        %v5355 = vunpack.c.h.b16 %v5166
        %v5356 = vunpack.c.l.b16 %v5167
        %v5357 = vunpack.c.h.b16 %v5167
        %v5358 = vunpack.c.l.b16 %v5168
        %v5359 = vunpack.c.h.b16 %v5168
        %v5360 = vunpack.c.l.b16 %v5169
        %v5361 = vunpack.c.h.b16 %v5169
        %v5362 = vpack.c.b16 %v5236, %v5234
        %v5363 = vpack.c.b16 %v5237, %v5235
        %v5364 = vpack.c.b16 %v5240, %v5238
        %v5365 = vpack.c.b16 %v5241, %v5239
        %v5366 = vpack.c.b16 %v5244, %v5242
        %v5367 = vpack.c.b16 %v5245, %v5243
        %v5368 = vpack.c.b16 %v5248, %v5246
        %v5369 = vpack.c.b16 %v5249, %v5247
        %v5370 = vpack.c.b16 %v5252, %v5250
        %v5371 = vpack.c.b16 %v5253, %v5251
        %v5372 = vpack.c.b16 %v5256, %v5254
        %v5373 = vpack.c.b16 %v5257, %v5255
        %v5374 = vpack.c.b16 %v5260, %v5258
        %v5375 = vpack.c.b16 %v5261, %v5259
        %v5376 = vpack.c.b16 %v5264, %v5262
        %v5377 = vpack.c.b16 %v5265, %v5263
        %v5378 = vpack.c.b16 %v5268, %v5266
        %v5379 = vpack.c.b16 %v5269, %v5267
        %v5380 = vpack.c.b16 %v5272, %v5270
        %v5381 = vpack.c.b16 %v5273, %v5271
        %v5382 = vpack.c.b16 %v5276, %v5274
        %v5383 = vpack.c.b16 %v5277, %v5275
        %v5384 = vpack.c.b16 %v5280, %v5278
        %v5385 = vpack.c.b16 %v5281, %v5279
        %v5386 = vpack.c.b16 %v5284, %v5282
        %v5387 = vpack.c.b16 %v5285, %v5283
        %v5388 = vpack.c.b16 %v5288, %v5286
        %v5389 = vpack.c.b16 %v5289, %v5287
        %v5390 = vpack.c.b16 %v5292, %v5290
        %v5391 = vpack.c.b16 %v5293, %v5291
        %v5392 = vpack.c.b16 %v5296, %v5294
        %v5393 = vpack.c.b16 %v5297, %v5295
        %v5394 = vpack.c.b16 %v5300, %v5298
        %v5395 = vpack.c.b16 %v5301, %v5299
        %v5396 = vpack.c.b16 %v5304, %v5302
        %v5397 = vpack.c.b16 %v5305, %v5303
        %v5398 = vpack.c.b16 %v5308, %v5306
        %v5399 = vpack.c.b16 %v5309, %v5307
        %v5400 = vpack.c.b16 %v5312, %v5310
        %v5401 = vpack.c.b16 %v5313, %v5311
        %v5402 = vpack.c.b16 %v5316, %v5314
        %v5403 = vpack.c.b16 %v5317, %v5315
        %v5404 = vpack.c.b16 %v5320, %v5318
        %v5405 = vpack.c.b16 %v5321, %v5319
        %v5406 = vpack.c.b16 %v5324, %v5322
        %v5407 = vpack.c.b16 %v5325, %v5323
        %v5408 = vpack.c.b16 %v5328, %v5326
        %v5409 = vpack.c.b16 %v5329, %v5327
        %v5410 = vpack.c.b16 %v5332, %v5330
        %v5411 = vpack.c.b16 %v5333, %v5331
        %v5412 = vpack.c.b16 %v5336, %v5334
        %v5413 = vpack.c.b16 %v5337, %v5335
        %v5414 = vpack.c.b16 %v5340, %v5338
        %v5415 = vpack.c.b16 %v5341, %v5339
        %v5416 = vpack.c.b16 %v5344, %v5342
        %v5417 = vpack.c.b16 %v5345, %v5343
        %v5418 = vpack.c.b16 %v5348, %v5346
        %v5419 = vpack.c.b16 %v5349, %v5347
        %v5420 = vpack.c.b16 %v5352, %v5350
        %v5421 = vpack.c.b16 %v5353, %v5351
        %v5422 = vpack.c.b16 %v5356, %v5354
        %v5423 = vpack.c.b16 %v5357, %v5355
        %v5424 = vpack.c.b16 %v5360, %v5358
        %v5425 = vpack.c.b16 %v5361, %v5359
        %5490 = vmatprep.subr.bf16.mxu0 %v5363
        %5491 = vmatpush1.bf16.msra.mxu0 %v5362
        %5492 = vmatprep.subr.bf16.mxu0 %v5365
        %5493 = vmatpush1.bf16.msra.mxu0 %v5364
        %5494 = vmatprep.subr.bf16.mxu0 %v5367
        %5495 = vmatpush1.bf16.msra.mxu0 %v5366
        %5496 = vmatprep.subr.bf16.mxu0 %v5369
        %5497 = vmatpush1.bf16.msra.mxu0 %v5368
        %5498 = vmatprep.subr.bf16.mxu0 %v5371
        %5499 = vmatpush1.bf16.msra.mxu0 %v5370
        %5500 = vmatprep.subr.bf16.mxu0 %v5373
        %5501 = vmatpush1.bf16.msra.mxu0 %v5372
        %5502 = vmatprep.subr.bf16.mxu0 %v5375
        %5503 = vmatpush1.bf16.msra.mxu0 %v5374
        %5504 = vmatprep.subr.bf16.mxu0 %v5377
        %5505 = vmatpush1.bf16.msra.mxu0 %v5376
        %5506 = vmatprep.subr.bf16.mxu0 %v5379
        %5507 = vmatpush1.bf16.msra.mxu0 %v5378
        %5508 = vmatprep.subr.bf16.mxu0 %v5381
        %5509 = vmatpush1.bf16.msra.mxu0 %v5380
        %5510 = vmatprep.subr.bf16.mxu0 %v5383
        %5511 = vmatpush1.bf16.msra.mxu0 %v5382
        %5512 = vmatprep.subr.bf16.mxu0 %v5385
        %5513 = vmatpush1.bf16.msra.mxu0 %v5384
        %5514 = vmatprep.subr.bf16.mxu0 %v5387
        %5515 = vmatpush1.bf16.msra.mxu0 %v5386
        %5516 = vmatprep.subr.bf16.mxu0 %v5389
        %5517 = vmatpush1.bf16.msra.mxu0 %v5388
        %5518 = vmatprep.subr.bf16.mxu0 %v5391
        %5519 = vmatpush1.bf16.msra.mxu0 %v5390
        %5520 = vmatprep.subr.bf16.mxu0 %v5393
        %5521 = vmatpush1.bf16.msra.mxu0 %v5392
        %5522 = vmatprep.mubr.bf16.mxu0 %v4662
        %5523 = vmatmul.mubr.bf16.gmra.mrb[0].mxu0 %v4661
        %v5524 = vpop.f32.mrb[0].mxu0
        %v5525 = vadd.f32 0.0, %v5524
        %v5526 = vpop.f32.mrb[0].mxu0
        %v5527 = vadd.f32 0.0, %v5526
        %v5528 = vpop.f32.mrb[0].mxu0
        %v5529 = vadd.f32 0.0, %v5528
        %v5530 = vpop.f32.mrb[0].mxu0
        %v5531 = vadd.f32 0.0, %v5530
        %5532 = vmatprep.mubr.bf16.mxu0 %v4666
        %5533 = vmatmul.mubr.bf16.gmra.mrb[0].mxu0 %v4665
        %v5534 = vpop.f32.mrb[0].mxu0
        %v5535 = vadd.f32 0.0, %v5534
        %v5536 = vpop.f32.mrb[0].mxu0
        %v5537 = vadd.f32 0.0, %v5536
        %v5538 = vpop.f32.mrb[0].mxu0
        %v5539 = vpop.f32.mrb[0].mxu0
        %5540 = vdwg.mxu0
        %5541 = vmatprep.subr.bf16.mxu0 %v5395
        %5542 = vmatpush1.bf16.msra.mxu0 %v5394
        %5543 = vmatprep.subr.bf16.mxu0 %v5397
        %5544 = vmatpush1.bf16.msra.mxu0 %v5396
        %5545 = vmatprep.subr.bf16.mxu0 %v5399
        %5546 = vmatpush1.bf16.msra.mxu0 %v5398
        %5547 = vmatprep.subr.bf16.mxu0 %v5401
        %5548 = vmatpush1.bf16.msra.mxu0 %v5400
        %5549 = vmatprep.subr.bf16.mxu0 %v5403
        %5550 = vmatpush1.bf16.msra.mxu0 %v5402
        %5551 = vmatprep.subr.bf16.mxu0 %v5405
        %5552 = vmatpush1.bf16.msra.mxu0 %v5404
        %5553 = vmatprep.subr.bf16.mxu0 %v5407
        %5554 = vmatpush1.bf16.msra.mxu0 %v5406
        %5555 = vmatprep.subr.bf16.mxu0 %v5409
        %5556 = vmatpush1.bf16.msra.mxu0 %v5408
        %5557 = vmatprep.subr.bf16.mxu0 %v5411
        %5558 = vmatpush1.bf16.msra.mxu0 %v5410
        %5559 = vmatprep.subr.bf16.mxu0 %v5413
        %5560 = vmatpush1.bf16.msra.mxu0 %v5412
        %5561 = vmatprep.subr.bf16.mxu0 %v5415
        %5562 = vmatpush1.bf16.msra.mxu0 %v5414
        %5563 = vmatprep.subr.bf16.mxu0 %v5417
        %5564 = vmatpush1.bf16.msra.mxu0 %v5416
        %5565 = vmatprep.subr.bf16.mxu0 %v5419
        %5566 = vmatpush1.bf16.msra.mxu0 %v5418
        %5567 = vmatprep.subr.bf16.mxu0 %v5421
        %5568 = vmatpush1.bf16.msra.mxu0 %v5420
        %5569 = vmatprep.subr.bf16.mxu0 %v5423
        %5570 = vmatpush1.bf16.msra.mxu0 %v5422
        %5571 = vmatprep.subr.bf16.mxu0 %v5425
        %5572 = vmatpush1.bf16.msra.mxu0 %v5424
        %5573 = vmatprep.mubr.bf16.mxu0 %v4664
        %5574 = vmatmul.mubr.bf16.gmra.mrb[0].mxu0 %v4663
        %v5575 = vpop.f32.mrb[0].mxu0
        %v5576 = vadd.f32 %v5525, %v5575
        %v5577 = vpop.f32.mrb[0].mxu0
        %v5578 = vadd.f32 %v5527, %v5577
        %v5579 = vpop.f32.mrb[0].mxu0
        %v5580 = vadd.f32 %v5529, %v5579
        %v5581 = vpop.f32.mrb[0].mxu0
        %v5582 = vadd.f32 %v5531, %v5581
        %5583 = vmatprep.mubr.bf16.mxu0 %v4668
        %5584 = vmatmul.mubr.bf16.gmra.mrb[0].mxu0 %v4667
        %v5585 = vpop.f32.mrb[0].mxu0
        %v5586 = vadd.f32 %v5535, %v5585
        %v5587 = vpop.f32.mrb[0].mxu0
        %v5588 = vadd.f32 %v5537, %v5587
        %v5589 = vpop.f32.mrb[0].mxu0
        %v5590 = vpop.f32.mrb[0].mxu0
        %5591 = vdwg.mxu0
        %v5598 = vrot.slane %v5576, 1
        %v5599 = vrot.slane %v5580, 1
        %v5600 = vsel %vm3268, %v5598, %v5599
        %v5601 = vrot.slane %v5578, 1
        %v5602 = vrot.slane %v5582, 1
        %v5603 = vsel %vm3268, %v5601, %v5602
        %v5604 = vrot.slane %v5586, 1
        %v5605 = vsel %vm3268, %v5599, %v5604
        %v5606 = vrot.slane %v5588, 1
        %v5607 = vsel %vm3268, %v5602, %v5606
        %v5614 = vadd.f32 %v5099, %v5600
        %v5615 = vadd.f32 %v5100, %v5603
        %v5616 = vadd.f32 %v5101, %v5605
        %v5617 = vadd.f32 %v5102, %v5607
        %v5618 = vadd.f32 %v5103, %v5604
        %v5619 = vadd.f32 %v5104, %v5606
        %s5620 = scalar_lea.vmem [#allocation28], 1024
        %v5621 = vld [vmem:[%s5620] sm:$0xff]
        %v5622 = vld [vmem:[%s5620 + $0x8] sm:$0xff]
        %v5623 = vld [vmem:[%s5620 + $0x10] sm:$0xff]
        %v5624 = vld [vmem:[%s5620 + $0x18] sm:$0xff]
        %v5625 = vld [vmem:[%s5620 + $0x20] sm:$0xff]
        %v5626 = vld [vmem:[%s5620 + $0x28] sm:$0xff]
        %v5627 = vld [vmem:[%s5620 + $0x30] sm:$0xff]
        %v5628 = vld [vmem:[%s5620 + $0x38] sm:$0xff]
        %v5629 = vld [vmem:[%s5620 + $0x40] sm:$0xff]
        %v5630 = vld [vmem:[%s5620 + $0x48] sm:$0xff]
        %v5631 = vld [vmem:[%s5620 + $0x50] sm:$0xff]
        %v5632 = vld [vmem:[%s5620 + $0x58] sm:$0xff]
        %v5633 = vld [vmem:[%s5620 + $0x60] sm:$0xff]
        %v5634 = vld [vmem:[%s5620 + $0x68] sm:$0xff]
        %v5635 = vld [vmem:[%s5620 + $0x70] sm:$0xff]
        %v5636 = vld [vmem:[%s5620 + $0x78] sm:$0xff]
        %v5637 = vld [vmem:[%s5620 + $0x80] sm:$0xff]
        %v5638 = vld [vmem:[%s5620 + $0x88] sm:$0xff]
        %v5639 = vld [vmem:[%s5620 + $0x90] sm:$0xff]
        %v5640 = vld [vmem:[%s5620 + $0x98] sm:$0xff]
        %v5641 = vld [vmem:[%s5620 + $0xa0] sm:$0xff]
        %v5642 = vld [vmem:[%s5620 + $0xa8] sm:$0xff]
        %v5643 = vld [vmem:[%s5620 + $0xb0] sm:$0xff]
        %v5644 = vld [vmem:[%s5620 + $0xb8] sm:$0xff]
        %v5645 = vld [vmem:[%s5620 + $0xc0] sm:$0xff]
        %v5646 = vld [vmem:[%s5620 + $0xc8] sm:$0xff]
        %v5647 = vld [vmem:[%s5620 + $0xd0] sm:$0xff]
        %v5648 = vld [vmem:[%s5620 + $0xd8] sm:$0xff]
        %v5649 = vld [vmem:[%s5620 + $0xe0] sm:$0xff]
        %v5650 = vld [vmem:[%s5620 + $0xe8] sm:$0xff]
        %v5651 = vld [vmem:[%s5620 + $0xf0] sm:$0xff]
        %v5652 = vld [vmem:[%s5620 + $0xf8] sm:$0xff]
        %v5653 = vld [vmem:[%s5620 + $0x100] sm:$0xff]
        %v5654 = vld [vmem:[%s5620 + $0x108] sm:$0xff]
        %v5655 = vld [vmem:[%s5620 + $0x110] sm:$0xff]
        %v5656 = vld [vmem:[%s5620 + $0x118] sm:$0xff]
        %v5657 = vld [vmem:[%s5620 + $0x120] sm:$0xff]
        %v5658 = vld [vmem:[%s5620 + $0x128] sm:$0xff]
        %v5659 = vld [vmem:[%s5620 + $0x130] sm:$0xff]
        %v5660 = vld [vmem:[%s5620 + $0x138] sm:$0xff]
        %v5661 = vld [vmem:[%s5620 + $0x140] sm:$0xff]
        %v5662 = vld [vmem:[%s5620 + $0x148] sm:$0xff]
        %v5663 = vld [vmem:[%s5620 + $0x150] sm:$0xff]
        %v5664 = vld [vmem:[%s5620 + $0x158] sm:$0xff]
        %v5665 = vld [vmem:[%s5620 + $0x160] sm:$0xff]
        %v5666 = vld [vmem:[%s5620 + $0x168] sm:$0xff]
        %v5667 = vld [vmem:[%s5620 + $0x170] sm:$0xff]
        %v5668 = vld [vmem:[%s5620 + $0x178] sm:$0xff]
        %v5669 = vld [vmem:[%s5620 + $0x180] sm:$0xff]
        %v5670 = vld [vmem:[%s5620 + $0x188] sm:$0xff]
        %v5671 = vld [vmem:[%s5620 + $0x190] sm:$0xff]
        %v5672 = vld [vmem:[%s5620 + $0x198] sm:$0xff]
        %v5673 = vld [vmem:[%s5620 + $0x1a0] sm:$0xff]
        %v5674 = vld [vmem:[%s5620 + $0x1a8] sm:$0xff]
        %v5675 = vld [vmem:[%s5620 + $0x1b0] sm:$0xff]
        %v5676 = vld [vmem:[%s5620 + $0x1b8] sm:$0xff]
        %v5677 = vld [vmem:[%s5620 + $0x1c0] sm:$0xff]
        %v5678 = vld [vmem:[%s5620 + $0x1c8] sm:$0xff]
        %v5679 = vld [vmem:[%s5620 + $0x1d0] sm:$0xff]
        %v5680 = vld [vmem:[%s5620 + $0x1d8] sm:$0xff]
        %v5681 = vld [vmem:[%s5620 + $0x1e0] sm:$0xff]
        %v5682 = vld [vmem:[%s5620 + $0x1e8] sm:$0xff]
        %v5683 = vld [vmem:[%s5620 + $0x1f0] sm:$0xff]
        %v5684 = vld [vmem:[%s5620 + $0x1f8] sm:$0xff]
        %v5749 = vunpack.c.l.b16 %v5621
        %v5750 = vunpack.c.h.b16 %v5621
        %v5751 = vunpack.c.l.b16 %v5622
        %v5752 = vunpack.c.h.b16 %v5622
        %v5753 = vunpack.c.l.b16 %v5623
        %v5754 = vunpack.c.h.b16 %v5623
        %v5755 = vunpack.c.l.b16 %v5624
        %v5756 = vunpack.c.h.b16 %v5624
        %v5757 = vunpack.c.l.b16 %v5625
        %v5758 = vunpack.c.h.b16 %v5625
        %v5759 = vunpack.c.l.b16 %v5626
        %v5760 = vunpack.c.h.b16 %v5626
        %v5761 = vunpack.c.l.b16 %v5627
        %v5762 = vunpack.c.h.b16 %v5627
        %v5763 = vunpack.c.l.b16 %v5628
        %v5764 = vunpack.c.h.b16 %v5628
        %v5765 = vunpack.c.l.b16 %v5629
        %v5766 = vunpack.c.h.b16 %v5629
        %v5767 = vunpack.c.l.b16 %v5630
        %v5768 = vunpack.c.h.b16 %v5630
        %v5769 = vunpack.c.l.b16 %v5631
        %v5770 = vunpack.c.h.b16 %v5631
        %v5771 = vunpack.c.l.b16 %v5632
        %v5772 = vunpack.c.h.b16 %v5632
        %v5773 = vunpack.c.l.b16 %v5633
        %v5774 = vunpack.c.h.b16 %v5633
        %v5775 = vunpack.c.l.b16 %v5634
        %v5776 = vunpack.c.h.b16 %v5634
        %v5777 = vunpack.c.l.b16 %v5635
        %v5778 = vunpack.c.h.b16 %v5635
        %v5779 = vunpack.c.l.b16 %v5636
        %v5780 = vunpack.c.h.b16 %v5636
        %v5781 = vunpack.c.l.b16 %v5637
        %v5782 = vunpack.c.h.b16 %v5637
        %v5783 = vunpack.c.l.b16 %v5638
        %v5784 = vunpack.c.h.b16 %v5638
        %v5785 = vunpack.c.l.b16 %v5639
        %v5786 = vunpack.c.h.b16 %v5639
        %v5787 = vunpack.c.l.b16 %v5640
        %v5788 = vunpack.c.h.b16 %v5640
        %v5789 = vunpack.c.l.b16 %v5641
        %v5790 = vunpack.c.h.b16 %v5641
        %v5791 = vunpack.c.l.b16 %v5642
        %v5792 = vunpack.c.h.b16 %v5642
        %v5793 = vunpack.c.l.b16 %v5643
        %v5794 = vunpack.c.h.b16 %v5643
        %v5795 = vunpack.c.l.b16 %v5644
        %v5796 = vunpack.c.h.b16 %v5644
        %v5797 = vunpack.c.l.b16 %v5645
        %v5798 = vunpack.c.h.b16 %v5645
        %v5799 = vunpack.c.l.b16 %v5646
        %v5800 = vunpack.c.h.b16 %v5646
        %v5801 = vunpack.c.l.b16 %v5647
        %v5802 = vunpack.c.h.b16 %v5647
        %v5803 = vunpack.c.l.b16 %v5648
        %v5804 = vunpack.c.h.b16 %v5648
        %v5805 = vunpack.c.l.b16 %v5649
        %v5806 = vunpack.c.h.b16 %v5649
        %v5807 = vunpack.c.l.b16 %v5650
        %v5808 = vunpack.c.h.b16 %v5650
        %v5809 = vunpack.c.l.b16 %v5651
        %v5810 = vunpack.c.h.b16 %v5651
        %v5811 = vunpack.c.l.b16 %v5652
        %v5812 = vunpack.c.h.b16 %v5652
        %v5813 = vunpack.c.l.b16 %v5653
        %v5814 = vunpack.c.h.b16 %v5653
        %v5815 = vunpack.c.l.b16 %v5654
        %v5816 = vunpack.c.h.b16 %v5654
        %v5817 = vunpack.c.l.b16 %v5655
        %v5818 = vunpack.c.h.b16 %v5655
        %v5819 = vunpack.c.l.b16 %v5656
        %v5820 = vunpack.c.h.b16 %v5656
        %v5821 = vunpack.c.l.b16 %v5657
        %v5822 = vunpack.c.h.b16 %v5657
        %v5823 = vunpack.c.l.b16 %v5658
        %v5824 = vunpack.c.h.b16 %v5658
        %v5825 = vunpack.c.l.b16 %v5659
        %v5826 = vunpack.c.h.b16 %v5659
        %v5827 = vunpack.c.l.b16 %v5660
        %v5828 = vunpack.c.h.b16 %v5660
        %v5829 = vunpack.c.l.b16 %v5661
        %v5830 = vunpack.c.h.b16 %v5661
        %v5831 = vunpack.c.l.b16 %v5662
        %v5832 = vunpack.c.h.b16 %v5662
        %v5833 = vunpack.c.l.b16 %v5663
        %v5834 = vunpack.c.h.b16 %v5663
        %v5835 = vunpack.c.l.b16 %v5664
        %v5836 = vunpack.c.h.b16 %v5664
        %v5837 = vunpack.c.l.b16 %v5665
        %v5838 = vunpack.c.h.b16 %v5665
        %v5839 = vunpack.c.l.b16 %v5666
        %v5840 = vunpack.c.h.b16 %v5666
        %v5841 = vunpack.c.l.b16 %v5667
        %v5842 = vunpack.c.h.b16 %v5667
        %v5843 = vunpack.c.l.b16 %v5668
        %v5844 = vunpack.c.h.b16 %v5668
        %v5845 = vunpack.c.l.b16 %v5669
        %v5846 = vunpack.c.h.b16 %v5669
        %v5847 = vunpack.c.l.b16 %v5670
        %v5848 = vunpack.c.h.b16 %v5670
        %v5849 = vunpack.c.l.b16 %v5671
        %v5850 = vunpack.c.h.b16 %v5671
        %v5851 = vunpack.c.l.b16 %v5672
        %v5852 = vunpack.c.h.b16 %v5672
        %v5853 = vunpack.c.l.b16 %v5673
        %v5854 = vunpack.c.h.b16 %v5673
        %v5855 = vunpack.c.l.b16 %v5674
        %v5856 = vunpack.c.h.b16 %v5674
        %v5857 = vunpack.c.l.b16 %v5675
        %v5858 = vunpack.c.h.b16 %v5675
        %v5859 = vunpack.c.l.b16 %v5676
        %v5860 = vunpack.c.h.b16 %v5676
        %v5861 = vunpack.c.l.b16 %v5677
        %v5862 = vunpack.c.h.b16 %v5677
        %v5863 = vunpack.c.l.b16 %v5678
        %v5864 = vunpack.c.h.b16 %v5678
        %v5865 = vunpack.c.l.b16 %v5679
        %v5866 = vunpack.c.h.b16 %v5679
        %v5867 = vunpack.c.l.b16 %v5680
        %v5868 = vunpack.c.h.b16 %v5680
        %v5869 = vunpack.c.l.b16 %v5681
        %v5870 = vunpack.c.h.b16 %v5681
        %v5871 = vunpack.c.l.b16 %v5682
        %v5872 = vunpack.c.h.b16 %v5682
        %v5873 = vunpack.c.l.b16 %v5683
        %v5874 = vunpack.c.h.b16 %v5683
        %v5875 = vunpack.c.l.b16 %v5684
        %v5876 = vunpack.c.h.b16 %v5684
        %v5877 = vpack.c.b16 %v5751, %v5749
        %v5878 = vpack.c.b16 %v5752, %v5750
        %v5879 = vpack.c.b16 %v5755, %v5753
        %v5880 = vpack.c.b16 %v5756, %v5754
        %v5881 = vpack.c.b16 %v5759, %v5757
        %v5882 = vpack.c.b16 %v5760, %v5758
        %v5883 = vpack.c.b16 %v5763, %v5761
        %v5884 = vpack.c.b16 %v5764, %v5762
        %v5885 = vpack.c.b16 %v5767, %v5765
        %v5886 = vpack.c.b16 %v5768, %v5766
        %v5887 = vpack.c.b16 %v5771, %v5769
        %v5888 = vpack.c.b16 %v5772, %v5770
        %v5889 = vpack.c.b16 %v5775, %v5773
        %v5890 = vpack.c.b16 %v5776, %v5774
        %v5891 = vpack.c.b16 %v5779, %v5777
        %v5892 = vpack.c.b16 %v5780, %v5778
        %v5893 = vpack.c.b16 %v5783, %v5781
        %v5894 = vpack.c.b16 %v5784, %v5782
        %v5895 = vpack.c.b16 %v5787, %v5785
        %v5896 = vpack.c.b16 %v5788, %v5786
        %v5897 = vpack.c.b16 %v5791, %v5789
        %v5898 = vpack.c.b16 %v5792, %v5790
        %v5899 = vpack.c.b16 %v5795, %v5793
        %v5900 = vpack.c.b16 %v5796, %v5794
        %v5901 = vpack.c.b16 %v5799, %v5797
        %v5902 = vpack.c.b16 %v5800, %v5798
        %v5903 = vpack.c.b16 %v5803, %v5801
        %v5904 = vpack.c.b16 %v5804, %v5802
        %v5905 = vpack.c.b16 %v5807, %v5805
        %v5906 = vpack.c.b16 %v5808, %v5806
        %v5907 = vpack.c.b16 %v5811, %v5809
        %v5908 = vpack.c.b16 %v5812, %v5810
        %v5909 = vpack.c.b16 %v5815, %v5813
        %v5910 = vpack.c.b16 %v5816, %v5814
        %v5911 = vpack.c.b16 %v5819, %v5817
        %v5912 = vpack.c.b16 %v5820, %v5818
        %v5913 = vpack.c.b16 %v5823, %v5821
        %v5914 = vpack.c.b16 %v5824, %v5822
        %v5915 = vpack.c.b16 %v5827, %v5825
        %v5916 = vpack.c.b16 %v5828, %v5826
        %v5917 = vpack.c.b16 %v5831, %v5829
        %v5918 = vpack.c.b16 %v5832, %v5830
        %v5919 = vpack.c.b16 %v5835, %v5833
        %v5920 = vpack.c.b16 %v5836, %v5834
        %v5921 = vpack.c.b16 %v5839, %v5837
        %v5922 = vpack.c.b16 %v5840, %v5838
        %v5923 = vpack.c.b16 %v5843, %v5841
        %v5924 = vpack.c.b16 %v5844, %v5842
        %v5925 = vpack.c.b16 %v5847, %v5845
        %v5926 = vpack.c.b16 %v5848, %v5846
        %v5927 = vpack.c.b16 %v5851, %v5849
        %v5928 = vpack.c.b16 %v5852, %v5850
        %v5929 = vpack.c.b16 %v5855, %v5853
        %v5930 = vpack.c.b16 %v5856, %v5854
        %v5931 = vpack.c.b16 %v5859, %v5857
        %v5932 = vpack.c.b16 %v5860, %v5858
        %v5933 = vpack.c.b16 %v5863, %v5861
        %v5934 = vpack.c.b16 %v5864, %v5862
        %v5935 = vpack.c.b16 %v5867, %v5865
        %v5936 = vpack.c.b16 %v5868, %v5866
        %v5937 = vpack.c.b16 %v5871, %v5869
        %v5938 = vpack.c.b16 %v5872, %v5870
        %v5939 = vpack.c.b16 %v5875, %v5873
        %v5940 = vpack.c.b16 %v5876, %v5874
        %6005 = vmatprep.subr.bf16.mxu0 %v5878
        %6006 = vmatpush1.bf16.msra.mxu0 %v5877
        %6007 = vmatprep.subr.bf16.mxu0 %v5880
        %6008 = vmatpush1.bf16.msra.mxu0 %v5879
        %6009 = vmatprep.subr.bf16.mxu0 %v5882
        %6010 = vmatpush1.bf16.msra.mxu0 %v5881
        %6011 = vmatprep.subr.bf16.mxu0 %v5884
        %6012 = vmatpush1.bf16.msra.mxu0 %v5883
        %6013 = vmatprep.subr.bf16.mxu0 %v5886
        %6014 = vmatpush1.bf16.msra.mxu0 %v5885
        %6015 = vmatprep.subr.bf16.mxu0 %v5888
        %6016 = vmatpush1.bf16.msra.mxu0 %v5887
        %6017 = vmatprep.subr.bf16.mxu0 %v5890
        %6018 = vmatpush1.bf16.msra.mxu0 %v5889
        %6019 = vmatprep.subr.bf16.mxu0 %v5892
        %6020 = vmatpush1.bf16.msra.mxu0 %v5891
        %6021 = vmatprep.subr.bf16.mxu0 %v5894
        %6022 = vmatpush1.bf16.msra.mxu0 %v5893
        %6023 = vmatprep.subr.bf16.mxu0 %v5896
        %6024 = vmatpush1.bf16.msra.mxu0 %v5895
        %6025 = vmatprep.subr.bf16.mxu0 %v5898
        %6026 = vmatpush1.bf16.msra.mxu0 %v5897
        %6027 = vmatprep.subr.bf16.mxu0 %v5900
        %6028 = vmatpush1.bf16.msra.mxu0 %v5899
        %6029 = vmatprep.subr.bf16.mxu0 %v5902
        %6030 = vmatpush1.bf16.msra.mxu0 %v5901
        %6031 = vmatprep.subr.bf16.mxu0 %v5904
        %6032 = vmatpush1.bf16.msra.mxu0 %v5903
        %6033 = vmatprep.subr.bf16.mxu0 %v5906
        %6034 = vmatpush1.bf16.msra.mxu0 %v5905
        %6035 = vmatprep.subr.bf16.mxu0 %v5908
        %6036 = vmatpush1.bf16.msra.mxu0 %v5907
        %6037 = vmatprep.mubr.bf16.mxu0 %v4662
        %6038 = vmatmul.mubr.bf16.gmra.mrb[0].mxu0 %v4661
        %v6039 = vpop.f32.mrb[0].mxu0
        %v6040 = vadd.f32 0.0, %v6039
        %v6041 = vpop.f32.mrb[0].mxu0
        %v6042 = vadd.f32 0.0, %v6041
        %v6043 = vpop.f32.mrb[0].mxu0
        %v6044 = vadd.f32 0.0, %v6043
        %v6045 = vpop.f32.mrb[0].mxu0
        %v6046 = vadd.f32 0.0, %v6045
        %6047 = vmatprep.mubr.bf16.mxu0 %v4666
        %6048 = vmatmul.mubr.bf16.gmra.mrb[0].mxu0 %v4665
        %v6049 = vpop.f32.mrb[0].mxu0
        %v6050 = vadd.f32 0.0, %v6049
        %v6051 = vpop.f32.mrb[0].mxu0
        %v6052 = vadd.f32 0.0, %v6051
        %v6053 = vpop.f32.mrb[0].mxu0
        %v6054 = vpop.f32.mrb[0].mxu0
        %6055 = vdwg.mxu0
        %6056 = vmatprep.subr.bf16.mxu0 %v5910
        %6057 = vmatpush1.bf16.msra.mxu0 %v5909
        %6058 = vmatprep.subr.bf16.mxu0 %v5912
        %6059 = vmatpush1.bf16.msra.mxu0 %v5911
        %6060 = vmatprep.subr.bf16.mxu0 %v5914
        %6061 = vmatpush1.bf16.msra.mxu0 %v5913
        %6062 = vmatprep.subr.bf16.mxu0 %v5916
        %6063 = vmatpush1.bf16.msra.mxu0 %v5915
        %6064 = vmatprep.subr.bf16.mxu0 %v5918
        %6065 = vmatpush1.bf16.msra.mxu0 %v5917
        %6066 = vmatprep.subr.bf16.mxu0 %v5920
        %6067 = vmatpush1.bf16.msra.mxu0 %v5919
        %6068 = vmatprep.subr.bf16.mxu0 %v5922
        %6069 = vmatpush1.bf16.msra.mxu0 %v5921
        %6070 = vmatprep.subr.bf16.mxu0 %v5924
        %6071 = vmatpush1.bf16.msra.mxu0 %v5923
        %6072 = vmatprep.subr.bf16.mxu0 %v5926
        %6073 = vmatpush1.bf16.msra.mxu0 %v5925
        %6074 = vmatprep.subr.bf16.mxu0 %v5928
        %6075 = vmatpush1.bf16.msra.mxu0 %v5927
        %6076 = vmatprep.subr.bf16.mxu0 %v5930
        %6077 = vmatpush1.bf16.msra.mxu0 %v5929
        %6078 = vmatprep.subr.bf16.mxu0 %v5932
        %6079 = vmatpush1.bf16.msra.mxu0 %v5931
        %6080 = vmatprep.subr.bf16.mxu0 %v5934
        %6081 = vmatpush1.bf16.msra.mxu0 %v5933
        %6082 = vmatprep.subr.bf16.mxu0 %v5936
        %6083 = vmatpush1.bf16.msra.mxu0 %v5935
        %6084 = vmatprep.subr.bf16.mxu0 %v5938
        %6085 = vmatpush1.bf16.msra.mxu0 %v5937
        %6086 = vmatprep.subr.bf16.mxu0 %v5940
        %6087 = vmatpush1.bf16.msra.mxu0 %v5939
        %6088 = vmatprep.mubr.bf16.mxu0 %v4664
        %6089 = vmatmul.mubr.bf16.gmra.mrb[0].mxu0 %v4663
        %v6090 = vpop.f32.mrb[0].mxu0
        %v6091 = vadd.f32 %v6040, %v6090
        %v6092 = vpop.f32.mrb[0].mxu0
        %v6093 = vadd.f32 %v6042, %v6092
        %v6094 = vpop.f32.mrb[0].mxu0
        %v6095 = vadd.f32 %v6044, %v6094
        %v6096 = vpop.f32.mrb[0].mxu0
        %v6097 = vadd.f32 %v6046, %v6096
        %6098 = vmatprep.mubr.bf16.mxu0 %v4668
        %6099 = vmatmul.mubr.bf16.gmra.mrb[0].mxu0 %v4667
        %v6100 = vpop.f32.mrb[0].mxu0
        %v6101 = vadd.f32 %v6050, %v6100
        %v6102 = vpop.f32.mrb[0].mxu0
        %v6103 = vadd.f32 %v6052, %v6102
        %v6104 = vpop.f32.mrb[0].mxu0
        %v6105 = vpop.f32.mrb[0].mxu0
        %6106 = vdwg.mxu0
        %v6113 = vrot.slane %v6091, 2
        %v6114 = vrot.slane %v6095, 2
        %v6115 = vsel %vm3784, %v6113, %v6114
        %v6116 = vrot.slane %v6093, 2
        %v6117 = vrot.slane %v6097, 2
        %v6118 = vsel %vm3784, %v6116, %v6117
        %v6119 = vrot.slane %v6101, 2
        %v6120 = vsel %vm3784, %v6114, %v6119
        %v6121 = vrot.slane %v6103, 2
        %v6122 = vsel %vm3784, %v6117, %v6121
        %v6129 = vadd.f32 %v5614, %v6115
        %v6130 = vadd.f32 %v5615, %v6118
        %v6131 = vadd.f32 %v5616, %v6120
        %v6132 = vadd.f32 %v5617, %v6122
        %v6133 = vadd.f32 %v5618, %v6119
        %v6134 = vadd.f32 %v5619, %v6121
        %s6135 = scalar_lea.vmem [#allocation28], 1536
        %v6136 = vld [vmem:[%s6135] sm:$0xff]
        %v6137 = vld [vmem:[%s6135 + $0x8] sm:$0xff]
        %v6138 = vld [vmem:[%s6135 + $0x10] sm:$0xff]
        %v6139 = vld [vmem:[%s6135 + $0x18] sm:$0xff]
        %v6140 = vld [vmem:[%s6135 + $0x20] sm:$0xff]
        %v6141 = vld [vmem:[%s6135 + $0x28] sm:$0xff]
        %v6142 = vld [vmem:[%s6135 + $0x30] sm:$0xff]
        %v6143 = vld [vmem:[%s6135 + $0x38] sm:$0xff]
        %v6144 = vld [vmem:[%s6135 + $0x40] sm:$0xff]
        %v6145 = vld [vmem:[%s6135 + $0x48] sm:$0xff]
        %v6146 = vld [vmem:[%s6135 + $0x50] sm:$0xff]
        %v6147 = vld [vmem:[%s6135 + $0x58] sm:$0xff]
        %v6148 = vld [vmem:[%s6135 + $0x60] sm:$0xff]
        %v6149 = vld [vmem:[%s6135 + $0x68] sm:$0xff]
        %v6150 = vld [vmem:[%s6135 + $0x70] sm:$0xff]
        %v6151 = vld [vmem:[%s6135 + $0x78] sm:$0xff]
        %v6152 = vld [vmem:[%s6135 + $0x80] sm:$0xff]
        %v6153 = vld [vmem:[%s6135 + $0x88] sm:$0xff]
        %v6154 = vld [vmem:[%s6135 + $0x90] sm:$0xff]
        %v6155 = vld [vmem:[%s6135 + $0x98] sm:$0xff]
        %v6156 = vld [vmem:[%s6135 + $0xa0] sm:$0xff]
        %v6157 = vld [vmem:[%s6135 + $0xa8] sm:$0xff]
        %v6158 = vld [vmem:[%s6135 + $0xb0] sm:$0xff]
        %v6159 = vld [vmem:[%s6135 + $0xb8] sm:$0xff]
        %v6160 = vld [vmem:[%s6135 + $0xc0] sm:$0xff]
        %v6161 = vld [vmem:[%s6135 + $0xc8] sm:$0xff]
        %v6162 = vld [vmem:[%s6135 + $0xd0] sm:$0xff]
        %v6163 = vld [vmem:[%s6135 + $0xd8] sm:$0xff]
        %v6164 = vld [vmem:[%s6135 + $0xe0] sm:$0xff]
        %v6165 = vld [vmem:[%s6135 + $0xe8] sm:$0xff]
        %v6166 = vld [vmem:[%s6135 + $0xf0] sm:$0xff]
        %v6167 = vld [vmem:[%s6135 + $0xf8] sm:$0xff]
        %v6168 = vld [vmem:[%s6135 + $0x100] sm:$0xff]
        %v6169 = vld [vmem:[%s6135 + $0x108] sm:$0xff]
        %v6170 = vld [vmem:[%s6135 + $0x110] sm:$0xff]
        %v6171 = vld [vmem:[%s6135 + $0x118] sm:$0xff]
        %v6172 = vld [vmem:[%s6135 + $0x120] sm:$0xff]
        %v6173 = vld [vmem:[%s6135 + $0x128] sm:$0xff]
        %v6174 = vld [vmem:[%s6135 + $0x130] sm:$0xff]
        %v6175 = vld [vmem:[%s6135 + $0x138] sm:$0xff]
        %v6176 = vld [vmem:[%s6135 + $0x140] sm:$0xff]
        %v6177 = vld [vmem:[%s6135 + $0x148] sm:$0xff]
        %v6178 = vld [vmem:[%s6135 + $0x150] sm:$0xff]
        %v6179 = vld [vmem:[%s6135 + $0x158] sm:$0xff]
        %v6180 = vld [vmem:[%s6135 + $0x160] sm:$0xff]
        %v6181 = vld [vmem:[%s6135 + $0x168] sm:$0xff]
        %v6182 = vld [vmem:[%s6135 + $0x170] sm:$0xff]
        %v6183 = vld [vmem:[%s6135 + $0x178] sm:$0xff]
        %v6184 = vld [vmem:[%s6135 + $0x180] sm:$0xff]
        %v6185 = vld [vmem:[%s6135 + $0x188] sm:$0xff]
        %v6186 = vld [vmem:[%s6135 + $0x190] sm:$0xff]
        %v6187 = vld [vmem:[%s6135 + $0x198] sm:$0xff]
        %v6188 = vld [vmem:[%s6135 + $0x1a0] sm:$0xff]
        %v6189 = vld [vmem:[%s6135 + $0x1a8] sm:$0xff]
        %v6190 = vld [vmem:[%s6135 + $0x1b0] sm:$0xff]
        %v6191 = vld [vmem:[%s6135 + $0x1b8] sm:$0xff]
        %v6192 = vld [vmem:[%s6135 + $0x1c0] sm:$0xff]
        %v6193 = vld [vmem:[%s6135 + $0x1c8] sm:$0xff]
        %v6194 = vld [vmem:[%s6135 + $0x1d0] sm:$0xff]
        %v6195 = vld [vmem:[%s6135 + $0x1d8] sm:$0xff]
        %v6196 = vld [vmem:[%s6135 + $0x1e0] sm:$0xff]
        %v6197 = vld [vmem:[%s6135 + $0x1e8] sm:$0xff]
        %v6198 = vld [vmem:[%s6135 + $0x1f0] sm:$0xff]
        %v6199 = vld [vmem:[%s6135 + $0x1f8] sm:$0xff]
        %v6264 = vunpack.c.l.b16 %v6136
        %v6265 = vunpack.c.h.b16 %v6136
        %v6266 = vunpack.c.l.b16 %v6137
        %v6267 = vunpack.c.h.b16 %v6137
        %v6268 = vunpack.c.l.b16 %v6138
        %v6269 = vunpack.c.h.b16 %v6138
        %v6270 = vunpack.c.l.b16 %v6139
        %v6271 = vunpack.c.h.b16 %v6139
        %v6272 = vunpack.c.l.b16 %v6140
        %v6273 = vunpack.c.h.b16 %v6140
        %v6274 = vunpack.c.l.b16 %v6141
        %v6275 = vunpack.c.h.b16 %v6141
        %v6276 = vunpack.c.l.b16 %v6142
        %v6277 = vunpack.c.h.b16 %v6142
        %v6278 = vunpack.c.l.b16 %v6143
        %v6279 = vunpack.c.h.b16 %v6143
        %v6280 = vunpack.c.l.b16 %v6144
        %v6281 = vunpack.c.h.b16 %v6144
        %v6282 = vunpack.c.l.b16 %v6145
        %v6283 = vunpack.c.h.b16 %v6145
        %v6284 = vunpack.c.l.b16 %v6146
        %v6285 = vunpack.c.h.b16 %v6146
        %v6286 = vunpack.c.l.b16 %v6147
        %v6287 = vunpack.c.h.b16 %v6147
        %v6288 = vunpack.c.l.b16 %v6148
        %v6289 = vunpack.c.h.b16 %v6148
        %v6290 = vunpack.c.l.b16 %v6149
        %v6291 = vunpack.c.h.b16 %v6149
        %v6292 = vunpack.c.l.b16 %v6150
        %v6293 = vunpack.c.h.b16 %v6150
        %v6294 = vunpack.c.l.b16 %v6151
        %v6295 = vunpack.c.h.b16 %v6151
        %v6296 = vunpack.c.l.b16 %v6152
        %v6297 = vunpack.c.h.b16 %v6152
        %v6298 = vunpack.c.l.b16 %v6153
        %v6299 = vunpack.c.h.b16 %v6153
        %v6300 = vunpack.c.l.b16 %v6154
        %v6301 = vunpack.c.h.b16 %v6154
        %v6302 = vunpack.c.l.b16 %v6155
        %v6303 = vunpack.c.h.b16 %v6155
        %v6304 = vunpack.c.l.b16 %v6156
        %v6305 = vunpack.c.h.b16 %v6156
        %v6306 = vunpack.c.l.b16 %v6157
        %v6307 = vunpack.c.h.b16 %v6157
        %v6308 = vunpack.c.l.b16 %v6158
        %v6309 = vunpack.c.h.b16 %v6158
        %v6310 = vunpack.c.l.b16 %v6159
        %v6311 = vunpack.c.h.b16 %v6159
        %v6312 = vunpack.c.l.b16 %v6160
        %v6313 = vunpack.c.h.b16 %v6160
        %v6314 = vunpack.c.l.b16 %v6161
        %v6315 = vunpack.c.h.b16 %v6161
        %v6316 = vunpack.c.l.b16 %v6162
        %v6317 = vunpack.c.h.b16 %v6162
        %v6318 = vunpack.c.l.b16 %v6163
        %v6319 = vunpack.c.h.b16 %v6163
        %v6320 = vunpack.c.l.b16 %v6164
        %v6321 = vunpack.c.h.b16 %v6164
        %v6322 = vunpack.c.l.b16 %v6165
        %v6323 = vunpack.c.h.b16 %v6165
        %v6324 = vunpack.c.l.b16 %v6166
        %v6325 = vunpack.c.h.b16 %v6166
        %v6326 = vunpack.c.l.b16 %v6167
        %v6327 = vunpack.c.h.b16 %v6167
        %v6328 = vunpack.c.l.b16 %v6168
        %v6329 = vunpack.c.h.b16 %v6168
        %v6330 = vunpack.c.l.b16 %v6169
        %v6331 = vunpack.c.h.b16 %v6169
        %v6332 = vunpack.c.l.b16 %v6170
        %v6333 = vunpack.c.h.b16 %v6170
        %v6334 = vunpack.c.l.b16 %v6171
        %v6335 = vunpack.c.h.b16 %v6171
        %v6336 = vunpack.c.l.b16 %v6172
        %v6337 = vunpack.c.h.b16 %v6172
        %v6338 = vunpack.c.l.b16 %v6173
        %v6339 = vunpack.c.h.b16 %v6173
        %v6340 = vunpack.c.l.b16 %v6174
        %v6341 = vunpack.c.h.b16 %v6174
        %v6342 = vunpack.c.l.b16 %v6175
        %v6343 = vunpack.c.h.b16 %v6175
        %v6344 = vunpack.c.l.b16 %v6176
        %v6345 = vunpack.c.h.b16 %v6176
        %v6346 = vunpack.c.l.b16 %v6177
        %v6347 = vunpack.c.h.b16 %v6177
        %v6348 = vunpack.c.l.b16 %v6178
        %v6349 = vunpack.c.h.b16 %v6178
        %v6350 = vunpack.c.l.b16 %v6179
        %v6351 = vunpack.c.h.b16 %v6179
        %v6352 = vunpack.c.l.b16 %v6180
        %v6353 = vunpack.c.h.b16 %v6180
        %v6354 = vunpack.c.l.b16 %v6181
        %v6355 = vunpack.c.h.b16 %v6181
        %v6356 = vunpack.c.l.b16 %v6182
        %v6357 = vunpack.c.h.b16 %v6182
        %v6358 = vunpack.c.l.b16 %v6183
        %v6359 = vunpack.c.h.b16 %v6183
        %v6360 = vunpack.c.l.b16 %v6184
        %v6361 = vunpack.c.h.b16 %v6184
        %v6362 = vunpack.c.l.b16 %v6185
        %v6363 = vunpack.c.h.b16 %v6185
        %v6364 = vunpack.c.l.b16 %v6186
        %v6365 = vunpack.c.h.b16 %v6186
        %v6366 = vunpack.c.l.b16 %v6187
        %v6367 = vunpack.c.h.b16 %v6187
        %v6368 = vunpack.c.l.b16 %v6188
        %v6369 = vunpack.c.h.b16 %v6188
        %v6370 = vunpack.c.l.b16 %v6189
        %v6371 = vunpack.c.h.b16 %v6189
        %v6372 = vunpack.c.l.b16 %v6190
        %v6373 = vunpack.c.h.b16 %v6190
        %v6374 = vunpack.c.l.b16 %v6191
        %v6375 = vunpack.c.h.b16 %v6191
        %v6376 = vunpack.c.l.b16 %v6192
        %v6377 = vunpack.c.h.b16 %v6192
        %v6378 = vunpack.c.l.b16 %v6193
        %v6379 = vunpack.c.h.b16 %v6193
        %v6380 = vunpack.c.l.b16 %v6194
        %v6381 = vunpack.c.h.b16 %v6194
        %v6382 = vunpack.c.l.b16 %v6195
        %v6383 = vunpack.c.h.b16 %v6195
        %v6384 = vunpack.c.l.b16 %v6196
        %v6385 = vunpack.c.h.b16 %v6196
        %v6386 = vunpack.c.l.b16 %v6197
        %v6387 = vunpack.c.h.b16 %v6197
        %v6388 = vunpack.c.l.b16 %v6198
        %v6389 = vunpack.c.h.b16 %v6198
        %v6390 = vunpack.c.l.b16 %v6199
        %v6391 = vunpack.c.h.b16 %v6199
        %v6392 = vpack.c.b16 %v6266, %v6264
        %v6393 = vpack.c.b16 %v6267, %v6265
        %v6394 = vpack.c.b16 %v6270, %v6268
        %v6395 = vpack.c.b16 %v6271, %v6269
        %v6396 = vpack.c.b16 %v6274, %v6272
        %v6397 = vpack.c.b16 %v6275, %v6273
        %v6398 = vpack.c.b16 %v6278, %v6276
        %v6399 = vpack.c.b16 %v6279, %v6277
        %v6400 = vpack.c.b16 %v6282, %v6280
        %v6401 = vpack.c.b16 %v6283, %v6281
        %v6402 = vpack.c.b16 %v6286, %v6284
        %v6403 = vpack.c.b16 %v6287, %v6285
        %v6404 = vpack.c.b16 %v6290, %v6288
        %v6405 = vpack.c.b16 %v6291, %v6289
        %v6406 = vpack.c.b16 %v6294, %v6292
        %v6407 = vpack.c.b16 %v6295, %v6293
        %v6408 = vpack.c.b16 %v6298, %v6296
        %v6409 = vpack.c.b16 %v6299, %v6297
        %v6410 = vpack.c.b16 %v6302, %v6300
        %v6411 = vpack.c.b16 %v6303, %v6301
        %v6412 = vpack.c.b16 %v6306, %v6304
        %v6413 = vpack.c.b16 %v6307, %v6305
        %v6414 = vpack.c.b16 %v6310, %v6308
        %v6415 = vpack.c.b16 %v6311, %v6309
        %v6416 = vpack.c.b16 %v6314, %v6312
        %v6417 = vpack.c.b16 %v6315, %v6313
        %v6418 = vpack.c.b16 %v6318, %v6316
        %v6419 = vpack.c.b16 %v6319, %v6317
        %v6420 = vpack.c.b16 %v6322, %v6320
        %v6421 = vpack.c.b16 %v6323, %v6321
        %v6422 = vpack.c.b16 %v6326, %v6324
        %v6423 = vpack.c.b16 %v6327, %v6325
        %v6424 = vpack.c.b16 %v6330, %v6328
        %v6425 = vpack.c.b16 %v6331, %v6329
        %v6426 = vpack.c.b16 %v6334, %v6332
        %v6427 = vpack.c.b16 %v6335, %v6333
        %v6428 = vpack.c.b16 %v6338, %v6336
        %v6429 = vpack.c.b16 %v6339, %v6337
        %v6430 = vpack.c.b16 %v6342, %v6340
        %v6431 = vpack.c.b16 %v6343, %v6341
        %v6432 = vpack.c.b16 %v6346, %v6344
        %v6433 = vpack.c.b16 %v6347, %v6345
        %v6434 = vpack.c.b16 %v6350, %v6348
        %v6435 = vpack.c.b16 %v6351, %v6349
        %v6436 = vpack.c.b16 %v6354, %v6352
        %v6437 = vpack.c.b16 %v6355, %v6353
        %v6438 = vpack.c.b16 %v6358, %v6356
        %v6439 = vpack.c.b16 %v6359, %v6357
        %v6440 = vpack.c.b16 %v6362, %v6360
        %v6441 = vpack.c.b16 %v6363, %v6361
        %v6442 = vpack.c.b16 %v6366, %v6364
        %v6443 = vpack.c.b16 %v6367, %v6365
        %v6444 = vpack.c.b16 %v6370, %v6368
        %v6445 = vpack.c.b16 %v6371, %v6369
        %v6446 = vpack.c.b16 %v6374, %v6372
        %v6447 = vpack.c.b16 %v6375, %v6373
        %v6448 = vpack.c.b16 %v6378, %v6376
        %v6449 = vpack.c.b16 %v6379, %v6377
        %v6450 = vpack.c.b16 %v6382, %v6380
        %v6451 = vpack.c.b16 %v6383, %v6381
        %v6452 = vpack.c.b16 %v6386, %v6384
        %v6453 = vpack.c.b16 %v6387, %v6385
        %v6454 = vpack.c.b16 %v6390, %v6388
        %v6455 = vpack.c.b16 %v6391, %v6389
        %6520 = vmatprep.subr.bf16.mxu0 %v6393
        %6521 = vmatpush1.bf16.msra.mxu0 %v6392
        %6522 = vmatprep.subr.bf16.mxu0 %v6395
        %6523 = vmatpush1.bf16.msra.mxu0 %v6394
        %6524 = vmatprep.subr.bf16.mxu0 %v6397
        %6525 = vmatpush1.bf16.msra.mxu0 %v6396
        %6526 = vmatprep.subr.bf16.mxu0 %v6399
        %6527 = vmatpush1.bf16.msra.mxu0 %v6398
        %6528 = vmatprep.subr.bf16.mxu0 %v6401
        %6529 = vmatpush1.bf16.msra.mxu0 %v6400
        %6530 = vmatprep.subr.bf16.mxu0 %v6403
        %6531 = vmatpush1.bf16.msra.mxu0 %v6402
        %6532 = vmatprep.subr.bf16.mxu0 %v6405
        %6533 = vmatpush1.bf16.msra.mxu0 %v6404
        %6534 = vmatprep.subr.bf16.mxu0 %v6407
        %6535 = vmatpush1.bf16.msra.mxu0 %v6406
        %6536 = vmatprep.subr.bf16.mxu0 %v6409
        %6537 = vmatpush1.bf16.msra.mxu0 %v6408
        %6538 = vmatprep.subr.bf16.mxu0 %v6411
        %6539 = vmatpush1.bf16.msra.mxu0 %v6410
        %6540 = vmatprep.subr.bf16.mxu0 %v6413
        %6541 = vmatpush1.bf16.msra.mxu0 %v6412
        %6542 = vmatprep.subr.bf16.mxu0 %v6415
        %6543 = vmatpush1.bf16.msra.mxu0 %v6414
        %6544 = vmatprep.subr.bf16.mxu0 %v6417
        %6545 = vmatpush1.bf16.msra.mxu0 %v6416
        %6546 = vmatprep.subr.bf16.mxu0 %v6419
        %6547 = vmatpush1.bf16.msra.mxu0 %v6418
        %6548 = vmatprep.subr.bf16.mxu0 %v6421
        %6549 = vmatpush1.bf16.msra.mxu0 %v6420
        %6550 = vmatprep.subr.bf16.mxu0 %v6423
        %6551 = vmatpush1.bf16.msra.mxu0 %v6422
        %6552 = vmatprep.mubr.bf16.mxu0 %v4662
        %6553 = vmatmul.mubr.bf16.gmra.mrb[0].mxu0 %v4661
        %v6554 = vpop.f32.mrb[0].mxu0
        %v6555 = vadd.f32 0.0, %v6554
        %v6556 = vpop.f32.mrb[0].mxu0
        %v6557 = vadd.f32 0.0, %v6556
        %v6558 = vpop.f32.mrb[0].mxu0
        %v6559 = vadd.f32 0.0, %v6558
        %v6560 = vpop.f32.mrb[0].mxu0
        %v6561 = vadd.f32 0.0, %v6560
        %6562 = vmatprep.mubr.bf16.mxu0 %v4666
        %6563 = vmatmul.mubr.bf16.gmra.mrb[0].mxu0 %v4665
        %v6564 = vpop.f32.mrb[0].mxu0
        %v6565 = vadd.f32 0.0, %v6564
        %v6566 = vpop.f32.mrb[0].mxu0
        %v6567 = vadd.f32 0.0, %v6566
        %v6568 = vpop.f32.mrb[0].mxu0
        %v6569 = vpop.f32.mrb[0].mxu0
        %6570 = vdwg.mxu0
        %6571 = vmatprep.subr.bf16.mxu0 %v6425
        %6572 = vmatpush1.bf16.msra.mxu0 %v6424
        %6573 = vmatprep.subr.bf16.mxu0 %v6427
        %6574 = vmatpush1.bf16.msra.mxu0 %v6426
        %6575 = vmatprep.subr.bf16.mxu0 %v6429
        %6576 = vmatpush1.bf16.msra.mxu0 %v6428
        %6577 = vmatprep.subr.bf16.mxu0 %v6431
        %6578 = vmatpush1.bf16.msra.mxu0 %v6430
        %6579 = vmatprep.subr.bf16.mxu0 %v6433
        %6580 = vmatpush1.bf16.msra.mxu0 %v6432
        %6581 = vmatprep.subr.bf16.mxu0 %v6435
        %6582 = vmatpush1.bf16.msra.mxu0 %v6434
        %6583 = vmatprep.subr.bf16.mxu0 %v6437
        %6584 = vmatpush1.bf16.msra.mxu0 %v6436
        %6585 = vmatprep.subr.bf16.mxu0 %v6439
        %6586 = vmatpush1.bf16.msra.mxu0 %v6438
        %6587 = vmatprep.subr.bf16.mxu0 %v6441
        %6588 = vmatpush1.bf16.msra.mxu0 %v6440
        %6589 = vmatprep.subr.bf16.mxu0 %v6443
        %6590 = vmatpush1.bf16.msra.mxu0 %v6442
        %6591 = vmatprep.subr.bf16.mxu0 %v6445
        %6592 = vmatpush1.bf16.msra.mxu0 %v6444
        %6593 = vmatprep.subr.bf16.mxu0 %v6447
        %6594 = vmatpush1.bf16.msra.mxu0 %v6446
        %6595 = vmatprep.subr.bf16.mxu0 %v6449
        %6596 = vmatpush1.bf16.msra.mxu0 %v6448
        %6597 = vmatprep.subr.bf16.mxu0 %v6451
        %6598 = vmatpush1.bf16.msra.mxu0 %v6450
        %6599 = vmatprep.subr.bf16.mxu0 %v6453
        %6600 = vmatpush1.bf16.msra.mxu0 %v6452
        %6601 = vmatprep.subr.bf16.mxu0 %v6455
        %6602 = vmatpush1.bf16.msra.mxu0 %v6454
        %6603 = vmatprep.mubr.bf16.mxu0 %v4664
        %6604 = vmatmul.mubr.bf16.gmra.mrb[0].mxu0 %v4663
        %v6605 = vpop.f32.mrb[0].mxu0
        %v6606 = vadd.f32 %v6555, %v6605
        %v6607 = vpop.f32.mrb[0].mxu0
        %v6608 = vadd.f32 %v6557, %v6607
        %v6609 = vpop.f32.mrb[0].mxu0
        %v6610 = vadd.f32 %v6559, %v6609
        %v6611 = vpop.f32.mrb[0].mxu0
        %v6612 = vadd.f32 %v6561, %v6611
        %6613 = vmatprep.mubr.bf16.mxu0 %v4668
        %6614 = vmatmul.mubr.bf16.gmra.mrb[0].mxu0 %v4667
        %v6615 = vpop.f32.mrb[0].mxu0
        %v6616 = vadd.f32 %v6565, %v6615
        %v6617 = vpop.f32.mrb[0].mxu0
        %v6618 = vadd.f32 %v6567, %v6617
        %v6619 = vpop.f32.mrb[0].mxu0
        %v6620 = vpop.f32.mrb[0].mxu0
        %6621 = vdwg.mxu0
        %v6628 = vrot.slane %v6606, 3
        %v6629 = vrot.slane %v6610, 3
        %v6630 = vsel %vm3837, %v6628, %v6629
        %v6631 = vrot.slane %v6608, 3
        %v6632 = vrot.slane %v6612, 3
        %v6633 = vsel %vm3837, %v6631, %v6632
        %v6634 = vrot.slane %v6616, 3
        %v6635 = vsel %vm3837, %v6629, %v6634
        %v6636 = vrot.slane %v6618, 3
        %v6637 = vsel %vm3837, %v6632, %v6636
        %v6644 = vadd.f32 %v6129, %v6630
        %v6645 = vadd.f32 %v6130, %v6633
        %v6646 = vadd.f32 %v6131, %v6635
        %v6647 = vadd.f32 %v6132, %v6637
        %v6648 = vadd.f32 %v6133, %v6634
        %v6649 = vadd.f32 %v6134, %v6636
        %s6650 = scalar_lea.vmem [#allocation28], 2048
        %v6651 = vld [vmem:[%s6650] sm:$0xff]
        %v6652 = vld [vmem:[%s6650 + $0x8] sm:$0xff]
        %v6653 = vld [vmem:[%s6650 + $0x10] sm:$0xff]
        %v6654 = vld [vmem:[%s6650 + $0x18] sm:$0xff]
        %v6655 = vld [vmem:[%s6650 + $0x20] sm:$0xff]
        %v6656 = vld [vmem:[%s6650 + $0x28] sm:$0xff]
        %v6657 = vld [vmem:[%s6650 + $0x30] sm:$0xff]
        %v6658 = vld [vmem:[%s6650 + $0x38] sm:$0xff]
        %v6659 = vld [vmem:[%s6650 + $0x40] sm:$0xff]
        %v6660 = vld [vmem:[%s6650 + $0x48] sm:$0xff]
        %v6661 = vld [vmem:[%s6650 + $0x50] sm:$0xff]
        %v6662 = vld [vmem:[%s6650 + $0x58] sm:$0xff]
        %v6663 = vld [vmem:[%s6650 + $0x60] sm:$0xff]
        %v6664 = vld [vmem:[%s6650 + $0x68] sm:$0xff]
        %v6665 = vld [vmem:[%s6650 + $0x70] sm:$0xff]
        %v6666 = vld [vmem:[%s6650 + $0x78] sm:$0xff]
        %v6667 = vld [vmem:[%s6650 + $0x80] sm:$0xff]
        %v6668 = vld [vmem:[%s6650 + $0x88] sm:$0xff]
        %v6669 = vld [vmem:[%s6650 + $0x90] sm:$0xff]
        %v6670 = vld [vmem:[%s6650 + $0x98] sm:$0xff]
        %v6671 = vld [vmem:[%s6650 + $0xa0] sm:$0xff]
        %v6672 = vld [vmem:[%s6650 + $0xa8] sm:$0xff]
        %v6673 = vld [vmem:[%s6650 + $0xb0] sm:$0xff]
        %v6674 = vld [vmem:[%s6650 + $0xb8] sm:$0xff]
        %v6675 = vld [vmem:[%s6650 + $0xc0] sm:$0xff]
        %v6676 = vld [vmem:[%s6650 + $0xc8] sm:$0xff]
        %v6677 = vld [vmem:[%s6650 + $0xd0] sm:$0xff]
        %v6678 = vld [vmem:[%s6650 + $0xd8] sm:$0xff]
        %v6679 = vld [vmem:[%s6650 + $0xe0] sm:$0xff]
        %v6680 = vld [vmem:[%s6650 + $0xe8] sm:$0xff]
        %v6681 = vld [vmem:[%s6650 + $0xf0] sm:$0xff]
        %v6682 = vld [vmem:[%s6650 + $0xf8] sm:$0xff]
        %v6683 = vld [vmem:[%s6650 + $0x100] sm:$0xff]
        %v6684 = vld [vmem:[%s6650 + $0x108] sm:$0xff]
        %v6685 = vld [vmem:[%s6650 + $0x110] sm:$0xff]
        %v6686 = vld [vmem:[%s6650 + $0x118] sm:$0xff]
        %v6687 = vld [vmem:[%s6650 + $0x120] sm:$0xff]
        %v6688 = vld [vmem:[%s6650 + $0x128] sm:$0xff]
        %v6689 = vld [vmem:[%s6650 + $0x130] sm:$0xff]
        %v6690 = vld [vmem:[%s6650 + $0x138] sm:$0xff]
        %v6691 = vld [vmem:[%s6650 + $0x140] sm:$0xff]
        %v6692 = vld [vmem:[%s6650 + $0x148] sm:$0xff]
        %v6693 = vld [vmem:[%s6650 + $0x150] sm:$0xff]
        %v6694 = vld [vmem:[%s6650 + $0x158] sm:$0xff]
        %v6695 = vld [vmem:[%s6650 + $0x160] sm:$0xff]
        %v6696 = vld [vmem:[%s6650 + $0x168] sm:$0xff]
        %v6697 = vld [vmem:[%s6650 + $0x170] sm:$0xff]
        %v6698 = vld [vmem:[%s6650 + $0x178] sm:$0xff]
        %v6699 = vld [vmem:[%s6650 + $0x180] sm:$0xff]
        %v6700 = vld [vmem:[%s6650 + $0x188] sm:$0xff]
        %v6701 = vld [vmem:[%s6650 + $0x190] sm:$0xff]
        %v6702 = vld [vmem:[%s6650 + $0x198] sm:$0xff]
        %v6703 = vld [vmem:[%s6650 + $0x1a0] sm:$0xff]
        %v6704 = vld [vmem:[%s6650 + $0x1a8] sm:$0xff]
        %v6705 = vld [vmem:[%s6650 + $0x1b0] sm:$0xff]
        %v6706 = vld [vmem:[%s6650 + $0x1b8] sm:$0xff]
        %v6707 = vld [vmem:[%s6650 + $0x1c0] sm:$0xff]
        %v6708 = vld [vmem:[%s6650 + $0x1c8] sm:$0xff]
        %v6709 = vld [vmem:[%s6650 + $0x1d0] sm:$0xff]
        %v6710 = vld [vmem:[%s6650 + $0x1d8] sm:$0xff]
        %v6711 = vld [vmem:[%s6650 + $0x1e0] sm:$0xff]
        %v6712 = vld [vmem:[%s6650 + $0x1e8] sm:$0xff]
        %v6713 = vld [vmem:[%s6650 + $0x1f0] sm:$0xff]
        %v6714 = vld [vmem:[%s6650 + $0x1f8] sm:$0xff]
        %v6779 = vunpack.c.l.b16 %v6651
        %v6780 = vunpack.c.h.b16 %v6651
        %v6781 = vunpack.c.l.b16 %v6652
        %v6782 = vunpack.c.h.b16 %v6652
        %v6783 = vunpack.c.l.b16 %v6653
        %v6784 = vunpack.c.h.b16 %v6653
        %v6785 = vunpack.c.l.b16 %v6654
        %v6786 = vunpack.c.h.b16 %v6654
        %v6787 = vunpack.c.l.b16 %v6655
        %v6788 = vunpack.c.h.b16 %v6655
        %v6789 = vunpack.c.l.b16 %v6656
        %v6790 = vunpack.c.h.b16 %v6656
        %v6791 = vunpack.c.l.b16 %v6657
        %v6792 = vunpack.c.h.b16 %v6657
        %v6793 = vunpack.c.l.b16 %v6658
        %v6794 = vunpack.c.h.b16 %v6658
        %v6795 = vunpack.c.l.b16 %v6659
        %v6796 = vunpack.c.h.b16 %v6659
        %v6797 = vunpack.c.l.b16 %v6660
        %v6798 = vunpack.c.h.b16 %v6660
        %v6799 = vunpack.c.l.b16 %v6661
        %v6800 = vunpack.c.h.b16 %v6661
        %v6801 = vunpack.c.l.b16 %v6662
        %v6802 = vunpack.c.h.b16 %v6662
        %v6803 = vunpack.c.l.b16 %v6663
        %v6804 = vunpack.c.h.b16 %v6663
        %v6805 = vunpack.c.l.b16 %v6664
        %v6806 = vunpack.c.h.b16 %v6664
        %v6807 = vunpack.c.l.b16 %v6665
        %v6808 = vunpack.c.h.b16 %v6665
        %v6809 = vunpack.c.l.b16 %v6666
        %v6810 = vunpack.c.h.b16 %v6666
        %v6811 = vunpack.c.l.b16 %v6667
        %v6812 = vunpack.c.h.b16 %v6667
        %v6813 = vunpack.c.l.b16 %v6668
        %v6814 = vunpack.c.h.b16 %v6668
        %v6815 = vunpack.c.l.b16 %v6669
        %v6816 = vunpack.c.h.b16 %v6669
        %v6817 = vunpack.c.l.b16 %v6670
        %v6818 = vunpack.c.h.b16 %v6670
        %v6819 = vunpack.c.l.b16 %v6671
        %v6820 = vunpack.c.h.b16 %v6671
        %v6821 = vunpack.c.l.b16 %v6672
        %v6822 = vunpack.c.h.b16 %v6672
        %v6823 = vunpack.c.l.b16 %v6673
        %v6824 = vunpack.c.h.b16 %v6673
        %v6825 = vunpack.c.l.b16 %v6674
        %v6826 = vunpack.c.h.b16 %v6674
        %v6827 = vunpack.c.l.b16 %v6675
        %v6828 = vunpack.c.h.b16 %v6675
        %v6829 = vunpack.c.l.b16 %v6676
        %v6830 = vunpack.c.h.b16 %v6676
        %v6831 = vunpack.c.l.b16 %v6677
        %v6832 = vunpack.c.h.b16 %v6677
        %v6833 = vunpack.c.l.b16 %v6678
        %v6834 = vunpack.c.h.b16 %v6678
        %v6835 = vunpack.c.l.b16 %v6679
        %v6836 = vunpack.c.h.b16 %v6679
        %v6837 = vunpack.c.l.b16 %v6680
        %v6838 = vunpack.c.h.b16 %v6680
        %v6839 = vunpack.c.l.b16 %v6681
        %v6840 = vunpack.c.h.b16 %v6681
        %v6841 = vunpack.c.l.b16 %v6682
        %v6842 = vunpack.c.h.b16 %v6682
        %v6843 = vunpack.c.l.b16 %v6683
        %v6844 = vunpack.c.h.b16 %v6683
        %v6845 = vunpack.c.l.b16 %v6684
        %v6846 = vunpack.c.h.b16 %v6684
        %v6847 = vunpack.c.l.b16 %v6685
        %v6848 = vunpack.c.h.b16 %v6685
        %v6849 = vunpack.c.l.b16 %v6686
        %v6850 = vunpack.c.h.b16 %v6686
        %v6851 = vunpack.c.l.b16 %v6687
        %v6852 = vunpack.c.h.b16 %v6687
        %v6853 = vunpack.c.l.b16 %v6688
        %v6854 = vunpack.c.h.b16 %v6688
        %v6855 = vunpack.c.l.b16 %v6689
        %v6856 = vunpack.c.h.b16 %v6689
        %v6857 = vunpack.c.l.b16 %v6690
        %v6858 = vunpack.c.h.b16 %v6690
        %v6859 = vunpack.c.l.b16 %v6691
        %v6860 = vunpack.c.h.b16 %v6691
        %v6861 = vunpack.c.l.b16 %v6692
        %v6862 = vunpack.c.h.b16 %v6692
        %v6863 = vunpack.c.l.b16 %v6693
        %v6864 = vunpack.c.h.b16 %v6693
        %v6865 = vunpack.c.l.b16 %v6694
        %v6866 = vunpack.c.h.b16 %v6694
        %v6867 = vunpack.c.l.b16 %v6695
        %v6868 = vunpack.c.h.b16 %v6695
        %v6869 = vunpack.c.l.b16 %v6696
        %v6870 = vunpack.c.h.b16 %v6696
        %v6871 = vunpack.c.l.b16 %v6697
        %v6872 = vunpack.c.h.b16 %v6697
        %v6873 = vunpack.c.l.b16 %v6698
        %v6874 = vunpack.c.h.b16 %v6698
        %v6875 = vunpack.c.l.b16 %v6699
        %v6876 = vunpack.c.h.b16 %v6699
        %v6877 = vunpack.c.l.b16 %v6700
        %v6878 = vunpack.c.h.b16 %v6700
        %v6879 = vunpack.c.l.b16 %v6701
        %v6880 = vunpack.c.h.b16 %v6701
        %v6881 = vunpack.c.l.b16 %v6702
        %v6882 = vunpack.c.h.b16 %v6702
        %v6883 = vunpack.c.l.b16 %v6703
        %v6884 = vunpack.c.h.b16 %v6703
        %v6885 = vunpack.c.l.b16 %v6704
        %v6886 = vunpack.c.h.b16 %v6704
        %v6887 = vunpack.c.l.b16 %v6705
        %v6888 = vunpack.c.h.b16 %v6705
        %v6889 = vunpack.c.l.b16 %v6706
        %v6890 = vunpack.c.h.b16 %v6706
        %v6891 = vunpack.c.l.b16 %v6707
        %v6892 = vunpack.c.h.b16 %v6707
        %v6893 = vunpack.c.l.b16 %v6708
        %v6894 = vunpack.c.h.b16 %v6708
        %v6895 = vunpack.c.l.b16 %v6709
        %v6896 = vunpack.c.h.b16 %v6709
        %v6897 = vunpack.c.l.b16 %v6710
        %v6898 = vunpack.c.h.b16 %v6710
        %v6899 = vunpack.c.l.b16 %v6711
        %v6900 = vunpack.c.h.b16 %v6711
        %v6901 = vunpack.c.l.b16 %v6712
        %v6902 = vunpack.c.h.b16 %v6712
        %v6903 = vunpack.c.l.b16 %v6713
        %v6904 = vunpack.c.h.b16 %v6713
        %v6905 = vunpack.c.l.b16 %v6714
        %v6906 = vunpack.c.h.b16 %v6714
        %v6907 = vpack.c.b16 %v6781, %v6779
        %v6908 = vpack.c.b16 %v6782, %v6780
        %v6909 = vpack.c.b16 %v6785, %v6783
        %v6910 = vpack.c.b16 %v6786, %v6784
        %v6911 = vpack.c.b16 %v6789, %v6787
        %v6912 = vpack.c.b16 %v6790, %v6788
        %v6913 = vpack.c.b16 %v6793, %v6791
        %v6914 = vpack.c.b16 %v6794, %v6792
        %v6915 = vpack.c.b16 %v6797, %v6795
        %v6916 = vpack.c.b16 %v6798, %v6796
        %v6917 = vpack.c.b16 %v6801, %v6799
        %v6918 = vpack.c.b16 %v6802, %v6800
        %v6919 = vpack.c.b16 %v6805, %v6803
        %v6920 = vpack.c.b16 %v6806, %v6804
        %v6921 = vpack.c.b16 %v6809, %v6807
        %v6922 = vpack.c.b16 %v6810, %v6808
        %v6923 = vpack.c.b16 %v6813, %v6811
        %v6924 = vpack.c.b16 %v6814, %v6812
        %v6925 = vpack.c.b16 %v6817, %v6815
        %v6926 = vpack.c.b16 %v6818, %v6816
        %v6927 = vpack.c.b16 %v6821, %v6819
        %v6928 = vpack.c.b16 %v6822, %v6820
        %v6929 = vpack.c.b16 %v6825, %v6823
        %v6930 = vpack.c.b16 %v6826, %v6824
        %v6931 = vpack.c.b16 %v6829, %v6827
        %v6932 = vpack.c.b16 %v6830, %v6828
        %v6933 = vpack.c.b16 %v6833, %v6831
        %v6934 = vpack.c.b16 %v6834, %v6832
        %v6935 = vpack.c.b16 %v6837, %v6835
        %v6936 = vpack.c.b16 %v6838, %v6836
        %v6937 = vpack.c.b16 %v6841, %v6839
        %v6938 = vpack.c.b16 %v6842, %v6840
        %v6939 = vpack.c.b16 %v6845, %v6843
        %v6940 = vpack.c.b16 %v6846, %v6844
        %v6941 = vpack.c.b16 %v6849, %v6847
        %v6942 = vpack.c.b16 %v6850, %v6848
        %v6943 = vpack.c.b16 %v6853, %v6851
        %v6944 = vpack.c.b16 %v6854, %v6852
        %v6945 = vpack.c.b16 %v6857, %v6855
        %v6946 = vpack.c.b16 %v6858, %v6856
        %v6947 = vpack.c.b16 %v6861, %v6859
        %v6948 = vpack.c.b16 %v6862, %v6860
        %v6949 = vpack.c.b16 %v6865, %v6863
        %v6950 = vpack.c.b16 %v6866, %v6864
        %v6951 = vpack.c.b16 %v6869, %v6867
        %v6952 = vpack.c.b16 %v6870, %v6868
        %v6953 = vpack.c.b16 %v6873, %v6871
        %v6954 = vpack.c.b16 %v6874, %v6872
        %v6955 = vpack.c.b16 %v6877, %v6875
        %v6956 = vpack.c.b16 %v6878, %v6876
        %v6957 = vpack.c.b16 %v6881, %v6879
        %v6958 = vpack.c.b16 %v6882, %v6880
        %v6959 = vpack.c.b16 %v6885, %v6883
        %v6960 = vpack.c.b16 %v6886, %v6884
        %v6961 = vpack.c.b16 %v6889, %v6887
        %v6962 = vpack.c.b16 %v6890, %v6888
        %v6963 = vpack.c.b16 %v6893, %v6891
        %v6964 = vpack.c.b16 %v6894, %v6892
        %v6965 = vpack.c.b16 %v6897, %v6895
        %v6966 = vpack.c.b16 %v6898, %v6896
        %v6967 = vpack.c.b16 %v6901, %v6899
        %v6968 = vpack.c.b16 %v6902, %v6900
        %v6969 = vpack.c.b16 %v6905, %v6903
        %v6970 = vpack.c.b16 %v6906, %v6904
        %7035 = vmatprep.subr.bf16.mxu0 %v6908
        %7036 = vmatpush1.bf16.msra.mxu0 %v6907
        %7037 = vmatprep.subr.bf16.mxu0 %v6910
        %7038 = vmatpush1.bf16.msra.mxu0 %v6909
        %7039 = vmatprep.subr.bf16.mxu0 %v6912
        %7040 = vmatpush1.bf16.msra.mxu0 %v6911
        %7041 = vmatprep.subr.bf16.mxu0 %v6914
        %7042 = vmatpush1.bf16.msra.mxu0 %v6913
        %7043 = vmatprep.subr.bf16.mxu0 %v6916
        %7044 = vmatpush1.bf16.msra.mxu0 %v6915
        %7045 = vmatprep.subr.bf16.mxu0 %v6918
        %7046 = vmatpush1.bf16.msra.mxu0 %v6917
        %7047 = vmatprep.subr.bf16.mxu0 %v6920
        %7048 = vmatpush1.bf16.msra.mxu0 %v6919
        %7049 = vmatprep.subr.bf16.mxu0 %v6922
        %7050 = vmatpush1.bf16.msra.mxu0 %v6921
        %7051 = vmatprep.subr.bf16.mxu0 %v6924
        %7052 = vmatpush1.bf16.msra.mxu0 %v6923
        %7053 = vmatprep.subr.bf16.mxu0 %v6926
        %7054 = vmatpush1.bf16.msra.mxu0 %v6925
        %7055 = vmatprep.subr.bf16.mxu0 %v6928
        %7056 = vmatpush1.bf16.msra.mxu0 %v6927
        %7057 = vmatprep.subr.bf16.mxu0 %v6930
        %7058 = vmatpush1.bf16.msra.mxu0 %v6929
        %7059 = vmatprep.subr.bf16.mxu0 %v6932
        %7060 = vmatpush1.bf16.msra.mxu0 %v6931
        %7061 = vmatprep.subr.bf16.mxu0 %v6934
        %7062 = vmatpush1.bf16.msra.mxu0 %v6933
        %7063 = vmatprep.subr.bf16.mxu0 %v6936
        %7064 = vmatpush1.bf16.msra.mxu0 %v6935
        %7065 = vmatprep.subr.bf16.mxu0 %v6938
        %7066 = vmatpush1.bf16.msra.mxu0 %v6937
        %7067 = vmatprep.mubr.bf16.mxu0 %v4662
        %7068 = vmatmul.mubr.bf16.gmra.mrb[0].mxu0 %v4661
        %v7069 = vpop.f32.mrb[0].mxu0
        %v7070 = vadd.f32 0.0, %v7069
        %v7071 = vpop.f32.mrb[0].mxu0
        %v7072 = vadd.f32 0.0, %v7071
        %v7073 = vpop.f32.mrb[0].mxu0
        %v7074 = vadd.f32 0.0, %v7073
        %v7075 = vpop.f32.mrb[0].mxu0
        %v7076 = vadd.f32 0.0, %v7075
        %7077 = vmatprep.mubr.bf16.mxu0 %v4666
        %7078 = vmatmul.mubr.bf16.gmra.mrb[0].mxu0 %v4665
        %v7079 = vpop.f32.mrb[0].mxu0
        %v7080 = vadd.f32 0.0, %v7079
        %v7081 = vpop.f32.mrb[0].mxu0
        %v7082 = vadd.f32 0.0, %v7081
        %v7083 = vpop.f32.mrb[0].mxu0
        %v7084 = vpop.f32.mrb[0].mxu0
        %7085 = vdwg.mxu0
        %7086 = vmatprep.subr.bf16.mxu0 %v6940
        %7087 = vmatpush1.bf16.msra.mxu0 %v6939
        %7088 = vmatprep.subr.bf16.mxu0 %v6942
        %7089 = vmatpush1.bf16.msra.mxu0 %v6941
        %7090 = vmatprep.subr.bf16.mxu0 %v6944
        %7091 = vmatpush1.bf16.msra.mxu0 %v6943
        %7092 = vmatprep.subr.bf16.mxu0 %v6946
        %7093 = vmatpush1.bf16.msra.mxu0 %v6945
        %7094 = vmatprep.subr.bf16.mxu0 %v6948
        %7095 = vmatpush1.bf16.msra.mxu0 %v6947
        %7096 = vmatprep.subr.bf16.mxu0 %v6950
        %7097 = vmatpush1.bf16.msra.mxu0 %v6949
        %7098 = vmatprep.subr.bf16.mxu0 %v6952
        %7099 = vmatpush1.bf16.msra.mxu0 %v6951
        %7100 = vmatprep.subr.bf16.mxu0 %v6954
        %7101 = vmatpush1.bf16.msra.mxu0 %v6953
        %7102 = vmatprep.subr.bf16.mxu0 %v6956
        %7103 = vmatpush1.bf16.msra.mxu0 %v6955
        %7104 = vmatprep.subr.bf16.mxu0 %v6958
        %7105 = vmatpush1.bf16.msra.mxu0 %v6957
        %7106 = vmatprep.subr.bf16.mxu0 %v6960
        %7107 = vmatpush1.bf16.msra.mxu0 %v6959
        %7108 = vmatprep.subr.bf16.mxu0 %v6962
        %7109 = vmatpush1.bf16.msra.mxu0 %v6961
        %7110 = vmatprep.subr.bf16.mxu0 %v6964
        %7111 = vmatpush1.bf16.msra.mxu0 %v6963
        %7112 = vmatprep.subr.bf16.mxu0 %v6966
        %7113 = vmatpush1.bf16.msra.mxu0 %v6965
        %7114 = vmatprep.subr.bf16.mxu0 %v6968
        %7115 = vmatpush1.bf16.msra.mxu0 %v6967
        %7116 = vmatprep.subr.bf16.mxu0 %v6970
        %7117 = vmatpush1.bf16.msra.mxu0 %v6969
        %7118 = vmatprep.mubr.bf16.mxu0 %v4664
        %7119 = vmatmul.mubr.bf16.gmra.mrb[0].mxu0 %v4663
        %v7120 = vpop.f32.mrb[0].mxu0
        %v7121 = vadd.f32 %v7070, %v7120
        %v7122 = vpop.f32.mrb[0].mxu0
        %v7123 = vadd.f32 %v7072, %v7122
        %v7124 = vpop.f32.mrb[0].mxu0
        %v7125 = vadd.f32 %v7074, %v7124
        %v7126 = vpop.f32.mrb[0].mxu0
        %v7127 = vadd.f32 %v7076, %v7126
        %7128 = vmatprep.mubr.bf16.mxu0 %v4668
        %7129 = vmatmul.mubr.bf16.gmra.mrb[0].mxu0 %v4667
        %v7130 = vpop.f32.mrb[0].mxu0
        %v7131 = vadd.f32 %v7080, %v7130
        %v7132 = vpop.f32.mrb[0].mxu0
        %v7133 = vadd.f32 %v7082, %v7132
        %v7134 = vpop.f32.mrb[0].mxu0
        %v7135 = vpop.f32.mrb[0].mxu0
        %7136 = vdwg.mxu0
        %v7143 = vrot.slane %v7121, 4
        %v7144 = vrot.slane %v7125, 4
        %v7145 = vsel %vm1012, %v7143, %v7144
        %v7146 = vrot.slane %v7123, 4
        %v7147 = vrot.slane %v7127, 4
        %v7148 = vsel %vm1012, %v7146, %v7147
        %v7149 = vrot.slane %v7131, 4
        %v7150 = vsel %vm1012, %v7144, %v7149
        %v7151 = vrot.slane %v7133, 4
        %v7152 = vsel %vm1012, %v7147, %v7151
        %v7159 = vadd.f32 %v6644, %v7145
        %v7160 = vadd.f32 %v6645, %v7148
        %v7161 = vadd.f32 %v6646, %v7150
        %v7162 = vadd.f32 %v6647, %v7152
        %v7163 = vadd.f32 %v6648, %v7149
        %v7164 = vadd.f32 %v6649, %v7151
        %v7165 = vld [vmem:[#allocation30] sm:$0x3]
        %v7167 = vlaneseq
        %v7168 = vshrl.u32 %v7167, 7
        %v7169 = vsub.s32 0, %v7168
        %v7170 = vrot.slane %v7165, %v7169
        %v7171 = vlaneseq
        %v7172 = vshrl.u32 %v7171, 7
        %v7173 = vsub.s32 1, %v7172
        %v7174 = vrot.slane %v7165, %v7173
        %v7177 = vadd.f32 %v7159, %v7170
        %v7178 = vadd.f32 %v7160, %v7174
        %v7179 = vadd.f32 %v7161, %v7170
        %v7180 = vadd.f32 %v7162, %v7174
        %v7181 = vadd.f32 %v7163, %v7170
        %v7182 = vadd.f32 %v7164, %v7174
        %v7183 = vmax.f32 %v7177, 0.0
        %v7184 = vmax.f32 %v7178, 0.0
        %v7185 = vmax.f32 %v7179, 0.0
        %v7186 = vmax.f32 %v7180, 0.0
        %v7187 = vmax.f32 %v7181, 0.0
        %v7188 = vmax.f32 %v7182, 0.0
        %v7195 = vrot.slane %v7183, 2
        %v7196 = vrot.slane %v7185, 2
        %v7197 = vsel %vm3784, %v7195, %v7196
        %v7198 = vrot.slane %v7184, 2
        %v7199 = vrot.slane %v7186, 2
        %v7200 = vsel %vm3784, %v7198, %v7199
        %v7201 = vrot.slane %v7187, 2
        %v7202 = vsel %vm3784, %v7196, %v7201
        %v7203 = vrot.slane %v7188, 2
        %v7204 = vsel %vm3784, %v7199, %v7203
        %v7209 = vsel %vm1761, %v7197, 0.0
        %v7210 = vsel %vm1761, %v7200, 0.0
        %v7211 = vsel %vm1762, %v7202, 0.0
        %v7212 = vsel %vm1762, %v7204, 0.0
        %v7213 = vpack.c.bf16 %v7211, %v7209
        %v7214 = vpack.c.bf16 %v7212, %v7210
        %7215 = vst [vmem:[#allocation3] sm:$0xff] %v7213
        %7216 = vst [vmem:[#allocation3 + $0x8] sm:$0xff] %v7214
        %v7217 = vld [vmem:[#allocation3] sm:$0xff]
        %v7218 = vld [vmem:[#allocation3 + $0x8] sm:$0xff]
        %v7219 = vld [vmem:[#allocation31] sm:$0xff]
        %v7220 = vld [vmem:[#allocation31 + $0x8] sm:$0xff]
        %v7221 = vld [vmem:[#allocation31 + $0x10] sm:$0xf]
        %v7222 = vld [vmem:[#allocation31 + $0x14] sm:$0xff]
        %v7223 = vld [vmem:[#allocation31 + $0x1c] sm:$0xff]
        %v7224 = vld [vmem:[#allocation31 + $0x24] sm:$0xf]
        %v7225 = vld [vmem:[#allocation31 + $0x28] sm:$0xff]
        %v7226 = vld [vmem:[#allocation31 + $0x30] sm:$0xff]
        %v7227 = vld [vmem:[#allocation31 + $0x38] sm:$0xf]
        %v7228 = vld [vmem:[#allocation31 + $0x3c] sm:$0xff]
        %v7229 = vld [vmem:[#allocation31 + $0x44] sm:$0xff]
        %v7230 = vld [vmem:[#allocation31 + $0x4c] sm:$0xf]
        %v7231 = vld [vmem:[#allocation31 + $0x50] sm:$0xff]
        %v7232 = vld [vmem:[#allocation31 + $0x58] sm:$0xff]
        %v7233 = vld [vmem:[#allocation31 + $0x60] sm:$0xf]
        %v7234 = vld [vmem:[#allocation31 + $0x64] sm:$0xff]
        %v7235 = vld [vmem:[#allocation31 + $0x6c] sm:$0xff]
        %v7236 = vld [vmem:[#allocation31 + $0x74] sm:$0xf]
        %v7237 = vld [vmem:[#allocation31 + $0x78] sm:$0xff]
        %v7238 = vld [vmem:[#allocation31 + $0x80] sm:$0xff]
        %v7239 = vld [vmem:[#allocation31 + $0x88] sm:$0xf]
        %v7240 = vld [vmem:[#allocation31 + $0x8c] sm:$0xff]
        %v7241 = vld [vmem:[#allocation31 + $0x94] sm:$0xff]
        %v7242 = vld [vmem:[#allocation31 + $0x9c] sm:$0xf]
        %v7243 = vld [vmem:[#allocation31 + $0xa0] sm:$0xff]
        %v7244 = vld [vmem:[#allocation31 + $0xa8] sm:$0xff]
        %v7245 = vld [vmem:[#allocation31 + $0xb0] sm:$0xf]
        %v7246 = vld [vmem:[#allocation31 + $0xb4] sm:$0xff]
        %v7247 = vld [vmem:[#allocation31 + $0xbc] sm:$0xff]
        %v7248 = vld [vmem:[#allocation31 + $0xc4] sm:$0xf]
        %v7249 = vld [vmem:[#allocation31 + $0xc8] sm:$0xff]
        %v7250 = vld [vmem:[#allocation31 + $0xd0] sm:$0xff]
        %v7251 = vld [vmem:[#allocation31 + $0xd8] sm:$0xf]
        %v7252 = vld [vmem:[#allocation31 + $0xdc] sm:$0xff]
        %v7253 = vld [vmem:[#allocation31 + $0xe4] sm:$0xff]
        %v7254 = vld [vmem:[#allocation31 + $0xec] sm:$0xf]
        %v7255 = vld [vmem:[#allocation31 + $0xf0] sm:$0xff]
        %v7256 = vld [vmem:[#allocation31 + $0xf8] sm:$0xff]
        %v7257 = vld [vmem:[#allocation31 + $0x100] sm:$0xf]
        %v7258 = vld [vmem:[#allocation31 + $0x104] sm:$0xff]
        %v7259 = vld [vmem:[#allocation31 + $0x10c] sm:$0xff]
        %v7260 = vld [vmem:[#allocation31 + $0x114] sm:$0xf]
        %v7261 = vld [vmem:[#allocation31 + $0x118] sm:$0xff]
        %v7262 = vld [vmem:[#allocation31 + $0x120] sm:$0xff]
        %v7263 = vld [vmem:[#allocation31 + $0x128] sm:$0xf]
        %v7264 = vld [vmem:[#allocation31 + $0x12c] sm:$0xff]
        %v7265 = vld [vmem:[#allocation31 + $0x134] sm:$0xff]
        %v7266 = vld [vmem:[#allocation31 + $0x13c] sm:$0xf]
        %v7267 = vld [vmem:[#allocation31 + $0x140] sm:$0xff]
        %v7268 = vld [vmem:[#allocation31 + $0x148] sm:$0xff]
        %v7269 = vld [vmem:[#allocation31 + $0x150] sm:$0xf]
        %v7270 = vld [vmem:[#allocation31 + $0x154] sm:$0xff]
        %v7271 = vld [vmem:[#allocation31 + $0x15c] sm:$0xff]
        %v7272 = vld [vmem:[#allocation31 + $0x164] sm:$0xf]
        %v7273 = vld [vmem:[#allocation31 + $0x168] sm:$0xff]
        %v7274 = vld [vmem:[#allocation31 + $0x170] sm:$0xff]
        %v7275 = vld [vmem:[#allocation31 + $0x178] sm:$0xf]
        %v7276 = vld [vmem:[#allocation31 + $0x17c] sm:$0xff]
        %v7277 = vld [vmem:[#allocation31 + $0x184] sm:$0xff]
        %v7278 = vld [vmem:[#allocation31 + $0x18c] sm:$0xf]
        %v7279 = vld [vmem:[#allocation31 + $0x190] sm:$0xff]
        %v7280 = vld [vmem:[#allocation31 + $0x198] sm:$0xff]
        %v7281 = vld [vmem:[#allocation31 + $0x1a0] sm:$0xf]
        %v7282 = vld [vmem:[#allocation31 + $0x1a4] sm:$0xff]
        %v7283 = vld [vmem:[#allocation31 + $0x1ac] sm:$0xff]
        %v7284 = vld [vmem:[#allocation31 + $0x1b4] sm:$0xf]
        %v7285 = vld [vmem:[#allocation31 + $0x1b8] sm:$0xff]
        %v7286 = vld [vmem:[#allocation31 + $0x1c0] sm:$0xff]
        %v7287 = vld [vmem:[#allocation31 + $0x1c8] sm:$0xf]
        %v7288 = vld [vmem:[#allocation31 + $0x1cc] sm:$0xff]
        %v7289 = vld [vmem:[#allocation31 + $0x1d4] sm:$0xff]
        %v7290 = vld [vmem:[#allocation31 + $0x1dc] sm:$0xf]
        %v7291 = vld [vmem:[#allocation31 + $0x1e0] sm:$0xff]
        %v7292 = vld [vmem:[#allocation31 + $0x1e8] sm:$0xff]
        %v7293 = vld [vmem:[#allocation31 + $0x1f0] sm:$0xf]
        %v7294 = vld [vmem:[#allocation31 + $0x1f4] sm:$0xff]
        %v7295 = vld [vmem:[#allocation31 + $0x1fc] sm:$0xff]
        %v7296 = vld [vmem:[#allocation31 + $0x204] sm:$0xf]
        %v7297 = vld [vmem:[#allocation31 + $0x208] sm:$0xff]
        %v7298 = vld [vmem:[#allocation31 + $0x210] sm:$0xff]
        %v7299 = vld [vmem:[#allocation31 + $0x218] sm:$0xf]
        %v7300 = vld [vmem:[#allocation31 + $0x21c] sm:$0xff]
        %v7301 = vld [vmem:[#allocation31 + $0x224] sm:$0xff]
        %v7302 = vld [vmem:[#allocation31 + $0x22c] sm:$0xf]
        %v7303 = vld [vmem:[#allocation31 + $0x230] sm:$0xff]
        %v7304 = vld [vmem:[#allocation31 + $0x238] sm:$0xff]
        %v7305 = vld [vmem:[#allocation31 + $0x240] sm:$0xf]
        %v7306 = vld [vmem:[#allocation31 + $0x244] sm:$0xff]
        %v7307 = vld [vmem:[#allocation31 + $0x24c] sm:$0xff]
        %v7308 = vld [vmem:[#allocation31 + $0x254] sm:$0xf]
        %v7309 = vld [vmem:[#allocation31 + $0x258] sm:$0xff]
        %v7310 = vld [vmem:[#allocation31 + $0x260] sm:$0xff]
        %v7311 = vld [vmem:[#allocation31 + $0x268] sm:$0xf]
        %v7312 = vld [vmem:[#allocation31 + $0x26c] sm:$0xff]
        %v7313 = vld [vmem:[#allocation31 + $0x274] sm:$0xff]
        %v7314 = vld [vmem:[#allocation31 + $0x27c] sm:$0xf]
        %v7411 = vunpack.c.l.b16 %v7219
        %v7412 = vunpack.c.h.b16 %v7219
        %v7413 = vunpack.c.l.b16 %v7220
        %v7414 = vunpack.c.h.b16 %v7220
        %v7415 = vunpack.c.l.b16 %v7221
        %v7416 = vunpack.c.l.b16 %v7222
        %v7417 = vunpack.c.h.b16 %v7222
        %v7418 = vunpack.c.l.b16 %v7223
        %v7419 = vunpack.c.h.b16 %v7223
        %v7420 = vunpack.c.l.b16 %v7224
        %v7421 = vunpack.c.l.b16 %v7225
        %v7422 = vunpack.c.h.b16 %v7225
        %v7423 = vunpack.c.l.b16 %v7226
        %v7424 = vunpack.c.h.b16 %v7226
        %v7425 = vunpack.c.l.b16 %v7227
        %v7426 = vunpack.c.l.b16 %v7228
        %v7427 = vunpack.c.h.b16 %v7228
        %v7428 = vunpack.c.l.b16 %v7229
        %v7429 = vunpack.c.h.b16 %v7229
        %v7430 = vunpack.c.l.b16 %v7230
        %v7431 = vunpack.c.l.b16 %v7231
        %v7432 = vunpack.c.h.b16 %v7231
        %v7433 = vunpack.c.l.b16 %v7232
        %v7434 = vunpack.c.h.b16 %v7232
        %v7435 = vunpack.c.l.b16 %v7233
        %v7436 = vunpack.c.l.b16 %v7234
        %v7437 = vunpack.c.h.b16 %v7234
        %v7438 = vunpack.c.l.b16 %v7235
        %v7439 = vunpack.c.h.b16 %v7235
        %v7440 = vunpack.c.l.b16 %v7236
        %v7441 = vunpack.c.l.b16 %v7237
        %v7442 = vunpack.c.h.b16 %v7237
        %v7443 = vunpack.c.l.b16 %v7238
        %v7444 = vunpack.c.h.b16 %v7238
        %v7445 = vunpack.c.l.b16 %v7239
        %v7446 = vunpack.c.l.b16 %v7240
        %v7447 = vunpack.c.h.b16 %v7240
        %v7448 = vunpack.c.l.b16 %v7241
        %v7449 = vunpack.c.h.b16 %v7241
        %v7450 = vunpack.c.l.b16 %v7242
        %v7451 = vunpack.c.l.b16 %v7243
        %v7452 = vunpack.c.h.b16 %v7243
        %v7453 = vunpack.c.l.b16 %v7244
        %v7454 = vunpack.c.h.b16 %v7244
        %v7455 = vunpack.c.l.b16 %v7245
        %v7456 = vunpack.c.l.b16 %v7246
        %v7457 = vunpack.c.h.b16 %v7246
        %v7458 = vunpack.c.l.b16 %v7247
        %v7459 = vunpack.c.h.b16 %v7247
        %v7460 = vunpack.c.l.b16 %v7248
        %v7461 = vunpack.c.l.b16 %v7249
        %v7462 = vunpack.c.h.b16 %v7249
        %v7463 = vunpack.c.l.b16 %v7250
        %v7464 = vunpack.c.h.b16 %v7250
        %v7465 = vunpack.c.l.b16 %v7251
        %v7466 = vunpack.c.l.b16 %v7252
        %v7467 = vunpack.c.h.b16 %v7252
        %v7468 = vunpack.c.l.b16 %v7253
        %v7469 = vunpack.c.h.b16 %v7253
        %v7470 = vunpack.c.l.b16 %v7254
        %v7471 = vunpack.c.l.b16 %v7255
        %v7472 = vunpack.c.h.b16 %v7255
        %v7473 = vunpack.c.l.b16 %v7256
        %v7474 = vunpack.c.h.b16 %v7256
        %v7475 = vunpack.c.l.b16 %v7257
        %v7476 = vunpack.c.l.b16 %v7258
        %v7477 = vunpack.c.h.b16 %v7258
        %v7478 = vunpack.c.l.b16 %v7259
        %v7479 = vunpack.c.h.b16 %v7259
        %v7480 = vunpack.c.l.b16 %v7260
        %v7481 = vunpack.c.l.b16 %v7261
        %v7482 = vunpack.c.h.b16 %v7261
        %v7483 = vunpack.c.l.b16 %v7262
        %v7484 = vunpack.c.h.b16 %v7262
        %v7485 = vunpack.c.l.b16 %v7263
        %v7486 = vunpack.c.l.b16 %v7264
        %v7487 = vunpack.c.h.b16 %v7264
        %v7488 = vunpack.c.l.b16 %v7265
        %v7489 = vunpack.c.h.b16 %v7265
        %v7490 = vunpack.c.l.b16 %v7266
        %v7491 = vunpack.c.l.b16 %v7267
        %v7492 = vunpack.c.h.b16 %v7267
        %v7493 = vunpack.c.l.b16 %v7268
        %v7494 = vunpack.c.h.b16 %v7268
        %v7495 = vunpack.c.l.b16 %v7269
        %v7496 = vunpack.c.l.b16 %v7270
        %v7497 = vunpack.c.h.b16 %v7270
        %v7498 = vunpack.c.l.b16 %v7271
        %v7499 = vunpack.c.h.b16 %v7271
        %v7500 = vunpack.c.l.b16 %v7272
        %v7501 = vunpack.c.l.b16 %v7273
        %v7502 = vunpack.c.h.b16 %v7273
        %v7503 = vunpack.c.l.b16 %v7274
        %v7504 = vunpack.c.h.b16 %v7274
        %v7505 = vunpack.c.l.b16 %v7275
        %v7506 = vunpack.c.l.b16 %v7276
        %v7507 = vunpack.c.h.b16 %v7276
        %v7508 = vunpack.c.l.b16 %v7277
        %v7509 = vunpack.c.h.b16 %v7277
        %v7510 = vunpack.c.l.b16 %v7278
        %v7511 = vunpack.c.l.b16 %v7279
        %v7512 = vunpack.c.h.b16 %v7279
        %v7513 = vunpack.c.l.b16 %v7280
        %v7514 = vunpack.c.h.b16 %v7280
        %v7515 = vunpack.c.l.b16 %v7281
        %v7516 = vunpack.c.l.b16 %v7282
        %v7517 = vunpack.c.h.b16 %v7282
        %v7518 = vunpack.c.l.b16 %v7283
        %v7519 = vunpack.c.h.b16 %v7283
        %v7520 = vunpack.c.l.b16 %v7284
        %v7521 = vunpack.c.l.b16 %v7285
        %v7522 = vunpack.c.h.b16 %v7285
        %v7523 = vunpack.c.l.b16 %v7286
        %v7524 = vunpack.c.h.b16 %v7286
        %v7525 = vunpack.c.l.b16 %v7287
        %v7526 = vunpack.c.l.b16 %v7288
        %v7527 = vunpack.c.h.b16 %v7288
        %v7528 = vunpack.c.l.b16 %v7289
        %v7529 = vunpack.c.h.b16 %v7289
        %v7530 = vunpack.c.l.b16 %v7290
        %v7531 = vunpack.c.l.b16 %v7291
        %v7532 = vunpack.c.h.b16 %v7291
        %v7533 = vunpack.c.l.b16 %v7292
        %v7534 = vunpack.c.h.b16 %v7292
        %v7535 = vunpack.c.l.b16 %v7293
        %v7536 = vunpack.c.l.b16 %v7294
        %v7537 = vunpack.c.h.b16 %v7294
        %v7538 = vunpack.c.l.b16 %v7295
        %v7539 = vunpack.c.h.b16 %v7295
        %v7540 = vunpack.c.l.b16 %v7296
        %v7541 = vunpack.c.l.b16 %v7297
        %v7542 = vunpack.c.h.b16 %v7297
        %v7543 = vunpack.c.l.b16 %v7298
        %v7544 = vunpack.c.h.b16 %v7298
        %v7545 = vunpack.c.l.b16 %v7299
        %v7546 = vunpack.c.l.b16 %v7300
        %v7547 = vunpack.c.h.b16 %v7300
        %v7548 = vunpack.c.l.b16 %v7301
        %v7549 = vunpack.c.h.b16 %v7301
        %v7550 = vunpack.c.l.b16 %v7302
        %v7551 = vunpack.c.l.b16 %v7303
        %v7552 = vunpack.c.h.b16 %v7303
        %v7553 = vunpack.c.l.b16 %v7304
        %v7554 = vunpack.c.h.b16 %v7304
        %v7555 = vunpack.c.l.b16 %v7305
        %v7556 = vunpack.c.l.b16 %v7306
        %v7557 = vunpack.c.h.b16 %v7306
        %v7558 = vunpack.c.l.b16 %v7307
        %v7559 = vunpack.c.h.b16 %v7307
        %v7560 = vunpack.c.l.b16 %v7308
        %v7561 = vunpack.c.l.b16 %v7309
        %v7562 = vunpack.c.h.b16 %v7309
        %v7563 = vunpack.c.l.b16 %v7310
        %v7564 = vunpack.c.h.b16 %v7310
        %v7565 = vunpack.c.l.b16 %v7311
        %v7566 = vunpack.c.l.b16 %v7312
        %v7567 = vunpack.c.h.b16 %v7312
        %v7568 = vunpack.c.l.b16 %v7313
        %v7569 = vunpack.c.h.b16 %v7313
        %v7570 = vunpack.c.l.b16 %v7314
        %v7571 = vpack.c.b16 %v7416, %v7411
        %v7572 = vpack.c.b16 %v7417, %v7412
        %v7573 = vpack.c.b16 %v7418, %v7413
        %v7574 = vpack.c.b16 %v7419, %v7414
        %v7575 = vpack.c.b16 %v7420, %v7415
        %v7576 = vpack.c.b16 %v7426, %v7421
        %v7577 = vpack.c.b16 %v7427, %v7422
        %v7578 = vpack.c.b16 %v7428, %v7423
        %v7579 = vpack.c.b16 %v7429, %v7424
        %v7580 = vpack.c.b16 %v7430, %v7425
        %v7581 = vpack.c.b16 %v7436, %v7431
        %v7582 = vpack.c.b16 %v7437, %v7432
        %v7583 = vpack.c.b16 %v7438, %v7433
        %v7584 = vpack.c.b16 %v7439, %v7434
        %v7585 = vpack.c.b16 %v7440, %v7435
        %v7586 = vpack.c.b16 %v7446, %v7441
        %v7587 = vpack.c.b16 %v7447, %v7442
        %v7588 = vpack.c.b16 %v7448, %v7443
        %v7589 = vpack.c.b16 %v7449, %v7444
        %v7590 = vpack.c.b16 %v7450, %v7445
        %v7591 = vpack.c.b16 %v7456, %v7451
        %v7592 = vpack.c.b16 %v7457, %v7452
        %v7593 = vpack.c.b16 %v7458, %v7453
        %v7594 = vpack.c.b16 %v7459, %v7454
        %v7595 = vpack.c.b16 %v7460, %v7455
        %v7596 = vpack.c.b16 %v7466, %v7461
        %v7597 = vpack.c.b16 %v7467, %v7462
        %v7598 = vpack.c.b16 %v7468, %v7463
        %v7599 = vpack.c.b16 %v7469, %v7464
        %v7600 = vpack.c.b16 %v7470, %v7465
        %v7601 = vpack.c.b16 %v7476, %v7471
        %v7602 = vpack.c.b16 %v7477, %v7472
        %v7603 = vpack.c.b16 %v7478, %v7473
        %v7604 = vpack.c.b16 %v7479, %v7474
        %v7605 = vpack.c.b16 %v7480, %v7475
        %v7606 = vpack.c.b16 %v7486, %v7481
        %v7607 = vpack.c.b16 %v7487, %v7482
        %v7608 = vpack.c.b16 %v7488, %v7483
        %v7609 = vpack.c.b16 %v7489, %v7484
        %v7610 = vpack.c.b16 %v7490, %v7485
        %v7611 = vpack.c.b16 %v7496, %v7491
        %v7612 = vpack.c.b16 %v7497, %v7492
        %v7613 = vpack.c.b16 %v7498, %v7493
        %v7614 = vpack.c.b16 %v7499, %v7494
        %v7615 = vpack.c.b16 %v7500, %v7495
        %v7616 = vpack.c.b16 %v7506, %v7501
        %v7617 = vpack.c.b16 %v7507, %v7502
        %v7618 = vpack.c.b16 %v7508, %v7503
        %v7619 = vpack.c.b16 %v7509, %v7504
        %v7620 = vpack.c.b16 %v7510, %v7505
        %v7621 = vpack.c.b16 %v7516, %v7511
        %v7622 = vpack.c.b16 %v7517, %v7512
        %v7623 = vpack.c.b16 %v7518, %v7513
        %v7624 = vpack.c.b16 %v7519, %v7514
        %v7625 = vpack.c.b16 %v7520, %v7515
        %v7626 = vpack.c.b16 %v7526, %v7521
        %v7627 = vpack.c.b16 %v7527, %v7522
        %v7628 = vpack.c.b16 %v7528, %v7523
        %v7629 = vpack.c.b16 %v7529, %v7524
        %v7630 = vpack.c.b16 %v7530, %v7525
        %v7631 = vpack.c.b16 %v7536, %v7531
        %v7632 = vpack.c.b16 %v7537, %v7532
        %v7633 = vpack.c.b16 %v7538, %v7533
        %v7634 = vpack.c.b16 %v7539, %v7534
        %v7635 = vpack.c.b16 %v7540, %v7535
        %v7636 = vpack.c.b16 %v7546, %v7541
        %v7637 = vpack.c.b16 %v7547, %v7542
        %v7638 = vpack.c.b16 %v7548, %v7543
        %v7639 = vpack.c.b16 %v7549, %v7544
        %v7640 = vpack.c.b16 %v7550, %v7545
        %v7641 = vpack.c.b16 %v7556, %v7551
        %v7642 = vpack.c.b16 %v7557, %v7552
        %v7643 = vpack.c.b16 %v7558, %v7553
        %v7644 = vpack.c.b16 %v7559, %v7554
        %v7645 = vpack.c.b16 %v7560, %v7555
        %v7646 = vpack.c.b16 %v7566, %v7561
        %v7647 = vpack.c.b16 %v7567, %v7562
        %v7648 = vpack.c.b16 %v7568, %v7563
        %v7649 = vpack.c.b16 %v7569, %v7564
        %v7650 = vpack.c.b16 %v7570, %v7565
        %7731 = vmatprep.subr.bf16.mxu0 %v7572
        %7732 = vmatpush1.bf16.msra.mxu0 %v7571
        %7733 = vmatprep.subr.bf16.mxu0 %v7577
        %7734 = vmatpush1.bf16.msra.mxu0 %v7576
        %7735 = vmatprep.subr.bf16.mxu0 %v7582
        %7736 = vmatpush1.bf16.msra.mxu0 %v7581
        %7737 = vmatprep.subr.bf16.mxu0 %v7587
        %7738 = vmatpush1.bf16.msra.mxu0 %v7586
        %7739 = vmatprep.subr.bf16.mxu0 %v7592
        %7740 = vmatpush1.bf16.msra.mxu0 %v7591
        %7741 = vmatprep.subr.bf16.mxu0 %v7597
        %7742 = vmatpush1.bf16.msra.mxu0 %v7596
        %7743 = vmatprep.subr.bf16.mxu0 %v7602
        %7744 = vmatpush1.bf16.msra.mxu0 %v7601
        %7745 = vmatprep.subr.bf16.mxu0 %v7607
        %7746 = vmatpush1.bf16.msra.mxu0 %v7606
        %7747 = vmatprep.subr.bf16.mxu0 %v7612
        %7748 = vmatpush1.bf16.msra.mxu0 %v7611
        %7749 = vmatprep.subr.bf16.mxu0 %v7617
        %7750 = vmatpush1.bf16.msra.mxu0 %v7616
        %7751 = vmatprep.subr.bf16.mxu0 %v7622
        %7752 = vmatpush1.bf16.msra.mxu0 %v7621
        %7753 = vmatprep.subr.bf16.mxu0 %v7627
        %7754 = vmatpush1.bf16.msra.mxu0 %v7626
        %7755 = vmatprep.subr.bf16.mxu0 %v7632
        %7756 = vmatpush1.bf16.msra.mxu0 %v7631
        %7757 = vmatprep.subr.bf16.mxu0 %v7637
        %7758 = vmatpush1.bf16.msra.mxu0 %v7636
        %7759 = vmatprep.subr.bf16.mxu0 %v7642
        %7760 = vmatpush1.bf16.msra.mxu0 %v7641
        %7761 = vmatprep.subr.bf16.mxu0 %v7647
        %7762 = vmatpush1.bf16.msra.mxu0 %v7646
        %7763 = vmatprep.mubr.bf16.mxu0 %v7218
        %7764 = vmatmul.mubr.bf16.gmra.mrb[0].mxu0 %v7217
        %v7765 = vpop.f32.mrb[0].mxu0
        %v7766 = vadd.f32 0.0, %v7765
        %v7767 = vpop.f32.mrb[0].mxu0
        %v7768 = vadd.f32 0.0, %v7767
        %v7769 = vpop.f32.mrb[0].mxu0
        %v7770 = vadd.f32 0.0, %v7769
        %v7771 = vpop.f32.mrb[0].mxu0
        %v7772 = vadd.f32 0.0, %v7771
        %7773 = vdwg.mxu0
        %7774 = vmatprep.subr.bf16.mxu0 %v7574
        %7775 = vmatpush1.bf16.msra.mxu0 %v7573
        %7776 = vmatprep.subr.bf16.mxu0 %v7579
        %7777 = vmatpush1.bf16.msra.mxu0 %v7578
        %7778 = vmatprep.subr.bf16.mxu0 %v7584
        %7779 = vmatpush1.bf16.msra.mxu0 %v7583
        %7780 = vmatprep.subr.bf16.mxu0 %v7589
        %7781 = vmatpush1.bf16.msra.mxu0 %v7588
        %7782 = vmatprep.subr.bf16.mxu0 %v7594
        %7783 = vmatpush1.bf16.msra.mxu0 %v7593
        %7784 = vmatprep.subr.bf16.mxu0 %v7599
        %7785 = vmatpush1.bf16.msra.mxu0 %v7598
        %7786 = vmatprep.subr.bf16.mxu0 %v7604
        %7787 = vmatpush1.bf16.msra.mxu0 %v7603
        %7788 = vmatprep.subr.bf16.mxu0 %v7609
        %7789 = vmatpush1.bf16.msra.mxu0 %v7608
        %7790 = vmatprep.subr.bf16.mxu0 %v7614
        %7791 = vmatpush1.bf16.msra.mxu0 %v7613
        %7792 = vmatprep.subr.bf16.mxu0 %v7619
        %7793 = vmatpush1.bf16.msra.mxu0 %v7618
        %7794 = vmatprep.subr.bf16.mxu0 %v7624
        %7795 = vmatpush1.bf16.msra.mxu0 %v7623
        %7796 = vmatprep.subr.bf16.mxu0 %v7629
        %7797 = vmatpush1.bf16.msra.mxu0 %v7628
        %7798 = vmatprep.subr.bf16.mxu0 %v7634
        %7799 = vmatpush1.bf16.msra.mxu0 %v7633
        %7800 = vmatprep.subr.bf16.mxu0 %v7639
        %7801 = vmatpush1.bf16.msra.mxu0 %v7638
        %7802 = vmatprep.subr.bf16.mxu0 %v7644
        %7803 = vmatpush1.bf16.msra.mxu0 %v7643
        %7804 = vmatprep.subr.bf16.mxu0 %v7649
        %7805 = vmatpush1.bf16.msra.mxu0 %v7648
        %7806 = vmatprep.mubr.bf16.mxu0 %v7218
        %7807 = vmatmul.mubr.bf16.gmra.mrb[0].mxu0 %v7217
        %v7808 = vpop.f32.mrb[0].mxu0
        %v7809 = vadd.f32 0.0, %v7808
        %v7810 = vpop.f32.mrb[0].mxu0
        %v7811 = vadd.f32 0.0, %v7810
        %v7812 = vpop.f32.mrb[0].mxu0
        %v7813 = vadd.f32 0.0, %v7812
        %v7814 = vpop.f32.mrb[0].mxu0
        %v7815 = vadd.f32 0.0, %v7814
        %7816 = vdwg.mxu0
        %7817 = vmatprep.subr.bf16.mxu0 0
        %7818 = vmatpush1.bf16.msra.mxu0 %v7575
        %7819 = vmatprep.subr.bf16.mxu0 0
        %7820 = vmatpush1.bf16.msra.mxu0 %v7580
        %7821 = vmatprep.subr.bf16.mxu0 0
        %7822 = vmatpush1.bf16.msra.mxu0 %v7585
        %7823 = vmatprep.subr.bf16.mxu0 0
        %7824 = vmatpush1.bf16.msra.mxu0 %v7590
        %7825 = vmatprep.subr.bf16.mxu0 0
        %7826 = vmatpush1.bf16.msra.mxu0 %v7595
        %7827 = vmatprep.subr.bf16.mxu0 0
        %7828 = vmatpush1.bf16.msra.mxu0 %v7600
        %7829 = vmatprep.subr.bf16.mxu0 0
        %7830 = vmatpush1.bf16.msra.mxu0 %v7605
        %7831 = vmatprep.subr.bf16.mxu0 0
        %7832 = vmatpush1.bf16.msra.mxu0 %v7610
        %7833 = vmatprep.subr.bf16.mxu0 0
        %7834 = vmatpush1.bf16.msra.mxu0 %v7615
        %7835 = vmatprep.subr.bf16.mxu0 0
        %7836 = vmatpush1.bf16.msra.mxu0 %v7620
        %7837 = vmatprep.subr.bf16.mxu0 0
        %7838 = vmatpush1.bf16.msra.mxu0 %v7625
        %7839 = vmatprep.subr.bf16.mxu0 0
        %7840 = vmatpush1.bf16.msra.mxu0 %v7630
        %7841 = vmatprep.subr.bf16.mxu0 0
        %7842 = vmatpush1.bf16.msra.mxu0 %v7635
        %7843 = vmatprep.subr.bf16.mxu0 0
        %7844 = vmatpush1.bf16.msra.mxu0 %v7640
        %7845 = vmatprep.subr.bf16.mxu0 0
        %7846 = vmatpush1.bf16.msra.mxu0 %v7645
        %7847 = vmatprep.subr.bf16.mxu0 0
        %7848 = vmatpush1.bf16.msra.mxu0 %v7650
        %7849 = vmatprep.mubr.bf16.mxu0 %v7218
        %7850 = vmatmul.mubr.bf16.gmra.mrb[0].mxu0 %v7217
        %v7851 = vpop.f32.mrb[0].mxu0
        %v7852 = vadd.f32 0.0, %v7851
        %v7853 = vpop.f32.mrb[0].mxu0
        %v7854 = vpop.f32.mrb[0].mxu0
        %v7855 = vadd.f32 0.0, %v7854
        %v7856 = vpop.f32.mrb[0].mxu0
        %7857 = vdwg.mxu0
        %v7858 = vadd.f32 %v7766, 0.0
        %v7859 = vadd.f32 %v7770, 0.0
        %v7862 = vrot.slane %v7768, 1
        %v7863 = vrot.slane %v7772, 1
        %v7864 = vsel %vm3268, %v7862, %v7863
        %v7867 = vadd.f32 %v7858, %v7864
        %v7868 = vadd.f32 %v7859, %v7863
        %v7871 = vrot.slane %v7809, 2
        %v7872 = vrot.slane %v7813, 2
        %v7873 = vsel %vm3784, %v7871, %v7872
        %v7876 = vadd.f32 %v7867, %v7873
        %v7877 = vadd.f32 %v7868, %v7872
        %v7880 = vrot.slane %v7811, 3
        %v7881 = vrot.slane %v7815, 3
        %v7882 = vsel %vm3837, %v7880, %v7881
        %v7885 = vadd.f32 %v7876, %v7882
        %v7886 = vadd.f32 %v7877, %v7881
        %v7889 = vrot.slane %v7852, 4
        %v7890 = vrot.slane %v7855, 4
        %v7891 = vsel %vm1012, %v7889, %v7890
        %v7894 = vadd.f32 %v7885, %v7891
        %v7895 = vadd.f32 %v7886, %v7890
        %v7896 = vld [vmem:[#allocation33] sm:$0x1]
        %v7898 = vlaneseq
        %v7899 = vshrl.u32 %v7898, 7
        %v7900 = vsub.s32 0, %v7899
        %v7901 = vrot.slane %v7896, %v7900
        %v7903 = vadd.f32 %v7894, %v7901
        %v7904 = vadd.f32 %v7895, %v7901
        %v7905 = vmax.f32 %v7903, 0.0
        %v7906 = vmax.f32 %v7904, 0.0
        %vm7909 = vcmask 1041408
        %v7910 = vrot.slane %v7905, 6
        %v7911 = vrot.slane %v7906, 6
        %v7912 = vsel %vm7909, %v7910, %v7911
        %v7915 = vadd.f32 %v4305, %v7910
        %v7916 = vadd.f32 %v4306, %v7912
        %7917 = vst [vmem:[%s877 - $0x4] sm:$0xf0] %v7915
        %7918 = vst [vmem:[%s877 + $0x4] sm:$0xf] %v7916
        %s7919 = sand.u32 %s471, 1
        %s7920 = scalar_lea.sflag [#allocation6], %s7919
        %s7921 = sand.u32 %s471, 1
        %s7922 = smul.addr %s7921, 8
        %s7923 = scalar_lea.vmem [#allocation34], %s7922
        // Predicated region
        $region173: #{task_shared_forward.1} parent=95 // pred_check
          %p7924 = pneg %p481
        $region174: #{task_shared_forward.1} parent=95 // pred_check_branch
          %7926 = sbr.rel (%p7924) target = $region176
        $region175: #{task_shared_forward.1} parent=95 // pred_region
          %s7928 = ssub.s32 128, 128
          %7929 = vsyncadd %s7920, %s7928
          %s7930 = smul.addr %s49, 2
          %s7931 = sadd.s32 %s50, %s7930
          %s7932 = smul.addr %s7931, 128
          %s7933 = scalar_lea.hbm %s19, %s7932
          %s7935 = sshll.u32 %s7923, 4
          %s7936 = int_to_ptr.vmem [resolvable:$true] %s7935
          %7938 = dma.vmem_to_hbm [thread:$0]  %s7936, 128, %s7933, %s7920
        $region176: #{task_shared_forward.1} parent=95 // pred_fallthru
          _
      $region96: #{task_shared_forward.1} parent=5 // pred_fallthru
        _
      %p7939 = scmp.le.s32.totalorder 2, %s40
      // Predicated region
      $region177: #{task_shared_forward.1} parent=5 // pred_check
        %p7940 = pneg %p7939
      $region178: #{task_shared_forward.1} parent=5 // pred_check_branch
        %7942 = sbr.rel (%p7940) target = $region180
      $region179: #{task_shared_forward.1} parent=5 // pred_region
        %s7943 = ssub.s32 %s40, 2
        // Predicated region
        $region181: #{task_shared_forward.1} parent=179 // pred_check
          %p7944 = pneg %p487
        $region182: #{task_shared_forward.1} parent=179 // pred_check_branch
          %7946 = sbr.rel (%p7944) target = $region184
        $region183: #{task_shared_forward.1} parent=179 // pred_region
          %s7947 = sand.u32 %s472, 1
          %s7948 = scalar_lea.sflag [#allocation6], %s7947
          %s7949 = sand.u32 %s472, 1
          %s7950 = smul.addr %s7949, 8
          %s7951 = scalar_lea.vmem [#allocation34], %s7950
          %7952 = dma.done %s7948, 128
        $region184: #{task_shared_forward.1} parent=179 // pred_fallthru
          _
      $region180: #{task_shared_forward.1} parent=5 // pred_fallthru
        _
    $region6: #{task_shared_forward.1} parent=1 // loop_footer
      %s44 = sadd.s32 1, %s40
    $region7: #{task_shared_forward.1} parent=1 // loop_footer_branch
      %39 = sbr.rel target = $region3
    $region8: #{task_shared_forward.1} parent=1 // loop_exit
      _
    %7953 = vsyncpa [#allocation5], 1
    %s7954 = scalar_lea.sflag [#allocation5], 1
    %7955 = vsyncpa %s7954, 1
    %7956 = vsyncpa [#allocation8], 1
    %7957 = vsyncpa [#allocation11], 1
    %7958 = vsyncpa [#allocation14], 1
    %7959 = vsyncpa [#allocation17], 1
    %7960 = vsyncpa [#allocation20], 1
    %7961 = vsyncpa [#allocation23], 1
    %7962 = vsyncpa [#allocation26], 1
    %7963 = vsyncpa [#allocation29], 1
    %7964 = vsyncpa [#allocation32], 1
    %7965 = vsyncpa [#allocation6], 1
    %s7966 = scalar_lea.sflag [#allocation6], 1
    %7967 = vsyncpa %s7966, 1

</llo_original>
